<compile_context>
chip_gen: v7x
topology: tpu7x:2x2x1
jax: 0.10.0
libtpu: 0.0.40
codegen_flags: <defaults>
</compile_context>

<pallas_src>
import numpy as np
import jax
import jax.numpy as jnp
from jax import lax
from jax.experimental import pallas as pl
from jax.experimental.pallas import tpu as pltpu


def _round_up(x, m):
    return ((x + m - 1) // m) * m


def _nbytes(shape, dtype):
    return int(np.prod(shape)) * jnp.dtype(dtype).itemsize


# ----------------------------- Pallas kernels ------------------------------

def make_fused_lstm_kernel(num_layers, seq_len, batch_chunk, mm_dtype):
    """Fused multi-layer LSTM over one batch chunk of a time-major sequence.

    Ref layout (positional):
      x_ref:            (T*Bc, E)   mm_dtype  -- time-major, chunk-flattened
      per layer l:      w_ih_t (E_in, 4Hp) mm_dtype, w_hh_t (Hp, 4Hp) mm_dtype,
                        b (1, 4Hp) f32        -- gate order (i, f, o, g)
      out_ref:          (T*Bc, Hp)  f32       -- last layer's hidden sequence
      scratch:          seq_scr (T*Bc, Hp) mm_dtype, gx_scr (T*Bc, 4Hp) f32
    """
    T, Bc = seq_len, batch_chunk

    def kernel(*refs):
        x_ref = refs[0]
        w_refs = refs[1:1 + 3 * num_layers]
        out_ref = refs[1 + 3 * num_layers]
        seq_scr, gx_scr = refs[2 + 3 * num_layers:]
        Hp = out_ref.shape[-1]
        H3 = 3 * Hp

        def run_layer(in_flat, w_ih_ref, w_hh_ref, b_ref, dst_ref):
            # Hoisted input projection: one GEMM + bias for the whole layer.
            gx_scr[...] = (
                jnp.dot(in_flat, w_ih_ref[...],
                        preferred_element_type=jnp.float32)
                + b_ref[...]
            )                                               # (T*Bc, 4Hp) f32

            def step(t, carry):
                h, c = carry                                # f32 vreg carries
                row = pl.multiple_of(t * Bc, Bc)            # sublane-aligned
                # Only the recurrent matmul stays on the serial path.
                gates = gx_scr[pl.ds(row, Bc), :] + jnp.dot(
                    h.astype(mm_dtype), w_hh_ref[...],
                    preferred_element_type=jnp.float32)     # (Bc, 4Hp)
                # Gate order (i, f, o, g): sigmoid on 3Hp lanes, tanh on Hp.
                sig = 0.5 * jnp.tanh(0.5 * gates[:, :H3]) + 0.5
                g = jnp.tanh(gates[:, H3:])
                i = sig[:, :Hp]
                f = sig[:, Hp:2 * Hp]
                o = sig[:, 2 * Hp:H3]
                c = f * c + i * g
                h = o * jnp.tanh(c)
                dst_ref[pl.ds(row, Bc), :] = h.astype(dst_ref.dtype)
                return (h, c)

            zero = jnp.zeros((Bc, Hp), jnp.float32)
            lax.fori_loop(0, T, step, (zero, zero), unroll=True)

        cur = x_ref[...]                                    # (T*Bc, E) mm_dtype
        for l in range(num_layers):
            w_ih_ref, w_hh_ref, b_ref = w_refs[3 * l:3 * l + 3]
            dst = out_ref if l == num_layers - 1 else seq_scr
            run_layer(cur, w_ih_ref, w_hh_ref, b_ref, dst)
            if l < num_layers - 1:
                cur = seq_scr[...]                          # bf16, no reshape

    return kernel


def linear_kernel(x_ref, w_ref, b_ref, o_ref):
    o_ref[...] = (
        jnp.dot(x_ref[...], w_ref[...], preferred_element_type=jnp.float32)
        + b_ref[...]
    )


# ------------------------------ wrappers ------------------------------------

def fused_lstm(x_tbe, lstm_params, hidden_pad, *,
               mm_dtype=jnp.bfloat16, batch_chunks=2):
    """x_tbe: (T, B, E) in mm_dtype. Returns (T, B, Hp) f32 hidden sequence."""
    T, B, E = x_tbe.shape
    Hp = hidden_pad
    L = len(lstm_params)

    nc = batch_chunks if _round_up(B, 8) >= 8 * batch_chunks else 1
    Bc = _round_up(-(-B // nc), 8)          # per-chunk batch, multiple of 8
    Bp = nc * Bc

    x = x_tbe if Bp == B else jnp.pad(x_tbe, ((0, 0), (0, Bp - B), (0, 0)))
    # (T, Bp, E) -> (nc, T*Bc, E): chunk-major, time-major within a chunk.
    x = x.reshape(T, nc, Bc, E).transpose(1, 0, 2, 3).reshape(nc, T * Bc, E)

    flat_w, w_bytes, flops = [], 0, 0
    for lw in lstm_params:
        flat_w += [lw["w_ih_t"], lw["w_hh_t"], lw["b"]]
        e_in = lw["w_ih_t"].shape[0]
        w_bytes += (_nbytes(lw["w_ih_t"].shape, lw["w_ih_t"].dtype)
                    + _nbytes(lw["w_hh_t"].shape, lw["w_hh_t"].dtype)
                    + _nbytes(lw["b"].shape, lw["b"].dtype))
        flops += 2 * T * Bp * e_in * 4 * Hp + 2 * T * Bp * Hp * 4 * Hp

    in_specs = [pl.BlockSpec((None, T * Bc, E), lambda i: (i, 0, 0))]
    for lw in lstm_params:
        in_specs += [
            pl.BlockSpec(lw["w_ih_t"].shape, lambda i: (0, 0)),
            pl.BlockSpec(lw["w_hh_t"].shape, lambda i: (0, 0)),
            pl.BlockSpec(lw["b"].shape, lambda i: (0, 0)),
        ]
    out_spec = pl.BlockSpec((None, T * Bc, Hp), lambda i: (i, 0, 0))

    x_blk = _nbytes((T * Bc, E), mm_dtype)
    out_blk = _nbytes((T * Bc, Hp), jnp.float32)
    scr = _nbytes((T * Bc, Hp), mm_dtype) + _nbytes((T * Bc, 4 * Hp), jnp.float32)
    vmem_limit = min(2 * (x_blk + out_blk + w_bytes) + scr + (16 << 20),
                     120 << 20)

    out = pl.pallas_call(
        make_fused_lstm_kernel(L, T, Bc, mm_dtype),
        out_shape=jax.ShapeDtypeStruct((nc, T * Bc, Hp), jnp.float32),
        grid_spec=pltpu.PrefetchScalarGridSpec(
            num_scalar_prefetch=0,
            grid=(nc,),
            in_specs=in_specs,
            out_specs=out_spec,
            scratch_shapes=[
                pltpu.VMEM((T * Bc, Hp), mm_dtype),          # inter-layer seq
                pltpu.VMEM((T * Bc, 4 * Hp), jnp.float32),   # hoisted input proj
            ]),
        compiler_params=pltpu.CompilerParams(
            dimension_semantics=("parallel",),
            vmem_limit_bytes=int(vmem_limit)),
        cost_estimate=pl.CostEstimate(
            flops=int(flops),
            transcendentals=int(L * T * Bp * 5 * Hp),
            bytes_accessed=int(nc * (x_blk + out_blk) + w_bytes)),
    )(x, *flat_w)

    h = out.reshape(nc, T, Bc, Hp).transpose(1, 0, 2, 3).reshape(T, Bp, Hp)
    return h[:, :B, :]


def linear(x, w_t, b, *, mm_dtype=jnp.bfloat16, row_tile=512, col_tile=1024):
    """x: (N, H) f32, w_t: (H, V) mm_dtype, b: (V,) f32 -> (N, V) f32."""
    N, H = x.shape
    V = w_t.shape[1]

    rt = min(row_tile, _round_up(N, 8))
    ct = min(col_tile, _round_up(V, 128))
    n_pad = _round_up(N, rt)
    v_pad = _round_up(V, ct)

    x_p = jnp.pad(x, ((0, n_pad - N), (0, 0))).astype(mm_dtype)
    w_p = w_t if v_pad == V else jnp.pad(w_t, ((0, 0), (0, v_pad - V)))
    b_p = (b if v_pad == V else jnp.pad(b, (0, v_pad - V))).reshape(1, v_pad)

    # Vocab tiles OUTER, row tiles INNER: the large (H, ct) weight tile is
    # fetched once per vocab tile and reused across all row tiles.
    grid = (v_pad // ct, n_pad // rt)
    vmem_limit = min(
        2 * (_nbytes((rt, H), mm_dtype) + _nbytes((H, ct), mm_dtype)
             + _nbytes((1, ct), jnp.float32) + _nbytes((rt, ct), jnp.float32))
        + (16 << 20), 120 << 20)

    out = pl.pallas_call(
        linear_kernel,
        out_shape=jax.ShapeDtypeStruct((n_pad, v_pad), jnp.float32),
        grid_spec=pltpu.PrefetchScalarGridSpec(
            num_scalar_prefetch=0,
            grid=grid,
            in_specs=[
                pl.BlockSpec((rt, H), lambda j, i: (i, 0)),
                pl.BlockSpec((H, ct), lambda j, i: (0, j)),
                pl.BlockSpec((1, ct), lambda j, i: (0, j)),
            ],
            out_specs=pl.BlockSpec((rt, ct), lambda j, i: (i, j)),
        ),
        compiler_params=pltpu.CompilerParams(
            dimension_semantics=("parallel", "parallel"),
            vmem_limit_bytes=int(vmem_limit)),
        cost_estimate=pl.CostEstimate(
            flops=2 * n_pad * H * v_pad,
            transcendentals=0,
            bytes_accessed=int(_nbytes((n_pad, H), mm_dtype) * grid[0]
                               + _nbytes((H, v_pad), mm_dtype)
                               + _nbytes((n_pad, v_pad), jnp.float32))),
    )(x_p, w_p, b_p)
    return out[:N, :V]


def packed_indices(lengths):
    """Time-major packing order of torch pack_padded_sequence (sorted desc)."""
    lengths = np.asarray(lengths)
    assert np.all(lengths[:-1] >= lengths[1:]), "lengths must be sorted desc"
    idx_t, idx_b = [], []
    for t in range(int(lengths.max())):
        for b in range(len(lengths)):
            if lengths[b] > t:
                idx_t.append(t)
                idx_b.append(b)
    return np.array(idx_t, np.int32), np.array(idx_b, np.int32)


def decoder_rnn_forward(params, features, captions, lengths):
    """features: (B, E) f32, captions: (B, T) i32, lengths: host int array.

    Returns (sum(lengths), vocab_size) -- identical to the torch forward,
    which applies the Linear to the packed LSTM hidden states.
    """
    emb = jnp.take(params["embed"], captions, axis=0)            # (B, T, E)
    x = jnp.concatenate([features[:, None, :], emb], axis=1)     # (B, T+1, E)
    x = jnp.transpose(x, (1, 0, 2)).astype(params["mm_dtype"])   # (T+1, B, E)
    h = fused_lstm(x, params["lstm"], params["hidden_pad"],
                   mm_dtype=params["mm_dtype"])                  # (T+1, B, Hp)
    idx_t, idx_b = packed_indices(lengths)
    packed_h = h[idx_t, idx_b]                                   # (N, Hp)
    return linear(packed_h, params["linear_w_t"], params["linear_b"],
                  mm_dtype=params["mm_dtype"])


# --------------------------- params / reference -----------------------------

def init_raw_params(key, embed_size, hidden_size, vocab_size, num_layers):
    """f32 parameters in PyTorch layout, torch gate order (i, f, g, o)."""
    keys = jax.random.split(key, 3 + 4 * num_layers)
    k = 1.0 / np.sqrt(hidden_size)
    raw = {
        "embed": jax.random.normal(keys[0], (vocab_size, embed_size),
                                   jnp.float32),
        "linear_w": jax.random.uniform(keys[1], (vocab_size, hidden_size),
                                       jnp.float32, -k, k),
        "linear_b": jax.random.uniform(keys[2], (vocab_size,),
                                       jnp.float32, -k, k),
        "lstm": [],
    }
    for l in range(num_layers):
        in_size = embed_size if l == 0 else hidden_size
        kk = keys[3 + 4 * l: 3 + 4 * (l + 1)]
        raw["lstm"].append({
            "w_ih": jax.random.uniform(kk[0], (4 * hidden_size, in_size),
                                       jnp.float32, -k, k),
            "w_hh": jax.random.uniform(kk[1], (4 * hidden_size, hidden_size),
                                       jnp.float32, -k, k),
            "b_ih": jax.random.uniform(kk[2], (4 * hidden_size,),
                                       jnp.float32, -k, k),
            "b_hh": jax.random.uniform(kk[3], (4 * hidden_size,),
                                       jnp.float32, -k, k),
        })
    return raw


def _reorder_pad_gate_axis(w, h, h_pad, axis):
    """Torch gate order (i,f,g,o) -> (i,f,o,g); each gate block padded to h_pad."""
    blocks = [lax.slice_in_dim(w, k * h, (k + 1) * h, axis=axis) for k in range(4)]
    blocks = [blocks[0], blocks[1], blocks[3], blocks[2]]      # i, f, o, g
    pad = [(0, 0)] * w.ndim
    pad[axis] = (0, h_pad - h)
    return jnp.concatenate([jnp.pad(bk, pad) for bk in blocks], axis=axis)


def prepare_params(raw, matmul_dtype=jnp.bfloat16):
    """One-time weight prep: gate reorder (i,f,o,g), H padded to a lane tile,
    transposition to x@W layout, bias fusion, bf16 cast for MXU operands."""
    H = raw["lstm"][0]["w_hh"].shape[1]
    Hp = _round_up(H, 128)
    params = {
        "embed": raw["embed"],
        "hidden_size": H,
        "hidden_pad": Hp,
        "mm_dtype": matmul_dtype,
        "linear_w_t": jnp.pad(raw["linear_w"].T,
                              ((0, Hp - H), (0, 0))).astype(matmul_dtype),
        "linear_b": raw["linear_b"],
        "lstm": [],
    }
    for l, lw in enumerate(raw["lstm"]):
        w_ih = _reorder_pad_gate_axis(lw["w_ih"], H, Hp, axis=0)    # (4Hp, E_in)
        w_hh = _reorder_pad_gate_axis(lw["w_hh"], H, Hp, axis=0)    # (4Hp, H)
        w_hh = jnp.pad(w_hh, ((0, 0), (0, Hp - H)))                 # (4Hp, Hp)
        if l > 0:
            w_ih = jnp.pad(w_ih, ((0, 0), (0, Hp - H)))             # (4Hp, Hp)
        b = _reorder_pad_gate_axis(lw["b_ih"] + lw["b_hh"], H, Hp, axis=0)
        params["lstm"].append({
            "w_ih_t": w_ih.T.astype(matmul_dtype),                  # (E_in_p, 4Hp)
            "w_hh_t": w_hh.T.astype(matmul_dtype),                  # (Hp, 4Hp)
            "b": b.reshape(1, 4 * Hp),                              # f32
        })
    return params


def ref_lstm_layer(x_tbe, w_ih, w_hh, b_ih, b_hh):
    """f32, torch gate order (i, f, g, o)."""
    B = x_tbe.shape[1]
    H = w_hh.shape[1]
    w_ih_t, w_hh_t, b = w_ih.T, w_hh.T, b_ih + b_hh

    def step(carry, x_t):
        h, c = carry
        gates = x_t @ w_ih_t + h @ w_hh_t + b
        i, f, g, o = jnp.split(gates, 4, axis=1)
        c = jax.nn.sigmoid(f) * c + jax.nn.sigmoid(i) * jnp.tanh(g)
        h = jax.nn.sigmoid(o) * jnp.tanh(c)
        return (h, c), h

    init = (jnp.zeros((B, H), jnp.float32), jnp.zeros((B, H), jnp.float32))
    _, ys = lax.scan(step, init, x_tbe)
    return ys


def ref_forward(raw, features, captions, lengths):
    """Torch-faithful f32 reference (no gate reorder, no padding, no bf16)."""
    emb = jnp.take(raw["embed"], captions, axis=0)
    x = jnp.concatenate([features[:, None, :], emb], axis=1)
    h = jnp.transpose(x, (1, 0, 2))
    for lw in raw["lstm"]:
        h = ref_lstm_layer(h, lw["w_ih"], lw["w_hh"], lw["b_ih"], lw["b_hh"])
    idx_t, idx_b = packed_indices(lengths)
    packed_h = h[idx_t, idx_b]
    return packed_h @ raw["linear_w"].T + raw["linear_b"]


# --------------------------------- main --------------------------------------

if __name__ == "__main__":
    vocab_size, embed_size, hidden_size, num_layers = 320, 48, 96, 2
    B, T = 12, 8                      # captions length T; LSTM seq len = T + 1

    key = jax.random.PRNGKey(0)
    kp, kf, kc = jax.random.split(key, 3)
    raw = init_raw_params(kp, embed_size, hidden_size, vocab_size, num_layers)
    params = prepare_params(raw, matmul_dtype=jnp.bfloat16)

    features = jax.random.normal(kf, (B, embed_size), jnp.float32)
    captions = jax.random.randint(kc, (B, T), 0, vocab_size, jnp.int32)
    lengths = np.array([9, 9, 8, 7, 7, 6, 5, 4, 3, 3, 2, 1], np.int32)

    out = decoder_rnn_forward(params, features, captions, lengths)
    out = jax.block_until_ready(out)

    assert out.shape == (int(lengths.sum()), vocab_size), out.shape
    ref = ref_forward(raw, features, captions, lengths)
    # bf16 MXU operands (perf review) -> looser tolerance than the f32 version.
    np.testing.assert_allclose(np.asarray(out), np.asarray(ref),
                               rtol=5e-2, atol=5e-2)
    # TODO(synk): `sample` (greedy decode loop) is not part of forward(); not implemented.
    print("KERNEL_OK")
</pallas_src>

<mosaic_0001>
module attributes {stable_mosaic.version = 11 : i64} {
  func.func @kernel(%arg0: i32, %arg1: memref<1x72x48xbf16, #tpu.memory_space<vmem>>, %arg2: memref<48x512xbf16, #tpu.memory_space<vmem>>, %arg3: memref<128x512xbf16, #tpu.memory_space<vmem>>, %arg4: memref<1x512xf32, #tpu.memory_space<vmem>>, %arg5: memref<128x512xbf16, #tpu.memory_space<vmem>>, %arg6: memref<128x512xbf16, #tpu.memory_space<vmem>>, %arg7: memref<1x512xf32, #tpu.memory_space<vmem>>, %arg8: memref<1x72x128xf32, #tpu.memory_space<vmem>>, %arg9: memref<72x128xbf16, #tpu.memory_space<vmem>>, %arg10: memref<72x512xf32, #tpu.memory_space<vmem>>) attributes {dimension_semantics = [#tpu.dimension_semantics<parallel>], iteration_bounds = array<i64: 2>, scalar_prefetch = 0 : i64, scratch_operands = 2 : i64, tpu.core_type = #tpu.core_type<tc>, window_params = [{transform_indices = @transform_0, window_bounds = array<i64: 1, 72, 48>}, {pipeline_mode = #tpu.pipeline_mode<synchronous>, transform_indices = @transform_1, window_bounds = array<i64: 48, 512>}, {pipeline_mode = #tpu.pipeline_mode<synchronous>, transform_indices = @transform_2, window_bounds = array<i64: 128, 512>}, {pipeline_mode = #tpu.pipeline_mode<synchronous>, transform_indices = @transform_3, window_bounds = array<i64: 1, 512>}, {pipeline_mode = #tpu.pipeline_mode<synchronous>, transform_indices = @transform_4, window_bounds = array<i64: 128, 512>}, {pipeline_mode = #tpu.pipeline_mode<synchronous>, transform_indices = @transform_5, window_bounds = array<i64: 128, 512>}, {pipeline_mode = #tpu.pipeline_mode<synchronous>, transform_indices = @transform_6, window_bounds = array<i64: 1, 512>}, {transform_indices = @transform_7, window_bounds = array<i64: 1, 72, 128>}]} {
    %c0 = arith.constant 0 : index
    %c0_0 = arith.constant 0 : index
    %c0_1 = arith.constant 0 : index
    %0 = vector.load %arg1[%c0, %c0_0, %c0_1] : memref<1x72x48xbf16, #tpu.memory_space<vmem>>, vector<1x72x48xbf16>
    %1 = vector.shape_cast %0 : vector<1x72x48xbf16> to vector<72x48xbf16>
    %c0_2 = arith.constant 0 : index
    %c0_3 = arith.constant 0 : index
    %2 = vector.load %arg2[%c0_2, %c0_3] : memref<48x512xbf16, #tpu.memory_space<vmem>>, vector<48x512xbf16>
    %cst = arith.constant dense<0.000000e+00> : vector<72x512xf32>
    %3 = tpu.matmul %1, %2, %cst {dimension_numbers = #tpu.dot_dimension_numbers<[1], [0], [0], [1], [0, 0, 1, 1], [], []>} : vector<72x48xbf16>, vector<48x512xbf16>, vector<72x512xf32> -> vector<72x512xf32>
    %c0_4 = arith.constant 0 : index
    %c0_5 = arith.constant 0 : index
    %4 = vector.load %arg4[%c0_4, %c0_5] : memref<1x512xf32, #tpu.memory_space<vmem>>, vector<1x512xf32>
    %5 = vector.broadcast %4 : vector<1x512xf32> to vector<72x512xf32>
    %6 = arith.addf %3, %5 : vector<72x512xf32>
    %c0_6 = arith.constant 0 : index
    %c0_7 = arith.constant 0 : index
    %7 = vector.load %arg10[%c0_6, %c0_7] : memref<72x512xf32, #tpu.memory_space<vmem>>, vector<72x512xf32>
    tpu.vector_store %arg10[%c0_6, %c0_7], %6 {strides = array<i32>} : memref<72x512xf32, #tpu.memory_space<vmem>>, vector<72x512xf32>,
    %cst_8 = arith.constant 0.000000e+00 : f32
    %8 = vector.broadcast %cst_8 : f32 to vector<8x128xf32>
    %c0_i32 = arith.constant 0 : i32
    %c8_i32 = arith.constant 8 : i32
    %9 = arith.muli %c0_i32, %c8_i32 : i32
    %10 = tpu.assume_multiple %9, 8 : i32
    %11 = arith.index_cast %10 : i32 to index
    %c0_9 = arith.constant 0 : index
    %12 = vector.load %arg10[%11, %c0_9] : memref<72x512xf32, #tpu.memory_space<vmem>>, vector<8x512xf32>
    %13 = arith.truncf %8 : vector<8x128xf32> to vector<8x128xbf16>
    %c0_10 = arith.constant 0 : index
    %c0_11 = arith.constant 0 : index
    %14 = vector.load %arg3[%c0_10, %c0_11] : memref<128x512xbf16, #tpu.memory_space<vmem>>, vector<128x512xbf16>
    %cst_12 = arith.constant dense<0.000000e+00> : vector<8x512xf32>
    %15 = tpu.matmul %13, %14, %cst_12 {dimension_numbers = #tpu.dot_dimension_numbers<[1], [0], [0], [1], [0, 0, 1, 1], [], []>} : vector<8x128xbf16>, vector<128x512xbf16>, vector<8x512xf32> -> vector<8x512xf32>
    %16 = arith.addf %12, %15 : vector<8x512xf32>
    %17 = vector.extract_strided_slice %16 {offsets = [0, 0], sizes = [8, 384], strides = [1, 1]} : vector<8x512xf32> to vector<8x384xf32>
    %cst_13 = arith.constant 5.000000e-01 : f32
    %18 = vector.broadcast %cst_13 : f32 to vector<8x384xf32>
    %19 = arith.mulf %18, %17 : vector<8x384xf32>
    %20 = math.tanh %19 : vector<8x384xf32>
    %cst_14 = arith.constant 5.000000e-01 : f32
    %21 = vector.broadcast %cst_14 : f32 to vector<8x384xf32>
    %22 = arith.mulf %21, %20 : vector<8x384xf32>
    %cst_15 = arith.constant 5.000000e-01 : f32
    %23 = vector.broadcast %cst_15 : f32 to vector<8x384xf32>
    %24 = arith.addf %22, %23 : vector<8x384xf32>
    %25 = vector.extract_strided_slice %16 {offsets = [0, 384], sizes = [8, 128], strides = [1, 1]} : vector<8x512xf32> to vector<8x128xf32>
    %26 = math.tanh %25 : vector<8x128xf32>
    %27 = vector.extract_strided_slice %24 {offsets = [0, 0], sizes = [8, 128], strides = [1, 1]} : vector<8x384xf32> to vector<8x128xf32>
    %28 = vector.extract_strided_slice %24 {offsets = [0, 128], sizes = [8, 128], strides = [1, 1]} : vector<8x384xf32> to vector<8x128xf32>
    %29 = vector.extract_strided_slice %24 {offsets = [0, 256], sizes = [8, 128], strides = [1, 1]} : vector<8x384xf32> to vector<8x128xf32>
    %30 = arith.mulf %28, %8 : vector<8x128xf32>
    %31 = arith.mulf %27, %26 : vector<8x128xf32>
    %32 = arith.addf %30, %31 : vector<8x128xf32>
    %33 = math.tanh %32 : vector<8x128xf32>
    %34 = arith.mulf %29, %33 : vector<8x128xf32>
    %35 = arith.truncf %34 : vector<8x128xf32> to vector<8x128xbf16>
    %36 = arith.index_cast %10 : i32 to index
    %c0_16 = arith.constant 0 : index
    %37 = vector.load %arg9[%36, %c0_16] : memref<72x128xbf16, #tpu.memory_space<vmem>>, vector<8x128xbf16>
    tpu.vector_store %arg9[%36, %c0_16], %35 {strides = array<i32>} : memref<72x128xbf16, #tpu.memory_space<vmem>>, vector<8x128xbf16>,
    %c1_i32 = arith.constant 1 : i32
    %c8_i32_17 = arith.constant 8 : i32
    %38 = arith.muli %c1_i32, %c8_i32_17 : i32
    %39 = tpu.assume_multiple %38, 8 : i32
    %40 = arith.index_cast %39 : i32 to index
    %c0_18 = arith.constant 0 : index
    %41 = vector.load %arg10[%40, %c0_18] : memref<72x512xf32, #tpu.memory_space<vmem>>, vector<8x512xf32>
    %42 = arith.truncf %34 : vector<8x128xf32> to vector<8x128xbf16>
    %c0_19 = arith.constant 0 : index
    %c0_20 = arith.constant 0 : index
    %43 = vector.load %arg3[%c0_19, %c0_20] : memref<128x512xbf16, #tpu.memory_space<vmem>>, vector<128x512xbf16>
    %cst_21 = arith.constant dense<0.000000e+00> : vector<8x512xf32>
    %44 = tpu.matmul %42, %43, %cst_21 {dimension_numbers = #tpu.dot_dimension_numbers<[1], [0], [0], [1], [0, 0, 1, 1], [], []>} : vector<8x128xbf16>, vector<128x512xbf16>, vector<8x512xf32> -> vector<8x512xf32>
    %45 = arith.addf %41, %44 : vector<8x512xf32>
    %46 = vector.extract_strided_slice %45 {offsets = [0, 0], sizes = [8, 384], strides = [1, 1]} : vector<8x512xf32> to vector<8x384xf32>
    %cst_22 = arith.constant 5.000000e-01 : f32
    %47 = vector.broadcast %cst_22 : f32 to vector<8x384xf32>
    %48 = arith.mulf %47, %46 : vector<8x384xf32>
    %49 = math.tanh %48 : vector<8x384xf32>
    %cst_23 = arith.constant 5.000000e-01 : f32
    %50 = vector.broadcast %cst_23 : f32 to vector<8x384xf32>
    %51 = arith.mulf %50, %49 : vector<8x384xf32>
    %cst_24 = arith.constant 5.000000e-01 : f32
    %52 = vector.broadcast %cst_24 : f32 to vector<8x384xf32>
    %53 = arith.addf %51, %52 : vector<8x384xf32>
    %54 = vector.extract_strided_slice %45 {offsets = [0, 384], sizes = [8, 128], strides = [1, 1]} : vector<8x512xf32> to vector<8x128xf32>
    %55 = math.tanh %54 : vector<8x128xf32>
    %56 = vector.extract_strided_slice %53 {offsets = [0, 0], sizes = [8, 128], strides = [1, 1]} : vector<8x384xf32> to vector<8x128xf32>
    %57 = vector.extract_strided_slice %53 {offsets = [0, 128], sizes = [8, 128], strides = [1, 1]} : vector<8x384xf32> to vector<8x128xf32>
    %58 = vector.extract_strided_slice %53 {offsets = [0, 256], sizes = [8, 128], strides = [1, 1]} : vector<8x384xf32> to vector<8x128xf32>
    %59 = arith.mulf %57, %32 : vector<8x128xf32>
    %60 = arith.mulf %56, %55 : vector<8x128xf32>
    %61 = arith.addf %59, %60 : vector<8x128xf32>
    %62 = math.tanh %61 : vector<8x128xf32>
    %63 = arith.mulf %58, %62 : vector<8x128xf32>
    %64 = arith.truncf %63 : vector<8x128xf32> to vector<8x128xbf16>
    %65 = arith.index_cast %39 : i32 to index
    %c0_25 = arith.constant 0 : index
    %66 = vector.load %arg9[%65, %c0_25] : memref<72x128xbf16, #tpu.memory_space<vmem>>, vector<8x128xbf16>
    tpu.vector_store %arg9[%65, %c0_25], %64 {strides = array<i32>} : memref<72x128xbf16, #tpu.memory_space<vmem>>, vector<8x128xbf16>,
    %c2_i32 = arith.constant 2 : i32
    %c8_i32_26 = arith.constant 8 : i32
    %67 = arith.muli %c2_i32, %c8_i32_26 : i32
    %68 = tpu.assume_multiple %67, 8 : i32
    %69 = arith.index_cast %68 : i32 to index
    %c0_27 = arith.constant 0 : index
    %70 = vector.load %arg10[%69, %c0_27] : memref<72x512xf32, #tpu.memory_space<vmem>>, vector<8x512xf32>
    %71 = arith.truncf %63 : vector<8x128xf32> to vector<8x128xbf16>
    %c0_28 = arith.constant 0 : index
    %c0_29 = arith.constant 0 : index
    %72 = vector.load %arg3[%c0_28, %c0_29] : memref<128x512xbf16, #tpu.memory_space<vmem>>, vector<128x512xbf16>
    %cst_30 = arith.constant dense<0.000000e+00> : vector<8x512xf32>
    %73 = tpu.matmul %71, %72, %cst_30 {dimension_numbers = #tpu.dot_dimension_numbers<[1], [0], [0], [1], [0, 0, 1, 1], [], []>} : vector<8x128xbf16>, vector<128x512xbf16>, vector<8x512xf32> -> vector<8x512xf32>
    %74 = arith.addf %70, %73 : vector<8x512xf32>
    %75 = vector.extract_strided_slice %74 {offsets = [0, 0], sizes = [8, 384], strides = [1, 1]} : vector<8x512xf32> to vector<8x384xf32>
    %cst_31 = arith.constant 5.000000e-01 : f32
    %76 = vector.broadcast %cst_31 : f32 to vector<8x384xf32>
    %77 = arith.mulf %76, %75 : vector<8x384xf32>
    %78 = math.tanh %77 : vector<8x384xf32>
    %cst_32 = arith.constant 5.000000e-01 : f32
    %79 = vector.broadcast %cst_32 : f32 to vector<8x384xf32>
    %80 = arith.mulf %79, %78 : vector<8x384xf32>
    %cst_33 = arith.constant 5.000000e-01 : f32
    %81 = vector.broadcast %cst_33 : f32 to vector<8x384xf32>
    %82 = arith.addf %80, %81 : vector<8x384xf32>
    %83 = vector.extract_strided_slice %74 {offsets = [0, 384], sizes = [8, 128], strides = [1, 1]} : vector<8x512xf32> to vector<8x128xf32>
    %84 = math.tanh %83 : vector<8x128xf32>
    %85 = vector.extract_strided_slice %82 {offsets = [0, 0], sizes = [8, 128], strides = [1, 1]} : vector<8x384xf32> to vector<8x128xf32>
    %86 = vector.extract_strided_slice %82 {offsets = [0, 128], sizes = [8, 128], strides = [1, 1]} : vector<8x384xf32> to vector<8x128xf32>
    %87 = vector.extract_strided_slice %82 {offsets = [0, 256], sizes = [8, 128], strides = [1, 1]} : vector<8x384xf32> to vector<8x128xf32>
    %88 = arith.mulf %86, %61 : vector<8x128xf32>
    %89 = arith.mulf %85, %84 : vector<8x128xf32>
    %90 = arith.addf %88, %89 : vector<8x128xf32>
    %91 = math.tanh %90 : vector<8x128xf32>
    %92 = arith.mulf %87, %91 : vector<8x128xf32>
    %93 = arith.truncf %92 : vector<8x128xf32> to vector<8x128xbf16>
    %94 = arith.index_cast %68 : i32 to index
    %c0_34 = arith.constant 0 : index
    %95 = vector.load %arg9[%94, %c0_34] : memref<72x128xbf16, #tpu.memory_space<vmem>>, vector<8x128xbf16>
    tpu.vector_store %arg9[%94, %c0_34], %93 {strides = array<i32>} : memref<72x128xbf16, #tpu.memory_space<vmem>>, vector<8x128xbf16>,
    %c3_i32 = arith.constant 3 : i32
    %c8_i32_35 = arith.constant 8 : i32
    %96 = arith.muli %c3_i32, %c8_i32_35 : i32
    %97 = tpu.assume_multiple %96, 8 : i32
    %98 = arith.index_cast %97 : i32 to index
    %c0_36 = arith.constant 0 : index
    %99 = vector.load %arg10[%98, %c0_36] : memref<72x512xf32, #tpu.memory_space<vmem>>, vector<8x512xf32>
    %100 = arith.truncf %92 : vector<8x128xf32> to vector<8x128xbf16>
    %c0_37 = arith.constant 0 : index
    %c0_38 = arith.constant 0 : index
    %101 = vector.load %arg3[%c0_37, %c0_38] : memref<128x512xbf16, #tpu.memory_space<vmem>>, vector<128x512xbf16>
    %cst_39 = arith.constant dense<0.000000e+00> : vector<8x512xf32>
    %102 = tpu.matmul %100, %101, %cst_39 {dimension_numbers = #tpu.dot_dimension_numbers<[1], [0], [0], [1], [0, 0, 1, 1], [], []>} : vector<8x128xbf16>, vector<128x512xbf16>, vector<8x512xf32> -> vector<8x512xf32>
    %103 = arith.addf %99, %102 : vector<8x512xf32>
    %104 = vector.extract_strided_slice %103 {offsets = [0, 0], sizes = [8, 384], strides = [1, 1]} : vector<8x512xf32> to vector<8x384xf32>
    %cst_40 = arith.constant 5.000000e-01 : f32
    %105 = vector.broadcast %cst_40 : f32 to vector<8x384xf32>
    %106 = arith.mulf %105, %104 : vector<8x384xf32>
    %107 = math.tanh %106 : vector<8x384xf32>
    %cst_41 = arith.constant 5.000000e-01 : f32
    %108 = vector.broadcast %cst_41 : f32 to vector<8x384xf32>
    %109 = arith.mulf %108, %107 : vector<8x384xf32>
    %cst_42 = arith.constant 5.000000e-01 : f32
    %110 = vector.broadcast %cst_42 : f32 to vector<8x384xf32>
    %111 = arith.addf %109, %110 : vector<8x384xf32>
    %112 = vector.extract_strided_slice %103 {offsets = [0, 384], sizes = [8, 128], strides = [1, 1]} : vector<8x512xf32> to vector<8x128xf32>
    %113 = math.tanh %112 : vector<8x128xf32>
    %114 = vector.extract_strided_slice %111 {offsets = [0, 0], sizes = [8, 128], strides = [1, 1]} : vector<8x384xf32> to vector<8x128xf32>
    %115 = vector.extract_strided_slice %111 {offsets = [0, 128], sizes = [8, 128], strides = [1, 1]} : vector<8x384xf32> to vector<8x128xf32>
    %116 = vector.extract_strided_slice %111 {offsets = [0, 256], sizes = [8, 128], strides = [1, 1]} : vector<8x384xf32> to vector<8x128xf32>
    %117 = arith.mulf %115, %90 : vector<8x128xf32>
    %118 = arith.mulf %114, %113 : vector<8x128xf32>
    %119 = arith.addf %117, %118 : vector<8x128xf32>
    %120 = math.tanh %119 : vector<8x128xf32>
    %121 = arith.mulf %116, %120 : vector<8x128xf32>
    %122 = arith.truncf %121 : vector<8x128xf32> to vector<8x128xbf16>
    %123 = arith.index_cast %97 : i32 to index
    %c0_43 = arith.constant 0 : index
    %124 = vector.load %arg9[%123, %c0_43] : memref<72x128xbf16, #tpu.memory_space<vmem>>, vector<8x128xbf16>
    tpu.vector_store %arg9[%123, %c0_43], %122 {strides = array<i32>} : memref<72x128xbf16, #tpu.memory_space<vmem>>, vector<8x128xbf16>,
    %c4_i32 = arith.constant 4 : i32
    %c8_i32_44 = arith.constant 8 : i32
    %125 = arith.muli %c4_i32, %c8_i32_44 : i32
    %126 = tpu.assume_multiple %125, 8 : i32
    %127 = arith.index_cast %126 : i32 to index
    %c0_45 = arith.constant 0 : index
    %128 = vector.load %arg10[%127, %c0_45] : memref<72x512xf32, #tpu.memory_space<vmem>>, vector<8x512xf32>
    %129 = arith.truncf %121 : vector<8x128xf32> to vector<8x128xbf16>
    %c0_46 = arith.constant 0 : index
    %c0_47 = arith.constant 0 : index
    %130 = vector.load %arg3[%c0_46, %c0_47] : memref<128x512xbf16, #tpu.memory_space<vmem>>, vector<128x512xbf16>
    %cst_48 = arith.constant dense<0.000000e+00> : vector<8x512xf32>
    %131 = tpu.matmul %129, %130, %cst_48 {dimension_numbers = #tpu.dot_dimension_numbers<[1], [0], [0], [1], [0, 0, 1, 1], [], []>} : vector<8x128xbf16>, vector<128x512xbf16>, vector<8x512xf32> -> vector<8x512xf32>
    %132 = arith.addf %128, %131 : vector<8x512xf32>
    %133 = vector.extract_strided_slice %132 {offsets = [0, 0], sizes = [8, 384], strides = [1, 1]} : vector<8x512xf32> to vector<8x384xf32>
    %cst_49 = arith.constant 5.000000e-01 : f32
    %134 = vector.broadcast %cst_49 : f32 to vector<8x384xf32>
    %135 = arith.mulf %134, %133 : vector<8x384xf32>
    %136 = math.tanh %135 : vector<8x384xf32>
    %cst_50 = arith.constant 5.000000e-01 : f32
    %137 = vector.broadcast %cst_50 : f32 to vector<8x384xf32>
    %138 = arith.mulf %137, %136 : vector<8x384xf32>
    %cst_51 = arith.constant 5.000000e-01 : f32
    %139 = vector.broadcast %cst_51 : f32 to vector<8x384xf32>
    %140 = arith.addf %138, %139 : vector<8x384xf32>
    %141 = vector.extract_strided_slice %132 {offsets = [0, 384], sizes = [8, 128], strides = [1, 1]} : vector<8x512xf32> to vector<8x128xf32>
    %142 = math.tanh %141 : vector<8x128xf32>
    %143 = vector.extract_strided_slice %140 {offsets = [0, 0], sizes = [8, 128], strides = [1, 1]} : vector<8x384xf32> to vector<8x128xf32>
    %144 = vector.extract_strided_slice %140 {offsets = [0, 128], sizes = [8, 128], strides = [1, 1]} : vector<8x384xf32> to vector<8x128xf32>
    %145 = vector.extract_strided_slice %140 {offsets = [0, 256], sizes = [8, 128], strides = [1, 1]} : vector<8x384xf32> to vector<8x128xf32>
    %146 = arith.mulf %144, %119 : vector<8x128xf32>
    %147 = arith.mulf %143, %142 : vector<8x128xf32>
    %148 = arith.addf %146, %147 : vector<8x128xf32>
    %149 = math.tanh %148 : vector<8x128xf32>
    %150 = arith.mulf %145, %149 : vector<8x128xf32>
    %151 = arith.truncf %150 : vector<8x128xf32> to vector<8x128xbf16>
    %152 = arith.index_cast %126 : i32 to index
    %c0_52 = arith.constant 0 : index
    %153 = vector.load %arg9[%152, %c0_52] : memref<72x128xbf16, #tpu.memory_space<vmem>>, vector<8x128xbf16>
    tpu.vector_store %arg9[%152, %c0_52], %151 {strides = array<i32>} : memref<72x128xbf16, #tpu.memory_space<vmem>>, vector<8x128xbf16>,
    %c5_i32 = arith.constant 5 : i32
    %c8_i32_53 = arith.constant 8 : i32
    %154 = arith.muli %c5_i32, %c8_i32_53 : i32
    %155 = tpu.assume_multiple %154, 8 : i32
    %156 = arith.index_cast %155 : i32 to index
    %c0_54 = arith.constant 0 : index
    %157 = vector.load %arg10[%156, %c0_54] : memref<72x512xf32, #tpu.memory_space<vmem>>, vector<8x512xf32>
    %158 = arith.truncf %150 : vector<8x128xf32> to vector<8x128xbf16>
    %c0_55 = arith.constant 0 : index
    %c0_56 = arith.constant 0 : index
    %159 = vector.load %arg3[%c0_55, %c0_56] : memref<128x512xbf16, #tpu.memory_space<vmem>>, vector<128x512xbf16>
    %cst_57 = arith.constant dense<0.000000e+00> : vector<8x512xf32>
    %160 = tpu.matmul %158, %159, %cst_57 {dimension_numbers = #tpu.dot_dimension_numbers<[1], [0], [0], [1], [0, 0, 1, 1], [], []>} : vector<8x128xbf16>, vector<128x512xbf16>, vector<8x512xf32> -> vector<8x512xf32>
    %161 = arith.addf %157, %160 : vector<8x512xf32>
    %162 = vector.extract_strided_slice %161 {offsets = [0, 0], sizes = [8, 384], strides = [1, 1]} : vector<8x512xf32> to vector<8x384xf32>
    %cst_58 = arith.constant 5.000000e-01 : f32
    %163 = vector.broadcast %cst_58 : f32 to vector<8x384xf32>
    %164 = arith.mulf %163, %162 : vector<8x384xf32>
    %165 = math.tanh %164 : vector<8x384xf32>
    %cst_59 = arith.constant 5.000000e-01 : f32
    %166 = vector.broadcast %cst_59 : f32 to vector<8x384xf32>
    %167 = arith.mulf %166, %165 : vector<8x384xf32>
    %cst_60 = arith.constant 5.000000e-01 : f32
    %168 = vector.broadcast %cst_60 : f32 to vector<8x384xf32>
    %169 = arith.addf %167, %168 : vector<8x384xf32>
    %170 = vector.extract_strided_slice %161 {offsets = [0, 384], sizes = [8, 128], strides = [1, 1]} : vector<8x512xf32> to vector<8x128xf32>
    %171 = math.tanh %170 : vector<8x128xf32>
    %172 = vector.extract_strided_slice %169 {offsets = [0, 0], sizes = [8, 128], strides = [1, 1]} : vector<8x384xf32> to vector<8x128xf32>
    %173 = vector.extract_strided_slice %169 {offsets = [0, 128], sizes = [8, 128], strides = [1, 1]} : vector<8x384xf32> to vector<8x128xf32>
    %174 = vector.extract_strided_slice %169 {offsets = [0, 256], sizes = [8, 128], strides = [1, 1]} : vector<8x384xf32> to vector<8x128xf32>
    %175 = arith.mulf %173, %148 : vector<8x128xf32>
    %176 = arith.mulf %172, %171 : vector<8x128xf32>
    %177 = arith.addf %175, %176 : vector<8x128xf32>
    %178 = math.tanh %177 : vector<8x128xf32>
    %179 = arith.mulf %174, %178 : vector<8x128xf32>
    %180 = arith.truncf %179 : vector<8x128xf32> to vector<8x128xbf16>
    %181 = arith.index_cast %155 : i32 to index
    %c0_61 = arith.constant 0 : index
    %182 = vector.load %arg9[%181, %c0_61] : memref<72x128xbf16, #tpu.memory_space<vmem>>, vector<8x128xbf16>
    tpu.vector_store %arg9[%181, %c0_61], %180 {strides = array<i32>} : memref<72x128xbf16, #tpu.memory_space<vmem>>, vector<8x128xbf16>,
    %c6_i32 = arith.constant 6 : i32
    %c8_i32_62 = arith.constant 8 : i32
    %183 = arith.muli %c6_i32, %c8_i32_62 : i32
    %184 = tpu.assume_multiple %183, 8 : i32
    %185 = arith.index_cast %184 : i32 to index
    %c0_63 = arith.constant 0 : index
    %186 = vector.load %arg10[%185, %c0_63] : memref<72x512xf32, #tpu.memory_space<vmem>>, vector<8x512xf32>
    %187 = arith.truncf %179 : vector<8x128xf32> to vector<8x128xbf16>
    %c0_64 = arith.constant 0 : index
    %c0_65 = arith.constant 0 : index
    %188 = vector.load %arg3[%c0_64, %c0_65] : memref<128x512xbf16, #tpu.memory_space<vmem>>, vector<128x512xbf16>
    %cst_66 = arith.constant dense<0.000000e+00> : vector<8x512xf32>
    %189 = tpu.matmul %187, %188, %cst_66 {dimension_numbers = #tpu.dot_dimension_numbers<[1], [0], [0], [1], [0, 0, 1, 1], [], []>} : vector<8x128xbf16>, vector<128x512xbf16>, vector<8x512xf32> -> vector<8x512xf32>
    %190 = arith.addf %186, %189 : vector<8x512xf32>
    %191 = vector.extract_strided_slice %190 {offsets = [0, 0], sizes = [8, 384], strides = [1, 1]} : vector<8x512xf32> to vector<8x384xf32>
    %cst_67 = arith.constant 5.000000e-01 : f32
    %192 = vector.broadcast %cst_67 : f32 to vector<8x384xf32>
    %193 = arith.mulf %192, %191 : vector<8x384xf32>
    %194 = math.tanh %193 : vector<8x384xf32>
    %cst_68 = arith.constant 5.000000e-01 : f32
    %195 = vector.broadcast %cst_68 : f32 to vector<8x384xf32>
    %196 = arith.mulf %195, %194 : vector<8x384xf32>
    %cst_69 = arith.constant 5.000000e-01 : f32
    %197 = vector.broadcast %cst_69 : f32 to vector<8x384xf32>
    %198 = arith.addf %196, %197 : vector<8x384xf32>
    %199 = vector.extract_strided_slice %190 {offsets = [0, 384], sizes = [8, 128], strides = [1, 1]} : vector<8x512xf32> to vector<8x128xf32>
    %200 = math.tanh %199 : vector<8x128xf32>
    %201 = vector.extract_strided_slice %198 {offsets = [0, 0], sizes = [8, 128], strides = [1, 1]} : vector<8x384xf32> to vector<8x128xf32>
    %202 = vector.extract_strided_slice %198 {offsets = [0, 128], sizes = [8, 128], strides = [1, 1]} : vector<8x384xf32> to vector<8x128xf32>
    %203 = vector.extract_strided_slice %198 {offsets = [0, 256], sizes = [8, 128], strides = [1, 1]} : vector<8x384xf32> to vector<8x128xf32>
    %204 = arith.mulf %202, %177 : vector<8x128xf32>
    %205 = arith.mulf %201, %200 : vector<8x128xf32>
    %206 = arith.addf %204, %205 : vector<8x128xf32>
    %207 = math.tanh %206 : vector<8x128xf32>
    %208 = arith.mulf %203, %207 : vector<8x128xf32>
    %209 = arith.truncf %208 : vector<8x128xf32> to vector<8x128xbf16>
    %210 = arith.index_cast %184 : i32 to index
    %c0_70 = arith.constant 0 : index
    %211 = vector.load %arg9[%210, %c0_70] : memref<72x128xbf16, #tpu.memory_space<vmem>>, vector<8x128xbf16>
    tpu.vector_store %arg9[%210, %c0_70], %209 {strides = array<i32>} : memref<72x128xbf16, #tpu.memory_space<vmem>>, vector<8x128xbf16>,
    %c7_i32 = arith.constant 7 : i32
    %c8_i32_71 = arith.constant 8 : i32
    %212 = arith.muli %c7_i32, %c8_i32_71 : i32
    %213 = tpu.assume_multiple %212, 8 : i32
    %214 = arith.index_cast %213 : i32 to index
    %c0_72 = arith.constant 0 : index
    %215 = vector.load %arg10[%214, %c0_72] : memref<72x512xf32, #tpu.memory_space<vmem>>, vector<8x512xf32>
    %216 = arith.truncf %208 : vector<8x128xf32> to vector<8x128xbf16>
    %c0_73 = arith.constant 0 : index
    %c0_74 = arith.constant 0 : index
    %217 = vector.load %arg3[%c0_73, %c0_74] : memref<128x512xbf16, #tpu.memory_space<vmem>>, vector<128x512xbf16>
    %cst_75 = arith.constant dense<0.000000e+00> : vector<8x512xf32>
    %218 = tpu.matmul %216, %217, %cst_75 {dimension_numbers = #tpu.dot_dimension_numbers<[1], [0], [0], [1], [0, 0, 1, 1], [], []>} : vector<8x128xbf16>, vector<128x512xbf16>, vector<8x512xf32> -> vector<8x512xf32>
    %219 = arith.addf %215, %218 : vector<8x512xf32>
    %220 = vector.extract_strided_slice %219 {offsets = [0, 0], sizes = [8, 384], strides = [1, 1]} : vector<8x512xf32> to vector<8x384xf32>
    %cst_76 = arith.constant 5.000000e-01 : f32
    %221 = vector.broadcast %cst_76 : f32 to vector<8x384xf32>
    %222 = arith.mulf %221, %220 : vector<8x384xf32>
    %223 = math.tanh %222 : vector<8x384xf32>
    %cst_77 = arith.constant 5.000000e-01 : f32
    %224 = vector.broadcast %cst_77 : f32 to vector<8x384xf32>
    %225 = arith.mulf %224, %223 : vector<8x384xf32>
    %cst_78 = arith.constant 5.000000e-01 : f32
    %226 = vector.broadcast %cst_78 : f32 to vector<8x384xf32>
    %227 = arith.addf %225, %226 : vector<8x384xf32>
    %228 = vector.extract_strided_slice %219 {offsets = [0, 384], sizes = [8, 128], strides = [1, 1]} : vector<8x512xf32> to vector<8x128xf32>
    %229 = math.tanh %228 : vector<8x128xf32>
    %230 = vector.extract_strided_slice %227 {offsets = [0, 0], sizes = [8, 128], strides = [1, 1]} : vector<8x384xf32> to vector<8x128xf32>
    %231 = vector.extract_strided_slice %227 {offsets = [0, 128], sizes = [8, 128], strides = [1, 1]} : vector<8x384xf32> to vector<8x128xf32>
    %232 = vector.extract_strided_slice %227 {offsets = [0, 256], sizes = [8, 128], strides = [1, 1]} : vector<8x384xf32> to vector<8x128xf32>
    %233 = arith.mulf %231, %206 : vector<8x128xf32>
    %234 = arith.mulf %230, %229 : vector<8x128xf32>
    %235 = arith.addf %233, %234 : vector<8x128xf32>
    %236 = math.tanh %235 : vector<8x128xf32>
    %237 = arith.mulf %232, %236 : vector<8x128xf32>
    %238 = arith.truncf %237 : vector<8x128xf32> to vector<8x128xbf16>
    %239 = arith.index_cast %213 : i32 to index
    %c0_79 = arith.constant 0 : index
    %240 = vector.load %arg9[%239, %c0_79] : memref<72x128xbf16, #tpu.memory_space<vmem>>, vector<8x128xbf16>
    tpu.vector_store %arg9[%239, %c0_79], %238 {strides = array<i32>} : memref<72x128xbf16, #tpu.memory_space<vmem>>, vector<8x128xbf16>,
    %c8_i32_80 = arith.constant 8 : i32
    %c8_i32_81 = arith.constant 8 : i32
    %241 = arith.muli %c8_i32_80, %c8_i32_81 : i32
    %242 = tpu.assume_multiple %241, 8 : i32
    %243 = arith.index_cast %242 : i32 to index
    %c0_82 = arith.constant 0 : index
    %244 = vector.load %arg10[%243, %c0_82] : memref<72x512xf32, #tpu.memory_space<vmem>>, vector<8x512xf32>
    %245 = arith.truncf %237 : vector<8x128xf32> to vector<8x128xbf16>
    %c0_83 = arith.constant 0 : index
    %c0_84 = arith.constant 0 : index
    %246 = vector.load %arg3[%c0_83, %c0_84] : memref<128x512xbf16, #tpu.memory_space<vmem>>, vector<128x512xbf16>
    %cst_85 = arith.constant dense<0.000000e+00> : vector<8x512xf32>
    %247 = tpu.matmul %245, %246, %cst_85 {dimension_numbers = #tpu.dot_dimension_numbers<[1], [0], [0], [1], [0, 0, 1, 1], [], []>} : vector<8x128xbf16>, vector<128x512xbf16>, vector<8x512xf32> -> vector<8x512xf32>
    %248 = arith.addf %244, %247 : vector<8x512xf32>
    %249 = vector.extract_strided_slice %248 {offsets = [0, 0], sizes = [8, 384], strides = [1, 1]} : vector<8x512xf32> to vector<8x384xf32>
    %cst_86 = arith.constant 5.000000e-01 : f32
    %250 = vector.broadcast %cst_86 : f32 to vector<8x384xf32>
    %251 = arith.mulf %250, %249 : vector<8x384xf32>
    %252 = math.tanh %251 : vector<8x384xf32>
    %cst_87 = arith.constant 5.000000e-01 : f32
    %253 = vector.broadcast %cst_87 : f32 to vector<8x384xf32>
    %254 = arith.mulf %253, %252 : vector<8x384xf32>
    %cst_88 = arith.constant 5.000000e-01 : f32
    %255 = vector.broadcast %cst_88 : f32 to vector<8x384xf32>
    %256 = arith.addf %254, %255 : vector<8x384xf32>
    %257 = vector.extract_strided_slice %248 {offsets = [0, 384], sizes = [8, 128], strides = [1, 1]} : vector<8x512xf32> to vector<8x128xf32>
    %258 = math.tanh %257 : vector<8x128xf32>
    %259 = vector.extract_strided_slice %256 {offsets = [0, 0], sizes = [8, 128], strides = [1, 1]} : vector<8x384xf32> to vector<8x128xf32>
    %260 = vector.extract_strided_slice %256 {offsets = [0, 128], sizes = [8, 128], strides = [1, 1]} : vector<8x384xf32> to vector<8x128xf32>
    %261 = vector.extract_strided_slice %256 {offsets = [0, 256], sizes = [8, 128], strides = [1, 1]} : vector<8x384xf32> to vector<8x128xf32>
    %262 = arith.mulf %260, %235 : vector<8x128xf32>
    %263 = arith.mulf %259, %258 : vector<8x128xf32>
    %264 = arith.addf %262, %263 : vector<8x128xf32>
    %265 = math.tanh %264 : vector<8x128xf32>
    %266 = arith.mulf %261, %265 : vector<8x128xf32>
    %267 = arith.truncf %266 : vector<8x128xf32> to vector<8x128xbf16>
    %268 = arith.index_cast %242 : i32 to index
    %c0_89 = arith.constant 0 : index
    %269 = vector.load %arg9[%268, %c0_89] : memref<72x128xbf16, #tpu.memory_space<vmem>>, vector<8x128xbf16>
    tpu.vector_store %arg9[%268, %c0_89], %267 {strides = array<i32>} : memref<72x128xbf16, #tpu.memory_space<vmem>>, vector<8x128xbf16>,
    %c9_i32 = arith.constant 9 : i32
    %c0_90 = arith.constant 0 : index
    %c0_91 = arith.constant 0 : index
    %270 = vector.load %arg9[%c0_90, %c0_91] : memref<72x128xbf16, #tpu.memory_space<vmem>>, vector<72x128xbf16>
    %c0_92 = arith.constant 0 : index
    %c0_93 = arith.constant 0 : index
    %271 = vector.load %arg5[%c0_92, %c0_93] : memref<128x512xbf16, #tpu.memory_space<vmem>>, vector<128x512xbf16>
    %cst_94 = arith.constant dense<0.000000e+00> : vector<72x512xf32>
    %272 = tpu.matmul %270, %271, %cst_94 {dimension_numbers = #tpu.dot_dimension_numbers<[1], [0], [0], [1], [0, 0, 1, 1], [], []>} : vector<72x128xbf16>, vector<128x512xbf16>, vector<72x512xf32> -> vector<72x512xf32>
    %c0_95 = arith.constant 0 : index
    %c0_96 = arith.constant 0 : index
    %273 = vector.load %arg7[%c0_95, %c0_96] : memref<1x512xf32, #tpu.memory_space<vmem>>, vector<1x512xf32>
    %274 = vector.broadcast %273 : vector<1x512xf32> to vector<72x512xf32>
    %275 = arith.addf %272, %274 : vector<72x512xf32>
    %c0_97 = arith.constant 0 : index
    %c0_98 = arith.constant 0 : index
    %276 = vector.load %arg10[%c0_97, %c0_98] : memref<72x512xf32, #tpu.memory_space<vmem>>, vector<72x512xf32>
    tpu.vector_store %arg10[%c0_97, %c0_98], %275 {strides = array<i32>} : memref<72x512xf32, #tpu.memory_space<vmem>>, vector<72x512xf32>,
    %cst_99 = arith.constant 0.000000e+00 : f32
    %277 = vector.broadcast %cst_99 : f32 to vector<8x128xf32>
    %c0_i32_100 = arith.constant 0 : i32
    %c8_i32_101 = arith.constant 8 : i32
    %278 = arith.muli %c0_i32_100, %c8_i32_101 : i32
    %279 = tpu.assume_multiple %278, 8 : i32
    %280 = arith.index_cast %279 : i32 to index
    %c0_102 = arith.constant 0 : index
    %281 = vector.load %arg10[%280, %c0_102] : memref<72x512xf32, #tpu.memory_space<vmem>>, vector<8x512xf32>
    %282 = arith.truncf %277 : vector<8x128xf32> to vector<8x128xbf16>
    %c0_103 = arith.constant 0 : index
    %c0_104 = arith.constant 0 : index
    %283 = vector.load %arg6[%c0_103, %c0_104] : memref<128x512xbf16, #tpu.memory_space<vmem>>, vector<128x512xbf16>
    %cst_105 = arith.constant dense<0.000000e+00> : vector<8x512xf32>
    %284 = tpu.matmul %282, %283, %cst_105 {dimension_numbers = #tpu.dot_dimension_numbers<[1], [0], [0], [1], [0, 0, 1, 1], [], []>} : vector<8x128xbf16>, vector<128x512xbf16>, vector<8x512xf32> -> vector<8x512xf32>
    %285 = arith.addf %281, %284 : vector<8x512xf32>
    %286 = vector.extract_strided_slice %285 {offsets = [0, 0], sizes = [8, 384], strides = [1, 1]} : vector<8x512xf32> to vector<8x384xf32>
    %cst_106 = arith.constant 5.000000e-01 : f32
    %287 = vector.broadcast %cst_106 : f32 to vector<8x384xf32>
    %288 = arith.mulf %287, %286 : vector<8x384xf32>
    %289 = math.tanh %288 : vector<8x384xf32>
    %cst_107 = arith.constant 5.000000e-01 : f32
    %290 = vector.broadcast %cst_107 : f32 to vector<8x384xf32>
    %291 = arith.mulf %290, %289 : vector<8x384xf32>
    %cst_108 = arith.constant 5.000000e-01 : f32
    %292 = vector.broadcast %cst_108 : f32 to vector<8x384xf32>
    %293 = arith.addf %291, %292 : vector<8x384xf32>
    %294 = vector.extract_strided_slice %285 {offsets = [0, 384], sizes = [8, 128], strides = [1, 1]} : vector<8x512xf32> to vector<8x128xf32>
    %295 = math.tanh %294 : vector<8x128xf32>
    %296 = vector.extract_strided_slice %293 {offsets = [0, 0], sizes = [8, 128], strides = [1, 1]} : vector<8x384xf32> to vector<8x128xf32>
    %297 = vector.extract_strided_slice %293 {offsets = [0, 128], sizes = [8, 128], strides = [1, 1]} : vector<8x384xf32> to vector<8x128xf32>
    %298 = vector.extract_strided_slice %293 {offsets = [0, 256], sizes = [8, 128], strides = [1, 1]} : vector<8x384xf32> to vector<8x128xf32>
    %299 = arith.mulf %297, %277 : vector<8x128xf32>
    %300 = arith.mulf %296, %295 : vector<8x128xf32>
    %301 = arith.addf %299, %300 : vector<8x128xf32>
    %302 = math.tanh %301 : vector<8x128xf32>
    %303 = arith.mulf %298, %302 : vector<8x128xf32>
    %c0_109 = arith.constant 0 : index
    %304 = arith.index_cast %279 : i32 to index
    %c0_110 = arith.constant 0 : index
    %305 = vector.load %arg8[%c0_109, %304, %c0_110] : memref<1x72x128xf32, #tpu.memory_space<vmem>>, vector<1x8x128xf32>
    %306 = vector.shape_cast %305 : vector<1x8x128xf32> to vector<8x128xf32>
    %307 = vector.shape_cast %303 : vector<8x128xf32> to vector<1x8x128xf32>
    tpu.vector_store %arg8[%c0_109, %304, %c0_110], %307 {strides = array<i32>} : memref<1x72x128xf32, #tpu.memory_space<vmem>>, vector<1x8x128xf32>,
    %c1_i32_111 = arith.constant 1 : i32
    %c8_i32_112 = arith.constant 8 : i32
    %308 = arith.muli %c1_i32_111, %c8_i32_112 : i32
    %309 = tpu.assume_multiple %308, 8 : i32
    %310 = arith.index_cast %309 : i32 to index
    %c0_113 = arith.constant 0 : index
    %311 = vector.load %arg10[%310, %c0_113] : memref<72x512xf32, #tpu.memory_space<vmem>>, vector<8x512xf32>
    %312 = arith.truncf %303 : vector<8x128xf32> to vector<8x128xbf16>
    %c0_114 = arith.constant 0 : index
    %c0_115 = arith.constant 0 : index
    %313 = vector.load %arg6[%c0_114, %c0_115] : memref<128x512xbf16, #tpu.memory_space<vmem>>, vector<128x512xbf16>
    %cst_116 = arith.constant dense<0.000000e+00> : vector<8x512xf32>
    %314 = tpu.matmul %312, %313, %cst_116 {dimension_numbers = #tpu.dot_dimension_numbers<[1], [0], [0], [1], [0, 0, 1, 1], [], []>} : vector<8x128xbf16>, vector<128x512xbf16>, vector<8x512xf32> -> vector<8x512xf32>
    %315 = arith.addf %311, %314 : vector<8x512xf32>
    %316 = vector.extract_strided_slice %315 {offsets = [0, 0], sizes = [8, 384], strides = [1, 1]} : vector<8x512xf32> to vector<8x384xf32>
    %cst_117 = arith.constant 5.000000e-01 : f32
    %317 = vector.broadcast %cst_117 : f32 to vector<8x384xf32>
    %318 = arith.mulf %317, %316 : vector<8x384xf32>
    %319 = math.tanh %318 : vector<8x384xf32>
    %cst_118 = arith.constant 5.000000e-01 : f32
    %320 = vector.broadcast %cst_118 : f32 to vector<8x384xf32>
    %321 = arith.mulf %320, %319 : vector<8x384xf32>
    %cst_119 = arith.constant 5.000000e-01 : f32
    %322 = vector.broadcast %cst_119 : f32 to vector<8x384xf32>
    %323 = arith.addf %321, %322 : vector<8x384xf32>
    %324 = vector.extract_strided_slice %315 {offsets = [0, 384], sizes = [8, 128], strides = [1, 1]} : vector<8x512xf32> to vector<8x128xf32>
    %325 = math.tanh %324 : vector<8x128xf32>
    %326 = vector.extract_strided_slice %323 {offsets = [0, 0], sizes = [8, 128], strides = [1, 1]} : vector<8x384xf32> to vector<8x128xf32>
    %327 = vector.extract_strided_slice %323 {offsets = [0, 128], sizes = [8, 128], strides = [1, 1]} : vector<8x384xf32> to vector<8x128xf32>
    %328 = vector.extract_strided_slice %323 {offsets = [0, 256], sizes = [8, 128], strides = [1, 1]} : vector<8x384xf32> to vector<8x128xf32>
    %329 = arith.mulf %327, %301 : vector<8x128xf32>
    %330 = arith.mulf %326, %325 : vector<8x128xf32>
    %331 = arith.addf %329, %330 : vector<8x128xf32>
    %332 = math.tanh %331 : vector<8x128xf32>
    %333 = arith.mulf %328, %332 : vector<8x128xf32>
    %c0_120 = arith.constant 0 : index
    %334 = arith.index_cast %309 : i32 to index
    %c0_121 = arith.constant 0 : index
    %335 = vector.load %arg8[%c0_120, %334, %c0_121] : memref<1x72x128xf32, #tpu.memory_space<vmem>>, vector<1x8x128xf32>
    %336 = vector.shape_cast %335 : vector<1x8x128xf32> to vector<8x128xf32>
    %337 = vector.shape_cast %333 : vector<8x128xf32> to vector<1x8x128xf32>
    tpu.vector_store %arg8[%c0_120, %334, %c0_121], %337 {strides = array<i32>} : memref<1x72x128xf32, #tpu.memory_space<vmem>>, vector<1x8x128xf32>,
    %c2_i32_122 = arith.constant 2 : i32
    %c8_i32_123 = arith.constant 8 : i32
    %338 = arith.muli %c2_i32_122, %c8_i32_123 : i32
    %339 = tpu.assume_multiple %338, 8 : i32
    %340 = arith.index_cast %339 : i32 to index
    %c0_124 = arith.constant 0 : index
    %341 = vector.load %arg10[%340, %c0_124] : memref<72x512xf32, #tpu.memory_space<vmem>>, vector<8x512xf32>
    %342 = arith.truncf %333 : vector<8x128xf32> to vector<8x128xbf16>
    %c0_125 = arith.constant 0 : index
    %c0_126 = arith.constant 0 : index
    %343 = vector.load %arg6[%c0_125, %c0_126] : memref<128x512xbf16, #tpu.memory_space<vmem>>, vector<128x512xbf16>
    %cst_127 = arith.constant dense<0.000000e+00> : vector<8x512xf32>
    %344 = tpu.matmul %342, %343, %cst_127 {dimension_numbers = #tpu.dot_dimension_numbers<[1], [0], [0], [1], [0, 0, 1, 1], [], []>} : vector<8x128xbf16>, vector<128x512xbf16>, vector<8x512xf32> -> vector<8x512xf32>
    %345 = arith.addf %341, %344 : vector<8x512xf32>
    %346 = vector.extract_strided_slice %345 {offsets = [0, 0], sizes = [8, 384], strides = [1, 1]} : vector<8x512xf32> to vector<8x384xf32>
    %cst_128 = arith.constant 5.000000e-01 : f32
    %347 = vector.broadcast %cst_128 : f32 to vector<8x384xf32>
    %348 = arith.mulf %347, %346 : vector<8x384xf32>
    %349 = math.tanh %348 : vector<8x384xf32>
    %cst_129 = arith.constant 5.000000e-01 : f32
    %350 = vector.broadcast %cst_129 : f32 to vector<8x384xf32>
    %351 = arith.mulf %350, %349 : vector<8x384xf32>
    %cst_130 = arith.constant 5.000000e-01 : f32
    %352 = vector.broadcast %cst_130 : f32 to vector<8x384xf32>
    %353 = arith.addf %351, %352 : vector<8x384xf32>
    %354 = vector.extract_strided_slice %345 {offsets = [0, 384], sizes = [8, 128], strides = [1, 1]} : vector<8x512xf32> to vector<8x128xf32>
    %355 = math.tanh %354 : vector<8x128xf32>
    %356 = vector.extract_strided_slice %353 {offsets = [0, 0], sizes = [8, 128], strides = [1, 1]} : vector<8x384xf32> to vector<8x128xf32>
    %357 = vector.extract_strided_slice %353 {offsets = [0, 128], sizes = [8, 128], strides = [1, 1]} : vector<8x384xf32> to vector<8x128xf32>
    %358 = vector.extract_strided_slice %353 {offsets = [0, 256], sizes = [8, 128], strides = [1, 1]} : vector<8x384xf32> to vector<8x128xf32>
    %359 = arith.mulf %357, %331 : vector<8x128xf32>
    %360 = arith.mulf %356, %355 : vector<8x128xf32>
    %361 = arith.addf %359, %360 : vector<8x128xf32>
    %362 = math.tanh %361 : vector<8x128xf32>
    %363 = arith.mulf %358, %362 : vector<8x128xf32>
    %c0_131 = arith.constant 0 : index
    %364 = arith.index_cast %339 : i32 to index
    %c0_132 = arith.constant 0 : index
    %365 = vector.load %arg8[%c0_131, %364, %c0_132] : memref<1x72x128xf32, #tpu.memory_space<vmem>>, vector<1x8x128xf32>
    %366 = vector.shape_cast %365 : vector<1x8x128xf32> to vector<8x128xf32>
    %367 = vector.shape_cast %363 : vector<8x128xf32> to vector<1x8x128xf32>
    tpu.vector_store %arg8[%c0_131, %364, %c0_132], %367 {strides = array<i32>} : memref<1x72x128xf32, #tpu.memory_space<vmem>>, vector<1x8x128xf32>,
    %c3_i32_133 = arith.constant 3 : i32
    %c8_i32_134 = arith.constant 8 : i32
    %368 = arith.muli %c3_i32_133, %c8_i32_134 : i32
    %369 = tpu.assume_multiple %368, 8 : i32
    %370 = arith.index_cast %369 : i32 to index
    %c0_135 = arith.constant 0 : index
    %371 = vector.load %arg10[%370, %c0_135] : memref<72x512xf32, #tpu.memory_space<vmem>>, vector<8x512xf32>
    %372 = arith.truncf %363 : vector<8x128xf32> to vector<8x128xbf16>
    %c0_136 = arith.constant 0 : index
    %c0_137 = arith.constant 0 : index
    %373 = vector.load %arg6[%c0_136, %c0_137] : memref<128x512xbf16, #tpu.memory_space<vmem>>, vector<128x512xbf16>
    %cst_138 = arith.constant dense<0.000000e+00> : vector<8x512xf32>
    %374 = tpu.matmul %372, %373, %cst_138 {dimension_numbers = #tpu.dot_dimension_numbers<[1], [0], [0], [1], [0, 0, 1, 1], [], []>} : vector<8x128xbf16>, vector<128x512xbf16>, vector<8x512xf32> -> vector<8x512xf32>
    %375 = arith.addf %371, %374 : vector<8x512xf32>
    %376 = vector.extract_strided_slice %375 {offsets = [0, 0], sizes = [8, 384], strides = [1, 1]} : vector<8x512xf32> to vector<8x384xf32>
    %cst_139 = arith.constant 5.000000e-01 : f32
    %377 = vector.broadcast %cst_139 : f32 to vector<8x384xf32>
    %378 = arith.mulf %377, %376 : vector<8x384xf32>
    %379 = math.tanh %378 : vector<8x384xf32>
    %cst_140 = arith.constant 5.000000e-01 : f32
    %380 = vector.broadcast %cst_140 : f32 to vector<8x384xf32>
    %381 = arith.mulf %380, %379 : vector<8x384xf32>
    %cst_141 = arith.constant 5.000000e-01 : f32
    %382 = vector.broadcast %cst_141 : f32 to vector<8x384xf32>
    %383 = arith.addf %381, %382 : vector<8x384xf32>
    %384 = vector.extract_strided_slice %375 {offsets = [0, 384], sizes = [8, 128], strides = [1, 1]} : vector<8x512xf32> to vector<8x128xf32>
    %385 = math.tanh %384 : vector<8x128xf32>
    %386 = vector.extract_strided_slice %383 {offsets = [0, 0], sizes = [8, 128], strides = [1, 1]} : vector<8x384xf32> to vector<8x128xf32>
    %387 = vector.extract_strided_slice %383 {offsets = [0, 128], sizes = [8, 128], strides = [1, 1]} : vector<8x384xf32> to vector<8x128xf32>
    %388 = vector.extract_strided_slice %383 {offsets = [0, 256], sizes = [8, 128], strides = [1, 1]} : vector<8x384xf32> to vector<8x128xf32>
    %389 = arith.mulf %387, %361 : vector<8x128xf32>
    %390 = arith.mulf %386, %385 : vector<8x128xf32>
    %391 = arith.addf %389, %390 : vector<8x128xf32>
    %392 = math.tanh %391 : vector<8x128xf32>
    %393 = arith.mulf %388, %392 : vector<8x128xf32>
    %c0_142 = arith.constant 0 : index
    %394 = arith.index_cast %369 : i32 to index
    %c0_143 = arith.constant 0 : index
    %395 = vector.load %arg8[%c0_142, %394, %c0_143] : memref<1x72x128xf32, #tpu.memory_space<vmem>>, vector<1x8x128xf32>
    %396 = vector.shape_cast %395 : vector<1x8x128xf32> to vector<8x128xf32>
    %397 = vector.shape_cast %393 : vector<8x128xf32> to vector<1x8x128xf32>
    tpu.vector_store %arg8[%c0_142, %394, %c0_143], %397 {strides = array<i32>} : memref<1x72x128xf32, #tpu.memory_space<vmem>>, vector<1x8x128xf32>,
    %c4_i32_144 = arith.constant 4 : i32
    %c8_i32_145 = arith.constant 8 : i32
    %398 = arith.muli %c4_i32_144, %c8_i32_145 : i32
    %399 = tpu.assume_multiple %398, 8 : i32
    %400 = arith.index_cast %399 : i32 to index
    %c0_146 = arith.constant 0 : index
    %401 = vector.load %arg10[%400, %c0_146] : memref<72x512xf32, #tpu.memory_space<vmem>>, vector<8x512xf32>
    %402 = arith.truncf %393 : vector<8x128xf32> to vector<8x128xbf16>
    %c0_147 = arith.constant 0 : index
    %c0_148 = arith.constant 0 : index
    %403 = vector.load %arg6[%c0_147, %c0_148] : memref<128x512xbf16, #tpu.memory_space<vmem>>, vector<128x512xbf16>
    %cst_149 = arith.constant dense<0.000000e+00> : vector<8x512xf32>
    %404 = tpu.matmul %402, %403, %cst_149 {dimension_numbers = #tpu.dot_dimension_numbers<[1], [0], [0], [1], [0, 0, 1, 1], [], []>} : vector<8x128xbf16>, vector<128x512xbf16>, vector<8x512xf32> -> vector<8x512xf32>
    %405 = arith.addf %401, %404 : vector<8x512xf32>
    %406 = vector.extract_strided_slice %405 {offsets = [0, 0], sizes = [8, 384], strides = [1, 1]} : vector<8x512xf32> to vector<8x384xf32>
    %cst_150 = arith.constant 5.000000e-01 : f32
    %407 = vector.broadcast %cst_150 : f32 to vector<8x384xf32>
    %408 = arith.mulf %407, %406 : vector<8x384xf32>
    %409 = math.tanh %408 : vector<8x384xf32>
    %cst_151 = arith.constant 5.000000e-01 : f32
    %410 = vector.broadcast %cst_151 : f32 to vector<8x384xf32>
    %411 = arith.mulf %410, %409 : vector<8x384xf32>
    %cst_152 = arith.constant 5.000000e-01 : f32
    %412 = vector.broadcast %cst_152 : f32 to vector<8x384xf32>
    %413 = arith.addf %411, %412 : vector<8x384xf32>
    %414 = vector.extract_strided_slice %405 {offsets = [0, 384], sizes = [8, 128], strides = [1, 1]} : vector<8x512xf32> to vector<8x128xf32>
    %415 = math.tanh %414 : vector<8x128xf32>
    %416 = vector.extract_strided_slice %413 {offsets = [0, 0], sizes = [8, 128], strides = [1, 1]} : vector<8x384xf32> to vector<8x128xf32>
    %417 = vector.extract_strided_slice %413 {offsets = [0, 128], sizes = [8, 128], strides = [1, 1]} : vector<8x384xf32> to vector<8x128xf32>
    %418 = vector.extract_strided_slice %413 {offsets = [0, 256], sizes = [8, 128], strides = [1, 1]} : vector<8x384xf32> to vector<8x128xf32>
    %419 = arith.mulf %417, %391 : vector<8x128xf32>
    %420 = arith.mulf %416, %415 : vector<8x128xf32>
    %421 = arith.addf %419, %420 : vector<8x128xf32>
    %422 = math.tanh %421 : vector<8x128xf32>
    %423 = arith.mulf %418, %422 : vector<8x128xf32>
    %c0_153 = arith.constant 0 : index
    %424 = arith.index_cast %399 : i32 to index
    %c0_154 = arith.constant 0 : index
    %425 = vector.load %arg8[%c0_153, %424, %c0_154] : memref<1x72x128xf32, #tpu.memory_space<vmem>>, vector<1x8x128xf32>
    %426 = vector.shape_cast %425 : vector<1x8x128xf32> to vector<8x128xf32>
    %427 = vector.shape_cast %423 : vector<8x128xf32> to vector<1x8x128xf32>
    tpu.vector_store %arg8[%c0_153, %424, %c0_154], %427 {strides = array<i32>} : memref<1x72x128xf32, #tpu.memory_space<vmem>>, vector<1x8x128xf32>,
    %c5_i32_155 = arith.constant 5 : i32
    %c8_i32_156 = arith.constant 8 : i32
    %428 = arith.muli %c5_i32_155, %c8_i32_156 : i32
    %429 = tpu.assume_multiple %428, 8 : i32
    %430 = arith.index_cast %429 : i32 to index
    %c0_157 = arith.constant 0 : index
    %431 = vector.load %arg10[%430, %c0_157] : memref<72x512xf32, #tpu.memory_space<vmem>>, vector<8x512xf32>
    %432 = arith.truncf %423 : vector<8x128xf32> to vector<8x128xbf16>
    %c0_158 = arith.constant 0 : index
    %c0_159 = arith.constant 0 : index
    %433 = vector.load %arg6[%c0_158, %c0_159] : memref<128x512xbf16, #tpu.memory_space<vmem>>, vector<128x512xbf16>
    %cst_160 = arith.constant dense<0.000000e+00> : vector<8x512xf32>
    %434 = tpu.matmul %432, %433, %cst_160 {dimension_numbers = #tpu.dot_dimension_numbers<[1], [0], [0], [1], [0, 0, 1, 1], [], []>} : vector<8x128xbf16>, vector<128x512xbf16>, vector<8x512xf32> -> vector<8x512xf32>
    %435 = arith.addf %431, %434 : vector<8x512xf32>
    %436 = vector.extract_strided_slice %435 {offsets = [0, 0], sizes = [8, 384], strides = [1, 1]} : vector<8x512xf32> to vector<8x384xf32>
    %cst_161 = arith.constant 5.000000e-01 : f32
    %437 = vector.broadcast %cst_161 : f32 to vector<8x384xf32>
    %438 = arith.mulf %437, %436 : vector<8x384xf32>
    %439 = math.tanh %438 : vector<8x384xf32>
    %cst_162 = arith.constant 5.000000e-01 : f32
    %440 = vector.broadcast %cst_162 : f32 to vector<8x384xf32>
    %441 = arith.mulf %440, %439 : vector<8x384xf32>
    %cst_163 = arith.constant 5.000000e-01 : f32
    %442 = vector.broadcast %cst_163 : f32 to vector<8x384xf32>
    %443 = arith.addf %441, %442 : vector<8x384xf32>
    %444 = vector.extract_strided_slice %435 {offsets = [0, 384], sizes = [8, 128], strides = [1, 1]} : vector<8x512xf32> to vector<8x128xf32>
    %445 = math.tanh %444 : vector<8x128xf32>
    %446 = vector.extract_strided_slice %443 {offsets = [0, 0], sizes = [8, 128], strides = [1, 1]} : vector<8x384xf32> to vector<8x128xf32>
    %447 = vector.extract_strided_slice %443 {offsets = [0, 128], sizes = [8, 128], strides = [1, 1]} : vector<8x384xf32> to vector<8x128xf32>
    %448 = vector.extract_strided_slice %443 {offsets = [0, 256], sizes = [8, 128], strides = [1, 1]} : vector<8x384xf32> to vector<8x128xf32>
    %449 = arith.mulf %447, %421 : vector<8x128xf32>
    %450 = arith.mulf %446, %445 : vector<8x128xf32>
    %451 = arith.addf %449, %450 : vector<8x128xf32>
    %452 = math.tanh %451 : vector<8x128xf32>
    %453 = arith.mulf %448, %452 : vector<8x128xf32>
    %c0_164 = arith.constant 0 : index
    %454 = arith.index_cast %429 : i32 to index
    %c0_165 = arith.constant 0 : index
    %455 = vector.load %arg8[%c0_164, %454, %c0_165] : memref<1x72x128xf32, #tpu.memory_space<vmem>>, vector<1x8x128xf32>
    %456 = vector.shape_cast %455 : vector<1x8x128xf32> to vector<8x128xf32>
    %457 = vector.shape_cast %453 : vector<8x128xf32> to vector<1x8x128xf32>
    tpu.vector_store %arg8[%c0_164, %454, %c0_165], %457 {strides = array<i32>} : memref<1x72x128xf32, #tpu.memory_space<vmem>>, vector<1x8x128xf32>,
    %c6_i32_166 = arith.constant 6 : i32
    %c8_i32_167 = arith.constant 8 : i32
    %458 = arith.muli %c6_i32_166, %c8_i32_167 : i32
    %459 = tpu.assume_multiple %458, 8 : i32
    %460 = arith.index_cast %459 : i32 to index
    %c0_168 = arith.constant 0 : index
    %461 = vector.load %arg10[%460, %c0_168] : memref<72x512xf32, #tpu.memory_space<vmem>>, vector<8x512xf32>
    %462 = arith.truncf %453 : vector<8x128xf32> to vector<8x128xbf16>
    %c0_169 = arith.constant 0 : index
    %c0_170 = arith.constant 0 : index
    %463 = vector.load %arg6[%c0_169, %c0_170] : memref<128x512xbf16, #tpu.memory_space<vmem>>, vector<128x512xbf16>
    %cst_171 = arith.constant dense<0.000000e+00> : vector<8x512xf32>
    %464 = tpu.matmul %462, %463, %cst_171 {dimension_numbers = #tpu.dot_dimension_numbers<[1], [0], [0], [1], [0, 0, 1, 1], [], []>} : vector<8x128xbf16>, vector<128x512xbf16>, vector<8x512xf32> -> vector<8x512xf32>
    %465 = arith.addf %461, %464 : vector<8x512xf32>
    %466 = vector.extract_strided_slice %465 {offsets = [0, 0], sizes = [8, 384], strides = [1, 1]} : vector<8x512xf32> to vector<8x384xf32>
    %cst_172 = arith.constant 5.000000e-01 : f32
    %467 = vector.broadcast %cst_172 : f32 to vector<8x384xf32>
    %468 = arith.mulf %467, %466 : vector<8x384xf32>
    %469 = math.tanh %468 : vector<8x384xf32>
    %cst_173 = arith.constant 5.000000e-01 : f32
    %470 = vector.broadcast %cst_173 : f32 to vector<8x384xf32>
    %471 = arith.mulf %470, %469 : vector<8x384xf32>
    %cst_174 = arith.constant 5.000000e-01 : f32
    %472 = vector.broadcast %cst_174 : f32 to vector<8x384xf32>
    %473 = arith.addf %471, %472 : vector<8x384xf32>
    %474 = vector.extract_strided_slice %465 {offsets = [0, 384], sizes = [8, 128], strides = [1, 1]} : vector<8x512xf32> to vector<8x128xf32>
    %475 = math.tanh %474 : vector<8x128xf32>
    %476 = vector.extract_strided_slice %473 {offsets = [0, 0], sizes = [8, 128], strides = [1, 1]} : vector<8x384xf32> to vector<8x128xf32>
    %477 = vector.extract_strided_slice %473 {offsets = [0, 128], sizes = [8, 128], strides = [1, 1]} : vector<8x384xf32> to vector<8x128xf32>
    %478 = vector.extract_strided_slice %473 {offsets = [0, 256], sizes = [8, 128], strides = [1, 1]} : vector<8x384xf32> to vector<8x128xf32>
    %479 = arith.mulf %477, %451 : vector<8x128xf32>
    %480 = arith.mulf %476, %475 : vector<8x128xf32>
    %481 = arith.addf %479, %480 : vector<8x128xf32>
    %482 = math.tanh %481 : vector<8x128xf32>
    %483 = arith.mulf %478, %482 : vector<8x128xf32>
    %c0_175 = arith.constant 0 : index
    %484 = arith.index_cast %459 : i32 to index
    %c0_176 = arith.constant 0 : index
    %485 = vector.load %arg8[%c0_175, %484, %c0_176] : memref<1x72x128xf32, #tpu.memory_space<vmem>>, vector<1x8x128xf32>
    %486 = vector.shape_cast %485 : vector<1x8x128xf32> to vector<8x128xf32>
    %487 = vector.shape_cast %483 : vector<8x128xf32> to vector<1x8x128xf32>
    tpu.vector_store %arg8[%c0_175, %484, %c0_176], %487 {strides = array<i32>} : memref<1x72x128xf32, #tpu.memory_space<vmem>>, vector<1x8x128xf32>,
    %c7_i32_177 = arith.constant 7 : i32
    %c8_i32_178 = arith.constant 8 : i32
    %488 = arith.muli %c7_i32_177, %c8_i32_178 : i32
    %489 = tpu.assume_multiple %488, 8 : i32
    %490 = arith.index_cast %489 : i32 to index
    %c0_179 = arith.constant 0 : index
    %491 = vector.load %arg10[%490, %c0_179] : memref<72x512xf32, #tpu.memory_space<vmem>>, vector<8x512xf32>
    %492 = arith.truncf %483 : vector<8x128xf32> to vector<8x128xbf16>
    %c0_180 = arith.constant 0 : index
    %c0_181 = arith.constant 0 : index
    %493 = vector.load %arg6[%c0_180, %c0_181] : memref<128x512xbf16, #tpu.memory_space<vmem>>, vector<128x512xbf16>
    %cst_182 = arith.constant dense<0.000000e+00> : vector<8x512xf32>
    %494 = tpu.matmul %492, %493, %cst_182 {dimension_numbers = #tpu.dot_dimension_numbers<[1], [0], [0], [1], [0, 0, 1, 1], [], []>} : vector<8x128xbf16>, vector<128x512xbf16>, vector<8x512xf32> -> vector<8x512xf32>
    %495 = arith.addf %491, %494 : vector<8x512xf32>
    %496 = vector.extract_strided_slice %495 {offsets = [0, 0], sizes = [8, 384], strides = [1, 1]} : vector<8x512xf32> to vector<8x384xf32>
    %cst_183 = arith.constant 5.000000e-01 : f32
    %497 = vector.broadcast %cst_183 : f32 to vector<8x384xf32>
    %498 = arith.mulf %497, %496 : vector<8x384xf32>
    %499 = math.tanh %498 : vector<8x384xf32>
    %cst_184 = arith.constant 5.000000e-01 : f32
    %500 = vector.broadcast %cst_184 : f32 to vector<8x384xf32>
    %501 = arith.mulf %500, %499 : vector<8x384xf32>
    %cst_185 = arith.constant 5.000000e-01 : f32
    %502 = vector.broadcast %cst_185 : f32 to vector<8x384xf32>
    %503 = arith.addf %501, %502 : vector<8x384xf32>
    %504 = vector.extract_strided_slice %495 {offsets = [0, 384], sizes = [8, 128], strides = [1, 1]} : vector<8x512xf32> to vector<8x128xf32>
    %505 = math.tanh %504 : vector<8x128xf32>
    %506 = vector.extract_strided_slice %503 {offsets = [0, 0], sizes = [8, 128], strides = [1, 1]} : vector<8x384xf32> to vector<8x128xf32>
    %507 = vector.extract_strided_slice %503 {offsets = [0, 128], sizes = [8, 128], strides = [1, 1]} : vector<8x384xf32> to vector<8x128xf32>
    %508 = vector.extract_strided_slice %503 {offsets = [0, 256], sizes = [8, 128], strides = [1, 1]} : vector<8x384xf32> to vector<8x128xf32>
    %509 = arith.mulf %507, %481 : vector<8x128xf32>
    %510 = arith.mulf %506, %505 : vector<8x128xf32>
    %511 = arith.addf %509, %510 : vector<8x128xf32>
    %512 = math.tanh %511 : vector<8x128xf32>
    %513 = arith.mulf %508, %512 : vector<8x128xf32>
    %c0_186 = arith.constant 0 : index
    %514 = arith.index_cast %489 : i32 to index
    %c0_187 = arith.constant 0 : index
    %515 = vector.load %arg8[%c0_186, %514, %c0_187] : memref<1x72x128xf32, #tpu.memory_space<vmem>>, vector<1x8x128xf32>
    %516 = vector.shape_cast %515 : vector<1x8x128xf32> to vector<8x128xf32>
    %517 = vector.shape_cast %513 : vector<8x128xf32> to vector<1x8x128xf32>
    tpu.vector_store %arg8[%c0_186, %514, %c0_187], %517 {strides = array<i32>} : memref<1x72x128xf32, #tpu.memory_space<vmem>>, vector<1x8x128xf32>,
    %c8_i32_188 = arith.constant 8 : i32
    %c8_i32_189 = arith.constant 8 : i32
    %518 = arith.muli %c8_i32_188, %c8_i32_189 : i32
    %519 = tpu.assume_multiple %518, 8 : i32
    %520 = arith.index_cast %519 : i32 to index
    %c0_190 = arith.constant 0 : index
    %521 = vector.load %arg10[%520, %c0_190] : memref<72x512xf32, #tpu.memory_space<vmem>>, vector<8x512xf32>
    %522 = arith.truncf %513 : vector<8x128xf32> to vector<8x128xbf16>
    %c0_191 = arith.constant 0 : index
    %c0_192 = arith.constant 0 : index
    %523 = vector.load %arg6[%c0_191, %c0_192] : memref<128x512xbf16, #tpu.memory_space<vmem>>, vector<128x512xbf16>
    %cst_193 = arith.constant dense<0.000000e+00> : vector<8x512xf32>
    %524 = tpu.matmul %522, %523, %cst_193 {dimension_numbers = #tpu.dot_dimension_numbers<[1], [0], [0], [1], [0, 0, 1, 1], [], []>} : vector<8x128xbf16>, vector<128x512xbf16>, vector<8x512xf32> -> vector<8x512xf32>
    %525 = arith.addf %521, %524 : vector<8x512xf32>
    %526 = vector.extract_strided_slice %525 {offsets = [0, 0], sizes = [8, 384], strides = [1, 1]} : vector<8x512xf32> to vector<8x384xf32>
    %cst_194 = arith.constant 5.000000e-01 : f32
    %527 = vector.broadcast %cst_194 : f32 to vector<8x384xf32>
    %528 = arith.mulf %527, %526 : vector<8x384xf32>
    %529 = math.tanh %528 : vector<8x384xf32>
    %cst_195 = arith.constant 5.000000e-01 : f32
    %530 = vector.broadcast %cst_195 : f32 to vector<8x384xf32>
    %531 = arith.mulf %530, %529 : vector<8x384xf32>
    %cst_196 = arith.constant 5.000000e-01 : f32
    %532 = vector.broadcast %cst_196 : f32 to vector<8x384xf32>
    %533 = arith.addf %531, %532 : vector<8x384xf32>
    %534 = vector.extract_strided_slice %525 {offsets = [0, 384], sizes = [8, 128], strides = [1, 1]} : vector<8x512xf32> to vector<8x128xf32>
    %535 = math.tanh %534 : vector<8x128xf32>
    %536 = vector.extract_strided_slice %533 {offsets = [0, 0], sizes = [8, 128], strides = [1, 1]} : vector<8x384xf32> to vector<8x128xf32>
    %537 = vector.extract_strided_slice %533 {offsets = [0, 128], sizes = [8, 128], strides = [1, 1]} : vector<8x384xf32> to vector<8x128xf32>
    %538 = vector.extract_strided_slice %533 {offsets = [0, 256], sizes = [8, 128], strides = [1, 1]} : vector<8x384xf32> to vector<8x128xf32>
    %539 = arith.mulf %537, %511 : vector<8x128xf32>
    %540 = arith.mulf %536, %535 : vector<8x128xf32>
    %541 = arith.addf %539, %540 : vector<8x128xf32>
    %542 = math.tanh %541 : vector<8x128xf32>
    %543 = arith.mulf %538, %542 : vector<8x128xf32>
    %c0_197 = arith.constant 0 : index
    %544 = arith.index_cast %519 : i32 to index
    %c0_198 = arith.constant 0 : index
    %545 = vector.load %arg8[%c0_197, %544, %c0_198] : memref<1x72x128xf32, #tpu.memory_space<vmem>>, vector<1x8x128xf32>
    %546 = vector.shape_cast %545 : vector<1x8x128xf32> to vector<8x128xf32>
    %547 = vector.shape_cast %543 : vector<8x128xf32> to vector<1x8x128xf32>
    tpu.vector_store %arg8[%c0_197, %544, %c0_198], %547 {strides = array<i32>} : memref<1x72x128xf32, #tpu.memory_space<vmem>>, vector<1x8x128xf32>,
    %c9_i32_199 = arith.constant 9 : i32
    return
  }
  func.func @transform_0(%arg0: i32) -> (i32, i32, i32) {
    %c0_i32 = arith.constant 0 : i32
    %c0_i32_0 = arith.constant 0 : i32
    %c0_i32_1 = arith.constant 0 : i32
    return %arg0, %c0_i32, %c0_i32_0 : i32, i32, i32
  }
  func.func @transform_1(%arg0: i32) -> (i32, i32) {
    %c0_i32 = arith.constant 0 : i32
    %c0_i32_0 = arith.constant 0 : i32
    %c0_i32_1 = arith.constant 0 : i32
    return %c0_i32, %c0_i32_0 : i32, i32
  }
  func.func @transform_2(%arg0: i32) -> (i32, i32) {
    %c0_i32 = arith.constant 0 : i32
    %c0_i32_0 = arith.constant 0 : i32
    %c0_i32_1 = arith.constant 0 : i32
    return %c0_i32, %c0_i32_0 : i32, i32
  }
  func.func @transform_3(%arg0: i32) -> (i32, i32) {
    %c0_i32 = arith.constant 0 : i32
    %c0_i32_0 = arith.constant 0 : i32
    %c0_i32_1 = arith.constant 0 : i32
    return %c0_i32, %c0_i32_0 : i32, i32
  }
  func.func @transform_4(%arg0: i32) -> (i32, i32) {
    %c0_i32 = arith.constant 0 : i32
    %c0_i32_0 = arith.constant 0 : i32
    %c0_i32_1 = arith.constant 0 : i32
    return %c0_i32, %c0_i32_0 : i32, i32
  }
  func.func @transform_5(%arg0: i32) -> (i32, i32) {
    %c0_i32 = arith.constant 0 : i32
    %c0_i32_0 = arith.constant 0 : i32
    %c0_i32_1 = arith.constant 0 : i32
    return %c0_i32, %c0_i32_0 : i32, i32
  }
  func.func @transform_6(%arg0: i32) -> (i32, i32) {
    %c0_i32 = arith.constant 0 : i32
    %c0_i32_0 = arith.constant 0 : i32
    %c0_i32_1 = arith.constant 0 : i32
    return %c0_i32, %c0_i32_0 : i32, i32
  }
  func.func @transform_7(%arg0: i32) -> (i32, i32, i32) {
    %c0_i32 = arith.constant 0 : i32
    %c0_i32_0 = arith.constant 0 : i32
    %c0_i32_1 = arith.constant 0 : i32
    return %arg0, %c0_i32, %c0_i32_0 : i32, i32, i32
  }
}

</mosaic_0001>

<llo_original>
// kernel: tpu_custom_call.1
$region0: #{tpu_custom_call.1}
  #allocation0 [shape = 'u32[]', space=smem, size = 0x4, offset = 0x4, fixed_abs, tag = 'smem constant byte address 0x4 - core index']
  #allocation1 [shape = 'u32[144,128]{1,0:T(1,128)}', space=vmem, size = 0x12000, scoped, tag = 'internal scratch']
  #allocation2 [shape = 'bf16[72,128]{1,0:T(8,128)(2,1)}', space=vmem, size = 0x4800, scoped, tag = 'scratch operand']
  #allocation3 [shape = 'f32[72,512]{1,0:T(8,128)}', space=vmem, size = 0x24000, scoped, tag = 'scratch operand']
  %s0 = inlined_call_operand.vmem [shape: bf16[2,72,48], index: 0, kind: input, shape index: {}]
  %s1 = inlined_call_operand.vmem [shape: bf16[48,512], index: 1, kind: input, shape index: {}]
  %s2 = inlined_call_operand.hbm [shape: bf16[128,512], index: 2, kind: input, shape index: {}]
  %s3 = inlined_call_operand.vmem [shape: f32[1,512], index: 3, kind: input, shape index: {}]
  %s4 = inlined_call_operand.hbm [shape: bf16[128,512], index: 4, kind: input, shape index: {}]
  %s5 = inlined_call_operand.hbm [shape: bf16[128,512], index: 5, kind: input, shape index: {}]
  %s6 = inlined_call_operand.vmem [shape: f32[1,512], index: 6, kind: input, shape index: {}]
  %s7 = inlined_call_operand.hbm [shape: f32[2,72,128], index: 7, kind: output, shape index: {}]
  %s8 = sld [smem:[#allocation0]]
  $region73: #{tpu_custom_call.1} parent=0
    _
  %s10 = ssub.s32 1, %s8
  %s11 = scalar_select 0, %s10, %s8
  $region1: #{tpu_custom_call.1} parent=0
    #allocation4 [shape = 'u8[131072]{0}', space=vmem, size = 0x20000, scoped, tag = 'input window, operand 2, single buffered']
    #allocation5 [shape = 's32[2]{0}', space=sflag, size = 0x8, scoped, tag = 'scoped memory for tpu_custom_call.1']
    #allocation6 [shape = 's32[2]{0}', space=sflag, size = 0x8, scoped, tag = 'scoped memory for tpu_custom_call.1']
    #allocation7 [shape = 'u8[131072]{0}', space=vmem, size = 0x20000, scoped, tag = 'input window, operand 4, single buffered']
    #allocation8 [shape = 's32[1]{0}', space=sflag, size = 0x4, scoped, tag = 'scoped memory for tpu_custom_call.1']
    #allocation9 [shape = 'u8[131072]{0}', space=vmem, size = 0x20000, scoped, tag = 'input window, operand 5, single buffered']
    #allocation10 [shape = 'u8[73728]{0}', space=vmem, size = 0x12000, scoped, tag = 'output window, operand 0']
    %12 = vsyncpa [#allocation5], 0
    %13 = vsyncpa [#allocation8], 0
    %14 = vsyncpa [#allocation6], 0
    %s15 = scalar_lea.sflag [#allocation6], 1
    %16 = vsyncpa %s15, 0
    loop: start=0, step=1, limit=4
    $region2: #{tpu_custom_call.1} parent=1 // loop_pre_header
      _
    $region3: #{tpu_custom_call.1} parent=1 // loop_header
      %s18 = sphi 0, %s22
      %p19 = scmp.ge.s32.totalorder %s18, 4
      %s28 = sphi 0, %s30
      %s31 = sphi 0, %s28
      %s32 = sphi 0, %s31
      %s48 = sphi 0, %s32
      %s52 = sphi 0, %s52
      %s54 = sphi 0, %s52
      %s55 = sphi 0, %s54
      %s69 = sphi 0, %s55
      %s73 = sphi 0, %s73
      %s75 = sphi 0, %s73
      %s76 = sphi 0, %s75
      %s90 = sphi 0, %s76
      %s94 = sphi 0, %s94
      %s96 = sphi 0, %s94
      %s97 = sphi 0, %s96
      %s111 = sphi 0, %s97
      %s115 = sphi 0, %s115
      %s117 = sphi 0, %s115
      %s118 = sphi 0, %s117
      %s132 = sphi 0, %s118
      %s136 = sphi 0, %s136
      %s138 = sphi 0, %s136
      %s139 = sphi 0, %s138
      %s153 = sphi 0, %s139
      %s157 = sphi 0, %s157
      %s159 = sphi 0, %s157
      %s160 = sphi 0, %s159
      %s174 = sphi 0, %s160
      %s180 = sphi 0, %s182
      %s183 = sphi 0, %s180
      %s184 = sphi 0, %s183
      %s200 = sphi 0, %s184
    $region4: #{tpu_custom_call.1} parent=1 // loop_header_branch
      %21 = sbr.rel (%p19) target = $region8
    $region5: #{tpu_custom_call.1} parent=1 // loop_body
      %s23 = ssub.s32 %s18, 1
      %s24 = ssub.s32 %s18, 2
      %s25 = sadd.s32 %s18, 1
      %s26 = ssub.s32 %s18, %s25
      %p27 = scmp.eq.s32.totalorder %s26, 0
      %s29 = sadd.s32 %s28, 1
      %s30 = scalar_select %p27, %s28, %s29
      %p33 = pneg %p27
      %p34 = scmp.eq.s32.totalorder %s18, 1
      %p35 = por %p33, %p34
      %p36 = scmp.ne.s32.totalorder %s28, %s31
      %p37 = scmp.eq.s32.totalorder %s18, 0
      %p38 = por %p36, %p37
      %p39 = scmp.ne.s32.totalorder %s28, %s31
      %p40 = scmp.eq.s32.totalorder %s23, 1
      %p41 = por %p39, %p40
      %p42 = scmp.ne.s32.totalorder %s31, %s32
      %p43 = scmp.eq.s32.totalorder %s23, 0
      %p44 = por %p42, %p43
      %p45 = scmp.ne.s32.totalorder %s31, %s32
      %p46 = scmp.eq.s32.totalorder %s24, 1
      %p47 = por %p45, %p46
      %p49 = scmp.ne.s32.totalorder %s32, %s48
      %p50 = scmp.eq.s32.totalorder %s24, 0
      %p51 = por %p49, %p50
      %s53 = sadd.s32 %s52, 1
      %p56 = scmp.eq.s32.totalorder %s18, 1
      %p57 = scmp.ne.s32.totalorder %s52, %s54
      %p58 = scmp.eq.s32.totalorder %s18, 0
      %p59 = por %p57, %p58
      %p60 = scmp.ne.s32.totalorder %s52, %s54
      %p61 = scmp.eq.s32.totalorder %s23, 1
      %p62 = por %p60, %p61
      %p63 = scmp.ne.s32.totalorder %s54, %s55
      %p64 = scmp.eq.s32.totalorder %s23, 0
      %p65 = por %p63, %p64
      %p66 = scmp.ne.s32.totalorder %s54, %s55
      %p67 = scmp.eq.s32.totalorder %s24, 1
      %p68 = por %p66, %p67
      %p70 = scmp.ne.s32.totalorder %s55, %s69
      %p71 = scmp.eq.s32.totalorder %s24, 0
      %p72 = por %p70, %p71
      %s74 = sadd.s32 %s73, 1
      %p77 = scmp.eq.s32.totalorder %s18, 1
      %p78 = scmp.ne.s32.totalorder %s73, %s75
      %p79 = scmp.eq.s32.totalorder %s18, 0
      %p80 = por %p78, %p79
      %p81 = scmp.ne.s32.totalorder %s73, %s75
      %p82 = scmp.eq.s32.totalorder %s23, 1
      %p83 = por %p81, %p82
      %p84 = scmp.ne.s32.totalorder %s75, %s76
      %p85 = scmp.eq.s32.totalorder %s23, 0
      %p86 = por %p84, %p85
      %p87 = scmp.ne.s32.totalorder %s75, %s76
      %p88 = scmp.eq.s32.totalorder %s24, 1
      %p89 = por %p87, %p88
      %p91 = scmp.ne.s32.totalorder %s76, %s90
      %p92 = scmp.eq.s32.totalorder %s24, 0
      %p93 = por %p91, %p92
      %s95 = sadd.s32 %s94, 1
      %p98 = scmp.eq.s32.totalorder %s18, 1
      %p99 = scmp.ne.s32.totalorder %s94, %s96
      %p100 = scmp.eq.s32.totalorder %s18, 0
      %p101 = por %p99, %p100
      %p102 = scmp.ne.s32.totalorder %s94, %s96
      %p103 = scmp.eq.s32.totalorder %s23, 1
      %p104 = por %p102, %p103
      %p105 = scmp.ne.s32.totalorder %s96, %s97
      %p106 = scmp.eq.s32.totalorder %s23, 0
      %p107 = por %p105, %p106
      %p108 = scmp.ne.s32.totalorder %s96, %s97
      %p109 = scmp.eq.s32.totalorder %s24, 1
      %p110 = por %p108, %p109
      %p112 = scmp.ne.s32.totalorder %s97, %s111
      %p113 = scmp.eq.s32.totalorder %s24, 0
      %p114 = por %p112, %p113
      %s116 = sadd.s32 %s115, 1
      %p119 = scmp.eq.s32.totalorder %s18, 1
      %p120 = scmp.ne.s32.totalorder %s115, %s117
      %p121 = scmp.eq.s32.totalorder %s18, 0
      %p122 = por %p120, %p121
      %p123 = scmp.ne.s32.totalorder %s115, %s117
      %p124 = scmp.eq.s32.totalorder %s23, 1
      %p125 = por %p123, %p124
      %p126 = scmp.ne.s32.totalorder %s117, %s118
      %p127 = scmp.eq.s32.totalorder %s23, 0
      %p128 = por %p126, %p127
      %p129 = scmp.ne.s32.totalorder %s117, %s118
      %p130 = scmp.eq.s32.totalorder %s24, 1
      %p131 = por %p129, %p130
      %p133 = scmp.ne.s32.totalorder %s118, %s132
      %p134 = scmp.eq.s32.totalorder %s24, 0
      %p135 = por %p133, %p134
      %s137 = sadd.s32 %s136, 1
      %p140 = scmp.eq.s32.totalorder %s18, 1
      %p141 = scmp.ne.s32.totalorder %s136, %s138
      %p142 = scmp.eq.s32.totalorder %s18, 0
      %p143 = por %p141, %p142
      %p144 = scmp.ne.s32.totalorder %s136, %s138
      %p145 = scmp.eq.s32.totalorder %s23, 1
      %p146 = por %p144, %p145
      %p147 = scmp.ne.s32.totalorder %s138, %s139
      %p148 = scmp.eq.s32.totalorder %s23, 0
      %p149 = por %p147, %p148
      %p150 = scmp.ne.s32.totalorder %s138, %s139
      %p151 = scmp.eq.s32.totalorder %s24, 1
      %p152 = por %p150, %p151
      %p154 = scmp.ne.s32.totalorder %s139, %s153
      %p155 = scmp.eq.s32.totalorder %s24, 0
      %p156 = por %p154, %p155
      %s158 = sadd.s32 %s157, 1
      %p161 = scmp.eq.s32.totalorder %s18, 1
      %p162 = scmp.ne.s32.totalorder %s157, %s159
      %p163 = scmp.eq.s32.totalorder %s18, 0
      %p164 = por %p162, %p163
      %p165 = scmp.ne.s32.totalorder %s157, %s159
      %p166 = scmp.eq.s32.totalorder %s23, 1
      %p167 = por %p165, %p166
      %p168 = scmp.ne.s32.totalorder %s159, %s160
      %p169 = scmp.eq.s32.totalorder %s23, 0
      %p170 = por %p168, %p169
      %p171 = scmp.ne.s32.totalorder %s159, %s160
      %p172 = scmp.eq.s32.totalorder %s24, 1
      %p173 = por %p171, %p172
      %p175 = scmp.ne.s32.totalorder %s160, %s174
      %p176 = scmp.eq.s32.totalorder %s24, 0
      %p177 = por %p175, %p176
      %s178 = ssub.s32 %s18, %s25
      %p179 = scmp.eq.s32.totalorder %s178, 0
      %s181 = sadd.s32 %s180, 1
      %s182 = scalar_select %p179, %s180, %s181
      %p185 = pneg %p179
      %p186 = scmp.eq.s32.totalorder %s18, 1
      %p187 = por %p185, %p186
      %p188 = scmp.ne.s32.totalorder %s180, %s183
      %p189 = scmp.eq.s32.totalorder %s18, 0
      %p190 = por %p188, %p189
      %p191 = scmp.ne.s32.totalorder %s180, %s183
      %p192 = scmp.eq.s32.totalorder %s23, 1
      %p193 = por %p191, %p192
      %p194 = scmp.ne.s32.totalorder %s183, %s184
      %p195 = scmp.eq.s32.totalorder %s23, 0
      %p196 = por %p194, %p195
      %p197 = scmp.ne.s32.totalorder %s183, %s184
      %p198 = scmp.eq.s32.totalorder %s24, 1
      %p199 = por %p197, %p198
      %p201 = scmp.ne.s32.totalorder %s184, %s200
      %p202 = scmp.eq.s32.totalorder %s24, 0
      %p203 = por %p201, %p202
      %p204 = scmp.le.s32.totalorder 1, %s18
      %p205 = scmp.lt.s32.totalorder %s18, 3
      %p206 = pnand %p204, %p205
      %p207 = pneg %p206
      // Predicated region
      $region9: #{tpu_custom_call.1} parent=5 // pred_check
        _
      $region10: #{tpu_custom_call.1} parent=5 // pred_check_branch
        %209 = sbr.rel (%p206) target = $region12
      $region11: #{tpu_custom_call.1} parent=5 // pred_region
        %s210 = ssub.s32 %s18, 1
        // Predicated region
        $region13: #{tpu_custom_call.1} parent=11 // pred_check
          %p211 = pneg %p65
        $region14: #{tpu_custom_call.1} parent=11 // pred_check_branch
          %213 = sbr.rel (%p211) target = $region16
        $region15: #{tpu_custom_call.1} parent=11 // pred_region
          _
        $region16: #{tpu_custom_call.1} parent=11 // pred_fallthru
          _
        // Predicated region
        $region17: #{tpu_custom_call.1} parent=11 // pred_check
          %p214 = pneg %p86
        $region18: #{tpu_custom_call.1} parent=11 // pred_check_branch
          %216 = sbr.rel (%p214) target = $region20
        $region19: #{tpu_custom_call.1} parent=11 // pred_region
          %s218 = ssub.s32 4096, 4096
          %219 = vsyncadd [#allocation5], %s218
          %s220 = sshll.u32 [#allocation4], 4
          %s221 = int_to_ptr.vmem [resolvable:$true] %s220
          %226 = dma.hbm_to_vmem [thread:$0]  %s2, 4096, %s221, [#allocation5], 256, 256, 16
        $region20: #{tpu_custom_call.1} parent=11 // pred_fallthru
          _
        // Predicated region
        $region21: #{tpu_custom_call.1} parent=11 // pred_check
          %p227 = pneg %p107
        $region22: #{tpu_custom_call.1} parent=11 // pred_check_branch
          %229 = sbr.rel (%p227) target = $region24
        $region23: #{tpu_custom_call.1} parent=11 // pred_region
          _
        $region24: #{tpu_custom_call.1} parent=11 // pred_fallthru
          _
        // Predicated region
        $region25: #{tpu_custom_call.1} parent=11 // pred_check
          %p230 = pneg %p128
        $region26: #{tpu_custom_call.1} parent=11 // pred_check_branch
          %232 = sbr.rel (%p230) target = $region28
        $region27: #{tpu_custom_call.1} parent=11 // pred_region
          %s234 = ssub.s32 4096, 4096
          %235 = vsyncadd [#allocation8], %s234
          %s236 = sshll.u32 [#allocation7], 4
          %s237 = int_to_ptr.vmem [resolvable:$true] %s236
          %242 = dma.hbm_to_vmem [thread:$0]  %s4, 4096, %s237, [#allocation8], 256, 256, 16
        $region28: #{tpu_custom_call.1} parent=11 // pred_fallthru
          _
        // Predicated region
        $region29: #{tpu_custom_call.1} parent=11 // pred_check
          %p243 = pneg %p149
        $region30: #{tpu_custom_call.1} parent=11 // pred_check_branch
          %245 = sbr.rel (%p243) target = $region32
        $region31: #{tpu_custom_call.1} parent=11 // pred_region
          %s247 = ssub.s32 4096, 4096
          %248 = vsyncadd [#allocation8], %s247
          %s249 = sshll.u32 [#allocation9], 4
          %s250 = int_to_ptr.vmem [resolvable:$true] %s249
          %255 = dma.hbm_to_vmem [thread:$0]  %s5, 4096, %s250, [#allocation8], 256, 256, 16
        $region32: #{tpu_custom_call.1} parent=11 // pred_fallthru
          _
        // Predicated region
        $region33: #{tpu_custom_call.1} parent=11 // pred_check
          %p256 = pneg %p170
        $region34: #{tpu_custom_call.1} parent=11 // pred_check_branch
          %258 = sbr.rel (%p256) target = $region36
        $region35: #{tpu_custom_call.1} parent=11 // pred_region
          _
        $region36: #{tpu_custom_call.1} parent=11 // pred_fallthru
          _
      $region12: #{tpu_custom_call.1} parent=5 // pred_fallthru
        _
      %p259 = scmp.lt.s32.totalorder %s18, 2
      // Predicated region
      $region37: #{tpu_custom_call.1} parent=5 // pred_check
        %p260 = pneg %p259
      $region38: #{tpu_custom_call.1} parent=5 // pred_check_branch
        %262 = sbr.rel (%p260) target = $region40
      $region39: #{tpu_custom_call.1} parent=5 // pred_region
        // Predicated region
        $region41: #{tpu_custom_call.1} parent=39 // pred_check
          %p263 = pneg %p38
        $region42: #{tpu_custom_call.1} parent=39 // pred_check_branch
          %265 = sbr.rel (%p263) target = $region44
        $region43: #{tpu_custom_call.1} parent=39 // pred_region
          %p266 = scmp.lt.s32.totalorder %s18, 1
          %s267 = scalar_select %p266, %s18, 1
          %s268 = smul.addr %s267, 9
          %s269 = smul.addr %s268, 4
          %s270 = scalar_lea.vmem %s0, %s269
        $region44: #{tpu_custom_call.1} parent=39 // pred_fallthru
          _
      $region40: #{tpu_custom_call.1} parent=5 // pred_fallthru
        _
      %p271 = scmp.le.s32.totalorder 1, %s18
      %p272 = scmp.lt.s32.totalorder %s18, 3
      %p273 = pnand %p271, %p272
      %p274 = pneg %p273
      // Predicated region
      $region45: #{tpu_custom_call.1} parent=5 // pred_check
        _
      $region46: #{tpu_custom_call.1} parent=5 // pred_check_branch
        %276 = sbr.rel (%p273) target = $region48
      $region47: #{tpu_custom_call.1} parent=5 // pred_region
        %s277 = ssub.s32 %s18, 1
        // Predicated region
        $region49: #{tpu_custom_call.1} parent=47 // pred_check
          %p278 = pneg %p86
        $region50: #{tpu_custom_call.1} parent=47 // pred_check_branch
          %280 = sbr.rel (%p278) target = $region52
        $region51: #{tpu_custom_call.1} parent=47 // pred_region
          %281 = dma.done [#allocation5], 4096
        $region52: #{tpu_custom_call.1} parent=47 // pred_fallthru
          _
        // Predicated region
        $region53: #{tpu_custom_call.1} parent=47 // pred_check
          %p282 = pneg %p128
        $region54: #{tpu_custom_call.1} parent=47 // pred_check_branch
          %284 = sbr.rel (%p282) target = $region56
        $region55: #{tpu_custom_call.1} parent=47 // pred_region
          %285 = dma.done [#allocation8], 4096
        $region56: #{tpu_custom_call.1} parent=47 // pred_fallthru
          _
        // Predicated region
        $region57: #{tpu_custom_call.1} parent=47 // pred_check
          %p286 = pneg %p149
        $region58: #{tpu_custom_call.1} parent=47 // pred_check_branch
          %288 = sbr.rel (%p286) target = $region60
        $region59: #{tpu_custom_call.1} parent=47 // pred_region
          %289 = dma.done [#allocation8], 4096
        $region60: #{tpu_custom_call.1} parent=47 // pred_fallthru
          _
        %p290 = scmp.lt.s32.totalorder %s23, 1
        %s291 = scalar_select %p290, %s23, 1
        %s292 = smul.addr %s291, 9
        %s293 = smul.addr %s292, 4
        %s294 = scalar_lea.vmem %s0, %s293
        %p295 = pneg %p44
        %p296 = pneg %p41
        %p297 = pneg %p65
        %p298 = pneg %p62
        %p299 = pneg %p86
        %p300 = pneg %p83
        %p301 = pneg %p107
        %p302 = pneg %p104
        %p303 = pneg %p128
        %p304 = pneg %p125
        %p305 = pneg %p149
        %p306 = pneg %p146
        %p307 = pneg %p170
        %p308 = pneg %p167
        %p309 = pneg %p196
        %p310 = pneg %p193
        %s311 = sand.u32 %s183, 1
        %s312 = scalar_lea.sflag [#allocation6], %s311
        %s313 = sand.u32 %s183, 1
        %s314 = smul.addr %s313, 72
        %s315 = scalar_lea.vmem [#allocation10], %s314
        %p316 = scmp.lt.s32.totalorder %s23, 1
        %s317 = scalar_select %p316, %s23, 1
        %s318 = smul.addr %s317, 9
        %s319 = smul.addr %s318, 4
        %s320 = scalar_lea.vmem %s0, %s319
        %v322 = vld [vmem:[%s320] sm:$0xf]
        %v323 = vld [vmem:[%s320 + $0x4] sm:$0xf]
        %v324 = vld [vmem:[%s320 + $0x8] sm:$0xf]
        %v325 = vld [vmem:[%s320 + $0xc] sm:$0xf]
        %v326 = vld [vmem:[%s320 + $0x10] sm:$0xf]
        %v327 = vld [vmem:[%s320 + $0x14] sm:$0xf]
        %v328 = vld [vmem:[%s320 + $0x18] sm:$0xf]
        %v329 = vld [vmem:[%s320 + $0x1c] sm:$0xf]
        %v330 = vld [vmem:[%s320 + $0x20] sm:$0xf]
        %v331 = vld [vmem:[%s1] sm:$0xff]
        %v332 = vld [vmem:[%s1 + $0x8] sm:$0xff]
        %v333 = vld [vmem:[%s1 + $0x10] sm:$0xff]
        %v334 = vld [vmem:[%s1 + $0x18] sm:$0xff]
        %v335 = vld [vmem:[%s1 + $0x20] sm:$0xff]
        %v336 = vld [vmem:[%s1 + $0x28] sm:$0xff]
        %v337 = vld [vmem:[%s1 + $0x30] sm:$0xff]
        %v338 = vld [vmem:[%s1 + $0x38] sm:$0xff]
        %v339 = vld [vmem:[%s1 + $0x40] sm:$0xff]
        %v340 = vld [vmem:[%s1 + $0x48] sm:$0xff]
        %v341 = vld [vmem:[%s1 + $0x50] sm:$0xff]
        %v342 = vld [vmem:[%s1 + $0x58] sm:$0xff]
        %v343 = vld [vmem:[%s3] sm:$0xf]
        %v345 = vlaneseq
        %v346 = vshrl.u32 %v345, 7
        %v347 = vsub.s32 0, %v346
        %v348 = vrot.slane %v343, %v347
        %v349 = vlaneseq
        %v350 = vshrl.u32 %v349, 7
        %v351 = vsub.s32 1, %v350
        %v352 = vrot.slane %v343, %v351
        %v353 = vlaneseq
        %v354 = vshrl.u32 %v353, 7
        %v355 = vsub.s32 2, %v354
        %v356 = vrot.slane %v343, %v355
        %v357 = vlaneseq
        %v358 = vshrl.u32 %v357, 7
        %v359 = vsub.s32 3, %v358
        %v360 = vrot.slane %v343, %v359
        %v374 = vunpack.c.l.b16 %v322
        %v375 = vunpack.c.l.b16 %v323
        %v376 = vunpack.c.l.b16 %v324
        %v377 = vunpack.c.l.b16 %v325
        %v378 = vunpack.c.l.b16 %v326
        %v379 = vunpack.c.l.b16 %v327
        %v380 = vunpack.c.l.b16 %v328
        %v381 = vunpack.c.l.b16 %v329
        %v382 = vunpack.c.l.b16 %v330
        %v383 = vpack.c.b16 %v375, %v374
        %v384 = vpack.c.b16 %v377, %v376
        %v385 = vpack.c.b16 %v379, %v378
        %v386 = vpack.c.b16 %v381, %v380
        %v387 = vpack.c.b16 %v382, %v382
        %v400 = vunpack.c.l.b16 %v331
        %v401 = vunpack.c.h.b16 %v331
        %v402 = vunpack.c.l.b16 %v332
        %v403 = vunpack.c.h.b16 %v332
        %v404 = vunpack.c.l.b16 %v333
        %v405 = vunpack.c.h.b16 %v333
        %v406 = vunpack.c.l.b16 %v334
        %v407 = vunpack.c.h.b16 %v334
        %v408 = vunpack.c.l.b16 %v335
        %v409 = vunpack.c.h.b16 %v335
        %v410 = vunpack.c.l.b16 %v336
        %v411 = vunpack.c.h.b16 %v336
        %v412 = vunpack.c.l.b16 %v337
        %v413 = vunpack.c.h.b16 %v337
        %v414 = vunpack.c.l.b16 %v338
        %v415 = vunpack.c.h.b16 %v338
        %v416 = vunpack.c.l.b16 %v339
        %v417 = vunpack.c.h.b16 %v339
        %v418 = vunpack.c.l.b16 %v340
        %v419 = vunpack.c.h.b16 %v340
        %v420 = vunpack.c.l.b16 %v341
        %v421 = vunpack.c.h.b16 %v341
        %v422 = vunpack.c.l.b16 %v342
        %v423 = vunpack.c.h.b16 %v342
        %v424 = vpack.c.b16 %v404, %v400
        %v425 = vpack.c.b16 %v405, %v401
        %v426 = vpack.c.b16 %v406, %v402
        %v427 = vpack.c.b16 %v407, %v403
        %v428 = vpack.c.b16 %v412, %v408
        %v429 = vpack.c.b16 %v413, %v409
        %v430 = vpack.c.b16 %v414, %v410
        %v431 = vpack.c.b16 %v415, %v411
        %v432 = vpack.c.b16 %v420, %v416
        %v433 = vpack.c.b16 %v421, %v417
        %v434 = vpack.c.b16 %v422, %v418
        %v435 = vpack.c.b16 %v423, %v419
        %vm448 = vcmask 392192
        %v450 = vsel %vm448, %v383, 0
        %v453 = vsel %vm448, %v384, 0
        %v456 = vsel %vm448, %v385, 0
        %v459 = vsel %vm448, %v386, 0
        %v462 = vsel %vm448, %v387, 0
        %464 = vmatprep.subr.bf16.mxu0 %v425
        %465 = vmatpush1.bf16.msra.mxu0 %v424
        %466 = vmatprep.subr.bf16.mxu0 %v429
        %467 = vmatpush1.bf16.msra.mxu0 %v428
        %468 = vmatprep.subr.bf16.mxu0 %v433
        %469 = vmatpush1.bf16.msra.mxu0 %v432
        %470 = vmatprep.subr.bf16.mxu0 0
        %471 = vmatpush1.bf16.msra.mxu0 0
        %472 = vmatprep.subr.bf16.mxu0 0
        %473 = vmatpush1.bf16.msra.mxu0 0
        %474 = vmatprep.subr.bf16.mxu0 0
        %475 = vmatpush1.bf16.msra.mxu0 0
        %476 = vmatprep.subr.bf16.mxu0 0
        %477 = vmatpush1.bf16.msra.mxu0 0
        %478 = vmatprep.subr.bf16.mxu0 0
        %479 = vmatpush1.bf16.msra.mxu0 0
        %480 = vmatprep.subr.bf16.mxu0 0
        %481 = vmatpush1.bf16.msra.mxu0 0
        %482 = vmatprep.subr.bf16.mxu0 0
        %483 = vmatpush1.bf16.msra.mxu0 0
        %484 = vmatprep.subr.bf16.mxu0 0
        %485 = vmatpush1.bf16.msra.mxu0 0
        %486 = vmatprep.subr.bf16.mxu0 0
        %487 = vmatpush1.bf16.msra.mxu0 0
        %488 = vmatprep.subr.bf16.mxu0 0
        %489 = vmatpush1.bf16.msra.mxu0 0
        %490 = vmatprep.subr.bf16.mxu0 0
        %491 = vmatpush1.bf16.msra.mxu0 0
        %492 = vmatprep.subr.bf16.mxu0 0
        %493 = vmatpush1.bf16.msra.mxu0 0
        %494 = vmatprep.subr.bf16.mxu0 0
        %495 = vmatpush1.bf16.msra.mxu0 0
        %496 = vmatprep.mubr.bf16.mxu0 0
        %497 = vmatmul.mubr.bf16.gmra.mrb[0].mxu0 %v450
        %v498 = vpop.f32.mrb[0].mxu0
        %v499 = vadd.f32 %v348, %v498
        %v500 = vpop.f32.mrb[0].mxu0
        %v501 = vadd.f32 %v352, %v500
        %v502 = vpop.f32.mrb[0].mxu0
        %v503 = vadd.f32 %v348, %v502
        %v504 = vpop.f32.mrb[0].mxu0
        %v505 = vadd.f32 %v352, %v504
        %506 = vmatprep.mubr.bf16.mxu0 0
        %507 = vmatmul.mubr.bf16.gmra.mrb[0].mxu0 %v453
        %v508 = vpop.f32.mrb[0].mxu0
        %v509 = vadd.f32 %v348, %v508
        %v510 = vpop.f32.mrb[0].mxu0
        %v511 = vadd.f32 %v352, %v510
        %v512 = vpop.f32.mrb[0].mxu0
        %v513 = vadd.f32 %v348, %v512
        %v514 = vpop.f32.mrb[0].mxu0
        %v515 = vadd.f32 %v352, %v514
        %516 = vmatprep.mubr.bf16.mxu0 0
        %517 = vmatmul.mubr.bf16.gmra.mrb[0].mxu0 %v456
        %v518 = vpop.f32.mrb[0].mxu0
        %v519 = vadd.f32 %v348, %v518
        %v520 = vpop.f32.mrb[0].mxu0
        %v521 = vadd.f32 %v352, %v520
        %v522 = vpop.f32.mrb[0].mxu0
        %v523 = vadd.f32 %v348, %v522
        %v524 = vpop.f32.mrb[0].mxu0
        %v525 = vadd.f32 %v352, %v524
        %526 = vmatprep.mubr.bf16.mxu0 0
        %527 = vmatmul.mubr.bf16.gmra.mrb[0].mxu0 %v459
        %v528 = vpop.f32.mrb[0].mxu0
        %v529 = vadd.f32 %v348, %v528
        %v530 = vpop.f32.mrb[0].mxu0
        %v531 = vadd.f32 %v352, %v530
        %v532 = vpop.f32.mrb[0].mxu0
        %v533 = vadd.f32 %v348, %v532
        %v534 = vpop.f32.mrb[0].mxu0
        %v535 = vadd.f32 %v352, %v534
        %536 = vmatprep.mubr.bf16.mxu0 0
        %537 = vmatmul.mubr.bf16.gmra.mrb[0].mxu0 %v462
        %v538 = vpop.f32.mrb[0].mxu0
        %v539 = vadd.f32 %v348, %v538
        %v540 = vpop.f32.mrb[0].mxu0
        %v541 = vadd.f32 %v352, %v540
        %v542 = vpop.f32.mrb[0].mxu0
        %v543 = vpop.f32.mrb[0].mxu0
        %544 = vdwg.mxu0
        %545 = vmatprep.subr.bf16.mxu0 %v427
        %546 = vmatpush1.bf16.msra.mxu0 %v426
        %547 = vmatprep.subr.bf16.mxu0 %v431
        %548 = vmatpush1.bf16.msra.mxu0 %v430
        %549 = vmatprep.subr.bf16.mxu0 %v435
        %550 = vmatpush1.bf16.msra.mxu0 %v434
        %551 = vmatprep.subr.bf16.mxu0 0
        %552 = vmatpush1.bf16.msra.mxu0 0
        %553 = vmatprep.subr.bf16.mxu0 0
        %554 = vmatpush1.bf16.msra.mxu0 0
        %555 = vmatprep.subr.bf16.mxu0 0
        %556 = vmatpush1.bf16.msra.mxu0 0
        %557 = vmatprep.subr.bf16.mxu0 0
        %558 = vmatpush1.bf16.msra.mxu0 0
        %559 = vmatprep.subr.bf16.mxu0 0
        %560 = vmatpush1.bf16.msra.mxu0 0
        %561 = vmatprep.subr.bf16.mxu0 0
        %562 = vmatpush1.bf16.msra.mxu0 0
        %563 = vmatprep.subr.bf16.mxu0 0
        %564 = vmatpush1.bf16.msra.mxu0 0
        %565 = vmatprep.subr.bf16.mxu0 0
        %566 = vmatpush1.bf16.msra.mxu0 0
        %567 = vmatprep.subr.bf16.mxu0 0
        %568 = vmatpush1.bf16.msra.mxu0 0
        %569 = vmatprep.subr.bf16.mxu0 0
        %570 = vmatpush1.bf16.msra.mxu0 0
        %571 = vmatprep.subr.bf16.mxu0 0
        %572 = vmatpush1.bf16.msra.mxu0 0
        %573 = vmatprep.subr.bf16.mxu0 0
        %574 = vmatpush1.bf16.msra.mxu0 0
        %575 = vmatprep.subr.bf16.mxu0 0
        %576 = vmatpush1.bf16.msra.mxu0 0
        %577 = vmatprep.mubr.bf16.mxu0 0
        %578 = vmatmul.mubr.bf16.gmra.mrb[0].mxu0 %v450
        %v579 = vpop.f32.mrb[0].mxu0
        %v580 = vadd.f32 %v356, %v579
        %v581 = vpop.f32.mrb[0].mxu0
        %v582 = vadd.f32 %v360, %v581
        %v583 = vpop.f32.mrb[0].mxu0
        %v584 = vadd.f32 %v356, %v583
        %v585 = vpop.f32.mrb[0].mxu0
        %v586 = vadd.f32 %v360, %v585
        %587 = vmatprep.mubr.bf16.mxu0 0
        %588 = vmatmul.mubr.bf16.gmra.mrb[0].mxu0 %v453
        %v589 = vpop.f32.mrb[0].mxu0
        %v590 = vadd.f32 %v356, %v589
        %v591 = vpop.f32.mrb[0].mxu0
        %v592 = vadd.f32 %v360, %v591
        %v593 = vpop.f32.mrb[0].mxu0
        %v594 = vadd.f32 %v356, %v593
        %v595 = vpop.f32.mrb[0].mxu0
        %v596 = vadd.f32 %v360, %v595
        %597 = vmatprep.mubr.bf16.mxu0 0
        %598 = vmatmul.mubr.bf16.gmra.mrb[0].mxu0 %v456
        %v599 = vpop.f32.mrb[0].mxu0
        %v600 = vadd.f32 %v356, %v599
        %v601 = vpop.f32.mrb[0].mxu0
        %v602 = vadd.f32 %v360, %v601
        %v603 = vpop.f32.mrb[0].mxu0
        %v604 = vadd.f32 %v356, %v603
        %v605 = vpop.f32.mrb[0].mxu0
        %v606 = vadd.f32 %v360, %v605
        %607 = vmatprep.mubr.bf16.mxu0 0
        %608 = vmatmul.mubr.bf16.gmra.mrb[0].mxu0 %v459
        %v609 = vpop.f32.mrb[0].mxu0
        %v610 = vadd.f32 %v356, %v609
        %v611 = vpop.f32.mrb[0].mxu0
        %v612 = vadd.f32 %v360, %v611
        %v613 = vpop.f32.mrb[0].mxu0
        %v614 = vadd.f32 %v356, %v613
        %v615 = vpop.f32.mrb[0].mxu0
        %v616 = vadd.f32 %v360, %v615
        %617 = vmatprep.mubr.bf16.mxu0 0
        %618 = vmatmul.mubr.bf16.gmra.mrb[0].mxu0 %v462
        %v619 = vpop.f32.mrb[0].mxu0
        %v620 = vadd.f32 %v356, %v619
        %v621 = vpop.f32.mrb[0].mxu0
        %v622 = vadd.f32 %v360, %v621
        %v623 = vpop.f32.mrb[0].mxu0
        %v624 = vpop.f32.mrb[0].mxu0
        %625 = vdwg.mxu0
        %626 = vst [vmem:[#allocation3] sm:$0xff] %v499
        %627 = vst [vmem:[#allocation3 + $0x8] sm:$0xff] %v501
        %628 = vst [vmem:[#allocation3 + $0x10] sm:$0xff] %v580
        %629 = vst [vmem:[#allocation3 + $0x18] sm:$0xff] %v582
        %630 = vst [vmem:[#allocation3 + $0x20] sm:$0xff] %v503
        %631 = vst [vmem:[#allocation3 + $0x28] sm:$0xff] %v505
        %632 = vst [vmem:[#allocation3 + $0x30] sm:$0xff] %v584
        %633 = vst [vmem:[#allocation3 + $0x38] sm:$0xff] %v586
        %634 = vst [vmem:[#allocation3 + $0x40] sm:$0xff] %v509
        %635 = vst [vmem:[#allocation3 + $0x48] sm:$0xff] %v511
        %636 = vst [vmem:[#allocation3 + $0x50] sm:$0xff] %v590
        %637 = vst [vmem:[#allocation3 + $0x58] sm:$0xff] %v592
        %638 = vst [vmem:[#allocation3 + $0x60] sm:$0xff] %v513
        %639 = vst [vmem:[#allocation3 + $0x68] sm:$0xff] %v515
        %640 = vst [vmem:[#allocation3 + $0x70] sm:$0xff] %v594
        %641 = vst [vmem:[#allocation3 + $0x78] sm:$0xff] %v596
        %642 = vst [vmem:[#allocation3 + $0x80] sm:$0xff] %v519
        %643 = vst [vmem:[#allocation3 + $0x88] sm:$0xff] %v521
        %644 = vst [vmem:[#allocation3 + $0x90] sm:$0xff] %v600
        %645 = vst [vmem:[#allocation3 + $0x98] sm:$0xff] %v602
        %646 = vst [vmem:[#allocation3 + $0xa0] sm:$0xff] %v523
        %647 = vst [vmem:[#allocation3 + $0xa8] sm:$0xff] %v525
        %648 = vst [vmem:[#allocation3 + $0xb0] sm:$0xff] %v604
        %649 = vst [vmem:[#allocation3 + $0xb8] sm:$0xff] %v606
        %650 = vst [vmem:[#allocation3 + $0xc0] sm:$0xff] %v529
        %651 = vst [vmem:[#allocation3 + $0xc8] sm:$0xff] %v531
        %652 = vst [vmem:[#allocation3 + $0xd0] sm:$0xff] %v610
        %653 = vst [vmem:[#allocation3 + $0xd8] sm:$0xff] %v612
        %654 = vst [vmem:[#allocation3 + $0xe0] sm:$0xff] %v533
        %655 = vst [vmem:[#allocation3 + $0xe8] sm:$0xff] %v535
        %656 = vst [vmem:[#allocation3 + $0xf0] sm:$0xff] %v614
        %657 = vst [vmem:[#allocation3 + $0xf8] sm:$0xff] %v616
        %658 = vst [vmem:[#allocation3 + $0x100] sm:$0xff] %v539
        %659 = vst [vmem:[#allocation3 + $0x108] sm:$0xff] %v541
        %660 = vst [vmem:[#allocation3 + $0x110] sm:$0xff] %v620
        %661 = vst [vmem:[#allocation3 + $0x118] sm:$0xff] %v622
        %s662 = smul.u32 0, 4
        %s663 = smul.addr %s662, 8
        %s664 = scalar_lea.vmem [#allocation3], %s663
        %v665 = vld [vmem:[%s664] sm:$0xff]
        %v666 = vld [vmem:[%s664 + $0x8] sm:$0xff]
        %v667 = vld [vmem:[%s664 + $0x10] sm:$0xff]
        %v668 = vld [vmem:[%s664 + $0x18] sm:$0xff]
        %v669 = vld [vmem:[#allocation4] sm:$0xff]
        %v670 = vld [vmem:[#allocation4 + $0x8] sm:$0xff]
        %v671 = vld [vmem:[#allocation4 + $0x10] sm:$0xff]
        %v672 = vld [vmem:[#allocation4 + $0x18] sm:$0xff]
        %v673 = vld [vmem:[#allocation4 + $0x20] sm:$0xff]
        %v674 = vld [vmem:[#allocation4 + $0x28] sm:$0xff]
        %v675 = vld [vmem:[#allocation4 + $0x30] sm:$0xff]
        %v676 = vld [vmem:[#allocation4 + $0x38] sm:$0xff]
        %v677 = vld [vmem:[#allocation4 + $0x40] sm:$0xff]
        %v678 = vld [vmem:[#allocation4 + $0x48] sm:$0xff]
        %v679 = vld [vmem:[#allocation4 + $0x50] sm:$0xff]
        %v680 = vld [vmem:[#allocation4 + $0x58] sm:$0xff]
        %v681 = vld [vmem:[#allocation4 + $0x60] sm:$0xff]
        %v682 = vld [vmem:[#allocation4 + $0x68] sm:$0xff]
        %v683 = vld [vmem:[#allocation4 + $0x70] sm:$0xff]
        %v684 = vld [vmem:[#allocation4 + $0x78] sm:$0xff]
        %v685 = vld [vmem:[#allocation4 + $0x80] sm:$0xff]
        %v686 = vld [vmem:[#allocation4 + $0x88] sm:$0xff]
        %v687 = vld [vmem:[#allocation4 + $0x90] sm:$0xff]
        %v688 = vld [vmem:[#allocation4 + $0x98] sm:$0xff]
        %v689 = vld [vmem:[#allocation4 + $0xa0] sm:$0xff]
        %v690 = vld [vmem:[#allocation4 + $0xa8] sm:$0xff]
        %v691 = vld [vmem:[#allocation4 + $0xb0] sm:$0xff]
        %v692 = vld [vmem:[#allocation4 + $0xb8] sm:$0xff]
        %v693 = vld [vmem:[#allocation4 + $0xc0] sm:$0xff]
        %v694 = vld [vmem:[#allocation4 + $0xc8] sm:$0xff]
        %v695 = vld [vmem:[#allocation4 + $0xd0] sm:$0xff]
        %v696 = vld [vmem:[#allocation4 + $0xd8] sm:$0xff]
        %v697 = vld [vmem:[#allocation4 + $0xe0] sm:$0xff]
        %v698 = vld [vmem:[#allocation4 + $0xe8] sm:$0xff]
        %v699 = vld [vmem:[#allocation4 + $0xf0] sm:$0xff]
        %v700 = vld [vmem:[#allocation4 + $0xf8] sm:$0xff]
        %v733 = vunpack.c.l.b16 %v669
        %v734 = vunpack.c.h.b16 %v669
        %v735 = vunpack.c.l.b16 %v670
        %v736 = vunpack.c.h.b16 %v670
        %v737 = vunpack.c.l.b16 %v671
        %v738 = vunpack.c.h.b16 %v671
        %v739 = vunpack.c.l.b16 %v672
        %v740 = vunpack.c.h.b16 %v672
        %v741 = vunpack.c.l.b16 %v673
        %v742 = vunpack.c.h.b16 %v673
        %v743 = vunpack.c.l.b16 %v674
        %v744 = vunpack.c.h.b16 %v674
        %v745 = vunpack.c.l.b16 %v675
        %v746 = vunpack.c.h.b16 %v675
        %v747 = vunpack.c.l.b16 %v676
        %v748 = vunpack.c.h.b16 %v676
        %v749 = vunpack.c.l.b16 %v677
        %v750 = vunpack.c.h.b16 %v677
        %v751 = vunpack.c.l.b16 %v678
        %v752 = vunpack.c.h.b16 %v678
        %v753 = vunpack.c.l.b16 %v679
        %v754 = vunpack.c.h.b16 %v679
        %v755 = vunpack.c.l.b16 %v680
        %v756 = vunpack.c.h.b16 %v680
        %v757 = vunpack.c.l.b16 %v681
        %v758 = vunpack.c.h.b16 %v681
        %v759 = vunpack.c.l.b16 %v682
        %v760 = vunpack.c.h.b16 %v682
        %v761 = vunpack.c.l.b16 %v683
        %v762 = vunpack.c.h.b16 %v683
        %v763 = vunpack.c.l.b16 %v684
        %v764 = vunpack.c.h.b16 %v684
        %v765 = vunpack.c.l.b16 %v685
        %v766 = vunpack.c.h.b16 %v685
        %v767 = vunpack.c.l.b16 %v686
        %v768 = vunpack.c.h.b16 %v686
        %v769 = vunpack.c.l.b16 %v687
        %v770 = vunpack.c.h.b16 %v687
        %v771 = vunpack.c.l.b16 %v688
        %v772 = vunpack.c.h.b16 %v688
        %v773 = vunpack.c.l.b16 %v689
        %v774 = vunpack.c.h.b16 %v689
        %v775 = vunpack.c.l.b16 %v690
        %v776 = vunpack.c.h.b16 %v690
        %v777 = vunpack.c.l.b16 %v691
        %v778 = vunpack.c.h.b16 %v691
        %v779 = vunpack.c.l.b16 %v692
        %v780 = vunpack.c.h.b16 %v692
        %v781 = vunpack.c.l.b16 %v693
        %v782 = vunpack.c.h.b16 %v693
        %v783 = vunpack.c.l.b16 %v694
        %v784 = vunpack.c.h.b16 %v694
        %v785 = vunpack.c.l.b16 %v695
        %v786 = vunpack.c.h.b16 %v695
        %v787 = vunpack.c.l.b16 %v696
        %v788 = vunpack.c.h.b16 %v696
        %v789 = vunpack.c.l.b16 %v697
        %v790 = vunpack.c.h.b16 %v697
        %v791 = vunpack.c.l.b16 %v698
        %v792 = vunpack.c.h.b16 %v698
        %v793 = vunpack.c.l.b16 %v699
        %v794 = vunpack.c.h.b16 %v699
        %v795 = vunpack.c.l.b16 %v700
        %v796 = vunpack.c.h.b16 %v700
        %v797 = vpack.c.b16 %v737, %v733
        %v798 = vpack.c.b16 %v738, %v734
        %v799 = vpack.c.b16 %v739, %v735
        %v800 = vpack.c.b16 %v740, %v736
        %v801 = vpack.c.b16 %v745, %v741
        %v802 = vpack.c.b16 %v746, %v742
        %v803 = vpack.c.b16 %v747, %v743
        %v804 = vpack.c.b16 %v748, %v744
        %v805 = vpack.c.b16 %v753, %v749
        %v806 = vpack.c.b16 %v754, %v750
        %v807 = vpack.c.b16 %v755, %v751
        %v808 = vpack.c.b16 %v756, %v752
        %v809 = vpack.c.b16 %v761, %v757
        %v810 = vpack.c.b16 %v762, %v758
        %v811 = vpack.c.b16 %v763, %v759
        %v812 = vpack.c.b16 %v764, %v760
        %v813 = vpack.c.b16 %v769, %v765
        %v814 = vpack.c.b16 %v770, %v766
        %v815 = vpack.c.b16 %v771, %v767
        %v816 = vpack.c.b16 %v772, %v768
        %v817 = vpack.c.b16 %v777, %v773
        %v818 = vpack.c.b16 %v778, %v774
        %v819 = vpack.c.b16 %v779, %v775
        %v820 = vpack.c.b16 %v780, %v776
        %v821 = vpack.c.b16 %v785, %v781
        %v822 = vpack.c.b16 %v786, %v782
        %v823 = vpack.c.b16 %v787, %v783
        %v824 = vpack.c.b16 %v788, %v784
        %v825 = vpack.c.b16 %v793, %v789
        %v826 = vpack.c.b16 %v794, %v790
        %v827 = vpack.c.b16 %v795, %v791
        %v828 = vpack.c.b16 %v796, %v792
        %861 = vmatprep.subr.bf16.mxu0 %v798
        %862 = vmatpush1.bf16.msra.mxu0 %v797
        %863 = vmatprep.subr.bf16.mxu0 %v802
        %864 = vmatpush1.bf16.msra.mxu0 %v801
        %865 = vmatprep.subr.bf16.mxu0 %v806
        %866 = vmatpush1.bf16.msra.mxu0 %v805
        %867 = vmatprep.subr.bf16.mxu0 %v810
        %868 = vmatpush1.bf16.msra.mxu0 %v809
        %869 = vmatprep.subr.bf16.mxu0 %v814
        %870 = vmatpush1.bf16.msra.mxu0 %v813
        %871 = vmatprep.subr.bf16.mxu0 %v818
        %872 = vmatpush1.bf16.msra.mxu0 %v817
        %873 = vmatprep.subr.bf16.mxu0 %v822
        %874 = vmatpush1.bf16.msra.mxu0 %v821
        %875 = vmatprep.subr.bf16.mxu0 %v826
        %876 = vmatpush1.bf16.msra.mxu0 %v825
        %877 = vmatprep.subr.bf16.mxu0 0
        %878 = vmatpush1.bf16.msra.mxu0 0
        %879 = vmatprep.subr.bf16.mxu0 0
        %880 = vmatpush1.bf16.msra.mxu0 0
        %881 = vmatprep.subr.bf16.mxu0 0
        %882 = vmatpush1.bf16.msra.mxu0 0
        %883 = vmatprep.subr.bf16.mxu0 0
        %884 = vmatpush1.bf16.msra.mxu0 0
        %885 = vmatprep.subr.bf16.mxu0 0
        %886 = vmatpush1.bf16.msra.mxu0 0
        %887 = vmatprep.subr.bf16.mxu0 0
        %888 = vmatpush1.bf16.msra.mxu0 0
        %889 = vmatprep.subr.bf16.mxu0 0
        %890 = vmatpush1.bf16.msra.mxu0 0
        %891 = vmatprep.subr.bf16.mxu0 0
        %892 = vmatpush1.bf16.msra.mxu0 0
        %893 = vmatprep.mubr.bf16.mxu0 0
        %894 = vmatmul.mubr.bf16.gmra.mrb[0].mxu0 0
        %v895 = vpop.f32.mrb[0].mxu0
        %v896 = vadd.f32 0.0, %v895
        %v897 = vpop.f32.mrb[0].mxu0
        %v898 = vadd.f32 0.0, %v897
        %v899 = vpop.f32.mrb[0].mxu0
        %v900 = vpop.f32.mrb[0].mxu0
        %901 = vdwg.mxu0
        %902 = vmatprep.subr.bf16.mxu0 %v800
        %903 = vmatpush1.bf16.msra.mxu0 %v799
        %904 = vmatprep.subr.bf16.mxu0 %v804
        %905 = vmatpush1.bf16.msra.mxu0 %v803
        %906 = vmatprep.subr.bf16.mxu0 %v808
        %907 = vmatpush1.bf16.msra.mxu0 %v807
        %908 = vmatprep.subr.bf16.mxu0 %v812
        %909 = vmatpush1.bf16.msra.mxu0 %v811
        %910 = vmatprep.subr.bf16.mxu0 %v816
        %911 = vmatpush1.bf16.msra.mxu0 %v815
        %912 = vmatprep.subr.bf16.mxu0 %v820
        %913 = vmatpush1.bf16.msra.mxu0 %v819
        %914 = vmatprep.subr.bf16.mxu0 %v824
        %915 = vmatpush1.bf16.msra.mxu0 %v823
        %916 = vmatprep.subr.bf16.mxu0 %v828
        %917 = vmatpush1.bf16.msra.mxu0 %v827
        %918 = vmatprep.subr.bf16.mxu0 0
        %919 = vmatpush1.bf16.msra.mxu0 0
        %920 = vmatprep.subr.bf16.mxu0 0
        %921 = vmatpush1.bf16.msra.mxu0 0
        %922 = vmatprep.subr.bf16.mxu0 0
        %923 = vmatpush1.bf16.msra.mxu0 0
        %924 = vmatprep.subr.bf16.mxu0 0
        %925 = vmatpush1.bf16.msra.mxu0 0
        %926 = vmatprep.subr.bf16.mxu0 0
        %927 = vmatpush1.bf16.msra.mxu0 0
        %928 = vmatprep.subr.bf16.mxu0 0
        %929 = vmatpush1.bf16.msra.mxu0 0
        %930 = vmatprep.subr.bf16.mxu0 0
        %931 = vmatpush1.bf16.msra.mxu0 0
        %932 = vmatprep.subr.bf16.mxu0 0
        %933 = vmatpush1.bf16.msra.mxu0 0
        %934 = vmatprep.mubr.bf16.mxu0 0
        %935 = vmatmul.mubr.bf16.gmra.mrb[0].mxu0 0
        %v936 = vpop.f32.mrb[0].mxu0
        %v937 = vadd.f32 0.0, %v936
        %v938 = vpop.f32.mrb[0].mxu0
        %v939 = vadd.f32 0.0, %v938
        %v940 = vpop.f32.mrb[0].mxu0
        %v941 = vpop.f32.mrb[0].mxu0
        %942 = vdwg.mxu0
        %v943 = vadd.f32 %v665, %v896
        %v944 = vadd.f32 %v666, %v898
        %v945 = vadd.f32 %v667, %v937
        %v946 = vadd.f32 %v668, %v939
        %v947 = vmul.f32 %v943, 0.5
        %v948 = vmul.f32 %v944, 0.5
        %v949 = vmul.f32 %v945, 0.5
        %v950 = vtanh.pop %v947
        %v951 = vtanh.pop %v948
        %v952 = vtanh.pop %v949
        %v953 = vmul.f32 %v950, 0.5
        %v954 = vmul.f32 %v951, 0.5
        %v955 = vmul.f32 %v952, 0.5
        %v956 = vadd.f32 %v953, 0.5
        %v957 = vadd.f32 %v954, 0.5
        %v958 = vadd.f32 %v955, 0.5
        %v959 = vtanh.pop %v946
        %v960 = vmul.f32 %v957, 0.0
        %v961 = vmul.f32 %v956, %v959
        %v962 = vadd.f32 %v960, %v961
        %v963 = vtanh.pop %v962
        %v964 = vmul.f32 %v958, %v963
        %v965 = vpack.c.bf16 %v964, %v964
        %966 = vst [vmem:[#allocation2] sm:$0xf] %v965
        %s967 = smul.u32 1, 4
        %s968 = smul.addr %s967, 8
        %s969 = scalar_lea.vmem [#allocation3], %s968
        %v970 = vld [vmem:[%s969] sm:$0xff]
        %v971 = vld [vmem:[%s969 + $0x8] sm:$0xff]
        %v972 = vld [vmem:[%s969 + $0x10] sm:$0xff]
        %v973 = vld [vmem:[%s969 + $0x18] sm:$0xff]
        %v974 = vld [vmem:[#allocation4] sm:$0xff]
        %v975 = vld [vmem:[#allocation4 + $0x8] sm:$0xff]
        %v976 = vld [vmem:[#allocation4 + $0x10] sm:$0xff]
        %v977 = vld [vmem:[#allocation4 + $0x18] sm:$0xff]
        %v978 = vld [vmem:[#allocation4 + $0x20] sm:$0xff]
        %v979 = vld [vmem:[#allocation4 + $0x28] sm:$0xff]
        %v980 = vld [vmem:[#allocation4 + $0x30] sm:$0xff]
        %v981 = vld [vmem:[#allocation4 + $0x38] sm:$0xff]
        %v982 = vld [vmem:[#allocation4 + $0x40] sm:$0xff]
        %v983 = vld [vmem:[#allocation4 + $0x48] sm:$0xff]
        %v984 = vld [vmem:[#allocation4 + $0x50] sm:$0xff]
        %v985 = vld [vmem:[#allocation4 + $0x58] sm:$0xff]
        %v986 = vld [vmem:[#allocation4 + $0x60] sm:$0xff]
        %v987 = vld [vmem:[#allocation4 + $0x68] sm:$0xff]
        %v988 = vld [vmem:[#allocation4 + $0x70] sm:$0xff]
        %v989 = vld [vmem:[#allocation4 + $0x78] sm:$0xff]
        %v990 = vld [vmem:[#allocation4 + $0x80] sm:$0xff]
        %v991 = vld [vmem:[#allocation4 + $0x88] sm:$0xff]
        %v992 = vld [vmem:[#allocation4 + $0x90] sm:$0xff]
        %v993 = vld [vmem:[#allocation4 + $0x98] sm:$0xff]
        %v994 = vld [vmem:[#allocation4 + $0xa0] sm:$0xff]
        %v995 = vld [vmem:[#allocation4 + $0xa8] sm:$0xff]
        %v996 = vld [vmem:[#allocation4 + $0xb0] sm:$0xff]
        %v997 = vld [vmem:[#allocation4 + $0xb8] sm:$0xff]
        %v998 = vld [vmem:[#allocation4 + $0xc0] sm:$0xff]
        %v999 = vld [vmem:[#allocation4 + $0xc8] sm:$0xff]
        %v1000 = vld [vmem:[#allocation4 + $0xd0] sm:$0xff]
        %v1001 = vld [vmem:[#allocation4 + $0xd8] sm:$0xff]
        %v1002 = vld [vmem:[#allocation4 + $0xe0] sm:$0xff]
        %v1003 = vld [vmem:[#allocation4 + $0xe8] sm:$0xff]
        %v1004 = vld [vmem:[#allocation4 + $0xf0] sm:$0xff]
        %v1005 = vld [vmem:[#allocation4 + $0xf8] sm:$0xff]
        %v1038 = vunpack.c.l.b16 %v974
        %v1039 = vunpack.c.h.b16 %v974
        %v1040 = vunpack.c.l.b16 %v975
        %v1041 = vunpack.c.h.b16 %v975
        %v1042 = vunpack.c.l.b16 %v976
        %v1043 = vunpack.c.h.b16 %v976
        %v1044 = vunpack.c.l.b16 %v977
        %v1045 = vunpack.c.h.b16 %v977
        %v1046 = vunpack.c.l.b16 %v978
        %v1047 = vunpack.c.h.b16 %v978
        %v1048 = vunpack.c.l.b16 %v979
        %v1049 = vunpack.c.h.b16 %v979
        %v1050 = vunpack.c.l.b16 %v980
        %v1051 = vunpack.c.h.b16 %v980
        %v1052 = vunpack.c.l.b16 %v981
        %v1053 = vunpack.c.h.b16 %v981
        %v1054 = vunpack.c.l.b16 %v982
        %v1055 = vunpack.c.h.b16 %v982
        %v1056 = vunpack.c.l.b16 %v983
        %v1057 = vunpack.c.h.b16 %v983
        %v1058 = vunpack.c.l.b16 %v984
        %v1059 = vunpack.c.h.b16 %v984
        %v1060 = vunpack.c.l.b16 %v985
        %v1061 = vunpack.c.h.b16 %v985
        %v1062 = vunpack.c.l.b16 %v986
        %v1063 = vunpack.c.h.b16 %v986
        %v1064 = vunpack.c.l.b16 %v987
        %v1065 = vunpack.c.h.b16 %v987
        %v1066 = vunpack.c.l.b16 %v988
        %v1067 = vunpack.c.h.b16 %v988
        %v1068 = vunpack.c.l.b16 %v989
        %v1069 = vunpack.c.h.b16 %v989
        %v1070 = vunpack.c.l.b16 %v990
        %v1071 = vunpack.c.h.b16 %v990
        %v1072 = vunpack.c.l.b16 %v991
        %v1073 = vunpack.c.h.b16 %v991
        %v1074 = vunpack.c.l.b16 %v992
        %v1075 = vunpack.c.h.b16 %v992
        %v1076 = vunpack.c.l.b16 %v993
        %v1077 = vunpack.c.h.b16 %v993
        %v1078 = vunpack.c.l.b16 %v994
        %v1079 = vunpack.c.h.b16 %v994
        %v1080 = vunpack.c.l.b16 %v995
        %v1081 = vunpack.c.h.b16 %v995
        %v1082 = vunpack.c.l.b16 %v996
        %v1083 = vunpack.c.h.b16 %v996
        %v1084 = vunpack.c.l.b16 %v997
        %v1085 = vunpack.c.h.b16 %v997
        %v1086 = vunpack.c.l.b16 %v998
        %v1087 = vunpack.c.h.b16 %v998
        %v1088 = vunpack.c.l.b16 %v999
        %v1089 = vunpack.c.h.b16 %v999
        %v1090 = vunpack.c.l.b16 %v1000
        %v1091 = vunpack.c.h.b16 %v1000
        %v1092 = vunpack.c.l.b16 %v1001
        %v1093 = vunpack.c.h.b16 %v1001
        %v1094 = vunpack.c.l.b16 %v1002
        %v1095 = vunpack.c.h.b16 %v1002
        %v1096 = vunpack.c.l.b16 %v1003
        %v1097 = vunpack.c.h.b16 %v1003
        %v1098 = vunpack.c.l.b16 %v1004
        %v1099 = vunpack.c.h.b16 %v1004
        %v1100 = vunpack.c.l.b16 %v1005
        %v1101 = vunpack.c.h.b16 %v1005
        %v1102 = vpack.c.b16 %v1042, %v1038
        %v1103 = vpack.c.b16 %v1043, %v1039
        %v1104 = vpack.c.b16 %v1044, %v1040
        %v1105 = vpack.c.b16 %v1045, %v1041
        %v1106 = vpack.c.b16 %v1050, %v1046
        %v1107 = vpack.c.b16 %v1051, %v1047
        %v1108 = vpack.c.b16 %v1052, %v1048
        %v1109 = vpack.c.b16 %v1053, %v1049
        %v1110 = vpack.c.b16 %v1058, %v1054
        %v1111 = vpack.c.b16 %v1059, %v1055
        %v1112 = vpack.c.b16 %v1060, %v1056
        %v1113 = vpack.c.b16 %v1061, %v1057
        %v1114 = vpack.c.b16 %v1066, %v1062
        %v1115 = vpack.c.b16 %v1067, %v1063
        %v1116 = vpack.c.b16 %v1068, %v1064
        %v1117 = vpack.c.b16 %v1069, %v1065
        %v1118 = vpack.c.b16 %v1074, %v1070
        %v1119 = vpack.c.b16 %v1075, %v1071
        %v1120 = vpack.c.b16 %v1076, %v1072
        %v1121 = vpack.c.b16 %v1077, %v1073
        %v1122 = vpack.c.b16 %v1082, %v1078
        %v1123 = vpack.c.b16 %v1083, %v1079
        %v1124 = vpack.c.b16 %v1084, %v1080
        %v1125 = vpack.c.b16 %v1085, %v1081
        %v1126 = vpack.c.b16 %v1090, %v1086
        %v1127 = vpack.c.b16 %v1091, %v1087
        %v1128 = vpack.c.b16 %v1092, %v1088
        %v1129 = vpack.c.b16 %v1093, %v1089
        %v1130 = vpack.c.b16 %v1098, %v1094
        %v1131 = vpack.c.b16 %v1099, %v1095
        %v1132 = vpack.c.b16 %v1100, %v1096
        %v1133 = vpack.c.b16 %v1101, %v1097
        %1166 = vmatprep.subr.bf16.mxu0 %v1103
        %1167 = vmatpush1.bf16.msra.mxu0 %v1102
        %1168 = vmatprep.subr.bf16.mxu0 %v1107
        %1169 = vmatpush1.bf16.msra.mxu0 %v1106
        %1170 = vmatprep.subr.bf16.mxu0 %v1111
        %1171 = vmatpush1.bf16.msra.mxu0 %v1110
        %1172 = vmatprep.subr.bf16.mxu0 %v1115
        %1173 = vmatpush1.bf16.msra.mxu0 %v1114
        %1174 = vmatprep.subr.bf16.mxu0 %v1119
        %1175 = vmatpush1.bf16.msra.mxu0 %v1118
        %1176 = vmatprep.subr.bf16.mxu0 %v1123
        %1177 = vmatpush1.bf16.msra.mxu0 %v1122
        %1178 = vmatprep.subr.bf16.mxu0 %v1127
        %1179 = vmatpush1.bf16.msra.mxu0 %v1126
        %1180 = vmatprep.subr.bf16.mxu0 %v1131
        %1181 = vmatpush1.bf16.msra.mxu0 %v1130
        %1182 = vmatprep.subr.bf16.mxu0 0
        %1183 = vmatpush1.bf16.msra.mxu0 0
        %1184 = vmatprep.subr.bf16.mxu0 0
        %1185 = vmatpush1.bf16.msra.mxu0 0
        %1186 = vmatprep.subr.bf16.mxu0 0
        %1187 = vmatpush1.bf16.msra.mxu0 0
        %1188 = vmatprep.subr.bf16.mxu0 0
        %1189 = vmatpush1.bf16.msra.mxu0 0
        %1190 = vmatprep.subr.bf16.mxu0 0
        %1191 = vmatpush1.bf16.msra.mxu0 0
        %1192 = vmatprep.subr.bf16.mxu0 0
        %1193 = vmatpush1.bf16.msra.mxu0 0
        %1194 = vmatprep.subr.bf16.mxu0 0
        %1195 = vmatpush1.bf16.msra.mxu0 0
        %1196 = vmatprep.subr.bf16.mxu0 0
        %1197 = vmatpush1.bf16.msra.mxu0 0
        %1198 = vmatprep.mubr.bf16.mxu0 0
        %1199 = vmatmul.mubr.bf16.gmra.mrb[0].mxu0 %v965
        %v1200 = vpop.f32.mrb[0].mxu0
        %v1201 = vadd.f32 0.0, %v1200
        %v1202 = vpop.f32.mrb[0].mxu0
        %v1203 = vadd.f32 0.0, %v1202
        %v1204 = vpop.f32.mrb[0].mxu0
        %v1205 = vpop.f32.mrb[0].mxu0
        %1206 = vdwg.mxu0
        %1207 = vmatprep.subr.bf16.mxu0 %v1105
        %1208 = vmatpush1.bf16.msra.mxu0 %v1104
        %1209 = vmatprep.subr.bf16.mxu0 %v1109
        %1210 = vmatpush1.bf16.msra.mxu0 %v1108
        %1211 = vmatprep.subr.bf16.mxu0 %v1113
        %1212 = vmatpush1.bf16.msra.mxu0 %v1112
        %1213 = vmatprep.subr.bf16.mxu0 %v1117
        %1214 = vmatpush1.bf16.msra.mxu0 %v1116
        %1215 = vmatprep.subr.bf16.mxu0 %v1121
        %1216 = vmatpush1.bf16.msra.mxu0 %v1120
        %1217 = vmatprep.subr.bf16.mxu0 %v1125
        %1218 = vmatpush1.bf16.msra.mxu0 %v1124
        %1219 = vmatprep.subr.bf16.mxu0 %v1129
        %1220 = vmatpush1.bf16.msra.mxu0 %v1128
        %1221 = vmatprep.subr.bf16.mxu0 %v1133
        %1222 = vmatpush1.bf16.msra.mxu0 %v1132
        %1223 = vmatprep.subr.bf16.mxu0 0
        %1224 = vmatpush1.bf16.msra.mxu0 0
        %1225 = vmatprep.subr.bf16.mxu0 0
        %1226 = vmatpush1.bf16.msra.mxu0 0
        %1227 = vmatprep.subr.bf16.mxu0 0
        %1228 = vmatpush1.bf16.msra.mxu0 0
        %1229 = vmatprep.subr.bf16.mxu0 0
        %1230 = vmatpush1.bf16.msra.mxu0 0
        %1231 = vmatprep.subr.bf16.mxu0 0
        %1232 = vmatpush1.bf16.msra.mxu0 0
        %1233 = vmatprep.subr.bf16.mxu0 0
        %1234 = vmatpush1.bf16.msra.mxu0 0
        %1235 = vmatprep.subr.bf16.mxu0 0
        %1236 = vmatpush1.bf16.msra.mxu0 0
        %1237 = vmatprep.subr.bf16.mxu0 0
        %1238 = vmatpush1.bf16.msra.mxu0 0
        %1239 = vmatprep.mubr.bf16.mxu0 0
        %1240 = vmatmul.mubr.bf16.gmra.mrb[0].mxu0 %v965
        %v1241 = vpop.f32.mrb[0].mxu0
        %v1242 = vadd.f32 0.0, %v1241
        %v1243 = vpop.f32.mrb[0].mxu0
        %v1244 = vadd.f32 0.0, %v1243
        %v1245 = vpop.f32.mrb[0].mxu0
        %v1246 = vpop.f32.mrb[0].mxu0
        %1247 = vdwg.mxu0
        %v1248 = vadd.f32 %v970, %v1201
        %v1249 = vadd.f32 %v971, %v1203
        %v1250 = vadd.f32 %v972, %v1242
        %v1251 = vadd.f32 %v973, %v1244
        %v1252 = vmul.f32 %v1248, 0.5
        %v1253 = vmul.f32 %v1249, 0.5
        %v1254 = vmul.f32 %v1250, 0.5
        %v1255 = vtanh.pop %v1252
        %v1256 = vtanh.pop %v1253
        %v1257 = vtanh.pop %v1254
        %v1258 = vmul.f32 %v1255, 0.5
        %v1259 = vmul.f32 %v1256, 0.5
        %v1260 = vmul.f32 %v1257, 0.5
        %v1261 = vadd.f32 %v1258, 0.5
        %v1262 = vadd.f32 %v1259, 0.5
        %v1263 = vadd.f32 %v1260, 0.5
        %v1264 = vtanh.pop %v1251
        %v1265 = vmul.f32 %v1262, %v962
        %v1266 = vmul.f32 %v1261, %v1264
        %v1267 = vadd.f32 %v1265, %v1266
        %v1268 = vtanh.pop %v1267
        %v1269 = vmul.f32 %v1263, %v1268
        %v1270 = vpack.c.bf16 %v1269, %v1269
        %s1271 = scalar_lea.vmem [#allocation2], 4
        %1272 = vst [vmem:[%s1271] sm:$0xf] %v1270
        %s1273 = smul.u32 2, 4
        %s1274 = smul.addr %s1273, 8
        %s1275 = scalar_lea.vmem [#allocation3], %s1274
        %v1276 = vld [vmem:[%s1275] sm:$0xff]
        %v1277 = vld [vmem:[%s1275 + $0x8] sm:$0xff]
        %v1278 = vld [vmem:[%s1275 + $0x10] sm:$0xff]
        %v1279 = vld [vmem:[%s1275 + $0x18] sm:$0xff]
        %v1280 = vld [vmem:[#allocation4] sm:$0xff]
        %v1281 = vld [vmem:[#allocation4 + $0x8] sm:$0xff]
        %v1282 = vld [vmem:[#allocation4 + $0x10] sm:$0xff]
        %v1283 = vld [vmem:[#allocation4 + $0x18] sm:$0xff]
        %v1284 = vld [vmem:[#allocation4 + $0x20] sm:$0xff]
        %v1285 = vld [vmem:[#allocation4 + $0x28] sm:$0xff]
        %v1286 = vld [vmem:[#allocation4 + $0x30] sm:$0xff]
        %v1287 = vld [vmem:[#allocation4 + $0x38] sm:$0xff]
        %v1288 = vld [vmem:[#allocation4 + $0x40] sm:$0xff]
        %v1289 = vld [vmem:[#allocation4 + $0x48] sm:$0xff]
        %v1290 = vld [vmem:[#allocation4 + $0x50] sm:$0xff]
        %v1291 = vld [vmem:[#allocation4 + $0x58] sm:$0xff]
        %v1292 = vld [vmem:[#allocation4 + $0x60] sm:$0xff]
        %v1293 = vld [vmem:[#allocation4 + $0x68] sm:$0xff]
        %v1294 = vld [vmem:[#allocation4 + $0x70] sm:$0xff]
        %v1295 = vld [vmem:[#allocation4 + $0x78] sm:$0xff]
        %v1296 = vld [vmem:[#allocation4 + $0x80] sm:$0xff]
        %v1297 = vld [vmem:[#allocation4 + $0x88] sm:$0xff]
        %v1298 = vld [vmem:[#allocation4 + $0x90] sm:$0xff]
        %v1299 = vld [vmem:[#allocation4 + $0x98] sm:$0xff]
        %v1300 = vld [vmem:[#allocation4 + $0xa0] sm:$0xff]
        %v1301 = vld [vmem:[#allocation4 + $0xa8] sm:$0xff]
        %v1302 = vld [vmem:[#allocation4 + $0xb0] sm:$0xff]
        %v1303 = vld [vmem:[#allocation4 + $0xb8] sm:$0xff]
        %v1304 = vld [vmem:[#allocation4 + $0xc0] sm:$0xff]
        %v1305 = vld [vmem:[#allocation4 + $0xc8] sm:$0xff]
        %v1306 = vld [vmem:[#allocation4 + $0xd0] sm:$0xff]
        %v1307 = vld [vmem:[#allocation4 + $0xd8] sm:$0xff]
        %v1308 = vld [vmem:[#allocation4 + $0xe0] sm:$0xff]
        %v1309 = vld [vmem:[#allocation4 + $0xe8] sm:$0xff]
        %v1310 = vld [vmem:[#allocation4 + $0xf0] sm:$0xff]
        %v1311 = vld [vmem:[#allocation4 + $0xf8] sm:$0xff]
        %v1344 = vunpack.c.l.b16 %v1280
        %v1345 = vunpack.c.h.b16 %v1280
        %v1346 = vunpack.c.l.b16 %v1281
        %v1347 = vunpack.c.h.b16 %v1281
        %v1348 = vunpack.c.l.b16 %v1282
        %v1349 = vunpack.c.h.b16 %v1282
        %v1350 = vunpack.c.l.b16 %v1283
        %v1351 = vunpack.c.h.b16 %v1283
        %v1352 = vunpack.c.l.b16 %v1284
        %v1353 = vunpack.c.h.b16 %v1284
        %v1354 = vunpack.c.l.b16 %v1285
        %v1355 = vunpack.c.h.b16 %v1285
        %v1356 = vunpack.c.l.b16 %v1286
        %v1357 = vunpack.c.h.b16 %v1286
        %v1358 = vunpack.c.l.b16 %v1287
        %v1359 = vunpack.c.h.b16 %v1287
        %v1360 = vunpack.c.l.b16 %v1288
        %v1361 = vunpack.c.h.b16 %v1288
        %v1362 = vunpack.c.l.b16 %v1289
        %v1363 = vunpack.c.h.b16 %v1289
        %v1364 = vunpack.c.l.b16 %v1290
        %v1365 = vunpack.c.h.b16 %v1290
        %v1366 = vunpack.c.l.b16 %v1291
        %v1367 = vunpack.c.h.b16 %v1291
        %v1368 = vunpack.c.l.b16 %v1292
        %v1369 = vunpack.c.h.b16 %v1292
        %v1370 = vunpack.c.l.b16 %v1293
        %v1371 = vunpack.c.h.b16 %v1293
        %v1372 = vunpack.c.l.b16 %v1294
        %v1373 = vunpack.c.h.b16 %v1294
        %v1374 = vunpack.c.l.b16 %v1295
        %v1375 = vunpack.c.h.b16 %v1295
        %v1376 = vunpack.c.l.b16 %v1296
        %v1377 = vunpack.c.h.b16 %v1296
        %v1378 = vunpack.c.l.b16 %v1297
        %v1379 = vunpack.c.h.b16 %v1297
        %v1380 = vunpack.c.l.b16 %v1298
        %v1381 = vunpack.c.h.b16 %v1298
        %v1382 = vunpack.c.l.b16 %v1299
        %v1383 = vunpack.c.h.b16 %v1299
        %v1384 = vunpack.c.l.b16 %v1300
        %v1385 = vunpack.c.h.b16 %v1300
        %v1386 = vunpack.c.l.b16 %v1301
        %v1387 = vunpack.c.h.b16 %v1301
        %v1388 = vunpack.c.l.b16 %v1302
        %v1389 = vunpack.c.h.b16 %v1302
        %v1390 = vunpack.c.l.b16 %v1303
        %v1391 = vunpack.c.h.b16 %v1303
        %v1392 = vunpack.c.l.b16 %v1304
        %v1393 = vunpack.c.h.b16 %v1304
        %v1394 = vunpack.c.l.b16 %v1305
        %v1395 = vunpack.c.h.b16 %v1305
        %v1396 = vunpack.c.l.b16 %v1306
        %v1397 = vunpack.c.h.b16 %v1306
        %v1398 = vunpack.c.l.b16 %v1307
        %v1399 = vunpack.c.h.b16 %v1307
        %v1400 = vunpack.c.l.b16 %v1308
        %v1401 = vunpack.c.h.b16 %v1308
        %v1402 = vunpack.c.l.b16 %v1309
        %v1403 = vunpack.c.h.b16 %v1309
        %v1404 = vunpack.c.l.b16 %v1310
        %v1405 = vunpack.c.h.b16 %v1310
        %v1406 = vunpack.c.l.b16 %v1311
        %v1407 = vunpack.c.h.b16 %v1311
        %v1408 = vpack.c.b16 %v1348, %v1344
        %v1409 = vpack.c.b16 %v1349, %v1345
        %v1410 = vpack.c.b16 %v1350, %v1346
        %v1411 = vpack.c.b16 %v1351, %v1347
        %v1412 = vpack.c.b16 %v1356, %v1352
        %v1413 = vpack.c.b16 %v1357, %v1353
        %v1414 = vpack.c.b16 %v1358, %v1354
        %v1415 = vpack.c.b16 %v1359, %v1355
        %v1416 = vpack.c.b16 %v1364, %v1360
        %v1417 = vpack.c.b16 %v1365, %v1361
        %v1418 = vpack.c.b16 %v1366, %v1362
        %v1419 = vpack.c.b16 %v1367, %v1363
        %v1420 = vpack.c.b16 %v1372, %v1368
        %v1421 = vpack.c.b16 %v1373, %v1369
        %v1422 = vpack.c.b16 %v1374, %v1370
        %v1423 = vpack.c.b16 %v1375, %v1371
        %v1424 = vpack.c.b16 %v1380, %v1376
        %v1425 = vpack.c.b16 %v1381, %v1377
        %v1426 = vpack.c.b16 %v1382, %v1378
        %v1427 = vpack.c.b16 %v1383, %v1379
        %v1428 = vpack.c.b16 %v1388, %v1384
        %v1429 = vpack.c.b16 %v1389, %v1385
        %v1430 = vpack.c.b16 %v1390, %v1386
        %v1431 = vpack.c.b16 %v1391, %v1387
        %v1432 = vpack.c.b16 %v1396, %v1392
        %v1433 = vpack.c.b16 %v1397, %v1393
        %v1434 = vpack.c.b16 %v1398, %v1394
        %v1435 = vpack.c.b16 %v1399, %v1395
        %v1436 = vpack.c.b16 %v1404, %v1400
        %v1437 = vpack.c.b16 %v1405, %v1401
        %v1438 = vpack.c.b16 %v1406, %v1402
        %v1439 = vpack.c.b16 %v1407, %v1403
        %1472 = vmatprep.subr.bf16.mxu0 %v1409
        %1473 = vmatpush1.bf16.msra.mxu0 %v1408
        %1474 = vmatprep.subr.bf16.mxu0 %v1413
        %1475 = vmatpush1.bf16.msra.mxu0 %v1412
        %1476 = vmatprep.subr.bf16.mxu0 %v1417
        %1477 = vmatpush1.bf16.msra.mxu0 %v1416
        %1478 = vmatprep.subr.bf16.mxu0 %v1421
        %1479 = vmatpush1.bf16.msra.mxu0 %v1420
        %1480 = vmatprep.subr.bf16.mxu0 %v1425
        %1481 = vmatpush1.bf16.msra.mxu0 %v1424
        %1482 = vmatprep.subr.bf16.mxu0 %v1429
        %1483 = vmatpush1.bf16.msra.mxu0 %v1428
        %1484 = vmatprep.subr.bf16.mxu0 %v1433
        %1485 = vmatpush1.bf16.msra.mxu0 %v1432
        %1486 = vmatprep.subr.bf16.mxu0 %v1437
        %1487 = vmatpush1.bf16.msra.mxu0 %v1436
        %1488 = vmatprep.subr.bf16.mxu0 0
        %1489 = vmatpush1.bf16.msra.mxu0 0
        %1490 = vmatprep.subr.bf16.mxu0 0
        %1491 = vmatpush1.bf16.msra.mxu0 0
        %1492 = vmatprep.subr.bf16.mxu0 0
        %1493 = vmatpush1.bf16.msra.mxu0 0
        %1494 = vmatprep.subr.bf16.mxu0 0
        %1495 = vmatpush1.bf16.msra.mxu0 0
        %1496 = vmatprep.subr.bf16.mxu0 0
        %1497 = vmatpush1.bf16.msra.mxu0 0
        %1498 = vmatprep.subr.bf16.mxu0 0
        %1499 = vmatpush1.bf16.msra.mxu0 0
        %1500 = vmatprep.subr.bf16.mxu0 0
        %1501 = vmatpush1.bf16.msra.mxu0 0
        %1502 = vmatprep.subr.bf16.mxu0 0
        %1503 = vmatpush1.bf16.msra.mxu0 0
        %1504 = vmatprep.mubr.bf16.mxu0 0
        %1505 = vmatmul.mubr.bf16.gmra.mrb[0].mxu0 %v1270
        %v1506 = vpop.f32.mrb[0].mxu0
        %v1507 = vadd.f32 0.0, %v1506
        %v1508 = vpop.f32.mrb[0].mxu0
        %v1509 = vadd.f32 0.0, %v1508
        %v1510 = vpop.f32.mrb[0].mxu0
        %v1511 = vpop.f32.mrb[0].mxu0
        %1512 = vdwg.mxu0
        %1513 = vmatprep.subr.bf16.mxu0 %v1411
        %1514 = vmatpush1.bf16.msra.mxu0 %v1410
        %1515 = vmatprep.subr.bf16.mxu0 %v1415
        %1516 = vmatpush1.bf16.msra.mxu0 %v1414
        %1517 = vmatprep.subr.bf16.mxu0 %v1419
        %1518 = vmatpush1.bf16.msra.mxu0 %v1418
        %1519 = vmatprep.subr.bf16.mxu0 %v1423
        %1520 = vmatpush1.bf16.msra.mxu0 %v1422
        %1521 = vmatprep.subr.bf16.mxu0 %v1427
        %1522 = vmatpush1.bf16.msra.mxu0 %v1426
        %1523 = vmatprep.subr.bf16.mxu0 %v1431
        %1524 = vmatpush1.bf16.msra.mxu0 %v1430
        %1525 = vmatprep.subr.bf16.mxu0 %v1435
        %1526 = vmatpush1.bf16.msra.mxu0 %v1434
        %1527 = vmatprep.subr.bf16.mxu0 %v1439
        %1528 = vmatpush1.bf16.msra.mxu0 %v1438
        %1529 = vmatprep.subr.bf16.mxu0 0
        %1530 = vmatpush1.bf16.msra.mxu0 0
        %1531 = vmatprep.subr.bf16.mxu0 0
        %1532 = vmatpush1.bf16.msra.mxu0 0
        %1533 = vmatprep.subr.bf16.mxu0 0
        %1534 = vmatpush1.bf16.msra.mxu0 0
        %1535 = vmatprep.subr.bf16.mxu0 0
        %1536 = vmatpush1.bf16.msra.mxu0 0
        %1537 = vmatprep.subr.bf16.mxu0 0
        %1538 = vmatpush1.bf16.msra.mxu0 0
        %1539 = vmatprep.subr.bf16.mxu0 0
        %1540 = vmatpush1.bf16.msra.mxu0 0
        %1541 = vmatprep.subr.bf16.mxu0 0
        %1542 = vmatpush1.bf16.msra.mxu0 0
        %1543 = vmatprep.subr.bf16.mxu0 0
        %1544 = vmatpush1.bf16.msra.mxu0 0
        %1545 = vmatprep.mubr.bf16.mxu0 0
        %1546 = vmatmul.mubr.bf16.gmra.mrb[0].mxu0 %v1270
        %v1547 = vpop.f32.mrb[0].mxu0
        %v1548 = vadd.f32 0.0, %v1547
        %v1549 = vpop.f32.mrb[0].mxu0
        %v1550 = vadd.f32 0.0, %v1549
        %v1551 = vpop.f32.mrb[0].mxu0
        %v1552 = vpop.f32.mrb[0].mxu0
        %1553 = vdwg.mxu0
        %v1554 = vadd.f32 %v1276, %v1507
        %v1555 = vadd.f32 %v1277, %v1509
        %v1556 = vadd.f32 %v1278, %v1548
        %v1557 = vadd.f32 %v1279, %v1550
        %v1558 = vmul.f32 %v1554, 0.5
        %v1559 = vmul.f32 %v1555, 0.5
        %v1560 = vmul.f32 %v1556, 0.5
        %v1561 = vtanh.pop %v1558
        %v1562 = vtanh.pop %v1559
        %v1563 = vtanh.pop %v1560
        %v1564 = vmul.f32 %v1561, 0.5
        %v1565 = vmul.f32 %v1562, 0.5
        %v1566 = vmul.f32 %v1563, 0.5
        %v1567 = vadd.f32 %v1564, 0.5
        %v1568 = vadd.f32 %v1565, 0.5
        %v1569 = vadd.f32 %v1566, 0.5
        %v1570 = vtanh.pop %v1557
        %v1571 = vmul.f32 %v1568, %v1267
        %v1572 = vmul.f32 %v1567, %v1570
        %v1573 = vadd.f32 %v1571, %v1572
        %v1574 = vtanh.pop %v1573
        %v1575 = vmul.f32 %v1569, %v1574
        %v1576 = vpack.c.bf16 %v1575, %v1575
        %s1577 = scalar_lea.vmem [#allocation2], 8
        %1578 = vst [vmem:[%s1577] sm:$0xf] %v1576
        %s1579 = smul.u32 3, 4
        %s1580 = smul.addr %s1579, 8
        %s1581 = scalar_lea.vmem [#allocation3], %s1580
        %v1582 = vld [vmem:[%s1581] sm:$0xff]
        %v1583 = vld [vmem:[%s1581 + $0x8] sm:$0xff]
        %v1584 = vld [vmem:[%s1581 + $0x10] sm:$0xff]
        %v1585 = vld [vmem:[%s1581 + $0x18] sm:$0xff]
        %v1586 = vld [vmem:[#allocation4] sm:$0xff]
        %v1587 = vld [vmem:[#allocation4 + $0x8] sm:$0xff]
        %v1588 = vld [vmem:[#allocation4 + $0x10] sm:$0xff]
        %v1589 = vld [vmem:[#allocation4 + $0x18] sm:$0xff]
        %v1590 = vld [vmem:[#allocation4 + $0x20] sm:$0xff]
        %v1591 = vld [vmem:[#allocation4 + $0x28] sm:$0xff]
        %v1592 = vld [vmem:[#allocation4 + $0x30] sm:$0xff]
        %v1593 = vld [vmem:[#allocation4 + $0x38] sm:$0xff]
        %v1594 = vld [vmem:[#allocation4 + $0x40] sm:$0xff]
        %v1595 = vld [vmem:[#allocation4 + $0x48] sm:$0xff]
        %v1596 = vld [vmem:[#allocation4 + $0x50] sm:$0xff]
        %v1597 = vld [vmem:[#allocation4 + $0x58] sm:$0xff]
        %v1598 = vld [vmem:[#allocation4 + $0x60] sm:$0xff]
        %v1599 = vld [vmem:[#allocation4 + $0x68] sm:$0xff]
        %v1600 = vld [vmem:[#allocation4 + $0x70] sm:$0xff]
        %v1601 = vld [vmem:[#allocation4 + $0x78] sm:$0xff]
        %v1602 = vld [vmem:[#allocation4 + $0x80] sm:$0xff]
        %v1603 = vld [vmem:[#allocation4 + $0x88] sm:$0xff]
        %v1604 = vld [vmem:[#allocation4 + $0x90] sm:$0xff]
        %v1605 = vld [vmem:[#allocation4 + $0x98] sm:$0xff]
        %v1606 = vld [vmem:[#allocation4 + $0xa0] sm:$0xff]
        %v1607 = vld [vmem:[#allocation4 + $0xa8] sm:$0xff]
        %v1608 = vld [vmem:[#allocation4 + $0xb0] sm:$0xff]
        %v1609 = vld [vmem:[#allocation4 + $0xb8] sm:$0xff]
        %v1610 = vld [vmem:[#allocation4 + $0xc0] sm:$0xff]
        %v1611 = vld [vmem:[#allocation4 + $0xc8] sm:$0xff]
        %v1612 = vld [vmem:[#allocation4 + $0xd0] sm:$0xff]
        %v1613 = vld [vmem:[#allocation4 + $0xd8] sm:$0xff]
        %v1614 = vld [vmem:[#allocation4 + $0xe0] sm:$0xff]
        %v1615 = vld [vmem:[#allocation4 + $0xe8] sm:$0xff]
        %v1616 = vld [vmem:[#allocation4 + $0xf0] sm:$0xff]
        %v1617 = vld [vmem:[#allocation4 + $0xf8] sm:$0xff]
        %v1650 = vunpack.c.l.b16 %v1586
        %v1651 = vunpack.c.h.b16 %v1586
        %v1652 = vunpack.c.l.b16 %v1587
        %v1653 = vunpack.c.h.b16 %v1587
        %v1654 = vunpack.c.l.b16 %v1588
        %v1655 = vunpack.c.h.b16 %v1588
        %v1656 = vunpack.c.l.b16 %v1589
        %v1657 = vunpack.c.h.b16 %v1589
        %v1658 = vunpack.c.l.b16 %v1590
        %v1659 = vunpack.c.h.b16 %v1590
        %v1660 = vunpack.c.l.b16 %v1591
        %v1661 = vunpack.c.h.b16 %v1591
        %v1662 = vunpack.c.l.b16 %v1592
        %v1663 = vunpack.c.h.b16 %v1592
        %v1664 = vunpack.c.l.b16 %v1593
        %v1665 = vunpack.c.h.b16 %v1593
        %v1666 = vunpack.c.l.b16 %v1594
        %v1667 = vunpack.c.h.b16 %v1594
        %v1668 = vunpack.c.l.b16 %v1595
        %v1669 = vunpack.c.h.b16 %v1595
        %v1670 = vunpack.c.l.b16 %v1596
        %v1671 = vunpack.c.h.b16 %v1596
        %v1672 = vunpack.c.l.b16 %v1597
        %v1673 = vunpack.c.h.b16 %v1597
        %v1674 = vunpack.c.l.b16 %v1598
        %v1675 = vunpack.c.h.b16 %v1598
        %v1676 = vunpack.c.l.b16 %v1599
        %v1677 = vunpack.c.h.b16 %v1599
        %v1678 = vunpack.c.l.b16 %v1600
        %v1679 = vunpack.c.h.b16 %v1600
        %v1680 = vunpack.c.l.b16 %v1601
        %v1681 = vunpack.c.h.b16 %v1601
        %v1682 = vunpack.c.l.b16 %v1602
        %v1683 = vunpack.c.h.b16 %v1602
        %v1684 = vunpack.c.l.b16 %v1603
        %v1685 = vunpack.c.h.b16 %v1603
        %v1686 = vunpack.c.l.b16 %v1604
        %v1687 = vunpack.c.h.b16 %v1604
        %v1688 = vunpack.c.l.b16 %v1605
        %v1689 = vunpack.c.h.b16 %v1605
        %v1690 = vunpack.c.l.b16 %v1606
        %v1691 = vunpack.c.h.b16 %v1606
        %v1692 = vunpack.c.l.b16 %v1607
        %v1693 = vunpack.c.h.b16 %v1607
        %v1694 = vunpack.c.l.b16 %v1608
        %v1695 = vunpack.c.h.b16 %v1608
        %v1696 = vunpack.c.l.b16 %v1609
        %v1697 = vunpack.c.h.b16 %v1609
        %v1698 = vunpack.c.l.b16 %v1610
        %v1699 = vunpack.c.h.b16 %v1610
        %v1700 = vunpack.c.l.b16 %v1611
        %v1701 = vunpack.c.h.b16 %v1611
        %v1702 = vunpack.c.l.b16 %v1612
        %v1703 = vunpack.c.h.b16 %v1612
        %v1704 = vunpack.c.l.b16 %v1613
        %v1705 = vunpack.c.h.b16 %v1613
        %v1706 = vunpack.c.l.b16 %v1614
        %v1707 = vunpack.c.h.b16 %v1614
        %v1708 = vunpack.c.l.b16 %v1615
        %v1709 = vunpack.c.h.b16 %v1615
        %v1710 = vunpack.c.l.b16 %v1616
        %v1711 = vunpack.c.h.b16 %v1616
        %v1712 = vunpack.c.l.b16 %v1617
        %v1713 = vunpack.c.h.b16 %v1617
        %v1714 = vpack.c.b16 %v1654, %v1650
        %v1715 = vpack.c.b16 %v1655, %v1651
        %v1716 = vpack.c.b16 %v1656, %v1652
        %v1717 = vpack.c.b16 %v1657, %v1653
        %v1718 = vpack.c.b16 %v1662, %v1658
        %v1719 = vpack.c.b16 %v1663, %v1659
        %v1720 = vpack.c.b16 %v1664, %v1660
        %v1721 = vpack.c.b16 %v1665, %v1661
        %v1722 = vpack.c.b16 %v1670, %v1666
        %v1723 = vpack.c.b16 %v1671, %v1667
        %v1724 = vpack.c.b16 %v1672, %v1668
        %v1725 = vpack.c.b16 %v1673, %v1669
        %v1726 = vpack.c.b16 %v1678, %v1674
        %v1727 = vpack.c.b16 %v1679, %v1675
        %v1728 = vpack.c.b16 %v1680, %v1676
        %v1729 = vpack.c.b16 %v1681, %v1677
        %v1730 = vpack.c.b16 %v1686, %v1682
        %v1731 = vpack.c.b16 %v1687, %v1683
        %v1732 = vpack.c.b16 %v1688, %v1684
        %v1733 = vpack.c.b16 %v1689, %v1685
        %v1734 = vpack.c.b16 %v1694, %v1690
        %v1735 = vpack.c.b16 %v1695, %v1691
        %v1736 = vpack.c.b16 %v1696, %v1692
        %v1737 = vpack.c.b16 %v1697, %v1693
        %v1738 = vpack.c.b16 %v1702, %v1698
        %v1739 = vpack.c.b16 %v1703, %v1699
        %v1740 = vpack.c.b16 %v1704, %v1700
        %v1741 = vpack.c.b16 %v1705, %v1701
        %v1742 = vpack.c.b16 %v1710, %v1706
        %v1743 = vpack.c.b16 %v1711, %v1707
        %v1744 = vpack.c.b16 %v1712, %v1708
        %v1745 = vpack.c.b16 %v1713, %v1709
        %1778 = vmatprep.subr.bf16.mxu0 %v1715
        %1779 = vmatpush1.bf16.msra.mxu0 %v1714
        %1780 = vmatprep.subr.bf16.mxu0 %v1719
        %1781 = vmatpush1.bf16.msra.mxu0 %v1718
        %1782 = vmatprep.subr.bf16.mxu0 %v1723
        %1783 = vmatpush1.bf16.msra.mxu0 %v1722
        %1784 = vmatprep.subr.bf16.mxu0 %v1727
        %1785 = vmatpush1.bf16.msra.mxu0 %v1726
        %1786 = vmatprep.subr.bf16.mxu0 %v1731
        %1787 = vmatpush1.bf16.msra.mxu0 %v1730
        %1788 = vmatprep.subr.bf16.mxu0 %v1735
        %1789 = vmatpush1.bf16.msra.mxu0 %v1734
        %1790 = vmatprep.subr.bf16.mxu0 %v1739
        %1791 = vmatpush1.bf16.msra.mxu0 %v1738
        %1792 = vmatprep.subr.bf16.mxu0 %v1743
        %1793 = vmatpush1.bf16.msra.mxu0 %v1742
        %1794 = vmatprep.subr.bf16.mxu0 0
        %1795 = vmatpush1.bf16.msra.mxu0 0
        %1796 = vmatprep.subr.bf16.mxu0 0
        %1797 = vmatpush1.bf16.msra.mxu0 0
        %1798 = vmatprep.subr.bf16.mxu0 0
        %1799 = vmatpush1.bf16.msra.mxu0 0
        %1800 = vmatprep.subr.bf16.mxu0 0
        %1801 = vmatpush1.bf16.msra.mxu0 0
        %1802 = vmatprep.subr.bf16.mxu0 0
        %1803 = vmatpush1.bf16.msra.mxu0 0
        %1804 = vmatprep.subr.bf16.mxu0 0
        %1805 = vmatpush1.bf16.msra.mxu0 0
        %1806 = vmatprep.subr.bf16.mxu0 0
        %1807 = vmatpush1.bf16.msra.mxu0 0
        %1808 = vmatprep.subr.bf16.mxu0 0
        %1809 = vmatpush1.bf16.msra.mxu0 0
        %1810 = vmatprep.mubr.bf16.mxu0 0
        %1811 = vmatmul.mubr.bf16.gmra.mrb[0].mxu0 %v1576
        %v1812 = vpop.f32.mrb[0].mxu0
        %v1813 = vadd.f32 0.0, %v1812
        %v1814 = vpop.f32.mrb[0].mxu0
        %v1815 = vadd.f32 0.0, %v1814
        %v1816 = vpop.f32.mrb[0].mxu0
        %v1817 = vpop.f32.mrb[0].mxu0
        %1818 = vdwg.mxu0
        %1819 = vmatprep.subr.bf16.mxu0 %v1717
        %1820 = vmatpush1.bf16.msra.mxu0 %v1716
        %1821 = vmatprep.subr.bf16.mxu0 %v1721
        %1822 = vmatpush1.bf16.msra.mxu0 %v1720
        %1823 = vmatprep.subr.bf16.mxu0 %v1725
        %1824 = vmatpush1.bf16.msra.mxu0 %v1724
        %1825 = vmatprep.subr.bf16.mxu0 %v1729
        %1826 = vmatpush1.bf16.msra.mxu0 %v1728
        %1827 = vmatprep.subr.bf16.mxu0 %v1733
        %1828 = vmatpush1.bf16.msra.mxu0 %v1732
        %1829 = vmatprep.subr.bf16.mxu0 %v1737
        %1830 = vmatpush1.bf16.msra.mxu0 %v1736
        %1831 = vmatprep.subr.bf16.mxu0 %v1741
        %1832 = vmatpush1.bf16.msra.mxu0 %v1740
        %1833 = vmatprep.subr.bf16.mxu0 %v1745
        %1834 = vmatpush1.bf16.msra.mxu0 %v1744
        %1835 = vmatprep.subr.bf16.mxu0 0
        %1836 = vmatpush1.bf16.msra.mxu0 0
        %1837 = vmatprep.subr.bf16.mxu0 0
        %1838 = vmatpush1.bf16.msra.mxu0 0
        %1839 = vmatprep.subr.bf16.mxu0 0
        %1840 = vmatpush1.bf16.msra.mxu0 0
        %1841 = vmatprep.subr.bf16.mxu0 0
        %1842 = vmatpush1.bf16.msra.mxu0 0
        %1843 = vmatprep.subr.bf16.mxu0 0
        %1844 = vmatpush1.bf16.msra.mxu0 0
        %1845 = vmatprep.subr.bf16.mxu0 0
        %1846 = vmatpush1.bf16.msra.mxu0 0
        %1847 = vmatprep.subr.bf16.mxu0 0
        %1848 = vmatpush1.bf16.msra.mxu0 0
        %1849 = vmatprep.subr.bf16.mxu0 0
        %1850 = vmatpush1.bf16.msra.mxu0 0
        %1851 = vmatprep.mubr.bf16.mxu0 0
        %1852 = vmatmul.mubr.bf16.gmra.mrb[0].mxu0 %v1576
        %v1853 = vpop.f32.mrb[0].mxu0
        %v1854 = vadd.f32 0.0, %v1853
        %v1855 = vpop.f32.mrb[0].mxu0
        %v1856 = vadd.f32 0.0, %v1855
        %v1857 = vpop.f32.mrb[0].mxu0
        %v1858 = vpop.f32.mrb[0].mxu0
        %1859 = vdwg.mxu0
        %v1860 = vadd.f32 %v1582, %v1813
        %v1861 = vadd.f32 %v1583, %v1815
        %v1862 = vadd.f32 %v1584, %v1854
        %v1863 = vadd.f32 %v1585, %v1856
        %v1864 = vmul.f32 %v1860, 0.5
        %v1865 = vmul.f32 %v1861, 0.5
        %v1866 = vmul.f32 %v1862, 0.5
        %v1867 = vtanh.pop %v1864
        %v1868 = vtanh.pop %v1865
        %v1869 = vtanh.pop %v1866
        %v1870 = vmul.f32 %v1867, 0.5
        %v1871 = vmul.f32 %v1868, 0.5
        %v1872 = vmul.f32 %v1869, 0.5
        %v1873 = vadd.f32 %v1870, 0.5
        %v1874 = vadd.f32 %v1871, 0.5
        %v1875 = vadd.f32 %v1872, 0.5
        %v1876 = vtanh.pop %v1863
        %v1877 = vmul.f32 %v1874, %v1573
        %v1878 = vmul.f32 %v1873, %v1876
        %v1879 = vadd.f32 %v1877, %v1878
        %v1880 = vtanh.pop %v1879
        %v1881 = vmul.f32 %v1875, %v1880
        %v1882 = vpack.c.bf16 %v1881, %v1881
        %s1883 = scalar_lea.vmem [#allocation2], 12
        %1884 = vst [vmem:[%s1883] sm:$0xf] %v1882
        %s1885 = smul.u32 4, 4
        %s1886 = smul.addr %s1885, 8
        %s1887 = scalar_lea.vmem [#allocation3], %s1886
        %v1888 = vld [vmem:[%s1887] sm:$0xff]
        %v1889 = vld [vmem:[%s1887 + $0x8] sm:$0xff]
        %v1890 = vld [vmem:[%s1887 + $0x10] sm:$0xff]
        %v1891 = vld [vmem:[%s1887 + $0x18] sm:$0xff]
        %v1892 = vld [vmem:[#allocation4] sm:$0xff]
        %v1893 = vld [vmem:[#allocation4 + $0x8] sm:$0xff]
        %v1894 = vld [vmem:[#allocation4 + $0x10] sm:$0xff]
        %v1895 = vld [vmem:[#allocation4 + $0x18] sm:$0xff]
        %v1896 = vld [vmem:[#allocation4 + $0x20] sm:$0xff]
        %v1897 = vld [vmem:[#allocation4 + $0x28] sm:$0xff]
        %v1898 = vld [vmem:[#allocation4 + $0x30] sm:$0xff]
        %v1899 = vld [vmem:[#allocation4 + $0x38] sm:$0xff]
        %v1900 = vld [vmem:[#allocation4 + $0x40] sm:$0xff]
        %v1901 = vld [vmem:[#allocation4 + $0x48] sm:$0xff]
        %v1902 = vld [vmem:[#allocation4 + $0x50] sm:$0xff]
        %v1903 = vld [vmem:[#allocation4 + $0x58] sm:$0xff]
        %v1904 = vld [vmem:[#allocation4 + $0x60] sm:$0xff]
        %v1905 = vld [vmem:[#allocation4 + $0x68] sm:$0xff]
        %v1906 = vld [vmem:[#allocation4 + $0x70] sm:$0xff]
        %v1907 = vld [vmem:[#allocation4 + $0x78] sm:$0xff]
        %v1908 = vld [vmem:[#allocation4 + $0x80] sm:$0xff]
        %v1909 = vld [vmem:[#allocation4 + $0x88] sm:$0xff]
        %v1910 = vld [vmem:[#allocation4 + $0x90] sm:$0xff]
        %v1911 = vld [vmem:[#allocation4 + $0x98] sm:$0xff]
        %v1912 = vld [vmem:[#allocation4 + $0xa0] sm:$0xff]
        %v1913 = vld [vmem:[#allocation4 + $0xa8] sm:$0xff]
        %v1914 = vld [vmem:[#allocation4 + $0xb0] sm:$0xff]
        %v1915 = vld [vmem:[#allocation4 + $0xb8] sm:$0xff]
        %v1916 = vld [vmem:[#allocation4 + $0xc0] sm:$0xff]
        %v1917 = vld [vmem:[#allocation4 + $0xc8] sm:$0xff]
        %v1918 = vld [vmem:[#allocation4 + $0xd0] sm:$0xff]
        %v1919 = vld [vmem:[#allocation4 + $0xd8] sm:$0xff]
        %v1920 = vld [vmem:[#allocation4 + $0xe0] sm:$0xff]
        %v1921 = vld [vmem:[#allocation4 + $0xe8] sm:$0xff]
        %v1922 = vld [vmem:[#allocation4 + $0xf0] sm:$0xff]
        %v1923 = vld [vmem:[#allocation4 + $0xf8] sm:$0xff]
        %v1956 = vunpack.c.l.b16 %v1892
        %v1957 = vunpack.c.h.b16 %v1892
        %v1958 = vunpack.c.l.b16 %v1893
        %v1959 = vunpack.c.h.b16 %v1893
        %v1960 = vunpack.c.l.b16 %v1894
        %v1961 = vunpack.c.h.b16 %v1894
        %v1962 = vunpack.c.l.b16 %v1895
        %v1963 = vunpack.c.h.b16 %v1895
        %v1964 = vunpack.c.l.b16 %v1896
        %v1965 = vunpack.c.h.b16 %v1896
        %v1966 = vunpack.c.l.b16 %v1897
        %v1967 = vunpack.c.h.b16 %v1897
        %v1968 = vunpack.c.l.b16 %v1898
        %v1969 = vunpack.c.h.b16 %v1898
        %v1970 = vunpack.c.l.b16 %v1899
        %v1971 = vunpack.c.h.b16 %v1899
        %v1972 = vunpack.c.l.b16 %v1900
        %v1973 = vunpack.c.h.b16 %v1900
        %v1974 = vunpack.c.l.b16 %v1901
        %v1975 = vunpack.c.h.b16 %v1901
        %v1976 = vunpack.c.l.b16 %v1902
        %v1977 = vunpack.c.h.b16 %v1902
        %v1978 = vunpack.c.l.b16 %v1903
        %v1979 = vunpack.c.h.b16 %v1903
        %v1980 = vunpack.c.l.b16 %v1904
        %v1981 = vunpack.c.h.b16 %v1904
        %v1982 = vunpack.c.l.b16 %v1905
        %v1983 = vunpack.c.h.b16 %v1905
        %v1984 = vunpack.c.l.b16 %v1906
        %v1985 = vunpack.c.h.b16 %v1906
        %v1986 = vunpack.c.l.b16 %v1907
        %v1987 = vunpack.c.h.b16 %v1907
        %v1988 = vunpack.c.l.b16 %v1908
        %v1989 = vunpack.c.h.b16 %v1908
        %v1990 = vunpack.c.l.b16 %v1909
        %v1991 = vunpack.c.h.b16 %v1909
        %v1992 = vunpack.c.l.b16 %v1910
        %v1993 = vunpack.c.h.b16 %v1910
        %v1994 = vunpack.c.l.b16 %v1911
        %v1995 = vunpack.c.h.b16 %v1911
        %v1996 = vunpack.c.l.b16 %v1912
        %v1997 = vunpack.c.h.b16 %v1912
        %v1998 = vunpack.c.l.b16 %v1913
        %v1999 = vunpack.c.h.b16 %v1913
        %v2000 = vunpack.c.l.b16 %v1914
        %v2001 = vunpack.c.h.b16 %v1914
        %v2002 = vunpack.c.l.b16 %v1915
        %v2003 = vunpack.c.h.b16 %v1915
        %v2004 = vunpack.c.l.b16 %v1916
        %v2005 = vunpack.c.h.b16 %v1916
        %v2006 = vunpack.c.l.b16 %v1917
        %v2007 = vunpack.c.h.b16 %v1917
        %v2008 = vunpack.c.l.b16 %v1918
        %v2009 = vunpack.c.h.b16 %v1918
        %v2010 = vunpack.c.l.b16 %v1919
        %v2011 = vunpack.c.h.b16 %v1919
        %v2012 = vunpack.c.l.b16 %v1920
        %v2013 = vunpack.c.h.b16 %v1920
        %v2014 = vunpack.c.l.b16 %v1921
        %v2015 = vunpack.c.h.b16 %v1921
        %v2016 = vunpack.c.l.b16 %v1922
        %v2017 = vunpack.c.h.b16 %v1922
        %v2018 = vunpack.c.l.b16 %v1923
        %v2019 = vunpack.c.h.b16 %v1923
        %v2020 = vpack.c.b16 %v1960, %v1956
        %v2021 = vpack.c.b16 %v1961, %v1957
        %v2022 = vpack.c.b16 %v1962, %v1958
        %v2023 = vpack.c.b16 %v1963, %v1959
        %v2024 = vpack.c.b16 %v1968, %v1964
        %v2025 = vpack.c.b16 %v1969, %v1965
        %v2026 = vpack.c.b16 %v1970, %v1966
        %v2027 = vpack.c.b16 %v1971, %v1967
        %v2028 = vpack.c.b16 %v1976, %v1972
        %v2029 = vpack.c.b16 %v1977, %v1973
        %v2030 = vpack.c.b16 %v1978, %v1974
        %v2031 = vpack.c.b16 %v1979, %v1975
        %v2032 = vpack.c.b16 %v1984, %v1980
        %v2033 = vpack.c.b16 %v1985, %v1981
        %v2034 = vpack.c.b16 %v1986, %v1982
        %v2035 = vpack.c.b16 %v1987, %v1983
        %v2036 = vpack.c.b16 %v1992, %v1988
        %v2037 = vpack.c.b16 %v1993, %v1989
        %v2038 = vpack.c.b16 %v1994, %v1990
        %v2039 = vpack.c.b16 %v1995, %v1991
        %v2040 = vpack.c.b16 %v2000, %v1996
        %v2041 = vpack.c.b16 %v2001, %v1997
        %v2042 = vpack.c.b16 %v2002, %v1998
        %v2043 = vpack.c.b16 %v2003, %v1999
        %v2044 = vpack.c.b16 %v2008, %v2004
        %v2045 = vpack.c.b16 %v2009, %v2005
        %v2046 = vpack.c.b16 %v2010, %v2006
        %v2047 = vpack.c.b16 %v2011, %v2007
        %v2048 = vpack.c.b16 %v2016, %v2012
        %v2049 = vpack.c.b16 %v2017, %v2013
        %v2050 = vpack.c.b16 %v2018, %v2014
        %v2051 = vpack.c.b16 %v2019, %v2015
        %2084 = vmatprep.subr.bf16.mxu0 %v2021
        %2085 = vmatpush1.bf16.msra.mxu0 %v2020
        %2086 = vmatprep.subr.bf16.mxu0 %v2025
        %2087 = vmatpush1.bf16.msra.mxu0 %v2024
        %2088 = vmatprep.subr.bf16.mxu0 %v2029
        %2089 = vmatpush1.bf16.msra.mxu0 %v2028
        %2090 = vmatprep.subr.bf16.mxu0 %v2033
        %2091 = vmatpush1.bf16.msra.mxu0 %v2032
        %2092 = vmatprep.subr.bf16.mxu0 %v2037
        %2093 = vmatpush1.bf16.msra.mxu0 %v2036
        %2094 = vmatprep.subr.bf16.mxu0 %v2041
        %2095 = vmatpush1.bf16.msra.mxu0 %v2040
        %2096 = vmatprep.subr.bf16.mxu0 %v2045
        %2097 = vmatpush1.bf16.msra.mxu0 %v2044
        %2098 = vmatprep.subr.bf16.mxu0 %v2049
        %2099 = vmatpush1.bf16.msra.mxu0 %v2048
        %2100 = vmatprep.subr.bf16.mxu0 0
        %2101 = vmatpush1.bf16.msra.mxu0 0
        %2102 = vmatprep.subr.bf16.mxu0 0
        %2103 = vmatpush1.bf16.msra.mxu0 0
        %2104 = vmatprep.subr.bf16.mxu0 0
        %2105 = vmatpush1.bf16.msra.mxu0 0
        %2106 = vmatprep.subr.bf16.mxu0 0
        %2107 = vmatpush1.bf16.msra.mxu0 0
        %2108 = vmatprep.subr.bf16.mxu0 0
        %2109 = vmatpush1.bf16.msra.mxu0 0
        %2110 = vmatprep.subr.bf16.mxu0 0
        %2111 = vmatpush1.bf16.msra.mxu0 0
        %2112 = vmatprep.subr.bf16.mxu0 0
        %2113 = vmatpush1.bf16.msra.mxu0 0
        %2114 = vmatprep.subr.bf16.mxu0 0
        %2115 = vmatpush1.bf16.msra.mxu0 0
        %2116 = vmatprep.mubr.bf16.mxu0 0
        %2117 = vmatmul.mubr.bf16.gmra.mrb[0].mxu0 %v1882
        %v2118 = vpop.f32.mrb[0].mxu0
        %v2119 = vadd.f32 0.0, %v2118
        %v2120 = vpop.f32.mrb[0].mxu0
        %v2121 = vadd.f32 0.0, %v2120
        %v2122 = vpop.f32.mrb[0].mxu0
        %v2123 = vpop.f32.mrb[0].mxu0
        %2124 = vdwg.mxu0
        %2125 = vmatprep.subr.bf16.mxu0 %v2023
        %2126 = vmatpush1.bf16.msra.mxu0 %v2022
        %2127 = vmatprep.subr.bf16.mxu0 %v2027
        %2128 = vmatpush1.bf16.msra.mxu0 %v2026
        %2129 = vmatprep.subr.bf16.mxu0 %v2031
        %2130 = vmatpush1.bf16.msra.mxu0 %v2030
        %2131 = vmatprep.subr.bf16.mxu0 %v2035
        %2132 = vmatpush1.bf16.msra.mxu0 %v2034
        %2133 = vmatprep.subr.bf16.mxu0 %v2039
        %2134 = vmatpush1.bf16.msra.mxu0 %v2038
        %2135 = vmatprep.subr.bf16.mxu0 %v2043
        %2136 = vmatpush1.bf16.msra.mxu0 %v2042
        %2137 = vmatprep.subr.bf16.mxu0 %v2047
        %2138 = vmatpush1.bf16.msra.mxu0 %v2046
        %2139 = vmatprep.subr.bf16.mxu0 %v2051
        %2140 = vmatpush1.bf16.msra.mxu0 %v2050
        %2141 = vmatprep.subr.bf16.mxu0 0
        %2142 = vmatpush1.bf16.msra.mxu0 0
        %2143 = vmatprep.subr.bf16.mxu0 0
        %2144 = vmatpush1.bf16.msra.mxu0 0
        %2145 = vmatprep.subr.bf16.mxu0 0
        %2146 = vmatpush1.bf16.msra.mxu0 0
        %2147 = vmatprep.subr.bf16.mxu0 0
        %2148 = vmatpush1.bf16.msra.mxu0 0
        %2149 = vmatprep.subr.bf16.mxu0 0
        %2150 = vmatpush1.bf16.msra.mxu0 0
        %2151 = vmatprep.subr.bf16.mxu0 0
        %2152 = vmatpush1.bf16.msra.mxu0 0
        %2153 = vmatprep.subr.bf16.mxu0 0
        %2154 = vmatpush1.bf16.msra.mxu0 0
        %2155 = vmatprep.subr.bf16.mxu0 0
        %2156 = vmatpush1.bf16.msra.mxu0 0
        %2157 = vmatprep.mubr.bf16.mxu0 0
        %2158 = vmatmul.mubr.bf16.gmra.mrb[0].mxu0 %v1882
        %v2159 = vpop.f32.mrb[0].mxu0
        %v2160 = vadd.f32 0.0, %v2159
        %v2161 = vpop.f32.mrb[0].mxu0
        %v2162 = vadd.f32 0.0, %v2161
        %v2163 = vpop.f32.mrb[0].mxu0
        %v2164 = vpop.f32.mrb[0].mxu0
        %2165 = vdwg.mxu0
        %v2166 = vadd.f32 %v1888, %v2119
        %v2167 = vadd.f32 %v1889, %v2121
        %v2168 = vadd.f32 %v1890, %v2160
        %v2169 = vadd.f32 %v1891, %v2162
        %v2170 = vmul.f32 %v2166, 0.5
        %v2171 = vmul.f32 %v2167, 0.5
        %v2172 = vmul.f32 %v2168, 0.5
        %v2173 = vtanh.pop %v2170
        %v2174 = vtanh.pop %v2171
        %v2175 = vtanh.pop %v2172
        %v2176 = vmul.f32 %v2173, 0.5
        %v2177 = vmul.f32 %v2174, 0.5
        %v2178 = vmul.f32 %v2175, 0.5
        %v2179 = vadd.f32 %v2176, 0.5
        %v2180 = vadd.f32 %v2177, 0.5
        %v2181 = vadd.f32 %v2178, 0.5
        %v2182 = vtanh.pop %v2169
        %v2183 = vmul.f32 %v2180, %v1879
        %v2184 = vmul.f32 %v2179, %v2182
        %v2185 = vadd.f32 %v2183, %v2184
        %v2186 = vtanh.pop %v2185
        %v2187 = vmul.f32 %v2181, %v2186
        %v2188 = vpack.c.bf16 %v2187, %v2187
        %s2189 = scalar_lea.vmem [#allocation2], 16
        %2190 = vst [vmem:[%s2189] sm:$0xf] %v2188
        %s2191 = smul.u32 5, 4
        %s2192 = smul.addr %s2191, 8
        %s2193 = scalar_lea.vmem [#allocation3], %s2192
        %v2194 = vld [vmem:[%s2193] sm:$0xff]
        %v2195 = vld [vmem:[%s2193 + $0x8] sm:$0xff]
        %v2196 = vld [vmem:[%s2193 + $0x10] sm:$0xff]
        %v2197 = vld [vmem:[%s2193 + $0x18] sm:$0xff]
        %v2198 = vld [vmem:[#allocation4] sm:$0xff]
        %v2199 = vld [vmem:[#allocation4 + $0x8] sm:$0xff]
        %v2200 = vld [vmem:[#allocation4 + $0x10] sm:$0xff]
        %v2201 = vld [vmem:[#allocation4 + $0x18] sm:$0xff]
        %v2202 = vld [vmem:[#allocation4 + $0x20] sm:$0xff]
        %v2203 = vld [vmem:[#allocation4 + $0x28] sm:$0xff]
        %v2204 = vld [vmem:[#allocation4 + $0x30] sm:$0xff]
        %v2205 = vld [vmem:[#allocation4 + $0x38] sm:$0xff]
        %v2206 = vld [vmem:[#allocation4 + $0x40] sm:$0xff]
        %v2207 = vld [vmem:[#allocation4 + $0x48] sm:$0xff]
        %v2208 = vld [vmem:[#allocation4 + $0x50] sm:$0xff]
        %v2209 = vld [vmem:[#allocation4 + $0x58] sm:$0xff]
        %v2210 = vld [vmem:[#allocation4 + $0x60] sm:$0xff]
        %v2211 = vld [vmem:[#allocation4 + $0x68] sm:$0xff]
        %v2212 = vld [vmem:[#allocation4 + $0x70] sm:$0xff]
        %v2213 = vld [vmem:[#allocation4 + $0x78] sm:$0xff]
        %v2214 = vld [vmem:[#allocation4 + $0x80] sm:$0xff]
        %v2215 = vld [vmem:[#allocation4 + $0x88] sm:$0xff]
        %v2216 = vld [vmem:[#allocation4 + $0x90] sm:$0xff]
        %v2217 = vld [vmem:[#allocation4 + $0x98] sm:$0xff]
        %v2218 = vld [vmem:[#allocation4 + $0xa0] sm:$0xff]
        %v2219 = vld [vmem:[#allocation4 + $0xa8] sm:$0xff]
        %v2220 = vld [vmem:[#allocation4 + $0xb0] sm:$0xff]
        %v2221 = vld [vmem:[#allocation4 + $0xb8] sm:$0xff]
        %v2222 = vld [vmem:[#allocation4 + $0xc0] sm:$0xff]
        %v2223 = vld [vmem:[#allocation4 + $0xc8] sm:$0xff]
        %v2224 = vld [vmem:[#allocation4 + $0xd0] sm:$0xff]
        %v2225 = vld [vmem:[#allocation4 + $0xd8] sm:$0xff]
        %v2226 = vld [vmem:[#allocation4 + $0xe0] sm:$0xff]
        %v2227 = vld [vmem:[#allocation4 + $0xe8] sm:$0xff]
        %v2228 = vld [vmem:[#allocation4 + $0xf0] sm:$0xff]
        %v2229 = vld [vmem:[#allocation4 + $0xf8] sm:$0xff]
        %v2262 = vunpack.c.l.b16 %v2198
        %v2263 = vunpack.c.h.b16 %v2198
        %v2264 = vunpack.c.l.b16 %v2199
        %v2265 = vunpack.c.h.b16 %v2199
        %v2266 = vunpack.c.l.b16 %v2200
        %v2267 = vunpack.c.h.b16 %v2200
        %v2268 = vunpack.c.l.b16 %v2201
        %v2269 = vunpack.c.h.b16 %v2201
        %v2270 = vunpack.c.l.b16 %v2202
        %v2271 = vunpack.c.h.b16 %v2202
        %v2272 = vunpack.c.l.b16 %v2203
        %v2273 = vunpack.c.h.b16 %v2203
        %v2274 = vunpack.c.l.b16 %v2204
        %v2275 = vunpack.c.h.b16 %v2204
        %v2276 = vunpack.c.l.b16 %v2205
        %v2277 = vunpack.c.h.b16 %v2205
        %v2278 = vunpack.c.l.b16 %v2206
        %v2279 = vunpack.c.h.b16 %v2206
        %v2280 = vunpack.c.l.b16 %v2207
        %v2281 = vunpack.c.h.b16 %v2207
        %v2282 = vunpack.c.l.b16 %v2208
        %v2283 = vunpack.c.h.b16 %v2208
        %v2284 = vunpack.c.l.b16 %v2209
        %v2285 = vunpack.c.h.b16 %v2209
        %v2286 = vunpack.c.l.b16 %v2210
        %v2287 = vunpack.c.h.b16 %v2210
        %v2288 = vunpack.c.l.b16 %v2211
        %v2289 = vunpack.c.h.b16 %v2211
        %v2290 = vunpack.c.l.b16 %v2212
        %v2291 = vunpack.c.h.b16 %v2212
        %v2292 = vunpack.c.l.b16 %v2213
        %v2293 = vunpack.c.h.b16 %v2213
        %v2294 = vunpack.c.l.b16 %v2214
        %v2295 = vunpack.c.h.b16 %v2214
        %v2296 = vunpack.c.l.b16 %v2215
        %v2297 = vunpack.c.h.b16 %v2215
        %v2298 = vunpack.c.l.b16 %v2216
        %v2299 = vunpack.c.h.b16 %v2216
        %v2300 = vunpack.c.l.b16 %v2217
        %v2301 = vunpack.c.h.b16 %v2217
        %v2302 = vunpack.c.l.b16 %v2218
        %v2303 = vunpack.c.h.b16 %v2218
        %v2304 = vunpack.c.l.b16 %v2219
        %v2305 = vunpack.c.h.b16 %v2219
        %v2306 = vunpack.c.l.b16 %v2220
        %v2307 = vunpack.c.h.b16 %v2220
        %v2308 = vunpack.c.l.b16 %v2221
        %v2309 = vunpack.c.h.b16 %v2221
        %v2310 = vunpack.c.l.b16 %v2222
        %v2311 = vunpack.c.h.b16 %v2222
        %v2312 = vunpack.c.l.b16 %v2223
        %v2313 = vunpack.c.h.b16 %v2223
        %v2314 = vunpack.c.l.b16 %v2224
        %v2315 = vunpack.c.h.b16 %v2224
        %v2316 = vunpack.c.l.b16 %v2225
        %v2317 = vunpack.c.h.b16 %v2225
        %v2318 = vunpack.c.l.b16 %v2226
        %v2319 = vunpack.c.h.b16 %v2226
        %v2320 = vunpack.c.l.b16 %v2227
        %v2321 = vunpack.c.h.b16 %v2227
        %v2322 = vunpack.c.l.b16 %v2228
        %v2323 = vunpack.c.h.b16 %v2228
        %v2324 = vunpack.c.l.b16 %v2229
        %v2325 = vunpack.c.h.b16 %v2229
        %v2326 = vpack.c.b16 %v2266, %v2262
        %v2327 = vpack.c.b16 %v2267, %v2263
        %v2328 = vpack.c.b16 %v2268, %v2264
        %v2329 = vpack.c.b16 %v2269, %v2265
        %v2330 = vpack.c.b16 %v2274, %v2270
        %v2331 = vpack.c.b16 %v2275, %v2271
        %v2332 = vpack.c.b16 %v2276, %v2272
        %v2333 = vpack.c.b16 %v2277, %v2273
        %v2334 = vpack.c.b16 %v2282, %v2278
        %v2335 = vpack.c.b16 %v2283, %v2279
        %v2336 = vpack.c.b16 %v2284, %v2280
        %v2337 = vpack.c.b16 %v2285, %v2281
        %v2338 = vpack.c.b16 %v2290, %v2286
        %v2339 = vpack.c.b16 %v2291, %v2287
        %v2340 = vpack.c.b16 %v2292, %v2288
        %v2341 = vpack.c.b16 %v2293, %v2289
        %v2342 = vpack.c.b16 %v2298, %v2294
        %v2343 = vpack.c.b16 %v2299, %v2295
        %v2344 = vpack.c.b16 %v2300, %v2296
        %v2345 = vpack.c.b16 %v2301, %v2297
        %v2346 = vpack.c.b16 %v2306, %v2302
        %v2347 = vpack.c.b16 %v2307, %v2303
        %v2348 = vpack.c.b16 %v2308, %v2304
        %v2349 = vpack.c.b16 %v2309, %v2305
        %v2350 = vpack.c.b16 %v2314, %v2310
        %v2351 = vpack.c.b16 %v2315, %v2311
        %v2352 = vpack.c.b16 %v2316, %v2312
        %v2353 = vpack.c.b16 %v2317, %v2313
        %v2354 = vpack.c.b16 %v2322, %v2318
        %v2355 = vpack.c.b16 %v2323, %v2319
        %v2356 = vpack.c.b16 %v2324, %v2320
        %v2357 = vpack.c.b16 %v2325, %v2321
        %2390 = vmatprep.subr.bf16.mxu0 %v2327
        %2391 = vmatpush1.bf16.msra.mxu0 %v2326
        %2392 = vmatprep.subr.bf16.mxu0 %v2331
        %2393 = vmatpush1.bf16.msra.mxu0 %v2330
        %2394 = vmatprep.subr.bf16.mxu0 %v2335
        %2395 = vmatpush1.bf16.msra.mxu0 %v2334
        %2396 = vmatprep.subr.bf16.mxu0 %v2339
        %2397 = vmatpush1.bf16.msra.mxu0 %v2338
        %2398 = vmatprep.subr.bf16.mxu0 %v2343
        %2399 = vmatpush1.bf16.msra.mxu0 %v2342
        %2400 = vmatprep.subr.bf16.mxu0 %v2347
        %2401 = vmatpush1.bf16.msra.mxu0 %v2346
        %2402 = vmatprep.subr.bf16.mxu0 %v2351
        %2403 = vmatpush1.bf16.msra.mxu0 %v2350
        %2404 = vmatprep.subr.bf16.mxu0 %v2355
        %2405 = vmatpush1.bf16.msra.mxu0 %v2354
        %2406 = vmatprep.subr.bf16.mxu0 0
        %2407 = vmatpush1.bf16.msra.mxu0 0
        %2408 = vmatprep.subr.bf16.mxu0 0
        %2409 = vmatpush1.bf16.msra.mxu0 0
        %2410 = vmatprep.subr.bf16.mxu0 0
        %2411 = vmatpush1.bf16.msra.mxu0 0
        %2412 = vmatprep.subr.bf16.mxu0 0
        %2413 = vmatpush1.bf16.msra.mxu0 0
        %2414 = vmatprep.subr.bf16.mxu0 0
        %2415 = vmatpush1.bf16.msra.mxu0 0
        %2416 = vmatprep.subr.bf16.mxu0 0
        %2417 = vmatpush1.bf16.msra.mxu0 0
        %2418 = vmatprep.subr.bf16.mxu0 0
        %2419 = vmatpush1.bf16.msra.mxu0 0
        %2420 = vmatprep.subr.bf16.mxu0 0
        %2421 = vmatpush1.bf16.msra.mxu0 0
        %2422 = vmatprep.mubr.bf16.mxu0 0
        %2423 = vmatmul.mubr.bf16.gmra.mrb[0].mxu0 %v2188
        %v2424 = vpop.f32.mrb[0].mxu0
        %v2425 = vadd.f32 0.0, %v2424
        %v2426 = vpop.f32.mrb[0].mxu0
        %v2427 = vadd.f32 0.0, %v2426
        %v2428 = vpop.f32.mrb[0].mxu0
        %v2429 = vpop.f32.mrb[0].mxu0
        %2430 = vdwg.mxu0
        %2431 = vmatprep.subr.bf16.mxu0 %v2329
        %2432 = vmatpush1.bf16.msra.mxu0 %v2328
        %2433 = vmatprep.subr.bf16.mxu0 %v2333
        %2434 = vmatpush1.bf16.msra.mxu0 %v2332
        %2435 = vmatprep.subr.bf16.mxu0 %v2337
        %2436 = vmatpush1.bf16.msra.mxu0 %v2336
        %2437 = vmatprep.subr.bf16.mxu0 %v2341
        %2438 = vmatpush1.bf16.msra.mxu0 %v2340
        %2439 = vmatprep.subr.bf16.mxu0 %v2345
        %2440 = vmatpush1.bf16.msra.mxu0 %v2344
        %2441 = vmatprep.subr.bf16.mxu0 %v2349
        %2442 = vmatpush1.bf16.msra.mxu0 %v2348
        %2443 = vmatprep.subr.bf16.mxu0 %v2353
        %2444 = vmatpush1.bf16.msra.mxu0 %v2352
        %2445 = vmatprep.subr.bf16.mxu0 %v2357
        %2446 = vmatpush1.bf16.msra.mxu0 %v2356
        %2447 = vmatprep.subr.bf16.mxu0 0
        %2448 = vmatpush1.bf16.msra.mxu0 0
        %2449 = vmatprep.subr.bf16.mxu0 0
        %2450 = vmatpush1.bf16.msra.mxu0 0
        %2451 = vmatprep.subr.bf16.mxu0 0
        %2452 = vmatpush1.bf16.msra.mxu0 0
        %2453 = vmatprep.subr.bf16.mxu0 0
        %2454 = vmatpush1.bf16.msra.mxu0 0
        %2455 = vmatprep.subr.bf16.mxu0 0
        %2456 = vmatpush1.bf16.msra.mxu0 0
        %2457 = vmatprep.subr.bf16.mxu0 0
        %2458 = vmatpush1.bf16.msra.mxu0 0
        %2459 = vmatprep.subr.bf16.mxu0 0
        %2460 = vmatpush1.bf16.msra.mxu0 0
        %2461 = vmatprep.subr.bf16.mxu0 0
        %2462 = vmatpush1.bf16.msra.mxu0 0
        %2463 = vmatprep.mubr.bf16.mxu0 0
        %2464 = vmatmul.mubr.bf16.gmra.mrb[0].mxu0 %v2188
        %v2465 = vpop.f32.mrb[0].mxu0
        %v2466 = vadd.f32 0.0, %v2465
        %v2467 = vpop.f32.mrb[0].mxu0
        %v2468 = vadd.f32 0.0, %v2467
        %v2469 = vpop.f32.mrb[0].mxu0
        %v2470 = vpop.f32.mrb[0].mxu0
        %2471 = vdwg.mxu0
        %v2472 = vadd.f32 %v2194, %v2425
        %v2473 = vadd.f32 %v2195, %v2427
        %v2474 = vadd.f32 %v2196, %v2466
        %v2475 = vadd.f32 %v2197, %v2468
        %v2476 = vmul.f32 %v2472, 0.5
        %v2477 = vmul.f32 %v2473, 0.5
        %v2478 = vmul.f32 %v2474, 0.5
        %v2479 = vtanh.pop %v2476
        %v2480 = vtanh.pop %v2477
        %v2481 = vtanh.pop %v2478
        %v2482 = vmul.f32 %v2479, 0.5
        %v2483 = vmul.f32 %v2480, 0.5
        %v2484 = vmul.f32 %v2481, 0.5
        %v2485 = vadd.f32 %v2482, 0.5
        %v2486 = vadd.f32 %v2483, 0.5
        %v2487 = vadd.f32 %v2484, 0.5
        %v2488 = vtanh.pop %v2475
        %v2489 = vmul.f32 %v2486, %v2185
        %v2490 = vmul.f32 %v2485, %v2488
        %v2491 = vadd.f32 %v2489, %v2490
        %v2492 = vtanh.pop %v2491
        %v2493 = vmul.f32 %v2487, %v2492
        %v2494 = vpack.c.bf16 %v2493, %v2493
        %s2495 = scalar_lea.vmem [#allocation2], 20
        %2496 = vst [vmem:[%s2495] sm:$0xf] %v2494
        %s2497 = smul.u32 6, 4
        %s2498 = smul.addr %s2497, 8
        %s2499 = scalar_lea.vmem [#allocation3], %s2498
        %v2500 = vld [vmem:[%s2499] sm:$0xff]
        %v2501 = vld [vmem:[%s2499 + $0x8] sm:$0xff]
        %v2502 = vld [vmem:[%s2499 + $0x10] sm:$0xff]
        %v2503 = vld [vmem:[%s2499 + $0x18] sm:$0xff]
        %v2504 = vld [vmem:[#allocation4] sm:$0xff]
        %v2505 = vld [vmem:[#allocation4 + $0x8] sm:$0xff]
        %v2506 = vld [vmem:[#allocation4 + $0x10] sm:$0xff]
        %v2507 = vld [vmem:[#allocation4 + $0x18] sm:$0xff]
        %v2508 = vld [vmem:[#allocation4 + $0x20] sm:$0xff]
        %v2509 = vld [vmem:[#allocation4 + $0x28] sm:$0xff]
        %v2510 = vld [vmem:[#allocation4 + $0x30] sm:$0xff]
        %v2511 = vld [vmem:[#allocation4 + $0x38] sm:$0xff]
        %v2512 = vld [vmem:[#allocation4 + $0x40] sm:$0xff]
        %v2513 = vld [vmem:[#allocation4 + $0x48] sm:$0xff]
        %v2514 = vld [vmem:[#allocation4 + $0x50] sm:$0xff]
        %v2515 = vld [vmem:[#allocation4 + $0x58] sm:$0xff]
        %v2516 = vld [vmem:[#allocation4 + $0x60] sm:$0xff]
        %v2517 = vld [vmem:[#allocation4 + $0x68] sm:$0xff]
        %v2518 = vld [vmem:[#allocation4 + $0x70] sm:$0xff]
        %v2519 = vld [vmem:[#allocation4 + $0x78] sm:$0xff]
        %v2520 = vld [vmem:[#allocation4 + $0x80] sm:$0xff]
        %v2521 = vld [vmem:[#allocation4 + $0x88] sm:$0xff]
        %v2522 = vld [vmem:[#allocation4 + $0x90] sm:$0xff]
        %v2523 = vld [vmem:[#allocation4 + $0x98] sm:$0xff]
        %v2524 = vld [vmem:[#allocation4 + $0xa0] sm:$0xff]
        %v2525 = vld [vmem:[#allocation4 + $0xa8] sm:$0xff]
        %v2526 = vld [vmem:[#allocation4 + $0xb0] sm:$0xff]
        %v2527 = vld [vmem:[#allocation4 + $0xb8] sm:$0xff]
        %v2528 = vld [vmem:[#allocation4 + $0xc0] sm:$0xff]
        %v2529 = vld [vmem:[#allocation4 + $0xc8] sm:$0xff]
        %v2530 = vld [vmem:[#allocation4 + $0xd0] sm:$0xff]
        %v2531 = vld [vmem:[#allocation4 + $0xd8] sm:$0xff]
        %v2532 = vld [vmem:[#allocation4 + $0xe0] sm:$0xff]
        %v2533 = vld [vmem:[#allocation4 + $0xe8] sm:$0xff]
        %v2534 = vld [vmem:[#allocation4 + $0xf0] sm:$0xff]
        %v2535 = vld [vmem:[#allocation4 + $0xf8] sm:$0xff]
        %v2568 = vunpack.c.l.b16 %v2504
        %v2569 = vunpack.c.h.b16 %v2504
        %v2570 = vunpack.c.l.b16 %v2505
        %v2571 = vunpack.c.h.b16 %v2505
        %v2572 = vunpack.c.l.b16 %v2506
        %v2573 = vunpack.c.h.b16 %v2506
        %v2574 = vunpack.c.l.b16 %v2507
        %v2575 = vunpack.c.h.b16 %v2507
        %v2576 = vunpack.c.l.b16 %v2508
        %v2577 = vunpack.c.h.b16 %v2508
        %v2578 = vunpack.c.l.b16 %v2509
        %v2579 = vunpack.c.h.b16 %v2509
        %v2580 = vunpack.c.l.b16 %v2510
        %v2581 = vunpack.c.h.b16 %v2510
        %v2582 = vunpack.c.l.b16 %v2511
        %v2583 = vunpack.c.h.b16 %v2511
        %v2584 = vunpack.c.l.b16 %v2512
        %v2585 = vunpack.c.h.b16 %v2512
        %v2586 = vunpack.c.l.b16 %v2513
        %v2587 = vunpack.c.h.b16 %v2513
        %v2588 = vunpack.c.l.b16 %v2514
        %v2589 = vunpack.c.h.b16 %v2514
        %v2590 = vunpack.c.l.b16 %v2515
        %v2591 = vunpack.c.h.b16 %v2515
        %v2592 = vunpack.c.l.b16 %v2516
        %v2593 = vunpack.c.h.b16 %v2516
        %v2594 = vunpack.c.l.b16 %v2517
        %v2595 = vunpack.c.h.b16 %v2517
        %v2596 = vunpack.c.l.b16 %v2518
        %v2597 = vunpack.c.h.b16 %v2518
        %v2598 = vunpack.c.l.b16 %v2519
        %v2599 = vunpack.c.h.b16 %v2519
        %v2600 = vunpack.c.l.b16 %v2520
        %v2601 = vunpack.c.h.b16 %v2520
        %v2602 = vunpack.c.l.b16 %v2521
        %v2603 = vunpack.c.h.b16 %v2521
        %v2604 = vunpack.c.l.b16 %v2522
        %v2605 = vunpack.c.h.b16 %v2522
        %v2606 = vunpack.c.l.b16 %v2523
        %v2607 = vunpack.c.h.b16 %v2523
        %v2608 = vunpack.c.l.b16 %v2524
        %v2609 = vunpack.c.h.b16 %v2524
        %v2610 = vunpack.c.l.b16 %v2525
        %v2611 = vunpack.c.h.b16 %v2525
        %v2612 = vunpack.c.l.b16 %v2526
        %v2613 = vunpack.c.h.b16 %v2526
        %v2614 = vunpack.c.l.b16 %v2527
        %v2615 = vunpack.c.h.b16 %v2527
        %v2616 = vunpack.c.l.b16 %v2528
        %v2617 = vunpack.c.h.b16 %v2528
        %v2618 = vunpack.c.l.b16 %v2529
        %v2619 = vunpack.c.h.b16 %v2529
        %v2620 = vunpack.c.l.b16 %v2530
        %v2621 = vunpack.c.h.b16 %v2530
        %v2622 = vunpack.c.l.b16 %v2531
        %v2623 = vunpack.c.h.b16 %v2531
        %v2624 = vunpack.c.l.b16 %v2532
        %v2625 = vunpack.c.h.b16 %v2532
        %v2626 = vunpack.c.l.b16 %v2533
        %v2627 = vunpack.c.h.b16 %v2533
        %v2628 = vunpack.c.l.b16 %v2534
        %v2629 = vunpack.c.h.b16 %v2534
        %v2630 = vunpack.c.l.b16 %v2535
        %v2631 = vunpack.c.h.b16 %v2535
        %v2632 = vpack.c.b16 %v2572, %v2568
        %v2633 = vpack.c.b16 %v2573, %v2569
        %v2634 = vpack.c.b16 %v2574, %v2570
        %v2635 = vpack.c.b16 %v2575, %v2571
        %v2636 = vpack.c.b16 %v2580, %v2576
        %v2637 = vpack.c.b16 %v2581, %v2577
        %v2638 = vpack.c.b16 %v2582, %v2578
        %v2639 = vpack.c.b16 %v2583, %v2579
        %v2640 = vpack.c.b16 %v2588, %v2584
        %v2641 = vpack.c.b16 %v2589, %v2585
        %v2642 = vpack.c.b16 %v2590, %v2586
        %v2643 = vpack.c.b16 %v2591, %v2587
        %v2644 = vpack.c.b16 %v2596, %v2592
        %v2645 = vpack.c.b16 %v2597, %v2593
        %v2646 = vpack.c.b16 %v2598, %v2594
        %v2647 = vpack.c.b16 %v2599, %v2595
        %v2648 = vpack.c.b16 %v2604, %v2600
        %v2649 = vpack.c.b16 %v2605, %v2601
        %v2650 = vpack.c.b16 %v2606, %v2602
        %v2651 = vpack.c.b16 %v2607, %v2603
        %v2652 = vpack.c.b16 %v2612, %v2608
        %v2653 = vpack.c.b16 %v2613, %v2609
        %v2654 = vpack.c.b16 %v2614, %v2610
        %v2655 = vpack.c.b16 %v2615, %v2611
        %v2656 = vpack.c.b16 %v2620, %v2616
        %v2657 = vpack.c.b16 %v2621, %v2617
        %v2658 = vpack.c.b16 %v2622, %v2618
        %v2659 = vpack.c.b16 %v2623, %v2619
        %v2660 = vpack.c.b16 %v2628, %v2624
        %v2661 = vpack.c.b16 %v2629, %v2625
        %v2662 = vpack.c.b16 %v2630, %v2626
        %v2663 = vpack.c.b16 %v2631, %v2627
        %2696 = vmatprep.subr.bf16.mxu0 %v2633
        %2697 = vmatpush1.bf16.msra.mxu0 %v2632
        %2698 = vmatprep.subr.bf16.mxu0 %v2637
        %2699 = vmatpush1.bf16.msra.mxu0 %v2636
        %2700 = vmatprep.subr.bf16.mxu0 %v2641
        %2701 = vmatpush1.bf16.msra.mxu0 %v2640
        %2702 = vmatprep.subr.bf16.mxu0 %v2645
        %2703 = vmatpush1.bf16.msra.mxu0 %v2644
        %2704 = vmatprep.subr.bf16.mxu0 %v2649
        %2705 = vmatpush1.bf16.msra.mxu0 %v2648
        %2706 = vmatprep.subr.bf16.mxu0 %v2653
        %2707 = vmatpush1.bf16.msra.mxu0 %v2652
        %2708 = vmatprep.subr.bf16.mxu0 %v2657
        %2709 = vmatpush1.bf16.msra.mxu0 %v2656
        %2710 = vmatprep.subr.bf16.mxu0 %v2661
        %2711 = vmatpush1.bf16.msra.mxu0 %v2660
        %2712 = vmatprep.subr.bf16.mxu0 0
        %2713 = vmatpush1.bf16.msra.mxu0 0
        %2714 = vmatprep.subr.bf16.mxu0 0
        %2715 = vmatpush1.bf16.msra.mxu0 0
        %2716 = vmatprep.subr.bf16.mxu0 0
        %2717 = vmatpush1.bf16.msra.mxu0 0
        %2718 = vmatprep.subr.bf16.mxu0 0
        %2719 = vmatpush1.bf16.msra.mxu0 0
        %2720 = vmatprep.subr.bf16.mxu0 0
        %2721 = vmatpush1.bf16.msra.mxu0 0
        %2722 = vmatprep.subr.bf16.mxu0 0
        %2723 = vmatpush1.bf16.msra.mxu0 0
        %2724 = vmatprep.subr.bf16.mxu0 0
        %2725 = vmatpush1.bf16.msra.mxu0 0
        %2726 = vmatprep.subr.bf16.mxu0 0
        %2727 = vmatpush1.bf16.msra.mxu0 0
        %2728 = vmatprep.mubr.bf16.mxu0 0
        %2729 = vmatmul.mubr.bf16.gmra.mrb[0].mxu0 %v2494
        %v2730 = vpop.f32.mrb[0].mxu0
        %v2731 = vadd.f32 0.0, %v2730
        %v2732 = vpop.f32.mrb[0].mxu0
        %v2733 = vadd.f32 0.0, %v2732
        %v2734 = vpop.f32.mrb[0].mxu0
        %v2735 = vpop.f32.mrb[0].mxu0
        %2736 = vdwg.mxu0
        %2737 = vmatprep.subr.bf16.mxu0 %v2635
        %2738 = vmatpush1.bf16.msra.mxu0 %v2634
        %2739 = vmatprep.subr.bf16.mxu0 %v2639
        %2740 = vmatpush1.bf16.msra.mxu0 %v2638
        %2741 = vmatprep.subr.bf16.mxu0 %v2643
        %2742 = vmatpush1.bf16.msra.mxu0 %v2642
        %2743 = vmatprep.subr.bf16.mxu0 %v2647
        %2744 = vmatpush1.bf16.msra.mxu0 %v2646
        %2745 = vmatprep.subr.bf16.mxu0 %v2651
        %2746 = vmatpush1.bf16.msra.mxu0 %v2650
        %2747 = vmatprep.subr.bf16.mxu0 %v2655
        %2748 = vmatpush1.bf16.msra.mxu0 %v2654
        %2749 = vmatprep.subr.bf16.mxu0 %v2659
        %2750 = vmatpush1.bf16.msra.mxu0 %v2658
        %2751 = vmatprep.subr.bf16.mxu0 %v2663
        %2752 = vmatpush1.bf16.msra.mxu0 %v2662
        %2753 = vmatprep.subr.bf16.mxu0 0
        %2754 = vmatpush1.bf16.msra.mxu0 0
        %2755 = vmatprep.subr.bf16.mxu0 0
        %2756 = vmatpush1.bf16.msra.mxu0 0
        %2757 = vmatprep.subr.bf16.mxu0 0
        %2758 = vmatpush1.bf16.msra.mxu0 0
        %2759 = vmatprep.subr.bf16.mxu0 0
        %2760 = vmatpush1.bf16.msra.mxu0 0
        %2761 = vmatprep.subr.bf16.mxu0 0
        %2762 = vmatpush1.bf16.msra.mxu0 0
        %2763 = vmatprep.subr.bf16.mxu0 0
        %2764 = vmatpush1.bf16.msra.mxu0 0
        %2765 = vmatprep.subr.bf16.mxu0 0
        %2766 = vmatpush1.bf16.msra.mxu0 0
        %2767 = vmatprep.subr.bf16.mxu0 0
        %2768 = vmatpush1.bf16.msra.mxu0 0
        %2769 = vmatprep.mubr.bf16.mxu0 0
        %2770 = vmatmul.mubr.bf16.gmra.mrb[0].mxu0 %v2494
        %v2771 = vpop.f32.mrb[0].mxu0
        %v2772 = vadd.f32 0.0, %v2771
        %v2773 = vpop.f32.mrb[0].mxu0
        %v2774 = vadd.f32 0.0, %v2773
        %v2775 = vpop.f32.mrb[0].mxu0
        %v2776 = vpop.f32.mrb[0].mxu0
        %2777 = vdwg.mxu0
        %v2778 = vadd.f32 %v2500, %v2731
        %v2779 = vadd.f32 %v2501, %v2733
        %v2780 = vadd.f32 %v2502, %v2772
        %v2781 = vadd.f32 %v2503, %v2774
        %v2782 = vmul.f32 %v2778, 0.5
        %v2783 = vmul.f32 %v2779, 0.5
        %v2784 = vmul.f32 %v2780, 0.5
        %v2785 = vtanh.pop %v2782
        %v2786 = vtanh.pop %v2783
        %v2787 = vtanh.pop %v2784
        %v2788 = vmul.f32 %v2785, 0.5
        %v2789 = vmul.f32 %v2786, 0.5
        %v2790 = vmul.f32 %v2787, 0.5
        %v2791 = vadd.f32 %v2788, 0.5
        %v2792 = vadd.f32 %v2789, 0.5
        %v2793 = vadd.f32 %v2790, 0.5
        %v2794 = vtanh.pop %v2781
        %v2795 = vmul.f32 %v2792, %v2491
        %v2796 = vmul.f32 %v2791, %v2794
        %v2797 = vadd.f32 %v2795, %v2796
        %v2798 = vtanh.pop %v2797
        %v2799 = vmul.f32 %v2793, %v2798
        %v2800 = vpack.c.bf16 %v2799, %v2799
        %s2801 = scalar_lea.vmem [#allocation2], 24
        %2802 = vst [vmem:[%s2801] sm:$0xf] %v2800
        %s2803 = smul.u32 7, 4
        %s2804 = smul.addr %s2803, 8
        %s2805 = scalar_lea.vmem [#allocation3], %s2804
        %v2806 = vld [vmem:[%s2805] sm:$0xff]
        %v2807 = vld [vmem:[%s2805 + $0x8] sm:$0xff]
        %v2808 = vld [vmem:[%s2805 + $0x10] sm:$0xff]
        %v2809 = vld [vmem:[%s2805 + $0x18] sm:$0xff]
        %v2810 = vld [vmem:[#allocation4] sm:$0xff]
        %v2811 = vld [vmem:[#allocation4 + $0x8] sm:$0xff]
        %v2812 = vld [vmem:[#allocation4 + $0x10] sm:$0xff]
        %v2813 = vld [vmem:[#allocation4 + $0x18] sm:$0xff]
        %v2814 = vld [vmem:[#allocation4 + $0x20] sm:$0xff]
        %v2815 = vld [vmem:[#allocation4 + $0x28] sm:$0xff]
        %v2816 = vld [vmem:[#allocation4 + $0x30] sm:$0xff]
        %v2817 = vld [vmem:[#allocation4 + $0x38] sm:$0xff]
        %v2818 = vld [vmem:[#allocation4 + $0x40] sm:$0xff]
        %v2819 = vld [vmem:[#allocation4 + $0x48] sm:$0xff]
        %v2820 = vld [vmem:[#allocation4 + $0x50] sm:$0xff]
        %v2821 = vld [vmem:[#allocation4 + $0x58] sm:$0xff]
        %v2822 = vld [vmem:[#allocation4 + $0x60] sm:$0xff]
        %v2823 = vld [vmem:[#allocation4 + $0x68] sm:$0xff]
        %v2824 = vld [vmem:[#allocation4 + $0x70] sm:$0xff]
        %v2825 = vld [vmem:[#allocation4 + $0x78] sm:$0xff]
        %v2826 = vld [vmem:[#allocation4 + $0x80] sm:$0xff]
        %v2827 = vld [vmem:[#allocation4 + $0x88] sm:$0xff]
        %v2828 = vld [vmem:[#allocation4 + $0x90] sm:$0xff]
        %v2829 = vld [vmem:[#allocation4 + $0x98] sm:$0xff]
        %v2830 = vld [vmem:[#allocation4 + $0xa0] sm:$0xff]
        %v2831 = vld [vmem:[#allocation4 + $0xa8] sm:$0xff]
        %v2832 = vld [vmem:[#allocation4 + $0xb0] sm:$0xff]
        %v2833 = vld [vmem:[#allocation4 + $0xb8] sm:$0xff]
        %v2834 = vld [vmem:[#allocation4 + $0xc0] sm:$0xff]
        %v2835 = vld [vmem:[#allocation4 + $0xc8] sm:$0xff]
        %v2836 = vld [vmem:[#allocation4 + $0xd0] sm:$0xff]
        %v2837 = vld [vmem:[#allocation4 + $0xd8] sm:$0xff]
        %v2838 = vld [vmem:[#allocation4 + $0xe0] sm:$0xff]
        %v2839 = vld [vmem:[#allocation4 + $0xe8] sm:$0xff]
        %v2840 = vld [vmem:[#allocation4 + $0xf0] sm:$0xff]
        %v2841 = vld [vmem:[#allocation4 + $0xf8] sm:$0xff]
        %v2874 = vunpack.c.l.b16 %v2810
        %v2875 = vunpack.c.h.b16 %v2810
        %v2876 = vunpack.c.l.b16 %v2811
        %v2877 = vunpack.c.h.b16 %v2811
        %v2878 = vunpack.c.l.b16 %v2812
        %v2879 = vunpack.c.h.b16 %v2812
        %v2880 = vunpack.c.l.b16 %v2813
        %v2881 = vunpack.c.h.b16 %v2813
        %v2882 = vunpack.c.l.b16 %v2814
        %v2883 = vunpack.c.h.b16 %v2814
        %v2884 = vunpack.c.l.b16 %v2815
        %v2885 = vunpack.c.h.b16 %v2815
        %v2886 = vunpack.c.l.b16 %v2816
        %v2887 = vunpack.c.h.b16 %v2816
        %v2888 = vunpack.c.l.b16 %v2817
        %v2889 = vunpack.c.h.b16 %v2817
        %v2890 = vunpack.c.l.b16 %v2818
        %v2891 = vunpack.c.h.b16 %v2818
        %v2892 = vunpack.c.l.b16 %v2819
        %v2893 = vunpack.c.h.b16 %v2819
        %v2894 = vunpack.c.l.b16 %v2820
        %v2895 = vunpack.c.h.b16 %v2820
        %v2896 = vunpack.c.l.b16 %v2821
        %v2897 = vunpack.c.h.b16 %v2821
        %v2898 = vunpack.c.l.b16 %v2822
        %v2899 = vunpack.c.h.b16 %v2822
        %v2900 = vunpack.c.l.b16 %v2823
        %v2901 = vunpack.c.h.b16 %v2823
        %v2902 = vunpack.c.l.b16 %v2824
        %v2903 = vunpack.c.h.b16 %v2824
        %v2904 = vunpack.c.l.b16 %v2825
        %v2905 = vunpack.c.h.b16 %v2825
        %v2906 = vunpack.c.l.b16 %v2826
        %v2907 = vunpack.c.h.b16 %v2826
        %v2908 = vunpack.c.l.b16 %v2827
        %v2909 = vunpack.c.h.b16 %v2827
        %v2910 = vunpack.c.l.b16 %v2828
        %v2911 = vunpack.c.h.b16 %v2828
        %v2912 = vunpack.c.l.b16 %v2829
        %v2913 = vunpack.c.h.b16 %v2829
        %v2914 = vunpack.c.l.b16 %v2830
        %v2915 = vunpack.c.h.b16 %v2830
        %v2916 = vunpack.c.l.b16 %v2831
        %v2917 = vunpack.c.h.b16 %v2831
        %v2918 = vunpack.c.l.b16 %v2832
        %v2919 = vunpack.c.h.b16 %v2832
        %v2920 = vunpack.c.l.b16 %v2833
        %v2921 = vunpack.c.h.b16 %v2833
        %v2922 = vunpack.c.l.b16 %v2834
        %v2923 = vunpack.c.h.b16 %v2834
        %v2924 = vunpack.c.l.b16 %v2835
        %v2925 = vunpack.c.h.b16 %v2835
        %v2926 = vunpack.c.l.b16 %v2836
        %v2927 = vunpack.c.h.b16 %v2836
        %v2928 = vunpack.c.l.b16 %v2837
        %v2929 = vunpack.c.h.b16 %v2837
        %v2930 = vunpack.c.l.b16 %v2838
        %v2931 = vunpack.c.h.b16 %v2838
        %v2932 = vunpack.c.l.b16 %v2839
        %v2933 = vunpack.c.h.b16 %v2839
        %v2934 = vunpack.c.l.b16 %v2840
        %v2935 = vunpack.c.h.b16 %v2840
        %v2936 = vunpack.c.l.b16 %v2841
        %v2937 = vunpack.c.h.b16 %v2841
        %v2938 = vpack.c.b16 %v2878, %v2874
        %v2939 = vpack.c.b16 %v2879, %v2875
        %v2940 = vpack.c.b16 %v2880, %v2876
        %v2941 = vpack.c.b16 %v2881, %v2877
        %v2942 = vpack.c.b16 %v2886, %v2882
        %v2943 = vpack.c.b16 %v2887, %v2883
        %v2944 = vpack.c.b16 %v2888, %v2884
        %v2945 = vpack.c.b16 %v2889, %v2885
        %v2946 = vpack.c.b16 %v2894, %v2890
        %v2947 = vpack.c.b16 %v2895, %v2891
        %v2948 = vpack.c.b16 %v2896, %v2892
        %v2949 = vpack.c.b16 %v2897, %v2893
        %v2950 = vpack.c.b16 %v2902, %v2898
        %v2951 = vpack.c.b16 %v2903, %v2899
        %v2952 = vpack.c.b16 %v2904, %v2900
        %v2953 = vpack.c.b16 %v2905, %v2901
        %v2954 = vpack.c.b16 %v2910, %v2906
        %v2955 = vpack.c.b16 %v2911, %v2907
        %v2956 = vpack.c.b16 %v2912, %v2908
        %v2957 = vpack.c.b16 %v2913, %v2909
        %v2958 = vpack.c.b16 %v2918, %v2914
        %v2959 = vpack.c.b16 %v2919, %v2915
        %v2960 = vpack.c.b16 %v2920, %v2916
        %v2961 = vpack.c.b16 %v2921, %v2917
        %v2962 = vpack.c.b16 %v2926, %v2922
        %v2963 = vpack.c.b16 %v2927, %v2923
        %v2964 = vpack.c.b16 %v2928, %v2924
        %v2965 = vpack.c.b16 %v2929, %v2925
        %v2966 = vpack.c.b16 %v2934, %v2930
        %v2967 = vpack.c.b16 %v2935, %v2931
        %v2968 = vpack.c.b16 %v2936, %v2932
        %v2969 = vpack.c.b16 %v2937, %v2933
        %3002 = vmatprep.subr.bf16.mxu0 %v2939
        %3003 = vmatpush1.bf16.msra.mxu0 %v2938
        %3004 = vmatprep.subr.bf16.mxu0 %v2943
        %3005 = vmatpush1.bf16.msra.mxu0 %v2942
        %3006 = vmatprep.subr.bf16.mxu0 %v2947
        %3007 = vmatpush1.bf16.msra.mxu0 %v2946
        %3008 = vmatprep.subr.bf16.mxu0 %v2951
        %3009 = vmatpush1.bf16.msra.mxu0 %v2950
        %3010 = vmatprep.subr.bf16.mxu0 %v2955
        %3011 = vmatpush1.bf16.msra.mxu0 %v2954
        %3012 = vmatprep.subr.bf16.mxu0 %v2959
        %3013 = vmatpush1.bf16.msra.mxu0 %v2958
        %3014 = vmatprep.subr.bf16.mxu0 %v2963
        %3015 = vmatpush1.bf16.msra.mxu0 %v2962
        %3016 = vmatprep.subr.bf16.mxu0 %v2967
        %3017 = vmatpush1.bf16.msra.mxu0 %v2966
        %3018 = vmatprep.subr.bf16.mxu0 0
        %3019 = vmatpush1.bf16.msra.mxu0 0
        %3020 = vmatprep.subr.bf16.mxu0 0
        %3021 = vmatpush1.bf16.msra.mxu0 0
        %3022 = vmatprep.subr.bf16.mxu0 0
        %3023 = vmatpush1.bf16.msra.mxu0 0
        %3024 = vmatprep.subr.bf16.mxu0 0
        %3025 = vmatpush1.bf16.msra.mxu0 0
        %3026 = vmatprep.subr.bf16.mxu0 0
        %3027 = vmatpush1.bf16.msra.mxu0 0
        %3028 = vmatprep.subr.bf16.mxu0 0
        %3029 = vmatpush1.bf16.msra.mxu0 0
        %3030 = vmatprep.subr.bf16.mxu0 0
        %3031 = vmatpush1.bf16.msra.mxu0 0
        %3032 = vmatprep.subr.bf16.mxu0 0
        %3033 = vmatpush1.bf16.msra.mxu0 0
        %3034 = vmatprep.mubr.bf16.mxu0 0
        %3035 = vmatmul.mubr.bf16.gmra.mrb[0].mxu0 %v2800
        %v3036 = vpop.f32.mrb[0].mxu0
        %v3037 = vadd.f32 0.0, %v3036
        %v3038 = vpop.f32.mrb[0].mxu0
        %v3039 = vadd.f32 0.0, %v3038
        %v3040 = vpop.f32.mrb[0].mxu0
        %v3041 = vpop.f32.mrb[0].mxu0
        %3042 = vdwg.mxu0
        %3043 = vmatprep.subr.bf16.mxu0 %v2941
        %3044 = vmatpush1.bf16.msra.mxu0 %v2940
        %3045 = vmatprep.subr.bf16.mxu0 %v2945
        %3046 = vmatpush1.bf16.msra.mxu0 %v2944
        %3047 = vmatprep.subr.bf16.mxu0 %v2949
        %3048 = vmatpush1.bf16.msra.mxu0 %v2948
        %3049 = vmatprep.subr.bf16.mxu0 %v2953
        %3050 = vmatpush1.bf16.msra.mxu0 %v2952
        %3051 = vmatprep.subr.bf16.mxu0 %v2957
        %3052 = vmatpush1.bf16.msra.mxu0 %v2956
        %3053 = vmatprep.subr.bf16.mxu0 %v2961
        %3054 = vmatpush1.bf16.msra.mxu0 %v2960
        %3055 = vmatprep.subr.bf16.mxu0 %v2965
        %3056 = vmatpush1.bf16.msra.mxu0 %v2964
        %3057 = vmatprep.subr.bf16.mxu0 %v2969
        %3058 = vmatpush1.bf16.msra.mxu0 %v2968
        %3059 = vmatprep.subr.bf16.mxu0 0
        %3060 = vmatpush1.bf16.msra.mxu0 0
        %3061 = vmatprep.subr.bf16.mxu0 0
        %3062 = vmatpush1.bf16.msra.mxu0 0
        %3063 = vmatprep.subr.bf16.mxu0 0
        %3064 = vmatpush1.bf16.msra.mxu0 0
        %3065 = vmatprep.subr.bf16.mxu0 0
        %3066 = vmatpush1.bf16.msra.mxu0 0
        %3067 = vmatprep.subr.bf16.mxu0 0
        %3068 = vmatpush1.bf16.msra.mxu0 0
        %3069 = vmatprep.subr.bf16.mxu0 0
        %3070 = vmatpush1.bf16.msra.mxu0 0
        %3071 = vmatprep.subr.bf16.mxu0 0
        %3072 = vmatpush1.bf16.msra.mxu0 0
        %3073 = vmatprep.subr.bf16.mxu0 0
        %3074 = vmatpush1.bf16.msra.mxu0 0
        %3075 = vmatprep.mubr.bf16.mxu0 0
        %3076 = vmatmul.mubr.bf16.gmra.mrb[0].mxu0 %v2800
        %v3077 = vpop.f32.mrb[0].mxu0
        %v3078 = vadd.f32 0.0, %v3077
        %v3079 = vpop.f32.mrb[0].mxu0
        %v3080 = vadd.f32 0.0, %v3079
        %v3081 = vpop.f32.mrb[0].mxu0
        %v3082 = vpop.f32.mrb[0].mxu0
        %3083 = vdwg.mxu0
        %v3084 = vadd.f32 %v2806, %v3037
        %v3085 = vadd.f32 %v2807, %v3039
        %v3086 = vadd.f32 %v2808, %v3078
        %v3087 = vadd.f32 %v2809, %v3080
        %v3088 = vmul.f32 %v3084, 0.5
        %v3089 = vmul.f32 %v3085, 0.5
        %v3090 = vmul.f32 %v3086, 0.5
        %v3091 = vtanh.pop %v3088
        %v3092 = vtanh.pop %v3089
        %v3093 = vtanh.pop %v3090
        %v3094 = vmul.f32 %v3091, 0.5
        %v3095 = vmul.f32 %v3092, 0.5
        %v3096 = vmul.f32 %v3093, 0.5
        %v3097 = vadd.f32 %v3094, 0.5
        %v3098 = vadd.f32 %v3095, 0.5
        %v3099 = vadd.f32 %v3096, 0.5
        %v3100 = vtanh.pop %v3087
        %v3101 = vmul.f32 %v3098, %v2797
        %v3102 = vmul.f32 %v3097, %v3100
        %v3103 = vadd.f32 %v3101, %v3102
        %v3104 = vtanh.pop %v3103
        %v3105 = vmul.f32 %v3099, %v3104
        %v3106 = vpack.c.bf16 %v3105, %v3105
        %s3107 = scalar_lea.vmem [#allocation2], 28
        %3108 = vst [vmem:[%s3107] sm:$0xf] %v3106
        %s3109 = smul.u32 8, 4
        %s3110 = smul.addr %s3109, 8
        %s3111 = scalar_lea.vmem [#allocation3], %s3110
        %v3112 = vld [vmem:[%s3111] sm:$0xff]
        %v3113 = vld [vmem:[%s3111 + $0x8] sm:$0xff]
        %v3114 = vld [vmem:[%s3111 + $0x10] sm:$0xff]
        %v3115 = vld [vmem:[%s3111 + $0x18] sm:$0xff]
        %v3116 = vld [vmem:[#allocation4] sm:$0xff]
        %v3117 = vld [vmem:[#allocation4 + $0x8] sm:$0xff]
        %v3118 = vld [vmem:[#allocation4 + $0x10] sm:$0xff]
        %v3119 = vld [vmem:[#allocation4 + $0x18] sm:$0xff]
        %v3120 = vld [vmem:[#allocation4 + $0x20] sm:$0xff]
        %v3121 = vld [vmem:[#allocation4 + $0x28] sm:$0xff]
        %v3122 = vld [vmem:[#allocation4 + $0x30] sm:$0xff]
        %v3123 = vld [vmem:[#allocation4 + $0x38] sm:$0xff]
        %v3124 = vld [vmem:[#allocation4 + $0x40] sm:$0xff]
        %v3125 = vld [vmem:[#allocation4 + $0x48] sm:$0xff]
        %v3126 = vld [vmem:[#allocation4 + $0x50] sm:$0xff]
        %v3127 = vld [vmem:[#allocation4 + $0x58] sm:$0xff]
        %v3128 = vld [vmem:[#allocation4 + $0x60] sm:$0xff]
        %v3129 = vld [vmem:[#allocation4 + $0x68] sm:$0xff]
        %v3130 = vld [vmem:[#allocation4 + $0x70] sm:$0xff]
        %v3131 = vld [vmem:[#allocation4 + $0x78] sm:$0xff]
        %v3132 = vld [vmem:[#allocation4 + $0x80] sm:$0xff]
        %v3133 = vld [vmem:[#allocation4 + $0x88] sm:$0xff]
        %v3134 = vld [vmem:[#allocation4 + $0x90] sm:$0xff]
        %v3135 = vld [vmem:[#allocation4 + $0x98] sm:$0xff]
        %v3136 = vld [vmem:[#allocation4 + $0xa0] sm:$0xff]
        %v3137 = vld [vmem:[#allocation4 + $0xa8] sm:$0xff]
        %v3138 = vld [vmem:[#allocation4 + $0xb0] sm:$0xff]
        %v3139 = vld [vmem:[#allocation4 + $0xb8] sm:$0xff]
        %v3140 = vld [vmem:[#allocation4 + $0xc0] sm:$0xff]
        %v3141 = vld [vmem:[#allocation4 + $0xc8] sm:$0xff]
        %v3142 = vld [vmem:[#allocation4 + $0xd0] sm:$0xff]
        %v3143 = vld [vmem:[#allocation4 + $0xd8] sm:$0xff]
        %v3144 = vld [vmem:[#allocation4 + $0xe0] sm:$0xff]
        %v3145 = vld [vmem:[#allocation4 + $0xe8] sm:$0xff]
        %v3146 = vld [vmem:[#allocation4 + $0xf0] sm:$0xff]
        %v3147 = vld [vmem:[#allocation4 + $0xf8] sm:$0xff]
        %v3180 = vunpack.c.l.b16 %v3116
        %v3181 = vunpack.c.h.b16 %v3116
        %v3182 = vunpack.c.l.b16 %v3117
        %v3183 = vunpack.c.h.b16 %v3117
        %v3184 = vunpack.c.l.b16 %v3118
        %v3185 = vunpack.c.h.b16 %v3118
        %v3186 = vunpack.c.l.b16 %v3119
        %v3187 = vunpack.c.h.b16 %v3119
        %v3188 = vunpack.c.l.b16 %v3120
        %v3189 = vunpack.c.h.b16 %v3120
        %v3190 = vunpack.c.l.b16 %v3121
        %v3191 = vunpack.c.h.b16 %v3121
        %v3192 = vunpack.c.l.b16 %v3122
        %v3193 = vunpack.c.h.b16 %v3122
        %v3194 = vunpack.c.l.b16 %v3123
        %v3195 = vunpack.c.h.b16 %v3123
        %v3196 = vunpack.c.l.b16 %v3124
        %v3197 = vunpack.c.h.b16 %v3124
        %v3198 = vunpack.c.l.b16 %v3125
        %v3199 = vunpack.c.h.b16 %v3125
        %v3200 = vunpack.c.l.b16 %v3126
        %v3201 = vunpack.c.h.b16 %v3126
        %v3202 = vunpack.c.l.b16 %v3127
        %v3203 = vunpack.c.h.b16 %v3127
        %v3204 = vunpack.c.l.b16 %v3128
        %v3205 = vunpack.c.h.b16 %v3128
        %v3206 = vunpack.c.l.b16 %v3129
        %v3207 = vunpack.c.h.b16 %v3129
        %v3208 = vunpack.c.l.b16 %v3130
        %v3209 = vunpack.c.h.b16 %v3130
        %v3210 = vunpack.c.l.b16 %v3131
        %v3211 = vunpack.c.h.b16 %v3131
        %v3212 = vunpack.c.l.b16 %v3132
        %v3213 = vunpack.c.h.b16 %v3132
        %v3214 = vunpack.c.l.b16 %v3133
        %v3215 = vunpack.c.h.b16 %v3133
        %v3216 = vunpack.c.l.b16 %v3134
        %v3217 = vunpack.c.h.b16 %v3134
        %v3218 = vunpack.c.l.b16 %v3135
        %v3219 = vunpack.c.h.b16 %v3135
        %v3220 = vunpack.c.l.b16 %v3136
        %v3221 = vunpack.c.h.b16 %v3136
        %v3222 = vunpack.c.l.b16 %v3137
        %v3223 = vunpack.c.h.b16 %v3137
        %v3224 = vunpack.c.l.b16 %v3138
        %v3225 = vunpack.c.h.b16 %v3138
        %v3226 = vunpack.c.l.b16 %v3139
        %v3227 = vunpack.c.h.b16 %v3139
        %v3228 = vunpack.c.l.b16 %v3140
        %v3229 = vunpack.c.h.b16 %v3140
        %v3230 = vunpack.c.l.b16 %v3141
        %v3231 = vunpack.c.h.b16 %v3141
        %v3232 = vunpack.c.l.b16 %v3142
        %v3233 = vunpack.c.h.b16 %v3142
        %v3234 = vunpack.c.l.b16 %v3143
        %v3235 = vunpack.c.h.b16 %v3143
        %v3236 = vunpack.c.l.b16 %v3144
        %v3237 = vunpack.c.h.b16 %v3144
        %v3238 = vunpack.c.l.b16 %v3145
        %v3239 = vunpack.c.h.b16 %v3145
        %v3240 = vunpack.c.l.b16 %v3146
        %v3241 = vunpack.c.h.b16 %v3146
        %v3242 = vunpack.c.l.b16 %v3147
        %v3243 = vunpack.c.h.b16 %v3147
        %v3244 = vpack.c.b16 %v3184, %v3180
        %v3245 = vpack.c.b16 %v3185, %v3181
        %v3246 = vpack.c.b16 %v3186, %v3182
        %v3247 = vpack.c.b16 %v3187, %v3183
        %v3248 = vpack.c.b16 %v3192, %v3188
        %v3249 = vpack.c.b16 %v3193, %v3189
        %v3250 = vpack.c.b16 %v3194, %v3190
        %v3251 = vpack.c.b16 %v3195, %v3191
        %v3252 = vpack.c.b16 %v3200, %v3196
        %v3253 = vpack.c.b16 %v3201, %v3197
        %v3254 = vpack.c.b16 %v3202, %v3198
        %v3255 = vpack.c.b16 %v3203, %v3199
        %v3256 = vpack.c.b16 %v3208, %v3204
        %v3257 = vpack.c.b16 %v3209, %v3205
        %v3258 = vpack.c.b16 %v3210, %v3206
        %v3259 = vpack.c.b16 %v3211, %v3207
        %v3260 = vpack.c.b16 %v3216, %v3212
        %v3261 = vpack.c.b16 %v3217, %v3213
        %v3262 = vpack.c.b16 %v3218, %v3214
        %v3263 = vpack.c.b16 %v3219, %v3215
        %v3264 = vpack.c.b16 %v3224, %v3220
        %v3265 = vpack.c.b16 %v3225, %v3221
        %v3266 = vpack.c.b16 %v3226, %v3222
        %v3267 = vpack.c.b16 %v3227, %v3223
        %v3268 = vpack.c.b16 %v3232, %v3228
        %v3269 = vpack.c.b16 %v3233, %v3229
        %v3270 = vpack.c.b16 %v3234, %v3230
        %v3271 = vpack.c.b16 %v3235, %v3231
        %v3272 = vpack.c.b16 %v3240, %v3236
        %v3273 = vpack.c.b16 %v3241, %v3237
        %v3274 = vpack.c.b16 %v3242, %v3238
        %v3275 = vpack.c.b16 %v3243, %v3239
        %3308 = vmatprep.subr.bf16.mxu0 %v3245
        %3309 = vmatpush1.bf16.msra.mxu0 %v3244
        %3310 = vmatprep.subr.bf16.mxu0 %v3249
        %3311 = vmatpush1.bf16.msra.mxu0 %v3248
        %3312 = vmatprep.subr.bf16.mxu0 %v3253
        %3313 = vmatpush1.bf16.msra.mxu0 %v3252
        %3314 = vmatprep.subr.bf16.mxu0 %v3257
        %3315 = vmatpush1.bf16.msra.mxu0 %v3256
        %3316 = vmatprep.subr.bf16.mxu0 %v3261
        %3317 = vmatpush1.bf16.msra.mxu0 %v3260
        %3318 = vmatprep.subr.bf16.mxu0 %v3265
        %3319 = vmatpush1.bf16.msra.mxu0 %v3264
        %3320 = vmatprep.subr.bf16.mxu0 %v3269
        %3321 = vmatpush1.bf16.msra.mxu0 %v3268
        %3322 = vmatprep.subr.bf16.mxu0 %v3273
        %3323 = vmatpush1.bf16.msra.mxu0 %v3272
        %3324 = vmatprep.subr.bf16.mxu0 0
        %3325 = vmatpush1.bf16.msra.mxu0 0
        %3326 = vmatprep.subr.bf16.mxu0 0
        %3327 = vmatpush1.bf16.msra.mxu0 0
        %3328 = vmatprep.subr.bf16.mxu0 0
        %3329 = vmatpush1.bf16.msra.mxu0 0
        %3330 = vmatprep.subr.bf16.mxu0 0
        %3331 = vmatpush1.bf16.msra.mxu0 0
        %3332 = vmatprep.subr.bf16.mxu0 0
        %3333 = vmatpush1.bf16.msra.mxu0 0
        %3334 = vmatprep.subr.bf16.mxu0 0
        %3335 = vmatpush1.bf16.msra.mxu0 0
        %3336 = vmatprep.subr.bf16.mxu0 0
        %3337 = vmatpush1.bf16.msra.mxu0 0
        %3338 = vmatprep.subr.bf16.mxu0 0
        %3339 = vmatpush1.bf16.msra.mxu0 0
        %3340 = vmatprep.mubr.bf16.mxu0 0
        %3341 = vmatmul.mubr.bf16.gmra.mrb[0].mxu0 %v3106
        %v3342 = vpop.f32.mrb[0].mxu0
        %v3343 = vadd.f32 0.0, %v3342
        %v3344 = vpop.f32.mrb[0].mxu0
        %v3345 = vadd.f32 0.0, %v3344
        %v3346 = vpop.f32.mrb[0].mxu0
        %v3347 = vpop.f32.mrb[0].mxu0
        %3348 = vdwg.mxu0
        %3349 = vmatprep.subr.bf16.mxu0 %v3247
        %3350 = vmatpush1.bf16.msra.mxu0 %v3246
        %3351 = vmatprep.subr.bf16.mxu0 %v3251
        %3352 = vmatpush1.bf16.msra.mxu0 %v3250
        %3353 = vmatprep.subr.bf16.mxu0 %v3255
        %3354 = vmatpush1.bf16.msra.mxu0 %v3254
        %3355 = vmatprep.subr.bf16.mxu0 %v3259
        %3356 = vmatpush1.bf16.msra.mxu0 %v3258
        %3357 = vmatprep.subr.bf16.mxu0 %v3263
        %3358 = vmatpush1.bf16.msra.mxu0 %v3262
        %3359 = vmatprep.subr.bf16.mxu0 %v3267
        %3360 = vmatpush1.bf16.msra.mxu0 %v3266
        %3361 = vmatprep.subr.bf16.mxu0 %v3271
        %3362 = vmatpush1.bf16.msra.mxu0 %v3270
        %3363 = vmatprep.subr.bf16.mxu0 %v3275
        %3364 = vmatpush1.bf16.msra.mxu0 %v3274
        %3365 = vmatprep.subr.bf16.mxu0 0
        %3366 = vmatpush1.bf16.msra.mxu0 0
        %3367 = vmatprep.subr.bf16.mxu0 0
        %3368 = vmatpush1.bf16.msra.mxu0 0
        %3369 = vmatprep.subr.bf16.mxu0 0
        %3370 = vmatpush1.bf16.msra.mxu0 0
        %3371 = vmatprep.subr.bf16.mxu0 0
        %3372 = vmatpush1.bf16.msra.mxu0 0
        %3373 = vmatprep.subr.bf16.mxu0 0
        %3374 = vmatpush1.bf16.msra.mxu0 0
        %3375 = vmatprep.subr.bf16.mxu0 0
        %3376 = vmatpush1.bf16.msra.mxu0 0
        %3377 = vmatprep.subr.bf16.mxu0 0
        %3378 = vmatpush1.bf16.msra.mxu0 0
        %3379 = vmatprep.subr.bf16.mxu0 0
        %3380 = vmatpush1.bf16.msra.mxu0 0
        %3381 = vmatprep.mubr.bf16.mxu0 0
        %3382 = vmatmul.mubr.bf16.gmra.mrb[0].mxu0 %v3106
        %v3383 = vpop.f32.mrb[0].mxu0
        %v3384 = vadd.f32 0.0, %v3383
        %v3385 = vpop.f32.mrb[0].mxu0
        %v3386 = vadd.f32 0.0, %v3385
        %v3387 = vpop.f32.mrb[0].mxu0
        %v3388 = vpop.f32.mrb[0].mxu0
        %3389 = vdwg.mxu0
        %v3390 = vadd.f32 %v3112, %v3343
        %v3391 = vadd.f32 %v3113, %v3345
        %v3392 = vadd.f32 %v3114, %v3384
        %v3393 = vadd.f32 %v3115, %v3386
        %v3394 = vmul.f32 %v3390, 0.5
        %v3395 = vmul.f32 %v3391, 0.5
        %v3396 = vmul.f32 %v3392, 0.5
        %v3397 = vtanh.pop %v3394
        %v3398 = vtanh.pop %v3395
        %v3399 = vtanh.pop %v3396
        %v3400 = vmul.f32 %v3397, 0.5
        %v3401 = vmul.f32 %v3398, 0.5
        %v3402 = vmul.f32 %v3399, 0.5
        %v3403 = vadd.f32 %v3400, 0.5
        %v3404 = vadd.f32 %v3401, 0.5
        %v3405 = vadd.f32 %v3402, 0.5
        %v3406 = vtanh.pop %v3393
        %v3407 = vmul.f32 %v3404, %v3103
        %v3408 = vmul.f32 %v3403, %v3406
        %v3409 = vadd.f32 %v3407, %v3408
        %v3410 = vtanh.pop %v3409
        %v3411 = vmul.f32 %v3405, %v3410
        %v3412 = vpack.c.bf16 %v3411, %v3411
        %s3413 = scalar_lea.vmem [#allocation2], 32
        %3414 = vst [vmem:[%s3413] sm:$0xf] %v3412
        %v3415 = vld [vmem:[#allocation2] sm:$0xf]
        %v3416 = vld [vmem:[#allocation2 + $0x4] sm:$0xf]
        %v3417 = vld [vmem:[#allocation2 + $0x8] sm:$0xf]
        %v3418 = vld [vmem:[#allocation2 + $0xc] sm:$0xf]
        %v3419 = vld [vmem:[#allocation2 + $0x10] sm:$0xf]
        %v3420 = vld [vmem:[#allocation2 + $0x14] sm:$0xf]
        %v3421 = vld [vmem:[#allocation2 + $0x18] sm:$0xf]
        %v3422 = vld [vmem:[#allocation2 + $0x1c] sm:$0xf]
        %v3423 = vld [vmem:[#allocation2 + $0x20] sm:$0xf]
        %v3424 = vld [vmem:[#allocation7] sm:$0xff]
        %v3425 = vld [vmem:[#allocation7 + $0x8] sm:$0xff]
        %v3426 = vld [vmem:[#allocation7 + $0x10] sm:$0xff]
        %v3427 = vld [vmem:[#allocation7 + $0x18] sm:$0xff]
        %v3428 = vld [vmem:[#allocation7 + $0x20] sm:$0xff]
        %v3429 = vld [vmem:[#allocation7 + $0x28] sm:$0xff]
        %v3430 = vld [vmem:[#allocation7 + $0x30] sm:$0xff]
        %v3431 = vld [vmem:[#allocation7 + $0x38] sm:$0xff]
        %v3432 = vld [vmem:[#allocation7 + $0x40] sm:$0xff]
        %v3433 = vld [vmem:[#allocation7 + $0x48] sm:$0xff]
        %v3434 = vld [vmem:[#allocation7 + $0x50] sm:$0xff]
        %v3435 = vld [vmem:[#allocation7 + $0x58] sm:$0xff]
        %v3436 = vld [vmem:[#allocation7 + $0x60] sm:$0xff]
        %v3437 = vld [vmem:[#allocation7 + $0x68] sm:$0xff]
        %v3438 = vld [vmem:[#allocation7 + $0x70] sm:$0xff]
        %v3439 = vld [vmem:[#allocation7 + $0x78] sm:$0xff]
        %v3440 = vld [vmem:[#allocation7 + $0x80] sm:$0xff]
        %v3441 = vld [vmem:[#allocation7 + $0x88] sm:$0xff]
        %v3442 = vld [vmem:[#allocation7 + $0x90] sm:$0xff]
        %v3443 = vld [vmem:[#allocation7 + $0x98] sm:$0xff]
        %v3444 = vld [vmem:[#allocation7 + $0xa0] sm:$0xff]
        %v3445 = vld [vmem:[#allocation7 + $0xa8] sm:$0xff]
        %v3446 = vld [vmem:[#allocation7 + $0xb0] sm:$0xff]
        %v3447 = vld [vmem:[#allocation7 + $0xb8] sm:$0xff]
        %v3448 = vld [vmem:[#allocation7 + $0xc0] sm:$0xff]
        %v3449 = vld [vmem:[#allocation7 + $0xc8] sm:$0xff]
        %v3450 = vld [vmem:[#allocation7 + $0xd0] sm:$0xff]
        %v3451 = vld [vmem:[#allocation7 + $0xd8] sm:$0xff]
        %v3452 = vld [vmem:[#allocation7 + $0xe0] sm:$0xff]
        %v3453 = vld [vmem:[#allocation7 + $0xe8] sm:$0xff]
        %v3454 = vld [vmem:[#allocation7 + $0xf0] sm:$0xff]
        %v3455 = vld [vmem:[#allocation7 + $0xf8] sm:$0xff]
        %v3456 = vld [vmem:[%s6] sm:$0xf]
        %v3458 = vlaneseq
        %v3459 = vshrl.u32 %v3458, 7
        %v3460 = vsub.s32 0, %v3459
        %v3461 = vrot.slane %v3456, %v3460
        %v3462 = vlaneseq
        %v3463 = vshrl.u32 %v3462, 7
        %v3464 = vsub.s32 1, %v3463
        %v3465 = vrot.slane %v3456, %v3464
        %v3466 = vlaneseq
        %v3467 = vshrl.u32 %v3466, 7
        %v3468 = vsub.s32 2, %v3467
        %v3469 = vrot.slane %v3456, %v3468
        %v3470 = vlaneseq
        %v3471 = vshrl.u32 %v3470, 7
        %v3472 = vsub.s32 3, %v3471
        %v3473 = vrot.slane %v3456, %v3472
        %v3487 = vunpack.c.l.b16 %v3415
        %v3488 = vunpack.c.l.b16 %v3416
        %v3489 = vunpack.c.l.b16 %v3417
        %v3490 = vunpack.c.l.b16 %v3418
        %v3491 = vunpack.c.l.b16 %v3419
        %v3492 = vunpack.c.l.b16 %v3420
        %v3493 = vunpack.c.l.b16 %v3421
        %v3494 = vunpack.c.l.b16 %v3422
        %v3495 = vunpack.c.l.b16 %v3423
        %v3496 = vpack.c.b16 %v3488, %v3487
        %v3497 = vpack.c.b16 %v3490, %v3489
        %v3498 = vpack.c.b16 %v3492, %v3491
        %v3499 = vpack.c.b16 %v3494, %v3493
        %v3500 = vpack.c.b16 %v3495, %v3495
        %v3538 = vunpack.c.l.b16 %v3424
        %v3539 = vunpack.c.h.b16 %v3424
        %v3540 = vunpack.c.l.b16 %v3425
        %v3541 = vunpack.c.h.b16 %v3425
        %v3542 = vunpack.c.l.b16 %v3426
        %v3543 = vunpack.c.h.b16 %v3426
        %v3544 = vunpack.c.l.b16 %v3427
        %v3545 = vunpack.c.h.b16 %v3427
        %v3546 = vunpack.c.l.b16 %v3428
        %v3547 = vunpack.c.h.b16 %v3428
        %v3548 = vunpack.c.l.b16 %v3429
        %v3549 = vunpack.c.h.b16 %v3429
        %v3550 = vunpack.c.l.b16 %v3430
        %v3551 = vunpack.c.h.b16 %v3430
        %v3552 = vunpack.c.l.b16 %v3431
        %v3553 = vunpack.c.h.b16 %v3431
        %v3554 = vunpack.c.l.b16 %v3432
        %v3555 = vunpack.c.h.b16 %v3432
        %v3556 = vunpack.c.l.b16 %v3433
        %v3557 = vunpack.c.h.b16 %v3433
        %v3558 = vunpack.c.l.b16 %v3434
        %v3559 = vunpack.c.h.b16 %v3434
        %v3560 = vunpack.c.l.b16 %v3435
        %v3561 = vunpack.c.h.b16 %v3435
        %v3562 = vunpack.c.l.b16 %v3436
        %v3563 = vunpack.c.h.b16 %v3436
        %v3564 = vunpack.c.l.b16 %v3437
        %v3565 = vunpack.c.h.b16 %v3437
        %v3566 = vunpack.c.l.b16 %v3438
        %v3567 = vunpack.c.h.b16 %v3438
        %v3568 = vunpack.c.l.b16 %v3439
        %v3569 = vunpack.c.h.b16 %v3439
        %v3570 = vunpack.c.l.b16 %v3440
        %v3571 = vunpack.c.h.b16 %v3440
        %v3572 = vunpack.c.l.b16 %v3441
        %v3573 = vunpack.c.h.b16 %v3441
        %v3574 = vunpack.c.l.b16 %v3442
        %v3575 = vunpack.c.h.b16 %v3442
        %v3576 = vunpack.c.l.b16 %v3443
        %v3577 = vunpack.c.h.b16 %v3443
        %v3578 = vunpack.c.l.b16 %v3444
        %v3579 = vunpack.c.h.b16 %v3444
        %v3580 = vunpack.c.l.b16 %v3445
        %v3581 = vunpack.c.h.b16 %v3445
        %v3582 = vunpack.c.l.b16 %v3446
        %v3583 = vunpack.c.h.b16 %v3446
        %v3584 = vunpack.c.l.b16 %v3447
        %v3585 = vunpack.c.h.b16 %v3447
        %v3586 = vunpack.c.l.b16 %v3448
        %v3587 = vunpack.c.h.b16 %v3448
        %v3588 = vunpack.c.l.b16 %v3449
        %v3589 = vunpack.c.h.b16 %v3449
        %v3590 = vunpack.c.l.b16 %v3450
        %v3591 = vunpack.c.h.b16 %v3450
        %v3592 = vunpack.c.l.b16 %v3451
        %v3593 = vunpack.c.h.b16 %v3451
        %v3594 = vunpack.c.l.b16 %v3452
        %v3595 = vunpack.c.h.b16 %v3452
        %v3596 = vunpack.c.l.b16 %v3453
        %v3597 = vunpack.c.h.b16 %v3453
        %v3598 = vunpack.c.l.b16 %v3454
        %v3599 = vunpack.c.h.b16 %v3454
        %v3600 = vunpack.c.l.b16 %v3455
        %v3601 = vunpack.c.h.b16 %v3455
        %v3602 = vpack.c.b16 %v3542, %v3538
        %v3603 = vpack.c.b16 %v3543, %v3539
        %v3604 = vpack.c.b16 %v3544, %v3540
        %v3605 = vpack.c.b16 %v3545, %v3541
        %v3606 = vpack.c.b16 %v3550, %v3546
        %v3607 = vpack.c.b16 %v3551, %v3547
        %v3608 = vpack.c.b16 %v3552, %v3548
        %v3609 = vpack.c.b16 %v3553, %v3549
        %v3610 = vpack.c.b16 %v3558, %v3554
        %v3611 = vpack.c.b16 %v3559, %v3555
        %v3612 = vpack.c.b16 %v3560, %v3556
        %v3613 = vpack.c.b16 %v3561, %v3557
        %v3614 = vpack.c.b16 %v3566, %v3562
        %v3615 = vpack.c.b16 %v3567, %v3563
        %v3616 = vpack.c.b16 %v3568, %v3564
        %v3617 = vpack.c.b16 %v3569, %v3565
        %v3618 = vpack.c.b16 %v3574, %v3570
        %v3619 = vpack.c.b16 %v3575, %v3571
        %v3620 = vpack.c.b16 %v3576, %v3572
        %v3621 = vpack.c.b16 %v3577, %v3573
        %v3622 = vpack.c.b16 %v3582, %v3578
        %v3623 = vpack.c.b16 %v3583, %v3579
        %v3624 = vpack.c.b16 %v3584, %v3580
        %v3625 = vpack.c.b16 %v3585, %v3581
        %v3626 = vpack.c.b16 %v3590, %v3586
        %v3627 = vpack.c.b16 %v3591, %v3587
        %v3628 = vpack.c.b16 %v3592, %v3588
        %v3629 = vpack.c.b16 %v3593, %v3589
        %v3630 = vpack.c.b16 %v3598, %v3594
        %v3631 = vpack.c.b16 %v3599, %v3595
        %v3632 = vpack.c.b16 %v3600, %v3596
        %v3633 = vpack.c.b16 %v3601, %v3597
        %3666 = vmatprep.subr.bf16.mxu0 %v3603
        %3667 = vmatpush1.bf16.msra.mxu0 %v3602
        %3668 = vmatprep.subr.bf16.mxu0 %v3607
        %3669 = vmatpush1.bf16.msra.mxu0 %v3606
        %3670 = vmatprep.subr.bf16.mxu0 %v3611
        %3671 = vmatpush1.bf16.msra.mxu0 %v3610
        %3672 = vmatprep.subr.bf16.mxu0 %v3615
        %3673 = vmatpush1.bf16.msra.mxu0 %v3614
        %3674 = vmatprep.subr.bf16.mxu0 %v3619
        %3675 = vmatpush1.bf16.msra.mxu0 %v3618
        %3676 = vmatprep.subr.bf16.mxu0 %v3623
        %3677 = vmatpush1.bf16.msra.mxu0 %v3622
        %3678 = vmatprep.subr.bf16.mxu0 %v3627
        %3679 = vmatpush1.bf16.msra.mxu0 %v3626
        %3680 = vmatprep.subr.bf16.mxu0 %v3631
        %3681 = vmatpush1.bf16.msra.mxu0 %v3630
        %3682 = vmatprep.subr.bf16.mxu0 0
        %3683 = vmatpush1.bf16.msra.mxu0 0
        %3684 = vmatprep.subr.bf16.mxu0 0
        %3685 = vmatpush1.bf16.msra.mxu0 0
        %3686 = vmatprep.subr.bf16.mxu0 0
        %3687 = vmatpush1.bf16.msra.mxu0 0
        %3688 = vmatprep.subr.bf16.mxu0 0
        %3689 = vmatpush1.bf16.msra.mxu0 0
        %3690 = vmatprep.subr.bf16.mxu0 0
        %3691 = vmatpush1.bf16.msra.mxu0 0
        %3692 = vmatprep.subr.bf16.mxu0 0
        %3693 = vmatpush1.bf16.msra.mxu0 0
        %3694 = vmatprep.subr.bf16.mxu0 0
        %3695 = vmatpush1.bf16.msra.mxu0 0
        %3696 = vmatprep.subr.bf16.mxu0 0
        %3697 = vmatpush1.bf16.msra.mxu0 0
        %3698 = vmatprep.mubr.bf16.mxu0 0
        %3699 = vmatmul.mubr.bf16.gmra.mrb[0].mxu0 %v3496
        %v3700 = vpop.f32.mrb[0].mxu0
        %v3701 = vadd.f32 %v3461, %v3700
        %v3702 = vpop.f32.mrb[0].mxu0
        %v3703 = vadd.f32 %v3465, %v3702
        %v3704 = vpop.f32.mrb[0].mxu0
        %v3705 = vadd.f32 %v3461, %v3704
        %v3706 = vpop.f32.mrb[0].mxu0
        %v3707 = vadd.f32 %v3465, %v3706
        %3708 = vmatprep.mubr.bf16.mxu0 0
        %3709 = vmatmul.mubr.bf16.gmra.mrb[0].mxu0 %v3497
        %v3710 = vpop.f32.mrb[0].mxu0
        %v3711 = vadd.f32 %v3461, %v3710
        %v3712 = vpop.f32.mrb[0].mxu0
        %v3713 = vadd.f32 %v3465, %v3712
        %v3714 = vpop.f32.mrb[0].mxu0
        %v3715 = vadd.f32 %v3461, %v3714
        %v3716 = vpop.f32.mrb[0].mxu0
        %v3717 = vadd.f32 %v3465, %v3716
        %3718 = vmatprep.mubr.bf16.mxu0 0
        %3719 = vmatmul.mubr.bf16.gmra.mrb[0].mxu0 %v3498
        %v3720 = vpop.f32.mrb[0].mxu0
        %v3721 = vadd.f32 %v3461, %v3720
        %v3722 = vpop.f32.mrb[0].mxu0
        %v3723 = vadd.f32 %v3465, %v3722
        %v3724 = vpop.f32.mrb[0].mxu0
        %v3725 = vadd.f32 %v3461, %v3724
        %v3726 = vpop.f32.mrb[0].mxu0
        %v3727 = vadd.f32 %v3465, %v3726
        %3728 = vmatprep.mubr.bf16.mxu0 0
        %3729 = vmatmul.mubr.bf16.gmra.mrb[0].mxu0 %v3499
        %v3730 = vpop.f32.mrb[0].mxu0
        %v3731 = vadd.f32 %v3461, %v3730
        %v3732 = vpop.f32.mrb[0].mxu0
        %v3733 = vadd.f32 %v3465, %v3732
        %v3734 = vpop.f32.mrb[0].mxu0
        %v3735 = vadd.f32 %v3461, %v3734
        %v3736 = vpop.f32.mrb[0].mxu0
        %v3737 = vadd.f32 %v3465, %v3736
        %3738 = vmatprep.mubr.bf16.mxu0 0
        %3739 = vmatmul.mubr.bf16.gmra.mrb[0].mxu0 %v3500
        %v3740 = vpop.f32.mrb[0].mxu0
        %v3741 = vadd.f32 %v3461, %v3740
        %v3742 = vpop.f32.mrb[0].mxu0
        %v3743 = vadd.f32 %v3465, %v3742
        %v3744 = vpop.f32.mrb[0].mxu0
        %v3745 = vpop.f32.mrb[0].mxu0
        %3746 = vdwg.mxu0
        %3747 = vmatprep.subr.bf16.mxu0 %v3605
        %3748 = vmatpush1.bf16.msra.mxu0 %v3604
        %3749 = vmatprep.subr.bf16.mxu0 %v3609
        %3750 = vmatpush1.bf16.msra.mxu0 %v3608
        %3751 = vmatprep.subr.bf16.mxu0 %v3613
        %3752 = vmatpush1.bf16.msra.mxu0 %v3612
        %3753 = vmatprep.subr.bf16.mxu0 %v3617
        %3754 = vmatpush1.bf16.msra.mxu0 %v3616
        %3755 = vmatprep.subr.bf16.mxu0 %v3621
        %3756 = vmatpush1.bf16.msra.mxu0 %v3620
        %3757 = vmatprep.subr.bf16.mxu0 %v3625
        %3758 = vmatpush1.bf16.msra.mxu0 %v3624
        %3759 = vmatprep.subr.bf16.mxu0 %v3629
        %3760 = vmatpush1.bf16.msra.mxu0 %v3628
        %3761 = vmatprep.subr.bf16.mxu0 %v3633
        %3762 = vmatpush1.bf16.msra.mxu0 %v3632
        %3763 = vmatprep.subr.bf16.mxu0 0
        %3764 = vmatpush1.bf16.msra.mxu0 0
        %3765 = vmatprep.subr.bf16.mxu0 0
        %3766 = vmatpush1.bf16.msra.mxu0 0
        %3767 = vmatprep.subr.bf16.mxu0 0
        %3768 = vmatpush1.bf16.msra.mxu0 0
        %3769 = vmatprep.subr.bf16.mxu0 0
        %3770 = vmatpush1.bf16.msra.mxu0 0
        %3771 = vmatprep.subr.bf16.mxu0 0
        %3772 = vmatpush1.bf16.msra.mxu0 0
        %3773 = vmatprep.subr.bf16.mxu0 0
        %3774 = vmatpush1.bf16.msra.mxu0 0
        %3775 = vmatprep.subr.bf16.mxu0 0
        %3776 = vmatpush1.bf16.msra.mxu0 0
        %3777 = vmatprep.subr.bf16.mxu0 0
        %3778 = vmatpush1.bf16.msra.mxu0 0
        %3779 = vmatprep.mubr.bf16.mxu0 0
        %3780 = vmatmul.mubr.bf16.gmra.mrb[0].mxu0 %v3496
        %v3781 = vpop.f32.mrb[0].mxu0
        %v3782 = vadd.f32 %v3469, %v3781
        %v3783 = vpop.f32.mrb[0].mxu0
        %v3784 = vadd.f32 %v3473, %v3783
        %v3785 = vpop.f32.mrb[0].mxu0
        %v3786 = vadd.f32 %v3469, %v3785
        %v3787 = vpop.f32.mrb[0].mxu0
        %v3788 = vadd.f32 %v3473, %v3787
        %3789 = vmatprep.mubr.bf16.mxu0 0
        %3790 = vmatmul.mubr.bf16.gmra.mrb[0].mxu0 %v3497
        %v3791 = vpop.f32.mrb[0].mxu0
        %v3792 = vadd.f32 %v3469, %v3791
        %v3793 = vpop.f32.mrb[0].mxu0
        %v3794 = vadd.f32 %v3473, %v3793
        %v3795 = vpop.f32.mrb[0].mxu0
        %v3796 = vadd.f32 %v3469, %v3795
        %v3797 = vpop.f32.mrb[0].mxu0
        %v3798 = vadd.f32 %v3473, %v3797
        %3799 = vmatprep.mubr.bf16.mxu0 0
        %3800 = vmatmul.mubr.bf16.gmra.mrb[0].mxu0 %v3498
        %v3801 = vpop.f32.mrb[0].mxu0
        %v3802 = vadd.f32 %v3469, %v3801
        %v3803 = vpop.f32.mrb[0].mxu0
        %v3804 = vadd.f32 %v3473, %v3803
        %v3805 = vpop.f32.mrb[0].mxu0
        %v3806 = vadd.f32 %v3469, %v3805
        %v3807 = vpop.f32.mrb[0].mxu0
        %v3808 = vadd.f32 %v3473, %v3807
        %3809 = vmatprep.mubr.bf16.mxu0 0
        %3810 = vmatmul.mubr.bf16.gmra.mrb[0].mxu0 %v3499
        %v3811 = vpop.f32.mrb[0].mxu0
        %v3812 = vadd.f32 %v3469, %v3811
        %v3813 = vpop.f32.mrb[0].mxu0
        %v3814 = vadd.f32 %v3473, %v3813
        %v3815 = vpop.f32.mrb[0].mxu0
        %v3816 = vadd.f32 %v3469, %v3815
        %v3817 = vpop.f32.mrb[0].mxu0
        %v3818 = vadd.f32 %v3473, %v3817
        %3819 = vmatprep.mubr.bf16.mxu0 0
        %3820 = vmatmul.mubr.bf16.gmra.mrb[0].mxu0 %v3500
        %v3821 = vpop.f32.mrb[0].mxu0
        %v3822 = vadd.f32 %v3469, %v3821
        %v3823 = vpop.f32.mrb[0].mxu0
        %v3824 = vadd.f32 %v3473, %v3823
        %v3825 = vpop.f32.mrb[0].mxu0
        %v3826 = vpop.f32.mrb[0].mxu0
        %3827 = vdwg.mxu0
        %3828 = vst [vmem:[#allocation3] sm:$0xff] %v3701
        %3829 = vst [vmem:[#allocation3 + $0x8] sm:$0xff] %v3703
        %3830 = vst [vmem:[#allocation3 + $0x10] sm:$0xff] %v3782
        %3831 = vst [vmem:[#allocation3 + $0x18] sm:$0xff] %v3784
        %3832 = vst [vmem:[#allocation3 + $0x20] sm:$0xff] %v3705
        %3833 = vst [vmem:[#allocation3 + $0x28] sm:$0xff] %v3707
        %3834 = vst [vmem:[#allocation3 + $0x30] sm:$0xff] %v3786
        %3835 = vst [vmem:[#allocation3 + $0x38] sm:$0xff] %v3788
        %3836 = vst [vmem:[#allocation3 + $0x40] sm:$0xff] %v3711
        %3837 = vst [vmem:[#allocation3 + $0x48] sm:$0xff] %v3713
        %3838 = vst [vmem:[#allocation3 + $0x50] sm:$0xff] %v3792
        %3839 = vst [vmem:[#allocation3 + $0x58] sm:$0xff] %v3794
        %3840 = vst [vmem:[#allocation3 + $0x60] sm:$0xff] %v3715
        %3841 = vst [vmem:[#allocation3 + $0x68] sm:$0xff] %v3717
        %3842 = vst [vmem:[#allocation3 + $0x70] sm:$0xff] %v3796
        %3843 = vst [vmem:[#allocation3 + $0x78] sm:$0xff] %v3798
        %3844 = vst [vmem:[#allocation3 + $0x80] sm:$0xff] %v3721
        %3845 = vst [vmem:[#allocation3 + $0x88] sm:$0xff] %v3723
        %3846 = vst [vmem:[#allocation3 + $0x90] sm:$0xff] %v3802
        %3847 = vst [vmem:[#allocation3 + $0x98] sm:$0xff] %v3804
        %3848 = vst [vmem:[#allocation3 + $0xa0] sm:$0xff] %v3725
        %3849 = vst [vmem:[#allocation3 + $0xa8] sm:$0xff] %v3727
        %3850 = vst [vmem:[#allocation3 + $0xb0] sm:$0xff] %v3806
        %3851 = vst [vmem:[#allocation3 + $0xb8] sm:$0xff] %v3808
        %3852 = vst [vmem:[#allocation3 + $0xc0] sm:$0xff] %v3731
        %3853 = vst [vmem:[#allocation3 + $0xc8] sm:$0xff] %v3733
        %3854 = vst [vmem:[#allocation3 + $0xd0] sm:$0xff] %v3812
        %3855 = vst [vmem:[#allocation3 + $0xd8] sm:$0xff] %v3814
        %3856 = vst [vmem:[#allocation3 + $0xe0] sm:$0xff] %v3735
        %3857 = vst [vmem:[#allocation3 + $0xe8] sm:$0xff] %v3737
        %3858 = vst [vmem:[#allocation3 + $0xf0] sm:$0xff] %v3816
        %3859 = vst [vmem:[#allocation3 + $0xf8] sm:$0xff] %v3818
        %3860 = vst [vmem:[#allocation3 + $0x100] sm:$0xff] %v3741
        %3861 = vst [vmem:[#allocation3 + $0x108] sm:$0xff] %v3743
        %3862 = vst [vmem:[#allocation3 + $0x110] sm:$0xff] %v3822
        %3863 = vst [vmem:[#allocation3 + $0x118] sm:$0xff] %v3824
        %v3864 = vld [vmem:[%s664] sm:$0xff]
        %v3865 = vld [vmem:[%s664 + $0x8] sm:$0xff]
        %v3866 = vld [vmem:[%s664 + $0x10] sm:$0xff]
        %v3867 = vld [vmem:[%s664 + $0x18] sm:$0xff]
        %v3868 = vld [vmem:[#allocation9] sm:$0xff]
        %v3869 = vld [vmem:[#allocation9 + $0x8] sm:$0xff]
        %v3870 = vld [vmem:[#allocation9 + $0x10] sm:$0xff]
        %v3871 = vld [vmem:[#allocation9 + $0x18] sm:$0xff]
        %v3872 = vld [vmem:[#allocation9 + $0x20] sm:$0xff]
        %v3873 = vld [vmem:[#allocation9 + $0x28] sm:$0xff]
        %v3874 = vld [vmem:[#allocation9 + $0x30] sm:$0xff]
        %v3875 = vld [vmem:[#allocation9 + $0x38] sm:$0xff]
        %v3876 = vld [vmem:[#allocation9 + $0x40] sm:$0xff]
        %v3877 = vld [vmem:[#allocation9 + $0x48] sm:$0xff]
        %v3878 = vld [vmem:[#allocation9 + $0x50] sm:$0xff]
        %v3879 = vld [vmem:[#allocation9 + $0x58] sm:$0xff]
        %v3880 = vld [vmem:[#allocation9 + $0x60] sm:$0xff]
        %v3881 = vld [vmem:[#allocation9 + $0x68] sm:$0xff]
        %v3882 = vld [vmem:[#allocation9 + $0x70] sm:$0xff]
        %v3883 = vld [vmem:[#allocation9 + $0x78] sm:$0xff]
        %v3884 = vld [vmem:[#allocation9 + $0x80] sm:$0xff]
        %v3885 = vld [vmem:[#allocation9 + $0x88] sm:$0xff]
        %v3886 = vld [vmem:[#allocation9 + $0x90] sm:$0xff]
        %v3887 = vld [vmem:[#allocation9 + $0x98] sm:$0xff]
        %v3888 = vld [vmem:[#allocation9 + $0xa0] sm:$0xff]
        %v3889 = vld [vmem:[#allocation9 + $0xa8] sm:$0xff]
        %v3890 = vld [vmem:[#allocation9 + $0xb0] sm:$0xff]
        %v3891 = vld [vmem:[#allocation9 + $0xb8] sm:$0xff]
        %v3892 = vld [vmem:[#allocation9 + $0xc0] sm:$0xff]
        %v3893 = vld [vmem:[#allocation9 + $0xc8] sm:$0xff]
        %v3894 = vld [vmem:[#allocation9 + $0xd0] sm:$0xff]
        %v3895 = vld [vmem:[#allocation9 + $0xd8] sm:$0xff]
        %v3896 = vld [vmem:[#allocation9 + $0xe0] sm:$0xff]
        %v3897 = vld [vmem:[#allocation9 + $0xe8] sm:$0xff]
        %v3898 = vld [vmem:[#allocation9 + $0xf0] sm:$0xff]
        %v3899 = vld [vmem:[#allocation9 + $0xf8] sm:$0xff]
        %v3932 = vunpack.c.l.b16 %v3868
        %v3933 = vunpack.c.h.b16 %v3868
        %v3934 = vunpack.c.l.b16 %v3869
        %v3935 = vunpack.c.h.b16 %v3869
        %v3936 = vunpack.c.l.b16 %v3870
        %v3937 = vunpack.c.h.b16 %v3870
        %v3938 = vunpack.c.l.b16 %v3871
        %v3939 = vunpack.c.h.b16 %v3871
        %v3940 = vunpack.c.l.b16 %v3872
        %v3941 = vunpack.c.h.b16 %v3872
        %v3942 = vunpack.c.l.b16 %v3873
        %v3943 = vunpack.c.h.b16 %v3873
        %v3944 = vunpack.c.l.b16 %v3874
        %v3945 = vunpack.c.h.b16 %v3874
        %v3946 = vunpack.c.l.b16 %v3875
        %v3947 = vunpack.c.h.b16 %v3875
        %v3948 = vunpack.c.l.b16 %v3876
        %v3949 = vunpack.c.h.b16 %v3876
        %v3950 = vunpack.c.l.b16 %v3877
        %v3951 = vunpack.c.h.b16 %v3877
        %v3952 = vunpack.c.l.b16 %v3878
        %v3953 = vunpack.c.h.b16 %v3878
        %v3954 = vunpack.c.l.b16 %v3879
        %v3955 = vunpack.c.h.b16 %v3879
        %v3956 = vunpack.c.l.b16 %v3880
        %v3957 = vunpack.c.h.b16 %v3880
        %v3958 = vunpack.c.l.b16 %v3881
        %v3959 = vunpack.c.h.b16 %v3881
        %v3960 = vunpack.c.l.b16 %v3882
        %v3961 = vunpack.c.h.b16 %v3882
        %v3962 = vunpack.c.l.b16 %v3883
        %v3963 = vunpack.c.h.b16 %v3883
        %v3964 = vunpack.c.l.b16 %v3884
        %v3965 = vunpack.c.h.b16 %v3884
        %v3966 = vunpack.c.l.b16 %v3885
        %v3967 = vunpack.c.h.b16 %v3885
        %v3968 = vunpack.c.l.b16 %v3886
        %v3969 = vunpack.c.h.b16 %v3886
        %v3970 = vunpack.c.l.b16 %v3887
        %v3971 = vunpack.c.h.b16 %v3887
        %v3972 = vunpack.c.l.b16 %v3888
        %v3973 = vunpack.c.h.b16 %v3888
        %v3974 = vunpack.c.l.b16 %v3889
        %v3975 = vunpack.c.h.b16 %v3889
        %v3976 = vunpack.c.l.b16 %v3890
        %v3977 = vunpack.c.h.b16 %v3890
        %v3978 = vunpack.c.l.b16 %v3891
        %v3979 = vunpack.c.h.b16 %v3891
        %v3980 = vunpack.c.l.b16 %v3892
        %v3981 = vunpack.c.h.b16 %v3892
        %v3982 = vunpack.c.l.b16 %v3893
        %v3983 = vunpack.c.h.b16 %v3893
        %v3984 = vunpack.c.l.b16 %v3894
        %v3985 = vunpack.c.h.b16 %v3894
        %v3986 = vunpack.c.l.b16 %v3895
        %v3987 = vunpack.c.h.b16 %v3895
        %v3988 = vunpack.c.l.b16 %v3896
        %v3989 = vunpack.c.h.b16 %v3896
        %v3990 = vunpack.c.l.b16 %v3897
        %v3991 = vunpack.c.h.b16 %v3897
        %v3992 = vunpack.c.l.b16 %v3898
        %v3993 = vunpack.c.h.b16 %v3898
        %v3994 = vunpack.c.l.b16 %v3899
        %v3995 = vunpack.c.h.b16 %v3899
        %v3996 = vpack.c.b16 %v3936, %v3932
        %v3997 = vpack.c.b16 %v3937, %v3933
        %v3998 = vpack.c.b16 %v3938, %v3934
        %v3999 = vpack.c.b16 %v3939, %v3935
        %v4000 = vpack.c.b16 %v3944, %v3940
        %v4001 = vpack.c.b16 %v3945, %v3941
        %v4002 = vpack.c.b16 %v3946, %v3942
        %v4003 = vpack.c.b16 %v3947, %v3943
        %v4004 = vpack.c.b16 %v3952, %v3948
        %v4005 = vpack.c.b16 %v3953, %v3949
        %v4006 = vpack.c.b16 %v3954, %v3950
        %v4007 = vpack.c.b16 %v3955, %v3951
        %v4008 = vpack.c.b16 %v3960, %v3956
        %v4009 = vpack.c.b16 %v3961, %v3957
        %v4010 = vpack.c.b16 %v3962, %v3958
        %v4011 = vpack.c.b16 %v3963, %v3959
        %v4012 = vpack.c.b16 %v3968, %v3964
        %v4013 = vpack.c.b16 %v3969, %v3965
        %v4014 = vpack.c.b16 %v3970, %v3966
        %v4015 = vpack.c.b16 %v3971, %v3967
        %v4016 = vpack.c.b16 %v3976, %v3972
        %v4017 = vpack.c.b16 %v3977, %v3973
        %v4018 = vpack.c.b16 %v3978, %v3974
        %v4019 = vpack.c.b16 %v3979, %v3975
        %v4020 = vpack.c.b16 %v3984, %v3980
        %v4021 = vpack.c.b16 %v3985, %v3981
        %v4022 = vpack.c.b16 %v3986, %v3982
        %v4023 = vpack.c.b16 %v3987, %v3983
        %v4024 = vpack.c.b16 %v3992, %v3988
        %v4025 = vpack.c.b16 %v3993, %v3989
        %v4026 = vpack.c.b16 %v3994, %v3990
        %v4027 = vpack.c.b16 %v3995, %v3991
        %4060 = vmatprep.subr.bf16.mxu0 %v3997
        %4061 = vmatpush1.bf16.msra.mxu0 %v3996
        %4062 = vmatprep.subr.bf16.mxu0 %v4001
        %4063 = vmatpush1.bf16.msra.mxu0 %v4000
        %4064 = vmatprep.subr.bf16.mxu0 %v4005
        %4065 = vmatpush1.bf16.msra.mxu0 %v4004
        %4066 = vmatprep.subr.bf16.mxu0 %v4009
        %4067 = vmatpush1.bf16.msra.mxu0 %v4008
        %4068 = vmatprep.subr.bf16.mxu0 %v4013
        %4069 = vmatpush1.bf16.msra.mxu0 %v4012
        %4070 = vmatprep.subr.bf16.mxu0 %v4017
        %4071 = vmatpush1.bf16.msra.mxu0 %v4016
        %4072 = vmatprep.subr.bf16.mxu0 %v4021
        %4073 = vmatpush1.bf16.msra.mxu0 %v4020
        %4074 = vmatprep.subr.bf16.mxu0 %v4025
        %4075 = vmatpush1.bf16.msra.mxu0 %v4024
        %4076 = vmatprep.subr.bf16.mxu0 0
        %4077 = vmatpush1.bf16.msra.mxu0 0
        %4078 = vmatprep.subr.bf16.mxu0 0
        %4079 = vmatpush1.bf16.msra.mxu0 0
        %4080 = vmatprep.subr.bf16.mxu0 0
        %4081 = vmatpush1.bf16.msra.mxu0 0
        %4082 = vmatprep.subr.bf16.mxu0 0
        %4083 = vmatpush1.bf16.msra.mxu0 0
        %4084 = vmatprep.subr.bf16.mxu0 0
        %4085 = vmatpush1.bf16.msra.mxu0 0
        %4086 = vmatprep.subr.bf16.mxu0 0
        %4087 = vmatpush1.bf16.msra.mxu0 0
        %4088 = vmatprep.subr.bf16.mxu0 0
        %4089 = vmatpush1.bf16.msra.mxu0 0
        %4090 = vmatprep.subr.bf16.mxu0 0
        %4091 = vmatpush1.bf16.msra.mxu0 0
        %4092 = vmatprep.mubr.bf16.mxu0 0
        %4093 = vmatmul.mubr.bf16.gmra.mrb[0].mxu0 0
        %v4094 = vpop.f32.mrb[0].mxu0
        %v4095 = vadd.f32 0.0, %v4094
        %v4096 = vpop.f32.mrb[0].mxu0
        %v4097 = vadd.f32 0.0, %v4096
        %v4098 = vpop.f32.mrb[0].mxu0
        %v4099 = vpop.f32.mrb[0].mxu0
        %4100 = vdwg.mxu0
        %4101 = vmatprep.subr.bf16.mxu0 %v3999
        %4102 = vmatpush1.bf16.msra.mxu0 %v3998
        %4103 = vmatprep.subr.bf16.mxu0 %v4003
        %4104 = vmatpush1.bf16.msra.mxu0 %v4002
        %4105 = vmatprep.subr.bf16.mxu0 %v4007
        %4106 = vmatpush1.bf16.msra.mxu0 %v4006
        %4107 = vmatprep.subr.bf16.mxu0 %v4011
        %4108 = vmatpush1.bf16.msra.mxu0 %v4010
        %4109 = vmatprep.subr.bf16.mxu0 %v4015
        %4110 = vmatpush1.bf16.msra.mxu0 %v4014
        %4111 = vmatprep.subr.bf16.mxu0 %v4019
        %4112 = vmatpush1.bf16.msra.mxu0 %v4018
        %4113 = vmatprep.subr.bf16.mxu0 %v4023
        %4114 = vmatpush1.bf16.msra.mxu0 %v4022
        %4115 = vmatprep.subr.bf16.mxu0 %v4027
        %4116 = vmatpush1.bf16.msra.mxu0 %v4026
        %4117 = vmatprep.subr.bf16.mxu0 0
        %4118 = vmatpush1.bf16.msra.mxu0 0
        %4119 = vmatprep.subr.bf16.mxu0 0
        %4120 = vmatpush1.bf16.msra.mxu0 0
        %4121 = vmatprep.subr.bf16.mxu0 0
        %4122 = vmatpush1.bf16.msra.mxu0 0
        %4123 = vmatprep.subr.bf16.mxu0 0
        %4124 = vmatpush1.bf16.msra.mxu0 0
        %4125 = vmatprep.subr.bf16.mxu0 0
        %4126 = vmatpush1.bf16.msra.mxu0 0
        %4127 = vmatprep.subr.bf16.mxu0 0
        %4128 = vmatpush1.bf16.msra.mxu0 0
        %4129 = vmatprep.subr.bf16.mxu0 0
        %4130 = vmatpush1.bf16.msra.mxu0 0
        %4131 = vmatprep.subr.bf16.mxu0 0
        %4132 = vmatpush1.bf16.msra.mxu0 0
        %4133 = vmatprep.mubr.bf16.mxu0 0
        %4134 = vmatmul.mubr.bf16.gmra.mrb[0].mxu0 0
        %v4135 = vpop.f32.mrb[0].mxu0
        %v4136 = vadd.f32 0.0, %v4135
        %v4137 = vpop.f32.mrb[0].mxu0
        %v4138 = vadd.f32 0.0, %v4137
        %v4139 = vpop.f32.mrb[0].mxu0
        %v4140 = vpop.f32.mrb[0].mxu0
        %4141 = vdwg.mxu0
        %v4142 = vadd.f32 %v3864, %v4095
        %v4143 = vadd.f32 %v3865, %v4097
        %v4144 = vadd.f32 %v3866, %v4136
        %v4145 = vadd.f32 %v3867, %v4138
        %v4146 = vmul.f32 %v4142, 0.5
        %v4147 = vmul.f32 %v4143, 0.5
        %v4148 = vmul.f32 %v4144, 0.5
        %v4149 = vtanh.pop %v4146
        %v4150 = vtanh.pop %v4147
        %v4151 = vtanh.pop %v4148
        %v4152 = vmul.f32 %v4149, 0.5
        %v4153 = vmul.f32 %v4150, 0.5
        %v4154 = vmul.f32 %v4151, 0.5
        %v4155 = vadd.f32 %v4152, 0.5
        %v4156 = vadd.f32 %v4153, 0.5
        %v4157 = vadd.f32 %v4154, 0.5
        %v4158 = vtanh.pop %v4145
        %v4159 = vmul.f32 %v4156, 0.0
        %v4160 = vmul.f32 %v4155, %v4158
        %v4161 = vadd.f32 %v4159, %v4160
        %v4162 = vtanh.pop %v4161
        %v4163 = vmul.f32 %v4157, %v4162
        %4164 = vst [vmem:[%s315] sm:$0xff] %v4163
        %v4165 = vld [vmem:[%s969] sm:$0xff]
        %v4166 = vld [vmem:[%s969 + $0x8] sm:$0xff]
        %v4167 = vld [vmem:[%s969 + $0x10] sm:$0xff]
        %v4168 = vld [vmem:[%s969 + $0x18] sm:$0xff]
        %v4169 = vpack.c.bf16 %v4163, %v4163
        %v4170 = vld [vmem:[#allocation9] sm:$0xff]
        %v4171 = vld [vmem:[#allocation9 + $0x8] sm:$0xff]
        %v4172 = vld [vmem:[#allocation9 + $0x10] sm:$0xff]
        %v4173 = vld [vmem:[#allocation9 + $0x18] sm:$0xff]
        %v4174 = vld [vmem:[#allocation9 + $0x20] sm:$0xff]
        %v4175 = vld [vmem:[#allocation9 + $0x28] sm:$0xff]
        %v4176 = vld [vmem:[#allocation9 + $0x30] sm:$0xff]
        %v4177 = vld [vmem:[#allocation9 + $0x38] sm:$0xff]
        %v4178 = vld [vmem:[#allocation9 + $0x40] sm:$0xff]
        %v4179 = vld [vmem:[#allocation9 + $0x48] sm:$0xff]
        %v4180 = vld [vmem:[#allocation9 + $0x50] sm:$0xff]
        %v4181 = vld [vmem:[#allocation9 + $0x58] sm:$0xff]
        %v4182 = vld [vmem:[#allocation9 + $0x60] sm:$0xff]
        %v4183 = vld [vmem:[#allocation9 + $0x68] sm:$0xff]
        %v4184 = vld [vmem:[#allocation9 + $0x70] sm:$0xff]
        %v4185 = vld [vmem:[#allocation9 + $0x78] sm:$0xff]
        %v4186 = vld [vmem:[#allocation9 + $0x80] sm:$0xff]
        %v4187 = vld [vmem:[#allocation9 + $0x88] sm:$0xff]
        %v4188 = vld [vmem:[#allocation9 + $0x90] sm:$0xff]
        %v4189 = vld [vmem:[#allocation9 + $0x98] sm:$0xff]
        %v4190 = vld [vmem:[#allocation9 + $0xa0] sm:$0xff]
        %v4191 = vld [vmem:[#allocation9 + $0xa8] sm:$0xff]
        %v4192 = vld [vmem:[#allocation9 + $0xb0] sm:$0xff]
        %v4193 = vld [vmem:[#allocation9 + $0xb8] sm:$0xff]
        %v4194 = vld [vmem:[#allocation9 + $0xc0] sm:$0xff]
        %v4195 = vld [vmem:[#allocation9 + $0xc8] sm:$0xff]
        %v4196 = vld [vmem:[#allocation9 + $0xd0] sm:$0xff]
        %v4197 = vld [vmem:[#allocation9 + $0xd8] sm:$0xff]
        %v4198 = vld [vmem:[#allocation9 + $0xe0] sm:$0xff]
        %v4199 = vld [vmem:[#allocation9 + $0xe8] sm:$0xff]
        %v4200 = vld [vmem:[#allocation9 + $0xf0] sm:$0xff]
        %v4201 = vld [vmem:[#allocation9 + $0xf8] sm:$0xff]
        %v4234 = vunpack.c.l.b16 %v4170
        %v4235 = vunpack.c.h.b16 %v4170
        %v4236 = vunpack.c.l.b16 %v4171
        %v4237 = vunpack.c.h.b16 %v4171
        %v4238 = vunpack.c.l.b16 %v4172
        %v4239 = vunpack.c.h.b16 %v4172
        %v4240 = vunpack.c.l.b16 %v4173
        %v4241 = vunpack.c.h.b16 %v4173
        %v4242 = vunpack.c.l.b16 %v4174
        %v4243 = vunpack.c.h.b16 %v4174
        %v4244 = vunpack.c.l.b16 %v4175
        %v4245 = vunpack.c.h.b16 %v4175
        %v4246 = vunpack.c.l.b16 %v4176
        %v4247 = vunpack.c.h.b16 %v4176
        %v4248 = vunpack.c.l.b16 %v4177
        %v4249 = vunpack.c.h.b16 %v4177
        %v4250 = vunpack.c.l.b16 %v4178
        %v4251 = vunpack.c.h.b16 %v4178
        %v4252 = vunpack.c.l.b16 %v4179
        %v4253 = vunpack.c.h.b16 %v4179
        %v4254 = vunpack.c.l.b16 %v4180
        %v4255 = vunpack.c.h.b16 %v4180
        %v4256 = vunpack.c.l.b16 %v4181
        %v4257 = vunpack.c.h.b16 %v4181
        %v4258 = vunpack.c.l.b16 %v4182
        %v4259 = vunpack.c.h.b16 %v4182
        %v4260 = vunpack.c.l.b16 %v4183
        %v4261 = vunpack.c.h.b16 %v4183
        %v4262 = vunpack.c.l.b16 %v4184
        %v4263 = vunpack.c.h.b16 %v4184
        %v4264 = vunpack.c.l.b16 %v4185
        %v4265 = vunpack.c.h.b16 %v4185
        %v4266 = vunpack.c.l.b16 %v4186
        %v4267 = vunpack.c.h.b16 %v4186
        %v4268 = vunpack.c.l.b16 %v4187
        %v4269 = vunpack.c.h.b16 %v4187
        %v4270 = vunpack.c.l.b16 %v4188
        %v4271 = vunpack.c.h.b16 %v4188
        %v4272 = vunpack.c.l.b16 %v4189
        %v4273 = vunpack.c.h.b16 %v4189
        %v4274 = vunpack.c.l.b16 %v4190
        %v4275 = vunpack.c.h.b16 %v4190
        %v4276 = vunpack.c.l.b16 %v4191
        %v4277 = vunpack.c.h.b16 %v4191
        %v4278 = vunpack.c.l.b16 %v4192
        %v4279 = vunpack.c.h.b16 %v4192
        %v4280 = vunpack.c.l.b16 %v4193
        %v4281 = vunpack.c.h.b16 %v4193
        %v4282 = vunpack.c.l.b16 %v4194
        %v4283 = vunpack.c.h.b16 %v4194
        %v4284 = vunpack.c.l.b16 %v4195
        %v4285 = vunpack.c.h.b16 %v4195
        %v4286 = vunpack.c.l.b16 %v4196
        %v4287 = vunpack.c.h.b16 %v4196
        %v4288 = vunpack.c.l.b16 %v4197
        %v4289 = vunpack.c.h.b16 %v4197
        %v4290 = vunpack.c.l.b16 %v4198
        %v4291 = vunpack.c.h.b16 %v4198
        %v4292 = vunpack.c.l.b16 %v4199
        %v4293 = vunpack.c.h.b16 %v4199
        %v4294 = vunpack.c.l.b16 %v4200
        %v4295 = vunpack.c.h.b16 %v4200
        %v4296 = vunpack.c.l.b16 %v4201
        %v4297 = vunpack.c.h.b16 %v4201
        %v4298 = vpack.c.b16 %v4238, %v4234
        %v4299 = vpack.c.b16 %v4239, %v4235
        %v4300 = vpack.c.b16 %v4240, %v4236
        %v4301 = vpack.c.b16 %v4241, %v4237
        %v4302 = vpack.c.b16 %v4246, %v4242
        %v4303 = vpack.c.b16 %v4247, %v4243
        %v4304 = vpack.c.b16 %v4248, %v4244
        %v4305 = vpack.c.b16 %v4249, %v4245
        %v4306 = vpack.c.b16 %v4254, %v4250
        %v4307 = vpack.c.b16 %v4255, %v4251
        %v4308 = vpack.c.b16 %v4256, %v4252
        %v4309 = vpack.c.b16 %v4257, %v4253
        %v4310 = vpack.c.b16 %v4262, %v4258
        %v4311 = vpack.c.b16 %v4263, %v4259
        %v4312 = vpack.c.b16 %v4264, %v4260
        %v4313 = vpack.c.b16 %v4265, %v4261
        %v4314 = vpack.c.b16 %v4270, %v4266
        %v4315 = vpack.c.b16 %v4271, %v4267
        %v4316 = vpack.c.b16 %v4272, %v4268
        %v4317 = vpack.c.b16 %v4273, %v4269
        %v4318 = vpack.c.b16 %v4278, %v4274
        %v4319 = vpack.c.b16 %v4279, %v4275
        %v4320 = vpack.c.b16 %v4280, %v4276
        %v4321 = vpack.c.b16 %v4281, %v4277
        %v4322 = vpack.c.b16 %v4286, %v4282
        %v4323 = vpack.c.b16 %v4287, %v4283
        %v4324 = vpack.c.b16 %v4288, %v4284
        %v4325 = vpack.c.b16 %v4289, %v4285
        %v4326 = vpack.c.b16 %v4294, %v4290
        %v4327 = vpack.c.b16 %v4295, %v4291
        %v4328 = vpack.c.b16 %v4296, %v4292
        %v4329 = vpack.c.b16 %v4297, %v4293
        %4362 = vmatprep.subr.bf16.mxu0 %v4299
        %4363 = vmatpush1.bf16.msra.mxu0 %v4298
        %4364 = vmatprep.subr.bf16.mxu0 %v4303
        %4365 = vmatpush1.bf16.msra.mxu0 %v4302
        %4366 = vmatprep.subr.bf16.mxu0 %v4307
        %4367 = vmatpush1.bf16.msra.mxu0 %v4306
        %4368 = vmatprep.subr.bf16.mxu0 %v4311
        %4369 = vmatpush1.bf16.msra.mxu0 %v4310
        %4370 = vmatprep.subr.bf16.mxu0 %v4315
        %4371 = vmatpush1.bf16.msra.mxu0 %v4314
        %4372 = vmatprep.subr.bf16.mxu0 %v4319
        %4373 = vmatpush1.bf16.msra.mxu0 %v4318
        %4374 = vmatprep.subr.bf16.mxu0 %v4323
        %4375 = vmatpush1.bf16.msra.mxu0 %v4322
        %4376 = vmatprep.subr.bf16.mxu0 %v4327
        %4377 = vmatpush1.bf16.msra.mxu0 %v4326
        %4378 = vmatprep.subr.bf16.mxu0 0
        %4379 = vmatpush1.bf16.msra.mxu0 0
        %4380 = vmatprep.subr.bf16.mxu0 0
        %4381 = vmatpush1.bf16.msra.mxu0 0
        %4382 = vmatprep.subr.bf16.mxu0 0
        %4383 = vmatpush1.bf16.msra.mxu0 0
        %4384 = vmatprep.subr.bf16.mxu0 0
        %4385 = vmatpush1.bf16.msra.mxu0 0
        %4386 = vmatprep.subr.bf16.mxu0 0
        %4387 = vmatpush1.bf16.msra.mxu0 0
        %4388 = vmatprep.subr.bf16.mxu0 0
        %4389 = vmatpush1.bf16.msra.mxu0 0
        %4390 = vmatprep.subr.bf16.mxu0 0
        %4391 = vmatpush1.bf16.msra.mxu0 0
        %4392 = vmatprep.subr.bf16.mxu0 0
        %4393 = vmatpush1.bf16.msra.mxu0 0
        %4394 = vmatprep.mubr.bf16.mxu0 0
        %4395 = vmatmul.mubr.bf16.gmra.mrb[0].mxu0 %v4169
        %v4396 = vpop.f32.mrb[0].mxu0
        %v4397 = vadd.f32 0.0, %v4396
        %v4398 = vpop.f32.mrb[0].mxu0
        %v4399 = vadd.f32 0.0, %v4398
        %v4400 = vpop.f32.mrb[0].mxu0
        %v4401 = vpop.f32.mrb[0].mxu0
        %4402 = vdwg.mxu0
        %4403 = vmatprep.subr.bf16.mxu0 %v4301
        %4404 = vmatpush1.bf16.msra.mxu0 %v4300
        %4405 = vmatprep.subr.bf16.mxu0 %v4305
        %4406 = vmatpush1.bf16.msra.mxu0 %v4304
        %4407 = vmatprep.subr.bf16.mxu0 %v4309
        %4408 = vmatpush1.bf16.msra.mxu0 %v4308
        %4409 = vmatprep.subr.bf16.mxu0 %v4313
        %4410 = vmatpush1.bf16.msra.mxu0 %v4312
        %4411 = vmatprep.subr.bf16.mxu0 %v4317
        %4412 = vmatpush1.bf16.msra.mxu0 %v4316
        %4413 = vmatprep.subr.bf16.mxu0 %v4321
        %4414 = vmatpush1.bf16.msra.mxu0 %v4320
        %4415 = vmatprep.subr.bf16.mxu0 %v4325
        %4416 = vmatpush1.bf16.msra.mxu0 %v4324
        %4417 = vmatprep.subr.bf16.mxu0 %v4329
        %4418 = vmatpush1.bf16.msra.mxu0 %v4328
        %4419 = vmatprep.subr.bf16.mxu0 0
        %4420 = vmatpush1.bf16.msra.mxu0 0
        %4421 = vmatprep.subr.bf16.mxu0 0
        %4422 = vmatpush1.bf16.msra.mxu0 0
        %4423 = vmatprep.subr.bf16.mxu0 0
        %4424 = vmatpush1.bf16.msra.mxu0 0
        %4425 = vmatprep.subr.bf16.mxu0 0
        %4426 = vmatpush1.bf16.msra.mxu0 0
        %4427 = vmatprep.subr.bf16.mxu0 0
        %4428 = vmatpush1.bf16.msra.mxu0 0
        %4429 = vmatprep.subr.bf16.mxu0 0
        %4430 = vmatpush1.bf16.msra.mxu0 0
        %4431 = vmatprep.subr.bf16.mxu0 0
        %4432 = vmatpush1.bf16.msra.mxu0 0
        %4433 = vmatprep.subr.bf16.mxu0 0
        %4434 = vmatpush1.bf16.msra.mxu0 0
        %4435 = vmatprep.mubr.bf16.mxu0 0
        %4436 = vmatmul.mubr.bf16.gmra.mrb[0].mxu0 %v4169
        %v4437 = vpop.f32.mrb[0].mxu0
        %v4438 = vadd.f32 0.0, %v4437
        %v4439 = vpop.f32.mrb[0].mxu0
        %v4440 = vadd.f32 0.0, %v4439
        %v4441 = vpop.f32.mrb[0].mxu0
        %v4442 = vpop.f32.mrb[0].mxu0
        %4443 = vdwg.mxu0
        %v4444 = vadd.f32 %v4165, %v4397
        %v4445 = vadd.f32 %v4166, %v4399
        %v4446 = vadd.f32 %v4167, %v4438
        %v4447 = vadd.f32 %v4168, %v4440
        %v4448 = vmul.f32 %v4444, 0.5
        %v4449 = vmul.f32 %v4445, 0.5
        %v4450 = vmul.f32 %v4446, 0.5
        %v4451 = vtanh.pop %v4448
        %v4452 = vtanh.pop %v4449
        %v4453 = vtanh.pop %v4450
        %v4454 = vmul.f32 %v4451, 0.5
        %v4455 = vmul.f32 %v4452, 0.5
        %v4456 = vmul.f32 %v4453, 0.5
        %v4457 = vadd.f32 %v4454, 0.5
        %v4458 = vadd.f32 %v4455, 0.5
        %v4459 = vadd.f32 %v4456, 0.5
        %v4460 = vtanh.pop %v4447
        %v4461 = vmul.f32 %v4458, %v4161
        %v4462 = vmul.f32 %v4457, %v4460
        %v4463 = vadd.f32 %v4461, %v4462
        %v4464 = vtanh.pop %v4463
        %v4465 = vmul.f32 %v4459, %v4464
        %s4466 = scalar_lea.vmem %s315, 8 [#allocation10]
        %4467 = vst [vmem:[%s4466] sm:$0xff] %v4465
        %v4468 = vld [vmem:[%s1275] sm:$0xff]
        %v4469 = vld [vmem:[%s1275 + $0x8] sm:$0xff]
        %v4470 = vld [vmem:[%s1275 + $0x10] sm:$0xff]
        %v4471 = vld [vmem:[%s1275 + $0x18] sm:$0xff]
        %v4472 = vpack.c.bf16 %v4465, %v4465
        %v4473 = vld [vmem:[#allocation9] sm:$0xff]
        %v4474 = vld [vmem:[#allocation9 + $0x8] sm:$0xff]
        %v4475 = vld [vmem:[#allocation9 + $0x10] sm:$0xff]
        %v4476 = vld [vmem:[#allocation9 + $0x18] sm:$0xff]
        %v4477 = vld [vmem:[#allocation9 + $0x20] sm:$0xff]
        %v4478 = vld [vmem:[#allocation9 + $0x28] sm:$0xff]
        %v4479 = vld [vmem:[#allocation9 + $0x30] sm:$0xff]
        %v4480 = vld [vmem:[#allocation9 + $0x38] sm:$0xff]
        %v4481 = vld [vmem:[#allocation9 + $0x40] sm:$0xff]
        %v4482 = vld [vmem:[#allocation9 + $0x48] sm:$0xff]
        %v4483 = vld [vmem:[#allocation9 + $0x50] sm:$0xff]
        %v4484 = vld [vmem:[#allocation9 + $0x58] sm:$0xff]
        %v4485 = vld [vmem:[#allocation9 + $0x60] sm:$0xff]
        %v4486 = vld [vmem:[#allocation9 + $0x68] sm:$0xff]
        %v4487 = vld [vmem:[#allocation9 + $0x70] sm:$0xff]
        %v4488 = vld [vmem:[#allocation9 + $0x78] sm:$0xff]
        %v4489 = vld [vmem:[#allocation9 + $0x80] sm:$0xff]
        %v4490 = vld [vmem:[#allocation9 + $0x88] sm:$0xff]
        %v4491 = vld [vmem:[#allocation9 + $0x90] sm:$0xff]
        %v4492 = vld [vmem:[#allocation9 + $0x98] sm:$0xff]
        %v4493 = vld [vmem:[#allocation9 + $0xa0] sm:$0xff]
        %v4494 = vld [vmem:[#allocation9 + $0xa8] sm:$0xff]
        %v4495 = vld [vmem:[#allocation9 + $0xb0] sm:$0xff]
        %v4496 = vld [vmem:[#allocation9 + $0xb8] sm:$0xff]
        %v4497 = vld [vmem:[#allocation9 + $0xc0] sm:$0xff]
        %v4498 = vld [vmem:[#allocation9 + $0xc8] sm:$0xff]
        %v4499 = vld [vmem:[#allocation9 + $0xd0] sm:$0xff]
        %v4500 = vld [vmem:[#allocation9 + $0xd8] sm:$0xff]
        %v4501 = vld [vmem:[#allocation9 + $0xe0] sm:$0xff]
        %v4502 = vld [vmem:[#allocation9 + $0xe8] sm:$0xff]
        %v4503 = vld [vmem:[#allocation9 + $0xf0] sm:$0xff]
        %v4504 = vld [vmem:[#allocation9 + $0xf8] sm:$0xff]
        %v4537 = vunpack.c.l.b16 %v4473
        %v4538 = vunpack.c.h.b16 %v4473
        %v4539 = vunpack.c.l.b16 %v4474
        %v4540 = vunpack.c.h.b16 %v4474
        %v4541 = vunpack.c.l.b16 %v4475
        %v4542 = vunpack.c.h.b16 %v4475
        %v4543 = vunpack.c.l.b16 %v4476
        %v4544 = vunpack.c.h.b16 %v4476
        %v4545 = vunpack.c.l.b16 %v4477
        %v4546 = vunpack.c.h.b16 %v4477
        %v4547 = vunpack.c.l.b16 %v4478
        %v4548 = vunpack.c.h.b16 %v4478
        %v4549 = vunpack.c.l.b16 %v4479
        %v4550 = vunpack.c.h.b16 %v4479
        %v4551 = vunpack.c.l.b16 %v4480
        %v4552 = vunpack.c.h.b16 %v4480
        %v4553 = vunpack.c.l.b16 %v4481
        %v4554 = vunpack.c.h.b16 %v4481
        %v4555 = vunpack.c.l.b16 %v4482
        %v4556 = vunpack.c.h.b16 %v4482
        %v4557 = vunpack.c.l.b16 %v4483
        %v4558 = vunpack.c.h.b16 %v4483
        %v4559 = vunpack.c.l.b16 %v4484
        %v4560 = vunpack.c.h.b16 %v4484
        %v4561 = vunpack.c.l.b16 %v4485
        %v4562 = vunpack.c.h.b16 %v4485
        %v4563 = vunpack.c.l.b16 %v4486
        %v4564 = vunpack.c.h.b16 %v4486
        %v4565 = vunpack.c.l.b16 %v4487
        %v4566 = vunpack.c.h.b16 %v4487
        %v4567 = vunpack.c.l.b16 %v4488
        %v4568 = vunpack.c.h.b16 %v4488
        %v4569 = vunpack.c.l.b16 %v4489
        %v4570 = vunpack.c.h.b16 %v4489
        %v4571 = vunpack.c.l.b16 %v4490
        %v4572 = vunpack.c.h.b16 %v4490
        %v4573 = vunpack.c.l.b16 %v4491
        %v4574 = vunpack.c.h.b16 %v4491
        %v4575 = vunpack.c.l.b16 %v4492
        %v4576 = vunpack.c.h.b16 %v4492
        %v4577 = vunpack.c.l.b16 %v4493
        %v4578 = vunpack.c.h.b16 %v4493
        %v4579 = vunpack.c.l.b16 %v4494
        %v4580 = vunpack.c.h.b16 %v4494
        %v4581 = vunpack.c.l.b16 %v4495
        %v4582 = vunpack.c.h.b16 %v4495
        %v4583 = vunpack.c.l.b16 %v4496
        %v4584 = vunpack.c.h.b16 %v4496
        %v4585 = vunpack.c.l.b16 %v4497
        %v4586 = vunpack.c.h.b16 %v4497
        %v4587 = vunpack.c.l.b16 %v4498
        %v4588 = vunpack.c.h.b16 %v4498
        %v4589 = vunpack.c.l.b16 %v4499
        %v4590 = vunpack.c.h.b16 %v4499
        %v4591 = vunpack.c.l.b16 %v4500
        %v4592 = vunpack.c.h.b16 %v4500
        %v4593 = vunpack.c.l.b16 %v4501
        %v4594 = vunpack.c.h.b16 %v4501
        %v4595 = vunpack.c.l.b16 %v4502
        %v4596 = vunpack.c.h.b16 %v4502
        %v4597 = vunpack.c.l.b16 %v4503
        %v4598 = vunpack.c.h.b16 %v4503
        %v4599 = vunpack.c.l.b16 %v4504
        %v4600 = vunpack.c.h.b16 %v4504
        %v4601 = vpack.c.b16 %v4541, %v4537
        %v4602 = vpack.c.b16 %v4542, %v4538
        %v4603 = vpack.c.b16 %v4543, %v4539
        %v4604 = vpack.c.b16 %v4544, %v4540
        %v4605 = vpack.c.b16 %v4549, %v4545
        %v4606 = vpack.c.b16 %v4550, %v4546
        %v4607 = vpack.c.b16 %v4551, %v4547
        %v4608 = vpack.c.b16 %v4552, %v4548
        %v4609 = vpack.c.b16 %v4557, %v4553
        %v4610 = vpack.c.b16 %v4558, %v4554
        %v4611 = vpack.c.b16 %v4559, %v4555
        %v4612 = vpack.c.b16 %v4560, %v4556
        %v4613 = vpack.c.b16 %v4565, %v4561
        %v4614 = vpack.c.b16 %v4566, %v4562
        %v4615 = vpack.c.b16 %v4567, %v4563
        %v4616 = vpack.c.b16 %v4568, %v4564
        %v4617 = vpack.c.b16 %v4573, %v4569
        %v4618 = vpack.c.b16 %v4574, %v4570
        %v4619 = vpack.c.b16 %v4575, %v4571
        %v4620 = vpack.c.b16 %v4576, %v4572
        %v4621 = vpack.c.b16 %v4581, %v4577
        %v4622 = vpack.c.b16 %v4582, %v4578
        %v4623 = vpack.c.b16 %v4583, %v4579
        %v4624 = vpack.c.b16 %v4584, %v4580
        %v4625 = vpack.c.b16 %v4589, %v4585
        %v4626 = vpack.c.b16 %v4590, %v4586
        %v4627 = vpack.c.b16 %v4591, %v4587
        %v4628 = vpack.c.b16 %v4592, %v4588
        %v4629 = vpack.c.b16 %v4597, %v4593
        %v4630 = vpack.c.b16 %v4598, %v4594
        %v4631 = vpack.c.b16 %v4599, %v4595
        %v4632 = vpack.c.b16 %v4600, %v4596
        %4665 = vmatprep.subr.bf16.mxu0 %v4602
        %4666 = vmatpush1.bf16.msra.mxu0 %v4601
        %4667 = vmatprep.subr.bf16.mxu0 %v4606
        %4668 = vmatpush1.bf16.msra.mxu0 %v4605
        %4669 = vmatprep.subr.bf16.mxu0 %v4610
        %4670 = vmatpush1.bf16.msra.mxu0 %v4609
        %4671 = vmatprep.subr.bf16.mxu0 %v4614
        %4672 = vmatpush1.bf16.msra.mxu0 %v4613
        %4673 = vmatprep.subr.bf16.mxu0 %v4618
        %4674 = vmatpush1.bf16.msra.mxu0 %v4617
        %4675 = vmatprep.subr.bf16.mxu0 %v4622
        %4676 = vmatpush1.bf16.msra.mxu0 %v4621
        %4677 = vmatprep.subr.bf16.mxu0 %v4626
        %4678 = vmatpush1.bf16.msra.mxu0 %v4625
        %4679 = vmatprep.subr.bf16.mxu0 %v4630
        %4680 = vmatpush1.bf16.msra.mxu0 %v4629
        %4681 = vmatprep.subr.bf16.mxu0 0
        %4682 = vmatpush1.bf16.msra.mxu0 0
        %4683 = vmatprep.subr.bf16.mxu0 0
        %4684 = vmatpush1.bf16.msra.mxu0 0
        %4685 = vmatprep.subr.bf16.mxu0 0
        %4686 = vmatpush1.bf16.msra.mxu0 0
        %4687 = vmatprep.subr.bf16.mxu0 0
        %4688 = vmatpush1.bf16.msra.mxu0 0
        %4689 = vmatprep.subr.bf16.mxu0 0
        %4690 = vmatpush1.bf16.msra.mxu0 0
        %4691 = vmatprep.subr.bf16.mxu0 0
        %4692 = vmatpush1.bf16.msra.mxu0 0
        %4693 = vmatprep.subr.bf16.mxu0 0
        %4694 = vmatpush1.bf16.msra.mxu0 0
        %4695 = vmatprep.subr.bf16.mxu0 0
        %4696 = vmatpush1.bf16.msra.mxu0 0
        %4697 = vmatprep.mubr.bf16.mxu0 0
        %4698 = vmatmul.mubr.bf16.gmra.mrb[0].mxu0 %v4472
        %v4699 = vpop.f32.mrb[0].mxu0
        %v4700 = vadd.f32 0.0, %v4699
        %v4701 = vpop.f32.mrb[0].mxu0
        %v4702 = vadd.f32 0.0, %v4701
        %v4703 = vpop.f32.mrb[0].mxu0
        %v4704 = vpop.f32.mrb[0].mxu0
        %4705 = vdwg.mxu0
        %4706 = vmatprep.subr.bf16.mxu0 %v4604
        %4707 = vmatpush1.bf16.msra.mxu0 %v4603
        %4708 = vmatprep.subr.bf16.mxu0 %v4608
        %4709 = vmatpush1.bf16.msra.mxu0 %v4607
        %4710 = vmatprep.subr.bf16.mxu0 %v4612
        %4711 = vmatpush1.bf16.msra.mxu0 %v4611
        %4712 = vmatprep.subr.bf16.mxu0 %v4616
        %4713 = vmatpush1.bf16.msra.mxu0 %v4615
        %4714 = vmatprep.subr.bf16.mxu0 %v4620
        %4715 = vmatpush1.bf16.msra.mxu0 %v4619
        %4716 = vmatprep.subr.bf16.mxu0 %v4624
        %4717 = vmatpush1.bf16.msra.mxu0 %v4623
        %4718 = vmatprep.subr.bf16.mxu0 %v4628
        %4719 = vmatpush1.bf16.msra.mxu0 %v4627
        %4720 = vmatprep.subr.bf16.mxu0 %v4632
        %4721 = vmatpush1.bf16.msra.mxu0 %v4631
        %4722 = vmatprep.subr.bf16.mxu0 0
        %4723 = vmatpush1.bf16.msra.mxu0 0
        %4724 = vmatprep.subr.bf16.mxu0 0
        %4725 = vmatpush1.bf16.msra.mxu0 0
        %4726 = vmatprep.subr.bf16.mxu0 0
        %4727 = vmatpush1.bf16.msra.mxu0 0
        %4728 = vmatprep.subr.bf16.mxu0 0
        %4729 = vmatpush1.bf16.msra.mxu0 0
        %4730 = vmatprep.subr.bf16.mxu0 0
        %4731 = vmatpush1.bf16.msra.mxu0 0
        %4732 = vmatprep.subr.bf16.mxu0 0
        %4733 = vmatpush1.bf16.msra.mxu0 0
        %4734 = vmatprep.subr.bf16.mxu0 0
        %4735 = vmatpush1.bf16.msra.mxu0 0
        %4736 = vmatprep.subr.bf16.mxu0 0
        %4737 = vmatpush1.bf16.msra.mxu0 0
        %4738 = vmatprep.mubr.bf16.mxu0 0
        %4739 = vmatmul.mubr.bf16.gmra.mrb[0].mxu0 %v4472
        %v4740 = vpop.f32.mrb[0].mxu0
        %v4741 = vadd.f32 0.0, %v4740
        %v4742 = vpop.f32.mrb[0].mxu0
        %v4743 = vadd.f32 0.0, %v4742
        %v4744 = vpop.f32.mrb[0].mxu0
        %v4745 = vpop.f32.mrb[0].mxu0
        %4746 = vdwg.mxu0
        %v4747 = vadd.f32 %v4468, %v4700
        %v4748 = vadd.f32 %v4469, %v4702
        %v4749 = vadd.f32 %v4470, %v4741
        %v4750 = vadd.f32 %v4471, %v4743
        %v4751 = vmul.f32 %v4747, 0.5
        %v4752 = vmul.f32 %v4748, 0.5
        %v4753 = vmul.f32 %v4749, 0.5
        %v4754 = vtanh.pop %v4751
        %v4755 = vtanh.pop %v4752
        %v4756 = vtanh.pop %v4753
        %v4757 = vmul.f32 %v4754, 0.5
        %v4758 = vmul.f32 %v4755, 0.5
        %v4759 = vmul.f32 %v4756, 0.5
        %v4760 = vadd.f32 %v4757, 0.5
        %v4761 = vadd.f32 %v4758, 0.5
        %v4762 = vadd.f32 %v4759, 0.5
        %v4763 = vtanh.pop %v4750
        %v4764 = vmul.f32 %v4761, %v4463
        %v4765 = vmul.f32 %v4760, %v4763
        %v4766 = vadd.f32 %v4764, %v4765
        %v4767 = vtanh.pop %v4766
        %v4768 = vmul.f32 %v4762, %v4767
        %s4769 = scalar_lea.vmem %s315, 16 [#allocation10]
        %4770 = vst [vmem:[%s4769] sm:$0xff] %v4768
        %v4771 = vld [vmem:[%s1581] sm:$0xff]
        %v4772 = vld [vmem:[%s1581 + $0x8] sm:$0xff]
        %v4773 = vld [vmem:[%s1581 + $0x10] sm:$0xff]
        %v4774 = vld [vmem:[%s1581 + $0x18] sm:$0xff]
        %v4775 = vpack.c.bf16 %v4768, %v4768
        %v4776 = vld [vmem:[#allocation9] sm:$0xff]
        %v4777 = vld [vmem:[#allocation9 + $0x8] sm:$0xff]
        %v4778 = vld [vmem:[#allocation9 + $0x10] sm:$0xff]
        %v4779 = vld [vmem:[#allocation9 + $0x18] sm:$0xff]
        %v4780 = vld [vmem:[#allocation9 + $0x20] sm:$0xff]
        %v4781 = vld [vmem:[#allocation9 + $0x28] sm:$0xff]
        %v4782 = vld [vmem:[#allocation9 + $0x30] sm:$0xff]
        %v4783 = vld [vmem:[#allocation9 + $0x38] sm:$0xff]
        %v4784 = vld [vmem:[#allocation9 + $0x40] sm:$0xff]
        %v4785 = vld [vmem:[#allocation9 + $0x48] sm:$0xff]
        %v4786 = vld [vmem:[#allocation9 + $0x50] sm:$0xff]
        %v4787 = vld [vmem:[#allocation9 + $0x58] sm:$0xff]
        %v4788 = vld [vmem:[#allocation9 + $0x60] sm:$0xff]
        %v4789 = vld [vmem:[#allocation9 + $0x68] sm:$0xff]
        %v4790 = vld [vmem:[#allocation9 + $0x70] sm:$0xff]
        %v4791 = vld [vmem:[#allocation9 + $0x78] sm:$0xff]
        %v4792 = vld [vmem:[#allocation9 + $0x80] sm:$0xff]
        %v4793 = vld [vmem:[#allocation9 + $0x88] sm:$0xff]
        %v4794 = vld [vmem:[#allocation9 + $0x90] sm:$0xff]
        %v4795 = vld [vmem:[#allocation9 + $0x98] sm:$0xff]
        %v4796 = vld [vmem:[#allocation9 + $0xa0] sm:$0xff]
        %v4797 = vld [vmem:[#allocation9 + $0xa8] sm:$0xff]
        %v4798 = vld [vmem:[#allocation9 + $0xb0] sm:$0xff]
        %v4799 = vld [vmem:[#allocation9 + $0xb8] sm:$0xff]
        %v4800 = vld [vmem:[#allocation9 + $0xc0] sm:$0xff]
        %v4801 = vld [vmem:[#allocation9 + $0xc8] sm:$0xff]
        %v4802 = vld [vmem:[#allocation9 + $0xd0] sm:$0xff]
        %v4803 = vld [vmem:[#allocation9 + $0xd8] sm:$0xff]
        %v4804 = vld [vmem:[#allocation9 + $0xe0] sm:$0xff]
        %v4805 = vld [vmem:[#allocation9 + $0xe8] sm:$0xff]
        %v4806 = vld [vmem:[#allocation9 + $0xf0] sm:$0xff]
        %v4807 = vld [vmem:[#allocation9 + $0xf8] sm:$0xff]
        %v4840 = vunpack.c.l.b16 %v4776
        %v4841 = vunpack.c.h.b16 %v4776
        %v4842 = vunpack.c.l.b16 %v4777
        %v4843 = vunpack.c.h.b16 %v4777
        %v4844 = vunpack.c.l.b16 %v4778
        %v4845 = vunpack.c.h.b16 %v4778
        %v4846 = vunpack.c.l.b16 %v4779
        %v4847 = vunpack.c.h.b16 %v4779
        %v4848 = vunpack.c.l.b16 %v4780
        %v4849 = vunpack.c.h.b16 %v4780
        %v4850 = vunpack.c.l.b16 %v4781
        %v4851 = vunpack.c.h.b16 %v4781
        %v4852 = vunpack.c.l.b16 %v4782
        %v4853 = vunpack.c.h.b16 %v4782
        %v4854 = vunpack.c.l.b16 %v4783
        %v4855 = vunpack.c.h.b16 %v4783
        %v4856 = vunpack.c.l.b16 %v4784
        %v4857 = vunpack.c.h.b16 %v4784
        %v4858 = vunpack.c.l.b16 %v4785
        %v4859 = vunpack.c.h.b16 %v4785
        %v4860 = vunpack.c.l.b16 %v4786
        %v4861 = vunpack.c.h.b16 %v4786
        %v4862 = vunpack.c.l.b16 %v4787
        %v4863 = vunpack.c.h.b16 %v4787
        %v4864 = vunpack.c.l.b16 %v4788
        %v4865 = vunpack.c.h.b16 %v4788
        %v4866 = vunpack.c.l.b16 %v4789
        %v4867 = vunpack.c.h.b16 %v4789
        %v4868 = vunpack.c.l.b16 %v4790
        %v4869 = vunpack.c.h.b16 %v4790
        %v4870 = vunpack.c.l.b16 %v4791
        %v4871 = vunpack.c.h.b16 %v4791
        %v4872 = vunpack.c.l.b16 %v4792
        %v4873 = vunpack.c.h.b16 %v4792
        %v4874 = vunpack.c.l.b16 %v4793
        %v4875 = vunpack.c.h.b16 %v4793
        %v4876 = vunpack.c.l.b16 %v4794
        %v4877 = vunpack.c.h.b16 %v4794
        %v4878 = vunpack.c.l.b16 %v4795
        %v4879 = vunpack.c.h.b16 %v4795
        %v4880 = vunpack.c.l.b16 %v4796
        %v4881 = vunpack.c.h.b16 %v4796
        %v4882 = vunpack.c.l.b16 %v4797
        %v4883 = vunpack.c.h.b16 %v4797
        %v4884 = vunpack.c.l.b16 %v4798
        %v4885 = vunpack.c.h.b16 %v4798
        %v4886 = vunpack.c.l.b16 %v4799
        %v4887 = vunpack.c.h.b16 %v4799
        %v4888 = vunpack.c.l.b16 %v4800
        %v4889 = vunpack.c.h.b16 %v4800
        %v4890 = vunpack.c.l.b16 %v4801
        %v4891 = vunpack.c.h.b16 %v4801
        %v4892 = vunpack.c.l.b16 %v4802
        %v4893 = vunpack.c.h.b16 %v4802
        %v4894 = vunpack.c.l.b16 %v4803
        %v4895 = vunpack.c.h.b16 %v4803
        %v4896 = vunpack.c.l.b16 %v4804
        %v4897 = vunpack.c.h.b16 %v4804
        %v4898 = vunpack.c.l.b16 %v4805
        %v4899 = vunpack.c.h.b16 %v4805
        %v4900 = vunpack.c.l.b16 %v4806
        %v4901 = vunpack.c.h.b16 %v4806
        %v4902 = vunpack.c.l.b16 %v4807
        %v4903 = vunpack.c.h.b16 %v4807
        %v4904 = vpack.c.b16 %v4844, %v4840
        %v4905 = vpack.c.b16 %v4845, %v4841
        %v4906 = vpack.c.b16 %v4846, %v4842
        %v4907 = vpack.c.b16 %v4847, %v4843
        %v4908 = vpack.c.b16 %v4852, %v4848
        %v4909 = vpack.c.b16 %v4853, %v4849
        %v4910 = vpack.c.b16 %v4854, %v4850
        %v4911 = vpack.c.b16 %v4855, %v4851
        %v4912 = vpack.c.b16 %v4860, %v4856
        %v4913 = vpack.c.b16 %v4861, %v4857
        %v4914 = vpack.c.b16 %v4862, %v4858
        %v4915 = vpack.c.b16 %v4863, %v4859
        %v4916 = vpack.c.b16 %v4868, %v4864
        %v4917 = vpack.c.b16 %v4869, %v4865
        %v4918 = vpack.c.b16 %v4870, %v4866
        %v4919 = vpack.c.b16 %v4871, %v4867
        %v4920 = vpack.c.b16 %v4876, %v4872
        %v4921 = vpack.c.b16 %v4877, %v4873
        %v4922 = vpack.c.b16 %v4878, %v4874
        %v4923 = vpack.c.b16 %v4879, %v4875
        %v4924 = vpack.c.b16 %v4884, %v4880
        %v4925 = vpack.c.b16 %v4885, %v4881
        %v4926 = vpack.c.b16 %v4886, %v4882
        %v4927 = vpack.c.b16 %v4887, %v4883
        %v4928 = vpack.c.b16 %v4892, %v4888
        %v4929 = vpack.c.b16 %v4893, %v4889
        %v4930 = vpack.c.b16 %v4894, %v4890
        %v4931 = vpack.c.b16 %v4895, %v4891
        %v4932 = vpack.c.b16 %v4900, %v4896
        %v4933 = vpack.c.b16 %v4901, %v4897
        %v4934 = vpack.c.b16 %v4902, %v4898
        %v4935 = vpack.c.b16 %v4903, %v4899
        %4968 = vmatprep.subr.bf16.mxu0 %v4905
        %4969 = vmatpush1.bf16.msra.mxu0 %v4904
        %4970 = vmatprep.subr.bf16.mxu0 %v4909
        %4971 = vmatpush1.bf16.msra.mxu0 %v4908
        %4972 = vmatprep.subr.bf16.mxu0 %v4913
        %4973 = vmatpush1.bf16.msra.mxu0 %v4912
        %4974 = vmatprep.subr.bf16.mxu0 %v4917
        %4975 = vmatpush1.bf16.msra.mxu0 %v4916
        %4976 = vmatprep.subr.bf16.mxu0 %v4921
        %4977 = vmatpush1.bf16.msra.mxu0 %v4920
        %4978 = vmatprep.subr.bf16.mxu0 %v4925
        %4979 = vmatpush1.bf16.msra.mxu0 %v4924
        %4980 = vmatprep.subr.bf16.mxu0 %v4929
        %4981 = vmatpush1.bf16.msra.mxu0 %v4928
        %4982 = vmatprep.subr.bf16.mxu0 %v4933
        %4983 = vmatpush1.bf16.msra.mxu0 %v4932
        %4984 = vmatprep.subr.bf16.mxu0 0
        %4985 = vmatpush1.bf16.msra.mxu0 0
        %4986 = vmatprep.subr.bf16.mxu0 0
        %4987 = vmatpush1.bf16.msra.mxu0 0
        %4988 = vmatprep.subr.bf16.mxu0 0
        %4989 = vmatpush1.bf16.msra.mxu0 0
        %4990 = vmatprep.subr.bf16.mxu0 0
        %4991 = vmatpush1.bf16.msra.mxu0 0
        %4992 = vmatprep.subr.bf16.mxu0 0
        %4993 = vmatpush1.bf16.msra.mxu0 0
        %4994 = vmatprep.subr.bf16.mxu0 0
        %4995 = vmatpush1.bf16.msra.mxu0 0
        %4996 = vmatprep.subr.bf16.mxu0 0
        %4997 = vmatpush1.bf16.msra.mxu0 0
        %4998 = vmatprep.subr.bf16.mxu0 0
        %4999 = vmatpush1.bf16.msra.mxu0 0
        %5000 = vmatprep.mubr.bf16.mxu0 0
        %5001 = vmatmul.mubr.bf16.gmra.mrb[0].mxu0 %v4775
        %v5002 = vpop.f32.mrb[0].mxu0
        %v5003 = vadd.f32 0.0, %v5002
        %v5004 = vpop.f32.mrb[0].mxu0
        %v5005 = vadd.f32 0.0, %v5004
        %v5006 = vpop.f32.mrb[0].mxu0
        %v5007 = vpop.f32.mrb[0].mxu0
        %5008 = vdwg.mxu0
        %5009 = vmatprep.subr.bf16.mxu0 %v4907
        %5010 = vmatpush1.bf16.msra.mxu0 %v4906
        %5011 = vmatprep.subr.bf16.mxu0 %v4911
        %5012 = vmatpush1.bf16.msra.mxu0 %v4910
        %5013 = vmatprep.subr.bf16.mxu0 %v4915
        %5014 = vmatpush1.bf16.msra.mxu0 %v4914
        %5015 = vmatprep.subr.bf16.mxu0 %v4919
        %5016 = vmatpush1.bf16.msra.mxu0 %v4918
        %5017 = vmatprep.subr.bf16.mxu0 %v4923
        %5018 = vmatpush1.bf16.msra.mxu0 %v4922
        %5019 = vmatprep.subr.bf16.mxu0 %v4927
        %5020 = vmatpush1.bf16.msra.mxu0 %v4926
        %5021 = vmatprep.subr.bf16.mxu0 %v4931
        %5022 = vmatpush1.bf16.msra.mxu0 %v4930
        %5023 = vmatprep.subr.bf16.mxu0 %v4935
        %5024 = vmatpush1.bf16.msra.mxu0 %v4934
        %5025 = vmatprep.subr.bf16.mxu0 0
        %5026 = vmatpush1.bf16.msra.mxu0 0
        %5027 = vmatprep.subr.bf16.mxu0 0
        %5028 = vmatpush1.bf16.msra.mxu0 0
        %5029 = vmatprep.subr.bf16.mxu0 0
        %5030 = vmatpush1.bf16.msra.mxu0 0
        %5031 = vmatprep.subr.bf16.mxu0 0
        %5032 = vmatpush1.bf16.msra.mxu0 0
        %5033 = vmatprep.subr.bf16.mxu0 0
        %5034 = vmatpush1.bf16.msra.mxu0 0
        %5035 = vmatprep.subr.bf16.mxu0 0
        %5036 = vmatpush1.bf16.msra.mxu0 0
        %5037 = vmatprep.subr.bf16.mxu0 0
        %5038 = vmatpush1.bf16.msra.mxu0 0
        %5039 = vmatprep.subr.bf16.mxu0 0
        %5040 = vmatpush1.bf16.msra.mxu0 0
        %5041 = vmatprep.mubr.bf16.mxu0 0
        %5042 = vmatmul.mubr.bf16.gmra.mrb[0].mxu0 %v4775
        %v5043 = vpop.f32.mrb[0].mxu0
        %v5044 = vadd.f32 0.0, %v5043
        %v5045 = vpop.f32.mrb[0].mxu0
        %v5046 = vadd.f32 0.0, %v5045
        %v5047 = vpop.f32.mrb[0].mxu0
        %v5048 = vpop.f32.mrb[0].mxu0
        %5049 = vdwg.mxu0
        %v5050 = vadd.f32 %v4771, %v5003
        %v5051 = vadd.f32 %v4772, %v5005
        %v5052 = vadd.f32 %v4773, %v5044
        %v5053 = vadd.f32 %v4774, %v5046
        %v5054 = vmul.f32 %v5050, 0.5
        %v5055 = vmul.f32 %v5051, 0.5
        %v5056 = vmul.f32 %v5052, 0.5
        %v5057 = vtanh.pop %v5054
        %v5058 = vtanh.pop %v5055
        %v5059 = vtanh.pop %v5056
        %v5060 = vmul.f32 %v5057, 0.5
        %v5061 = vmul.f32 %v5058, 0.5
        %v5062 = vmul.f32 %v5059, 0.5
        %v5063 = vadd.f32 %v5060, 0.5
        %v5064 = vadd.f32 %v5061, 0.5
        %v5065 = vadd.f32 %v5062, 0.5
        %v5066 = vtanh.pop %v5053
        %v5067 = vmul.f32 %v5064, %v4766
        %v5068 = vmul.f32 %v5063, %v5066
        %v5069 = vadd.f32 %v5067, %v5068
        %v5070 = vtanh.pop %v5069
        %v5071 = vmul.f32 %v5065, %v5070
        %s5072 = scalar_lea.vmem %s315, 24 [#allocation10]
        %5073 = vst [vmem:[%s5072] sm:$0xff] %v5071
        %v5074 = vld [vmem:[%s1887] sm:$0xff]
        %v5075 = vld [vmem:[%s1887 + $0x8] sm:$0xff]
        %v5076 = vld [vmem:[%s1887 + $0x10] sm:$0xff]
        %v5077 = vld [vmem:[%s1887 + $0x18] sm:$0xff]
        %v5078 = vpack.c.bf16 %v5071, %v5071
        %v5079 = vld [vmem:[#allocation9] sm:$0xff]
        %v5080 = vld [vmem:[#allocation9 + $0x8] sm:$0xff]
        %v5081 = vld [vmem:[#allocation9 + $0x10] sm:$0xff]
        %v5082 = vld [vmem:[#allocation9 + $0x18] sm:$0xff]
        %v5083 = vld [vmem:[#allocation9 + $0x20] sm:$0xff]
        %v5084 = vld [vmem:[#allocation9 + $0x28] sm:$0xff]
        %v5085 = vld [vmem:[#allocation9 + $0x30] sm:$0xff]
        %v5086 = vld [vmem:[#allocation9 + $0x38] sm:$0xff]
        %v5087 = vld [vmem:[#allocation9 + $0x40] sm:$0xff]
        %v5088 = vld [vmem:[#allocation9 + $0x48] sm:$0xff]
        %v5089 = vld [vmem:[#allocation9 + $0x50] sm:$0xff]
        %v5090 = vld [vmem:[#allocation9 + $0x58] sm:$0xff]
        %v5091 = vld [vmem:[#allocation9 + $0x60] sm:$0xff]
        %v5092 = vld [vmem:[#allocation9 + $0x68] sm:$0xff]
        %v5093 = vld [vmem:[#allocation9 + $0x70] sm:$0xff]
        %v5094 = vld [vmem:[#allocation9 + $0x78] sm:$0xff]
        %v5095 = vld [vmem:[#allocation9 + $0x80] sm:$0xff]
        %v5096 = vld [vmem:[#allocation9 + $0x88] sm:$0xff]
        %v5097 = vld [vmem:[#allocation9 + $0x90] sm:$0xff]
        %v5098 = vld [vmem:[#allocation9 + $0x98] sm:$0xff]
        %v5099 = vld [vmem:[#allocation9 + $0xa0] sm:$0xff]
        %v5100 = vld [vmem:[#allocation9 + $0xa8] sm:$0xff]
        %v5101 = vld [vmem:[#allocation9 + $0xb0] sm:$0xff]
        %v5102 = vld [vmem:[#allocation9 + $0xb8] sm:$0xff]
        %v5103 = vld [vmem:[#allocation9 + $0xc0] sm:$0xff]
        %v5104 = vld [vmem:[#allocation9 + $0xc8] sm:$0xff]
        %v5105 = vld [vmem:[#allocation9 + $0xd0] sm:$0xff]
        %v5106 = vld [vmem:[#allocation9 + $0xd8] sm:$0xff]
        %v5107 = vld [vmem:[#allocation9 + $0xe0] sm:$0xff]
        %v5108 = vld [vmem:[#allocation9 + $0xe8] sm:$0xff]
        %v5109 = vld [vmem:[#allocation9 + $0xf0] sm:$0xff]
        %v5110 = vld [vmem:[#allocation9 + $0xf8] sm:$0xff]
        %v5143 = vunpack.c.l.b16 %v5079
        %v5144 = vunpack.c.h.b16 %v5079
        %v5145 = vunpack.c.l.b16 %v5080
        %v5146 = vunpack.c.h.b16 %v5080
        %v5147 = vunpack.c.l.b16 %v5081
        %v5148 = vunpack.c.h.b16 %v5081
        %v5149 = vunpack.c.l.b16 %v5082
        %v5150 = vunpack.c.h.b16 %v5082
        %v5151 = vunpack.c.l.b16 %v5083
        %v5152 = vunpack.c.h.b16 %v5083
        %v5153 = vunpack.c.l.b16 %v5084
        %v5154 = vunpack.c.h.b16 %v5084
        %v5155 = vunpack.c.l.b16 %v5085
        %v5156 = vunpack.c.h.b16 %v5085
        %v5157 = vunpack.c.l.b16 %v5086
        %v5158 = vunpack.c.h.b16 %v5086
        %v5159 = vunpack.c.l.b16 %v5087
        %v5160 = vunpack.c.h.b16 %v5087
        %v5161 = vunpack.c.l.b16 %v5088
        %v5162 = vunpack.c.h.b16 %v5088
        %v5163 = vunpack.c.l.b16 %v5089
        %v5164 = vunpack.c.h.b16 %v5089
        %v5165 = vunpack.c.l.b16 %v5090
        %v5166 = vunpack.c.h.b16 %v5090
        %v5167 = vunpack.c.l.b16 %v5091
        %v5168 = vunpack.c.h.b16 %v5091
        %v5169 = vunpack.c.l.b16 %v5092
        %v5170 = vunpack.c.h.b16 %v5092
        %v5171 = vunpack.c.l.b16 %v5093
        %v5172 = vunpack.c.h.b16 %v5093
        %v5173 = vunpack.c.l.b16 %v5094
        %v5174 = vunpack.c.h.b16 %v5094
        %v5175 = vunpack.c.l.b16 %v5095
        %v5176 = vunpack.c.h.b16 %v5095
        %v5177 = vunpack.c.l.b16 %v5096
        %v5178 = vunpack.c.h.b16 %v5096
        %v5179 = vunpack.c.l.b16 %v5097
        %v5180 = vunpack.c.h.b16 %v5097
        %v5181 = vunpack.c.l.b16 %v5098
        %v5182 = vunpack.c.h.b16 %v5098
        %v5183 = vunpack.c.l.b16 %v5099
        %v5184 = vunpack.c.h.b16 %v5099
        %v5185 = vunpack.c.l.b16 %v5100
        %v5186 = vunpack.c.h.b16 %v5100
        %v5187 = vunpack.c.l.b16 %v5101
        %v5188 = vunpack.c.h.b16 %v5101
        %v5189 = vunpack.c.l.b16 %v5102
        %v5190 = vunpack.c.h.b16 %v5102
        %v5191 = vunpack.c.l.b16 %v5103
        %v5192 = vunpack.c.h.b16 %v5103
        %v5193 = vunpack.c.l.b16 %v5104
        %v5194 = vunpack.c.h.b16 %v5104
        %v5195 = vunpack.c.l.b16 %v5105
        %v5196 = vunpack.c.h.b16 %v5105
        %v5197 = vunpack.c.l.b16 %v5106
        %v5198 = vunpack.c.h.b16 %v5106
        %v5199 = vunpack.c.l.b16 %v5107
        %v5200 = vunpack.c.h.b16 %v5107
        %v5201 = vunpack.c.l.b16 %v5108
        %v5202 = vunpack.c.h.b16 %v5108
        %v5203 = vunpack.c.l.b16 %v5109
        %v5204 = vunpack.c.h.b16 %v5109
        %v5205 = vunpack.c.l.b16 %v5110
        %v5206 = vunpack.c.h.b16 %v5110
        %v5207 = vpack.c.b16 %v5147, %v5143
        %v5208 = vpack.c.b16 %v5148, %v5144
        %v5209 = vpack.c.b16 %v5149, %v5145
        %v5210 = vpack.c.b16 %v5150, %v5146
        %v5211 = vpack.c.b16 %v5155, %v5151
        %v5212 = vpack.c.b16 %v5156, %v5152
        %v5213 = vpack.c.b16 %v5157, %v5153
        %v5214 = vpack.c.b16 %v5158, %v5154
        %v5215 = vpack.c.b16 %v5163, %v5159
        %v5216 = vpack.c.b16 %v5164, %v5160
        %v5217 = vpack.c.b16 %v5165, %v5161
        %v5218 = vpack.c.b16 %v5166, %v5162
        %v5219 = vpack.c.b16 %v5171, %v5167
        %v5220 = vpack.c.b16 %v5172, %v5168
        %v5221 = vpack.c.b16 %v5173, %v5169
        %v5222 = vpack.c.b16 %v5174, %v5170
        %v5223 = vpack.c.b16 %v5179, %v5175
        %v5224 = vpack.c.b16 %v5180, %v5176
        %v5225 = vpack.c.b16 %v5181, %v5177
        %v5226 = vpack.c.b16 %v5182, %v5178
        %v5227 = vpack.c.b16 %v5187, %v5183
        %v5228 = vpack.c.b16 %v5188, %v5184
        %v5229 = vpack.c.b16 %v5189, %v5185
        %v5230 = vpack.c.b16 %v5190, %v5186
        %v5231 = vpack.c.b16 %v5195, %v5191
        %v5232 = vpack.c.b16 %v5196, %v5192
        %v5233 = vpack.c.b16 %v5197, %v5193
        %v5234 = vpack.c.b16 %v5198, %v5194
        %v5235 = vpack.c.b16 %v5203, %v5199
        %v5236 = vpack.c.b16 %v5204, %v5200
        %v5237 = vpack.c.b16 %v5205, %v5201
        %v5238 = vpack.c.b16 %v5206, %v5202
        %5271 = vmatprep.subr.bf16.mxu0 %v5208
        %5272 = vmatpush1.bf16.msra.mxu0 %v5207
        %5273 = vmatprep.subr.bf16.mxu0 %v5212
        %5274 = vmatpush1.bf16.msra.mxu0 %v5211
        %5275 = vmatprep.subr.bf16.mxu0 %v5216
        %5276 = vmatpush1.bf16.msra.mxu0 %v5215
        %5277 = vmatprep.subr.bf16.mxu0 %v5220
        %5278 = vmatpush1.bf16.msra.mxu0 %v5219
        %5279 = vmatprep.subr.bf16.mxu0 %v5224
        %5280 = vmatpush1.bf16.msra.mxu0 %v5223
        %5281 = vmatprep.subr.bf16.mxu0 %v5228
        %5282 = vmatpush1.bf16.msra.mxu0 %v5227
        %5283 = vmatprep.subr.bf16.mxu0 %v5232
        %5284 = vmatpush1.bf16.msra.mxu0 %v5231
        %5285 = vmatprep.subr.bf16.mxu0 %v5236
        %5286 = vmatpush1.bf16.msra.mxu0 %v5235
        %5287 = vmatprep.subr.bf16.mxu0 0
        %5288 = vmatpush1.bf16.msra.mxu0 0
        %5289 = vmatprep.subr.bf16.mxu0 0
        %5290 = vmatpush1.bf16.msra.mxu0 0
        %5291 = vmatprep.subr.bf16.mxu0 0
        %5292 = vmatpush1.bf16.msra.mxu0 0
        %5293 = vmatprep.subr.bf16.mxu0 0
        %5294 = vmatpush1.bf16.msra.mxu0 0
        %5295 = vmatprep.subr.bf16.mxu0 0
        %5296 = vmatpush1.bf16.msra.mxu0 0
        %5297 = vmatprep.subr.bf16.mxu0 0
        %5298 = vmatpush1.bf16.msra.mxu0 0
        %5299 = vmatprep.subr.bf16.mxu0 0
        %5300 = vmatpush1.bf16.msra.mxu0 0
        %5301 = vmatprep.subr.bf16.mxu0 0
        %5302 = vmatpush1.bf16.msra.mxu0 0
        %5303 = vmatprep.mubr.bf16.mxu0 0
        %5304 = vmatmul.mubr.bf16.gmra.mrb[0].mxu0 %v5078
        %v5305 = vpop.f32.mrb[0].mxu0
        %v5306 = vadd.f32 0.0, %v5305
        %v5307 = vpop.f32.mrb[0].mxu0
        %v5308 = vadd.f32 0.0, %v5307
        %v5309 = vpop.f32.mrb[0].mxu0
        %v5310 = vpop.f32.mrb[0].mxu0
        %5311 = vdwg.mxu0
        %5312 = vmatprep.subr.bf16.mxu0 %v5210
        %5313 = vmatpush1.bf16.msra.mxu0 %v5209
        %5314 = vmatprep.subr.bf16.mxu0 %v5214
        %5315 = vmatpush1.bf16.msra.mxu0 %v5213
        %5316 = vmatprep.subr.bf16.mxu0 %v5218
        %5317 = vmatpush1.bf16.msra.mxu0 %v5217
        %5318 = vmatprep.subr.bf16.mxu0 %v5222
        %5319 = vmatpush1.bf16.msra.mxu0 %v5221
        %5320 = vmatprep.subr.bf16.mxu0 %v5226
        %5321 = vmatpush1.bf16.msra.mxu0 %v5225
        %5322 = vmatprep.subr.bf16.mxu0 %v5230
        %5323 = vmatpush1.bf16.msra.mxu0 %v5229
        %5324 = vmatprep.subr.bf16.mxu0 %v5234
        %5325 = vmatpush1.bf16.msra.mxu0 %v5233
        %5326 = vmatprep.subr.bf16.mxu0 %v5238
        %5327 = vmatpush1.bf16.msra.mxu0 %v5237
        %5328 = vmatprep.subr.bf16.mxu0 0
        %5329 = vmatpush1.bf16.msra.mxu0 0
        %5330 = vmatprep.subr.bf16.mxu0 0
        %5331 = vmatpush1.bf16.msra.mxu0 0
        %5332 = vmatprep.subr.bf16.mxu0 0
        %5333 = vmatpush1.bf16.msra.mxu0 0
        %5334 = vmatprep.subr.bf16.mxu0 0
        %5335 = vmatpush1.bf16.msra.mxu0 0
        %5336 = vmatprep.subr.bf16.mxu0 0
        %5337 = vmatpush1.bf16.msra.mxu0 0
        %5338 = vmatprep.subr.bf16.mxu0 0
        %5339 = vmatpush1.bf16.msra.mxu0 0
        %5340 = vmatprep.subr.bf16.mxu0 0
        %5341 = vmatpush1.bf16.msra.mxu0 0
        %5342 = vmatprep.subr.bf16.mxu0 0
        %5343 = vmatpush1.bf16.msra.mxu0 0
        %5344 = vmatprep.mubr.bf16.mxu0 0
        %5345 = vmatmul.mubr.bf16.gmra.mrb[0].mxu0 %v5078
        %v5346 = vpop.f32.mrb[0].mxu0
        %v5347 = vadd.f32 0.0, %v5346
        %v5348 = vpop.f32.mrb[0].mxu0
        %v5349 = vadd.f32 0.0, %v5348
        %v5350 = vpop.f32.mrb[0].mxu0
        %v5351 = vpop.f32.mrb[0].mxu0
        %5352 = vdwg.mxu0
        %v5353 = vadd.f32 %v5074, %v5306
        %v5354 = vadd.f32 %v5075, %v5308
        %v5355 = vadd.f32 %v5076, %v5347
        %v5356 = vadd.f32 %v5077, %v5349
        %v5357 = vmul.f32 %v5353, 0.5
        %v5358 = vmul.f32 %v5354, 0.5
        %v5359 = vmul.f32 %v5355, 0.5
        %v5360 = vtanh.pop %v5357
        %v5361 = vtanh.pop %v5358
        %v5362 = vtanh.pop %v5359
        %v5363 = vmul.f32 %v5360, 0.5
        %v5364 = vmul.f32 %v5361, 0.5
        %v5365 = vmul.f32 %v5362, 0.5
        %v5366 = vadd.f32 %v5363, 0.5
        %v5367 = vadd.f32 %v5364, 0.5
        %v5368 = vadd.f32 %v5365, 0.5
        %v5369 = vtanh.pop %v5356
        %v5370 = vmul.f32 %v5367, %v5069
        %v5371 = vmul.f32 %v5366, %v5369
        %v5372 = vadd.f32 %v5370, %v5371
        %v5373 = vtanh.pop %v5372
        %v5374 = vmul.f32 %v5368, %v5373
        %s5375 = scalar_lea.vmem %s315, 32 [#allocation10]
        %5376 = vst [vmem:[%s5375] sm:$0xff] %v5374
        %v5377 = vld [vmem:[%s2193] sm:$0xff]
        %v5378 = vld [vmem:[%s2193 + $0x8] sm:$0xff]
        %v5379 = vld [vmem:[%s2193 + $0x10] sm:$0xff]
        %v5380 = vld [vmem:[%s2193 + $0x18] sm:$0xff]
        %v5381 = vpack.c.bf16 %v5374, %v5374
        %v5382 = vld [vmem:[#allocation9] sm:$0xff]
        %v5383 = vld [vmem:[#allocation9 + $0x8] sm:$0xff]
        %v5384 = vld [vmem:[#allocation9 + $0x10] sm:$0xff]
        %v5385 = vld [vmem:[#allocation9 + $0x18] sm:$0xff]
        %v5386 = vld [vmem:[#allocation9 + $0x20] sm:$0xff]
        %v5387 = vld [vmem:[#allocation9 + $0x28] sm:$0xff]
        %v5388 = vld [vmem:[#allocation9 + $0x30] sm:$0xff]
        %v5389 = vld [vmem:[#allocation9 + $0x38] sm:$0xff]
        %v5390 = vld [vmem:[#allocation9 + $0x40] sm:$0xff]
        %v5391 = vld [vmem:[#allocation9 + $0x48] sm:$0xff]
        %v5392 = vld [vmem:[#allocation9 + $0x50] sm:$0xff]
        %v5393 = vld [vmem:[#allocation9 + $0x58] sm:$0xff]
        %v5394 = vld [vmem:[#allocation9 + $0x60] sm:$0xff]
        %v5395 = vld [vmem:[#allocation9 + $0x68] sm:$0xff]
        %v5396 = vld [vmem:[#allocation9 + $0x70] sm:$0xff]
        %v5397 = vld [vmem:[#allocation9 + $0x78] sm:$0xff]
        %v5398 = vld [vmem:[#allocation9 + $0x80] sm:$0xff]
        %v5399 = vld [vmem:[#allocation9 + $0x88] sm:$0xff]
        %v5400 = vld [vmem:[#allocation9 + $0x90] sm:$0xff]
        %v5401 = vld [vmem:[#allocation9 + $0x98] sm:$0xff]
        %v5402 = vld [vmem:[#allocation9 + $0xa0] sm:$0xff]
        %v5403 = vld [vmem:[#allocation9 + $0xa8] sm:$0xff]
        %v5404 = vld [vmem:[#allocation9 + $0xb0] sm:$0xff]
        %v5405 = vld [vmem:[#allocation9 + $0xb8] sm:$0xff]
        %v5406 = vld [vmem:[#allocation9 + $0xc0] sm:$0xff]
        %v5407 = vld [vmem:[#allocation9 + $0xc8] sm:$0xff]
        %v5408 = vld [vmem:[#allocation9 + $0xd0] sm:$0xff]
        %v5409 = vld [vmem:[#allocation9 + $0xd8] sm:$0xff]
        %v5410 = vld [vmem:[#allocation9 + $0xe0] sm:$0xff]
        %v5411 = vld [vmem:[#allocation9 + $0xe8] sm:$0xff]
        %v5412 = vld [vmem:[#allocation9 + $0xf0] sm:$0xff]
        %v5413 = vld [vmem:[#allocation9 + $0xf8] sm:$0xff]
        %v5446 = vunpack.c.l.b16 %v5382
        %v5447 = vunpack.c.h.b16 %v5382
        %v5448 = vunpack.c.l.b16 %v5383
        %v5449 = vunpack.c.h.b16 %v5383
        %v5450 = vunpack.c.l.b16 %v5384
        %v5451 = vunpack.c.h.b16 %v5384
        %v5452 = vunpack.c.l.b16 %v5385
        %v5453 = vunpack.c.h.b16 %v5385
        %v5454 = vunpack.c.l.b16 %v5386
        %v5455 = vunpack.c.h.b16 %v5386
        %v5456 = vunpack.c.l.b16 %v5387
        %v5457 = vunpack.c.h.b16 %v5387
        %v5458 = vunpack.c.l.b16 %v5388
        %v5459 = vunpack.c.h.b16 %v5388
        %v5460 = vunpack.c.l.b16 %v5389
        %v5461 = vunpack.c.h.b16 %v5389
        %v5462 = vunpack.c.l.b16 %v5390
        %v5463 = vunpack.c.h.b16 %v5390
        %v5464 = vunpack.c.l.b16 %v5391
        %v5465 = vunpack.c.h.b16 %v5391
        %v5466 = vunpack.c.l.b16 %v5392
        %v5467 = vunpack.c.h.b16 %v5392
        %v5468 = vunpack.c.l.b16 %v5393
        %v5469 = vunpack.c.h.b16 %v5393
        %v5470 = vunpack.c.l.b16 %v5394
        %v5471 = vunpack.c.h.b16 %v5394
        %v5472 = vunpack.c.l.b16 %v5395
        %v5473 = vunpack.c.h.b16 %v5395
        %v5474 = vunpack.c.l.b16 %v5396
        %v5475 = vunpack.c.h.b16 %v5396
        %v5476 = vunpack.c.l.b16 %v5397
        %v5477 = vunpack.c.h.b16 %v5397
        %v5478 = vunpack.c.l.b16 %v5398
        %v5479 = vunpack.c.h.b16 %v5398
        %v5480 = vunpack.c.l.b16 %v5399
        %v5481 = vunpack.c.h.b16 %v5399
        %v5482 = vunpack.c.l.b16 %v5400
        %v5483 = vunpack.c.h.b16 %v5400
        %v5484 = vunpack.c.l.b16 %v5401
        %v5485 = vunpack.c.h.b16 %v5401
        %v5486 = vunpack.c.l.b16 %v5402
        %v5487 = vunpack.c.h.b16 %v5402
        %v5488 = vunpack.c.l.b16 %v5403
        %v5489 = vunpack.c.h.b16 %v5403
        %v5490 = vunpack.c.l.b16 %v5404
        %v5491 = vunpack.c.h.b16 %v5404
        %v5492 = vunpack.c.l.b16 %v5405
        %v5493 = vunpack.c.h.b16 %v5405
        %v5494 = vunpack.c.l.b16 %v5406
        %v5495 = vunpack.c.h.b16 %v5406
        %v5496 = vunpack.c.l.b16 %v5407
        %v5497 = vunpack.c.h.b16 %v5407
        %v5498 = vunpack.c.l.b16 %v5408
        %v5499 = vunpack.c.h.b16 %v5408
        %v5500 = vunpack.c.l.b16 %v5409
        %v5501 = vunpack.c.h.b16 %v5409
        %v5502 = vunpack.c.l.b16 %v5410
        %v5503 = vunpack.c.h.b16 %v5410
        %v5504 = vunpack.c.l.b16 %v5411
        %v5505 = vunpack.c.h.b16 %v5411
        %v5506 = vunpack.c.l.b16 %v5412
        %v5507 = vunpack.c.h.b16 %v5412
        %v5508 = vunpack.c.l.b16 %v5413
        %v5509 = vunpack.c.h.b16 %v5413
        %v5510 = vpack.c.b16 %v5450, %v5446
        %v5511 = vpack.c.b16 %v5451, %v5447
        %v5512 = vpack.c.b16 %v5452, %v5448
        %v5513 = vpack.c.b16 %v5453, %v5449
        %v5514 = vpack.c.b16 %v5458, %v5454
        %v5515 = vpack.c.b16 %v5459, %v5455
        %v5516 = vpack.c.b16 %v5460, %v5456
        %v5517 = vpack.c.b16 %v5461, %v5457
        %v5518 = vpack.c.b16 %v5466, %v5462
        %v5519 = vpack.c.b16 %v5467, %v5463
        %v5520 = vpack.c.b16 %v5468, %v5464
        %v5521 = vpack.c.b16 %v5469, %v5465
        %v5522 = vpack.c.b16 %v5474, %v5470
        %v5523 = vpack.c.b16 %v5475, %v5471
        %v5524 = vpack.c.b16 %v5476, %v5472
        %v5525 = vpack.c.b16 %v5477, %v5473
        %v5526 = vpack.c.b16 %v5482, %v5478
        %v5527 = vpack.c.b16 %v5483, %v5479
        %v5528 = vpack.c.b16 %v5484, %v5480
        %v5529 = vpack.c.b16 %v5485, %v5481
        %v5530 = vpack.c.b16 %v5490, %v5486
        %v5531 = vpack.c.b16 %v5491, %v5487
        %v5532 = vpack.c.b16 %v5492, %v5488
        %v5533 = vpack.c.b16 %v5493, %v5489
        %v5534 = vpack.c.b16 %v5498, %v5494
        %v5535 = vpack.c.b16 %v5499, %v5495
        %v5536 = vpack.c.b16 %v5500, %v5496
        %v5537 = vpack.c.b16 %v5501, %v5497
        %v5538 = vpack.c.b16 %v5506, %v5502
        %v5539 = vpack.c.b16 %v5507, %v5503
        %v5540 = vpack.c.b16 %v5508, %v5504
        %v5541 = vpack.c.b16 %v5509, %v5505
        %5574 = vmatprep.subr.bf16.mxu0 %v5511
        %5575 = vmatpush1.bf16.msra.mxu0 %v5510
        %5576 = vmatprep.subr.bf16.mxu0 %v5515
        %5577 = vmatpush1.bf16.msra.mxu0 %v5514
        %5578 = vmatprep.subr.bf16.mxu0 %v5519
        %5579 = vmatpush1.bf16.msra.mxu0 %v5518
        %5580 = vmatprep.subr.bf16.mxu0 %v5523
        %5581 = vmatpush1.bf16.msra.mxu0 %v5522
        %5582 = vmatprep.subr.bf16.mxu0 %v5527
        %5583 = vmatpush1.bf16.msra.mxu0 %v5526
        %5584 = vmatprep.subr.bf16.mxu0 %v5531
        %5585 = vmatpush1.bf16.msra.mxu0 %v5530
        %5586 = vmatprep.subr.bf16.mxu0 %v5535
        %5587 = vmatpush1.bf16.msra.mxu0 %v5534
        %5588 = vmatprep.subr.bf16.mxu0 %v5539
        %5589 = vmatpush1.bf16.msra.mxu0 %v5538
        %5590 = vmatprep.subr.bf16.mxu0 0
        %5591 = vmatpush1.bf16.msra.mxu0 0
        %5592 = vmatprep.subr.bf16.mxu0 0
        %5593 = vmatpush1.bf16.msra.mxu0 0
        %5594 = vmatprep.subr.bf16.mxu0 0
        %5595 = vmatpush1.bf16.msra.mxu0 0
        %5596 = vmatprep.subr.bf16.mxu0 0
        %5597 = vmatpush1.bf16.msra.mxu0 0
        %5598 = vmatprep.subr.bf16.mxu0 0
        %5599 = vmatpush1.bf16.msra.mxu0 0
        %5600 = vmatprep.subr.bf16.mxu0 0
        %5601 = vmatpush1.bf16.msra.mxu0 0
        %5602 = vmatprep.subr.bf16.mxu0 0
        %5603 = vmatpush1.bf16.msra.mxu0 0
        %5604 = vmatprep.subr.bf16.mxu0 0
        %5605 = vmatpush1.bf16.msra.mxu0 0
        %5606 = vmatprep.mubr.bf16.mxu0 0
        %5607 = vmatmul.mubr.bf16.gmra.mrb[0].mxu0 %v5381
        %v5608 = vpop.f32.mrb[0].mxu0
        %v5609 = vadd.f32 0.0, %v5608
        %v5610 = vpop.f32.mrb[0].mxu0
        %v5611 = vadd.f32 0.0, %v5610
        %v5612 = vpop.f32.mrb[0].mxu0
        %v5613 = vpop.f32.mrb[0].mxu0
        %5614 = vdwg.mxu0
        %5615 = vmatprep.subr.bf16.mxu0 %v5513
        %5616 = vmatpush1.bf16.msra.mxu0 %v5512
        %5617 = vmatprep.subr.bf16.mxu0 %v5517
        %5618 = vmatpush1.bf16.msra.mxu0 %v5516
        %5619 = vmatprep.subr.bf16.mxu0 %v5521
        %5620 = vmatpush1.bf16.msra.mxu0 %v5520
        %5621 = vmatprep.subr.bf16.mxu0 %v5525
        %5622 = vmatpush1.bf16.msra.mxu0 %v5524
        %5623 = vmatprep.subr.bf16.mxu0 %v5529
        %5624 = vmatpush1.bf16.msra.mxu0 %v5528
        %5625 = vmatprep.subr.bf16.mxu0 %v5533
        %5626 = vmatpush1.bf16.msra.mxu0 %v5532
        %5627 = vmatprep.subr.bf16.mxu0 %v5537
        %5628 = vmatpush1.bf16.msra.mxu0 %v5536
        %5629 = vmatprep.subr.bf16.mxu0 %v5541
        %5630 = vmatpush1.bf16.msra.mxu0 %v5540
        %5631 = vmatprep.subr.bf16.mxu0 0
        %5632 = vmatpush1.bf16.msra.mxu0 0
        %5633 = vmatprep.subr.bf16.mxu0 0
        %5634 = vmatpush1.bf16.msra.mxu0 0
        %5635 = vmatprep.subr.bf16.mxu0 0
        %5636 = vmatpush1.bf16.msra.mxu0 0
        %5637 = vmatprep.subr.bf16.mxu0 0
        %5638 = vmatpush1.bf16.msra.mxu0 0
        %5639 = vmatprep.subr.bf16.mxu0 0
        %5640 = vmatpush1.bf16.msra.mxu0 0
        %5641 = vmatprep.subr.bf16.mxu0 0
        %5642 = vmatpush1.bf16.msra.mxu0 0
        %5643 = vmatprep.subr.bf16.mxu0 0
        %5644 = vmatpush1.bf16.msra.mxu0 0
        %5645 = vmatprep.subr.bf16.mxu0 0
        %5646 = vmatpush1.bf16.msra.mxu0 0
        %5647 = vmatprep.mubr.bf16.mxu0 0
        %5648 = vmatmul.mubr.bf16.gmra.mrb[0].mxu0 %v5381
        %v5649 = vpop.f32.mrb[0].mxu0
        %v5650 = vadd.f32 0.0, %v5649
        %v5651 = vpop.f32.mrb[0].mxu0
        %v5652 = vadd.f32 0.0, %v5651
        %v5653 = vpop.f32.mrb[0].mxu0
        %v5654 = vpop.f32.mrb[0].mxu0
        %5655 = vdwg.mxu0
        %v5656 = vadd.f32 %v5377, %v5609
        %v5657 = vadd.f32 %v5378, %v5611
        %v5658 = vadd.f32 %v5379, %v5650
        %v5659 = vadd.f32 %v5380, %v5652
        %v5660 = vmul.f32 %v5656, 0.5
        %v5661 = vmul.f32 %v5657, 0.5
        %v5662 = vmul.f32 %v5658, 0.5
        %v5663 = vtanh.pop %v5660
        %v5664 = vtanh.pop %v5661
        %v5665 = vtanh.pop %v5662
        %v5666 = vmul.f32 %v5663, 0.5
        %v5667 = vmul.f32 %v5664, 0.5
        %v5668 = vmul.f32 %v5665, 0.5
        %v5669 = vadd.f32 %v5666, 0.5
        %v5670 = vadd.f32 %v5667, 0.5
        %v5671 = vadd.f32 %v5668, 0.5
        %v5672 = vtanh.pop %v5659
        %v5673 = vmul.f32 %v5670, %v5372
        %v5674 = vmul.f32 %v5669, %v5672
        %v5675 = vadd.f32 %v5673, %v5674
        %v5676 = vtanh.pop %v5675
        %v5677 = vmul.f32 %v5671, %v5676
        %s5678 = scalar_lea.vmem %s315, 40 [#allocation10]
        %5679 = vst [vmem:[%s5678] sm:$0xff] %v5677
        %v5680 = vld [vmem:[%s2499] sm:$0xff]
        %v5681 = vld [vmem:[%s2499 + $0x8] sm:$0xff]
        %v5682 = vld [vmem:[%s2499 + $0x10] sm:$0xff]
        %v5683 = vld [vmem:[%s2499 + $0x18] sm:$0xff]
        %v5684 = vpack.c.bf16 %v5677, %v5677
        %v5685 = vld [vmem:[#allocation9] sm:$0xff]
        %v5686 = vld [vmem:[#allocation9 + $0x8] sm:$0xff]
        %v5687 = vld [vmem:[#allocation9 + $0x10] sm:$0xff]
        %v5688 = vld [vmem:[#allocation9 + $0x18] sm:$0xff]
        %v5689 = vld [vmem:[#allocation9 + $0x20] sm:$0xff]
        %v5690 = vld [vmem:[#allocation9 + $0x28] sm:$0xff]
        %v5691 = vld [vmem:[#allocation9 + $0x30] sm:$0xff]
        %v5692 = vld [vmem:[#allocation9 + $0x38] sm:$0xff]
        %v5693 = vld [vmem:[#allocation9 + $0x40] sm:$0xff]
        %v5694 = vld [vmem:[#allocation9 + $0x48] sm:$0xff]
        %v5695 = vld [vmem:[#allocation9 + $0x50] sm:$0xff]
        %v5696 = vld [vmem:[#allocation9 + $0x58] sm:$0xff]
        %v5697 = vld [vmem:[#allocation9 + $0x60] sm:$0xff]
        %v5698 = vld [vmem:[#allocation9 + $0x68] sm:$0xff]
        %v5699 = vld [vmem:[#allocation9 + $0x70] sm:$0xff]
        %v5700 = vld [vmem:[#allocation9 + $0x78] sm:$0xff]
        %v5701 = vld [vmem:[#allocation9 + $0x80] sm:$0xff]
        %v5702 = vld [vmem:[#allocation9 + $0x88] sm:$0xff]
        %v5703 = vld [vmem:[#allocation9 + $0x90] sm:$0xff]
        %v5704 = vld [vmem:[#allocation9 + $0x98] sm:$0xff]
        %v5705 = vld [vmem:[#allocation9 + $0xa0] sm:$0xff]
        %v5706 = vld [vmem:[#allocation9 + $0xa8] sm:$0xff]
        %v5707 = vld [vmem:[#allocation9 + $0xb0] sm:$0xff]
        %v5708 = vld [vmem:[#allocation9 + $0xb8] sm:$0xff]
        %v5709 = vld [vmem:[#allocation9 + $0xc0] sm:$0xff]
        %v5710 = vld [vmem:[#allocation9 + $0xc8] sm:$0xff]
        %v5711 = vld [vmem:[#allocation9 + $0xd0] sm:$0xff]
        %v5712 = vld [vmem:[#allocation9 + $0xd8] sm:$0xff]
        %v5713 = vld [vmem:[#allocation9 + $0xe0] sm:$0xff]
        %v5714 = vld [vmem:[#allocation9 + $0xe8] sm:$0xff]
        %v5715 = vld [vmem:[#allocation9 + $0xf0] sm:$0xff]
        %v5716 = vld [vmem:[#allocation9 + $0xf8] sm:$0xff]
        %v5749 = vunpack.c.l.b16 %v5685
        %v5750 = vunpack.c.h.b16 %v5685
        %v5751 = vunpack.c.l.b16 %v5686
        %v5752 = vunpack.c.h.b16 %v5686
        %v5753 = vunpack.c.l.b16 %v5687
        %v5754 = vunpack.c.h.b16 %v5687
        %v5755 = vunpack.c.l.b16 %v5688
        %v5756 = vunpack.c.h.b16 %v5688
        %v5757 = vunpack.c.l.b16 %v5689
        %v5758 = vunpack.c.h.b16 %v5689
        %v5759 = vunpack.c.l.b16 %v5690
        %v5760 = vunpack.c.h.b16 %v5690
        %v5761 = vunpack.c.l.b16 %v5691
        %v5762 = vunpack.c.h.b16 %v5691
        %v5763 = vunpack.c.l.b16 %v5692
        %v5764 = vunpack.c.h.b16 %v5692
        %v5765 = vunpack.c.l.b16 %v5693
        %v5766 = vunpack.c.h.b16 %v5693
        %v5767 = vunpack.c.l.b16 %v5694
        %v5768 = vunpack.c.h.b16 %v5694
        %v5769 = vunpack.c.l.b16 %v5695
        %v5770 = vunpack.c.h.b16 %v5695
        %v5771 = vunpack.c.l.b16 %v5696
        %v5772 = vunpack.c.h.b16 %v5696
        %v5773 = vunpack.c.l.b16 %v5697
        %v5774 = vunpack.c.h.b16 %v5697
        %v5775 = vunpack.c.l.b16 %v5698
        %v5776 = vunpack.c.h.b16 %v5698
        %v5777 = vunpack.c.l.b16 %v5699
        %v5778 = vunpack.c.h.b16 %v5699
        %v5779 = vunpack.c.l.b16 %v5700
        %v5780 = vunpack.c.h.b16 %v5700
        %v5781 = vunpack.c.l.b16 %v5701
        %v5782 = vunpack.c.h.b16 %v5701
        %v5783 = vunpack.c.l.b16 %v5702
        %v5784 = vunpack.c.h.b16 %v5702
        %v5785 = vunpack.c.l.b16 %v5703
        %v5786 = vunpack.c.h.b16 %v5703
        %v5787 = vunpack.c.l.b16 %v5704
        %v5788 = vunpack.c.h.b16 %v5704
        %v5789 = vunpack.c.l.b16 %v5705
        %v5790 = vunpack.c.h.b16 %v5705
        %v5791 = vunpack.c.l.b16 %v5706
        %v5792 = vunpack.c.h.b16 %v5706
        %v5793 = vunpack.c.l.b16 %v5707
        %v5794 = vunpack.c.h.b16 %v5707
        %v5795 = vunpack.c.l.b16 %v5708
        %v5796 = vunpack.c.h.b16 %v5708
        %v5797 = vunpack.c.l.b16 %v5709
        %v5798 = vunpack.c.h.b16 %v5709
        %v5799 = vunpack.c.l.b16 %v5710
        %v5800 = vunpack.c.h.b16 %v5710
        %v5801 = vunpack.c.l.b16 %v5711
        %v5802 = vunpack.c.h.b16 %v5711
        %v5803 = vunpack.c.l.b16 %v5712
        %v5804 = vunpack.c.h.b16 %v5712
        %v5805 = vunpack.c.l.b16 %v5713
        %v5806 = vunpack.c.h.b16 %v5713
        %v5807 = vunpack.c.l.b16 %v5714
        %v5808 = vunpack.c.h.b16 %v5714
        %v5809 = vunpack.c.l.b16 %v5715
        %v5810 = vunpack.c.h.b16 %v5715
        %v5811 = vunpack.c.l.b16 %v5716
        %v5812 = vunpack.c.h.b16 %v5716
        %v5813 = vpack.c.b16 %v5753, %v5749
        %v5814 = vpack.c.b16 %v5754, %v5750
        %v5815 = vpack.c.b16 %v5755, %v5751
        %v5816 = vpack.c.b16 %v5756, %v5752
        %v5817 = vpack.c.b16 %v5761, %v5757
        %v5818 = vpack.c.b16 %v5762, %v5758
        %v5819 = vpack.c.b16 %v5763, %v5759
        %v5820 = vpack.c.b16 %v5764, %v5760
        %v5821 = vpack.c.b16 %v5769, %v5765
        %v5822 = vpack.c.b16 %v5770, %v5766
        %v5823 = vpack.c.b16 %v5771, %v5767
        %v5824 = vpack.c.b16 %v5772, %v5768
        %v5825 = vpack.c.b16 %v5777, %v5773
        %v5826 = vpack.c.b16 %v5778, %v5774
        %v5827 = vpack.c.b16 %v5779, %v5775
        %v5828 = vpack.c.b16 %v5780, %v5776
        %v5829 = vpack.c.b16 %v5785, %v5781
        %v5830 = vpack.c.b16 %v5786, %v5782
        %v5831 = vpack.c.b16 %v5787, %v5783
        %v5832 = vpack.c.b16 %v5788, %v5784
        %v5833 = vpack.c.b16 %v5793, %v5789
        %v5834 = vpack.c.b16 %v5794, %v5790
        %v5835 = vpack.c.b16 %v5795, %v5791
        %v5836 = vpack.c.b16 %v5796, %v5792
        %v5837 = vpack.c.b16 %v5801, %v5797
        %v5838 = vpack.c.b16 %v5802, %v5798
        %v5839 = vpack.c.b16 %v5803, %v5799
        %v5840 = vpack.c.b16 %v5804, %v5800
        %v5841 = vpack.c.b16 %v5809, %v5805
        %v5842 = vpack.c.b16 %v5810, %v5806
        %v5843 = vpack.c.b16 %v5811, %v5807
        %v5844 = vpack.c.b16 %v5812, %v5808
        %5877 = vmatprep.subr.bf16.mxu0 %v5814
        %5878 = vmatpush1.bf16.msra.mxu0 %v5813
        %5879 = vmatprep.subr.bf16.mxu0 %v5818
        %5880 = vmatpush1.bf16.msra.mxu0 %v5817
        %5881 = vmatprep.subr.bf16.mxu0 %v5822
        %5882 = vmatpush1.bf16.msra.mxu0 %v5821
        %5883 = vmatprep.subr.bf16.mxu0 %v5826
        %5884 = vmatpush1.bf16.msra.mxu0 %v5825
        %5885 = vmatprep.subr.bf16.mxu0 %v5830
        %5886 = vmatpush1.bf16.msra.mxu0 %v5829
        %5887 = vmatprep.subr.bf16.mxu0 %v5834
        %5888 = vmatpush1.bf16.msra.mxu0 %v5833
        %5889 = vmatprep.subr.bf16.mxu0 %v5838
        %5890 = vmatpush1.bf16.msra.mxu0 %v5837
        %5891 = vmatprep.subr.bf16.mxu0 %v5842
        %5892 = vmatpush1.bf16.msra.mxu0 %v5841
        %5893 = vmatprep.subr.bf16.mxu0 0
        %5894 = vmatpush1.bf16.msra.mxu0 0
        %5895 = vmatprep.subr.bf16.mxu0 0
        %5896 = vmatpush1.bf16.msra.mxu0 0
        %5897 = vmatprep.subr.bf16.mxu0 0
        %5898 = vmatpush1.bf16.msra.mxu0 0
        %5899 = vmatprep.subr.bf16.mxu0 0
        %5900 = vmatpush1.bf16.msra.mxu0 0
        %5901 = vmatprep.subr.bf16.mxu0 0
        %5902 = vmatpush1.bf16.msra.mxu0 0
        %5903 = vmatprep.subr.bf16.mxu0 0
        %5904 = vmatpush1.bf16.msra.mxu0 0
        %5905 = vmatprep.subr.bf16.mxu0 0
        %5906 = vmatpush1.bf16.msra.mxu0 0
        %5907 = vmatprep.subr.bf16.mxu0 0
        %5908 = vmatpush1.bf16.msra.mxu0 0
        %5909 = vmatprep.mubr.bf16.mxu0 0
        %5910 = vmatmul.mubr.bf16.gmra.mrb[0].mxu0 %v5684
        %v5911 = vpop.f32.mrb[0].mxu0
        %v5912 = vadd.f32 0.0, %v5911
        %v5913 = vpop.f32.mrb[0].mxu0
        %v5914 = vadd.f32 0.0, %v5913
        %v5915 = vpop.f32.mrb[0].mxu0
        %v5916 = vpop.f32.mrb[0].mxu0
        %5917 = vdwg.mxu0
        %5918 = vmatprep.subr.bf16.mxu0 %v5816
        %5919 = vmatpush1.bf16.msra.mxu0 %v5815
        %5920 = vmatprep.subr.bf16.mxu0 %v5820
        %5921 = vmatpush1.bf16.msra.mxu0 %v5819
        %5922 = vmatprep.subr.bf16.mxu0 %v5824
        %5923 = vmatpush1.bf16.msra.mxu0 %v5823
        %5924 = vmatprep.subr.bf16.mxu0 %v5828
        %5925 = vmatpush1.bf16.msra.mxu0 %v5827
        %5926 = vmatprep.subr.bf16.mxu0 %v5832
        %5927 = vmatpush1.bf16.msra.mxu0 %v5831
        %5928 = vmatprep.subr.bf16.mxu0 %v5836
        %5929 = vmatpush1.bf16.msra.mxu0 %v5835
        %5930 = vmatprep.subr.bf16.mxu0 %v5840
        %5931 = vmatpush1.bf16.msra.mxu0 %v5839
        %5932 = vmatprep.subr.bf16.mxu0 %v5844
        %5933 = vmatpush1.bf16.msra.mxu0 %v5843
        %5934 = vmatprep.subr.bf16.mxu0 0
        %5935 = vmatpush1.bf16.msra.mxu0 0
        %5936 = vmatprep.subr.bf16.mxu0 0
        %5937 = vmatpush1.bf16.msra.mxu0 0
        %5938 = vmatprep.subr.bf16.mxu0 0
        %5939 = vmatpush1.bf16.msra.mxu0 0
        %5940 = vmatprep.subr.bf16.mxu0 0
        %5941 = vmatpush1.bf16.msra.mxu0 0
        %5942 = vmatprep.subr.bf16.mxu0 0
        %5943 = vmatpush1.bf16.msra.mxu0 0
        %5944 = vmatprep.subr.bf16.mxu0 0
        %5945 = vmatpush1.bf16.msra.mxu0 0
        %5946 = vmatprep.subr.bf16.mxu0 0
        %5947 = vmatpush1.bf16.msra.mxu0 0
        %5948 = vmatprep.subr.bf16.mxu0 0
        %5949 = vmatpush1.bf16.msra.mxu0 0
        %5950 = vmatprep.mubr.bf16.mxu0 0
        %5951 = vmatmul.mubr.bf16.gmra.mrb[0].mxu0 %v5684
        %v5952 = vpop.f32.mrb[0].mxu0
        %v5953 = vadd.f32 0.0, %v5952
        %v5954 = vpop.f32.mrb[0].mxu0
        %v5955 = vadd.f32 0.0, %v5954
        %v5956 = vpop.f32.mrb[0].mxu0
        %v5957 = vpop.f32.mrb[0].mxu0
        %5958 = vdwg.mxu0
        %v5959 = vadd.f32 %v5680, %v5912
        %v5960 = vadd.f32 %v5681, %v5914
        %v5961 = vadd.f32 %v5682, %v5953
        %v5962 = vadd.f32 %v5683, %v5955
        %v5963 = vmul.f32 %v5959, 0.5
        %v5964 = vmul.f32 %v5960, 0.5
        %v5965 = vmul.f32 %v5961, 0.5
        %v5966 = vtanh.pop %v5963
        %v5967 = vtanh.pop %v5964
        %v5968 = vtanh.pop %v5965
        %v5969 = vmul.f32 %v5966, 0.5
        %v5970 = vmul.f32 %v5967, 0.5
        %v5971 = vmul.f32 %v5968, 0.5
        %v5972 = vadd.f32 %v5969, 0.5
        %v5973 = vadd.f32 %v5970, 0.5
        %v5974 = vadd.f32 %v5971, 0.5
        %v5975 = vtanh.pop %v5962
        %v5976 = vmul.f32 %v5973, %v5675
        %v5977 = vmul.f32 %v5972, %v5975
        %v5978 = vadd.f32 %v5976, %v5977
        %v5979 = vtanh.pop %v5978
        %v5980 = vmul.f32 %v5974, %v5979
        %s5981 = scalar_lea.vmem %s315, 48 [#allocation10]
        %5982 = vst [vmem:[%s5981] sm:$0xff] %v5980
        %v5983 = vld [vmem:[%s2805] sm:$0xff]
        %v5984 = vld [vmem:[%s2805 + $0x8] sm:$0xff]
        %v5985 = vld [vmem:[%s2805 + $0x10] sm:$0xff]
        %v5986 = vld [vmem:[%s2805 + $0x18] sm:$0xff]
        %v5987 = vpack.c.bf16 %v5980, %v5980
        %v5988 = vld [vmem:[#allocation9] sm:$0xff]
        %v5989 = vld [vmem:[#allocation9 + $0x8] sm:$0xff]
        %v5990 = vld [vmem:[#allocation9 + $0x10] sm:$0xff]
        %v5991 = vld [vmem:[#allocation9 + $0x18] sm:$0xff]
        %v5992 = vld [vmem:[#allocation9 + $0x20] sm:$0xff]
        %v5993 = vld [vmem:[#allocation9 + $0x28] sm:$0xff]
        %v5994 = vld [vmem:[#allocation9 + $0x30] sm:$0xff]
        %v5995 = vld [vmem:[#allocation9 + $0x38] sm:$0xff]
        %v5996 = vld [vmem:[#allocation9 + $0x40] sm:$0xff]
        %v5997 = vld [vmem:[#allocation9 + $0x48] sm:$0xff]
        %v5998 = vld [vmem:[#allocation9 + $0x50] sm:$0xff]
        %v5999 = vld [vmem:[#allocation9 + $0x58] sm:$0xff]
        %v6000 = vld [vmem:[#allocation9 + $0x60] sm:$0xff]
        %v6001 = vld [vmem:[#allocation9 + $0x68] sm:$0xff]
        %v6002 = vld [vmem:[#allocation9 + $0x70] sm:$0xff]
        %v6003 = vld [vmem:[#allocation9 + $0x78] sm:$0xff]
        %v6004 = vld [vmem:[#allocation9 + $0x80] sm:$0xff]
        %v6005 = vld [vmem:[#allocation9 + $0x88] sm:$0xff]
        %v6006 = vld [vmem:[#allocation9 + $0x90] sm:$0xff]
        %v6007 = vld [vmem:[#allocation9 + $0x98] sm:$0xff]
        %v6008 = vld [vmem:[#allocation9 + $0xa0] sm:$0xff]
        %v6009 = vld [vmem:[#allocation9 + $0xa8] sm:$0xff]
        %v6010 = vld [vmem:[#allocation9 + $0xb0] sm:$0xff]
        %v6011 = vld [vmem:[#allocation9 + $0xb8] sm:$0xff]
        %v6012 = vld [vmem:[#allocation9 + $0xc0] sm:$0xff]
        %v6013 = vld [vmem:[#allocation9 + $0xc8] sm:$0xff]
        %v6014 = vld [vmem:[#allocation9 + $0xd0] sm:$0xff]
        %v6015 = vld [vmem:[#allocation9 + $0xd8] sm:$0xff]
        %v6016 = vld [vmem:[#allocation9 + $0xe0] sm:$0xff]
        %v6017 = vld [vmem:[#allocation9 + $0xe8] sm:$0xff]
        %v6018 = vld [vmem:[#allocation9 + $0xf0] sm:$0xff]
        %v6019 = vld [vmem:[#allocation9 + $0xf8] sm:$0xff]
        %v6052 = vunpack.c.l.b16 %v5988
        %v6053 = vunpack.c.h.b16 %v5988
        %v6054 = vunpack.c.l.b16 %v5989
        %v6055 = vunpack.c.h.b16 %v5989
        %v6056 = vunpack.c.l.b16 %v5990
        %v6057 = vunpack.c.h.b16 %v5990
        %v6058 = vunpack.c.l.b16 %v5991
        %v6059 = vunpack.c.h.b16 %v5991
        %v6060 = vunpack.c.l.b16 %v5992
        %v6061 = vunpack.c.h.b16 %v5992
        %v6062 = vunpack.c.l.b16 %v5993
        %v6063 = vunpack.c.h.b16 %v5993
        %v6064 = vunpack.c.l.b16 %v5994
        %v6065 = vunpack.c.h.b16 %v5994
        %v6066 = vunpack.c.l.b16 %v5995
        %v6067 = vunpack.c.h.b16 %v5995
        %v6068 = vunpack.c.l.b16 %v5996
        %v6069 = vunpack.c.h.b16 %v5996
        %v6070 = vunpack.c.l.b16 %v5997
        %v6071 = vunpack.c.h.b16 %v5997
        %v6072 = vunpack.c.l.b16 %v5998
        %v6073 = vunpack.c.h.b16 %v5998
        %v6074 = vunpack.c.l.b16 %v5999
        %v6075 = vunpack.c.h.b16 %v5999
        %v6076 = vunpack.c.l.b16 %v6000
        %v6077 = vunpack.c.h.b16 %v6000
        %v6078 = vunpack.c.l.b16 %v6001
        %v6079 = vunpack.c.h.b16 %v6001
        %v6080 = vunpack.c.l.b16 %v6002
        %v6081 = vunpack.c.h.b16 %v6002
        %v6082 = vunpack.c.l.b16 %v6003
        %v6083 = vunpack.c.h.b16 %v6003
        %v6084 = vunpack.c.l.b16 %v6004
        %v6085 = vunpack.c.h.b16 %v6004
        %v6086 = vunpack.c.l.b16 %v6005
        %v6087 = vunpack.c.h.b16 %v6005
        %v6088 = vunpack.c.l.b16 %v6006
        %v6089 = vunpack.c.h.b16 %v6006
        %v6090 = vunpack.c.l.b16 %v6007
        %v6091 = vunpack.c.h.b16 %v6007
        %v6092 = vunpack.c.l.b16 %v6008
        %v6093 = vunpack.c.h.b16 %v6008
        %v6094 = vunpack.c.l.b16 %v6009
        %v6095 = vunpack.c.h.b16 %v6009
        %v6096 = vunpack.c.l.b16 %v6010
        %v6097 = vunpack.c.h.b16 %v6010
        %v6098 = vunpack.c.l.b16 %v6011
        %v6099 = vunpack.c.h.b16 %v6011
        %v6100 = vunpack.c.l.b16 %v6012
        %v6101 = vunpack.c.h.b16 %v6012
        %v6102 = vunpack.c.l.b16 %v6013
        %v6103 = vunpack.c.h.b16 %v6013
        %v6104 = vunpack.c.l.b16 %v6014
        %v6105 = vunpack.c.h.b16 %v6014
        %v6106 = vunpack.c.l.b16 %v6015
        %v6107 = vunpack.c.h.b16 %v6015
        %v6108 = vunpack.c.l.b16 %v6016
        %v6109 = vunpack.c.h.b16 %v6016
        %v6110 = vunpack.c.l.b16 %v6017
        %v6111 = vunpack.c.h.b16 %v6017
        %v6112 = vunpack.c.l.b16 %v6018
        %v6113 = vunpack.c.h.b16 %v6018
        %v6114 = vunpack.c.l.b16 %v6019
        %v6115 = vunpack.c.h.b16 %v6019
        %v6116 = vpack.c.b16 %v6056, %v6052
        %v6117 = vpack.c.b16 %v6057, %v6053
        %v6118 = vpack.c.b16 %v6058, %v6054
        %v6119 = vpack.c.b16 %v6059, %v6055
        %v6120 = vpack.c.b16 %v6064, %v6060
        %v6121 = vpack.c.b16 %v6065, %v6061
        %v6122 = vpack.c.b16 %v6066, %v6062
        %v6123 = vpack.c.b16 %v6067, %v6063
        %v6124 = vpack.c.b16 %v6072, %v6068
        %v6125 = vpack.c.b16 %v6073, %v6069
        %v6126 = vpack.c.b16 %v6074, %v6070
        %v6127 = vpack.c.b16 %v6075, %v6071
        %v6128 = vpack.c.b16 %v6080, %v6076
        %v6129 = vpack.c.b16 %v6081, %v6077
        %v6130 = vpack.c.b16 %v6082, %v6078
        %v6131 = vpack.c.b16 %v6083, %v6079
        %v6132 = vpack.c.b16 %v6088, %v6084
        %v6133 = vpack.c.b16 %v6089, %v6085
        %v6134 = vpack.c.b16 %v6090, %v6086
        %v6135 = vpack.c.b16 %v6091, %v6087
        %v6136 = vpack.c.b16 %v6096, %v6092
        %v6137 = vpack.c.b16 %v6097, %v6093
        %v6138 = vpack.c.b16 %v6098, %v6094
        %v6139 = vpack.c.b16 %v6099, %v6095
        %v6140 = vpack.c.b16 %v6104, %v6100
        %v6141 = vpack.c.b16 %v6105, %v6101
        %v6142 = vpack.c.b16 %v6106, %v6102
        %v6143 = vpack.c.b16 %v6107, %v6103
        %v6144 = vpack.c.b16 %v6112, %v6108
        %v6145 = vpack.c.b16 %v6113, %v6109
        %v6146 = vpack.c.b16 %v6114, %v6110
        %v6147 = vpack.c.b16 %v6115, %v6111
        %6180 = vmatprep.subr.bf16.mxu0 %v6117
        %6181 = vmatpush1.bf16.msra.mxu0 %v6116
        %6182 = vmatprep.subr.bf16.mxu0 %v6121
        %6183 = vmatpush1.bf16.msra.mxu0 %v6120
        %6184 = vmatprep.subr.bf16.mxu0 %v6125
        %6185 = vmatpush1.bf16.msra.mxu0 %v6124
        %6186 = vmatprep.subr.bf16.mxu0 %v6129
        %6187 = vmatpush1.bf16.msra.mxu0 %v6128
        %6188 = vmatprep.subr.bf16.mxu0 %v6133
        %6189 = vmatpush1.bf16.msra.mxu0 %v6132
        %6190 = vmatprep.subr.bf16.mxu0 %v6137
        %6191 = vmatpush1.bf16.msra.mxu0 %v6136
        %6192 = vmatprep.subr.bf16.mxu0 %v6141
        %6193 = vmatpush1.bf16.msra.mxu0 %v6140
        %6194 = vmatprep.subr.bf16.mxu0 %v6145
        %6195 = vmatpush1.bf16.msra.mxu0 %v6144
        %6196 = vmatprep.subr.bf16.mxu0 0
        %6197 = vmatpush1.bf16.msra.mxu0 0
        %6198 = vmatprep.subr.bf16.mxu0 0
        %6199 = vmatpush1.bf16.msra.mxu0 0
        %6200 = vmatprep.subr.bf16.mxu0 0
        %6201 = vmatpush1.bf16.msra.mxu0 0
        %6202 = vmatprep.subr.bf16.mxu0 0
        %6203 = vmatpush1.bf16.msra.mxu0 0
        %6204 = vmatprep.subr.bf16.mxu0 0
        %6205 = vmatpush1.bf16.msra.mxu0 0
        %6206 = vmatprep.subr.bf16.mxu0 0
        %6207 = vmatpush1.bf16.msra.mxu0 0
        %6208 = vmatprep.subr.bf16.mxu0 0
        %6209 = vmatpush1.bf16.msra.mxu0 0
        %6210 = vmatprep.subr.bf16.mxu0 0
        %6211 = vmatpush1.bf16.msra.mxu0 0
        %6212 = vmatprep.mubr.bf16.mxu0 0
        %6213 = vmatmul.mubr.bf16.gmra.mrb[0].mxu0 %v5987
        %v6214 = vpop.f32.mrb[0].mxu0
        %v6215 = vadd.f32 0.0, %v6214
        %v6216 = vpop.f32.mrb[0].mxu0
        %v6217 = vadd.f32 0.0, %v6216
        %v6218 = vpop.f32.mrb[0].mxu0
        %v6219 = vpop.f32.mrb[0].mxu0
        %6220 = vdwg.mxu0
        %6221 = vmatprep.subr.bf16.mxu0 %v6119
        %6222 = vmatpush1.bf16.msra.mxu0 %v6118
        %6223 = vmatprep.subr.bf16.mxu0 %v6123
        %6224 = vmatpush1.bf16.msra.mxu0 %v6122
        %6225 = vmatprep.subr.bf16.mxu0 %v6127
        %6226 = vmatpush1.bf16.msra.mxu0 %v6126
        %6227 = vmatprep.subr.bf16.mxu0 %v6131
        %6228 = vmatpush1.bf16.msra.mxu0 %v6130
        %6229 = vmatprep.subr.bf16.mxu0 %v6135
        %6230 = vmatpush1.bf16.msra.mxu0 %v6134
        %6231 = vmatprep.subr.bf16.mxu0 %v6139
        %6232 = vmatpush1.bf16.msra.mxu0 %v6138
        %6233 = vmatprep.subr.bf16.mxu0 %v6143
        %6234 = vmatpush1.bf16.msra.mxu0 %v6142
        %6235 = vmatprep.subr.bf16.mxu0 %v6147
        %6236 = vmatpush1.bf16.msra.mxu0 %v6146
        %6237 = vmatprep.subr.bf16.mxu0 0
        %6238 = vmatpush1.bf16.msra.mxu0 0
        %6239 = vmatprep.subr.bf16.mxu0 0
        %6240 = vmatpush1.bf16.msra.mxu0 0
        %6241 = vmatprep.subr.bf16.mxu0 0
        %6242 = vmatpush1.bf16.msra.mxu0 0
        %6243 = vmatprep.subr.bf16.mxu0 0
        %6244 = vmatpush1.bf16.msra.mxu0 0
        %6245 = vmatprep.subr.bf16.mxu0 0
        %6246 = vmatpush1.bf16.msra.mxu0 0
        %6247 = vmatprep.subr.bf16.mxu0 0
        %6248 = vmatpush1.bf16.msra.mxu0 0
        %6249 = vmatprep.subr.bf16.mxu0 0
        %6250 = vmatpush1.bf16.msra.mxu0 0
        %6251 = vmatprep.subr.bf16.mxu0 0
        %6252 = vmatpush1.bf16.msra.mxu0 0
        %6253 = vmatprep.mubr.bf16.mxu0 0
        %6254 = vmatmul.mubr.bf16.gmra.mrb[0].mxu0 %v5987
        %v6255 = vpop.f32.mrb[0].mxu0
        %v6256 = vadd.f32 0.0, %v6255
        %v6257 = vpop.f32.mrb[0].mxu0
        %v6258 = vadd.f32 0.0, %v6257
        %v6259 = vpop.f32.mrb[0].mxu0
        %v6260 = vpop.f32.mrb[0].mxu0
        %6261 = vdwg.mxu0
        %v6262 = vadd.f32 %v5983, %v6215
        %v6263 = vadd.f32 %v5984, %v6217
        %v6264 = vadd.f32 %v5985, %v6256
        %v6265 = vadd.f32 %v5986, %v6258
        %v6266 = vmul.f32 %v6262, 0.5
        %v6267 = vmul.f32 %v6263, 0.5
        %v6268 = vmul.f32 %v6264, 0.5
        %v6269 = vtanh.pop %v6266
        %v6270 = vtanh.pop %v6267
        %v6271 = vtanh.pop %v6268
        %v6272 = vmul.f32 %v6269, 0.5
        %v6273 = vmul.f32 %v6270, 0.5
        %v6274 = vmul.f32 %v6271, 0.5
        %v6275 = vadd.f32 %v6272, 0.5
        %v6276 = vadd.f32 %v6273, 0.5
        %v6277 = vadd.f32 %v6274, 0.5
        %v6278 = vtanh.pop %v6265
        %v6279 = vmul.f32 %v6276, %v5978
        %v6280 = vmul.f32 %v6275, %v6278
        %v6281 = vadd.f32 %v6279, %v6280
        %v6282 = vtanh.pop %v6281
        %v6283 = vmul.f32 %v6277, %v6282
        %s6284 = scalar_lea.vmem %s315, 56 [#allocation10]
        %6285 = vst [vmem:[%s6284] sm:$0xff] %v6283
        %v6286 = vld [vmem:[%s3111] sm:$0xff]
        %v6287 = vld [vmem:[%s3111 + $0x8] sm:$0xff]
        %v6288 = vld [vmem:[%s3111 + $0x10] sm:$0xff]
        %v6289 = vld [vmem:[%s3111 + $0x18] sm:$0xff]
        %v6290 = vpack.c.bf16 %v6283, %v6283
        %v6291 = vld [vmem:[#allocation9] sm:$0xff]
        %v6292 = vld [vmem:[#allocation9 + $0x8] sm:$0xff]
        %v6293 = vld [vmem:[#allocation9 + $0x10] sm:$0xff]
        %v6294 = vld [vmem:[#allocation9 + $0x18] sm:$0xff]
        %v6295 = vld [vmem:[#allocation9 + $0x20] sm:$0xff]
        %v6296 = vld [vmem:[#allocation9 + $0x28] sm:$0xff]
        %v6297 = vld [vmem:[#allocation9 + $0x30] sm:$0xff]
        %v6298 = vld [vmem:[#allocation9 + $0x38] sm:$0xff]
        %v6299 = vld [vmem:[#allocation9 + $0x40] sm:$0xff]
        %v6300 = vld [vmem:[#allocation9 + $0x48] sm:$0xff]
        %v6301 = vld [vmem:[#allocation9 + $0x50] sm:$0xff]
        %v6302 = vld [vmem:[#allocation9 + $0x58] sm:$0xff]
        %v6303 = vld [vmem:[#allocation9 + $0x60] sm:$0xff]
        %v6304 = vld [vmem:[#allocation9 + $0x68] sm:$0xff]
        %v6305 = vld [vmem:[#allocation9 + $0x70] sm:$0xff]
        %v6306 = vld [vmem:[#allocation9 + $0x78] sm:$0xff]
        %v6307 = vld [vmem:[#allocation9 + $0x80] sm:$0xff]
        %v6308 = vld [vmem:[#allocation9 + $0x88] sm:$0xff]
        %v6309 = vld [vmem:[#allocation9 + $0x90] sm:$0xff]
        %v6310 = vld [vmem:[#allocation9 + $0x98] sm:$0xff]
        %v6311 = vld [vmem:[#allocation9 + $0xa0] sm:$0xff]
        %v6312 = vld [vmem:[#allocation9 + $0xa8] sm:$0xff]
        %v6313 = vld [vmem:[#allocation9 + $0xb0] sm:$0xff]
        %v6314 = vld [vmem:[#allocation9 + $0xb8] sm:$0xff]
        %v6315 = vld [vmem:[#allocation9 + $0xc0] sm:$0xff]
        %v6316 = vld [vmem:[#allocation9 + $0xc8] sm:$0xff]
        %v6317 = vld [vmem:[#allocation9 + $0xd0] sm:$0xff]
        %v6318 = vld [vmem:[#allocation9 + $0xd8] sm:$0xff]
        %v6319 = vld [vmem:[#allocation9 + $0xe0] sm:$0xff]
        %v6320 = vld [vmem:[#allocation9 + $0xe8] sm:$0xff]
        %v6321 = vld [vmem:[#allocation9 + $0xf0] sm:$0xff]
        %v6322 = vld [vmem:[#allocation9 + $0xf8] sm:$0xff]
        %v6355 = vunpack.c.l.b16 %v6291
        %v6356 = vunpack.c.h.b16 %v6291
        %v6357 = vunpack.c.l.b16 %v6292
        %v6358 = vunpack.c.h.b16 %v6292
        %v6359 = vunpack.c.l.b16 %v6293
        %v6360 = vunpack.c.h.b16 %v6293
        %v6361 = vunpack.c.l.b16 %v6294
        %v6362 = vunpack.c.h.b16 %v6294
        %v6363 = vunpack.c.l.b16 %v6295
        %v6364 = vunpack.c.h.b16 %v6295
        %v6365 = vunpack.c.l.b16 %v6296
        %v6366 = vunpack.c.h.b16 %v6296
        %v6367 = vunpack.c.l.b16 %v6297
        %v6368 = vunpack.c.h.b16 %v6297
        %v6369 = vunpack.c.l.b16 %v6298
        %v6370 = vunpack.c.h.b16 %v6298
        %v6371 = vunpack.c.l.b16 %v6299
        %v6372 = vunpack.c.h.b16 %v6299
        %v6373 = vunpack.c.l.b16 %v6300
        %v6374 = vunpack.c.h.b16 %v6300
        %v6375 = vunpack.c.l.b16 %v6301
        %v6376 = vunpack.c.h.b16 %v6301
        %v6377 = vunpack.c.l.b16 %v6302
        %v6378 = vunpack.c.h.b16 %v6302
        %v6379 = vunpack.c.l.b16 %v6303
        %v6380 = vunpack.c.h.b16 %v6303
        %v6381 = vunpack.c.l.b16 %v6304
        %v6382 = vunpack.c.h.b16 %v6304
        %v6383 = vunpack.c.l.b16 %v6305
        %v6384 = vunpack.c.h.b16 %v6305
        %v6385 = vunpack.c.l.b16 %v6306
        %v6386 = vunpack.c.h.b16 %v6306
        %v6387 = vunpack.c.l.b16 %v6307
        %v6388 = vunpack.c.h.b16 %v6307
        %v6389 = vunpack.c.l.b16 %v6308
        %v6390 = vunpack.c.h.b16 %v6308
        %v6391 = vunpack.c.l.b16 %v6309
        %v6392 = vunpack.c.h.b16 %v6309
        %v6393 = vunpack.c.l.b16 %v6310
        %v6394 = vunpack.c.h.b16 %v6310
        %v6395 = vunpack.c.l.b16 %v6311
        %v6396 = vunpack.c.h.b16 %v6311
        %v6397 = vunpack.c.l.b16 %v6312
        %v6398 = vunpack.c.h.b16 %v6312
        %v6399 = vunpack.c.l.b16 %v6313
        %v6400 = vunpack.c.h.b16 %v6313
        %v6401 = vunpack.c.l.b16 %v6314
        %v6402 = vunpack.c.h.b16 %v6314
        %v6403 = vunpack.c.l.b16 %v6315
        %v6404 = vunpack.c.h.b16 %v6315
        %v6405 = vunpack.c.l.b16 %v6316
        %v6406 = vunpack.c.h.b16 %v6316
        %v6407 = vunpack.c.l.b16 %v6317
        %v6408 = vunpack.c.h.b16 %v6317
        %v6409 = vunpack.c.l.b16 %v6318
        %v6410 = vunpack.c.h.b16 %v6318
        %v6411 = vunpack.c.l.b16 %v6319
        %v6412 = vunpack.c.h.b16 %v6319
        %v6413 = vunpack.c.l.b16 %v6320
        %v6414 = vunpack.c.h.b16 %v6320
        %v6415 = vunpack.c.l.b16 %v6321
        %v6416 = vunpack.c.h.b16 %v6321
        %v6417 = vunpack.c.l.b16 %v6322
        %v6418 = vunpack.c.h.b16 %v6322
        %v6419 = vpack.c.b16 %v6359, %v6355
        %v6420 = vpack.c.b16 %v6360, %v6356
        %v6421 = vpack.c.b16 %v6361, %v6357
        %v6422 = vpack.c.b16 %v6362, %v6358
        %v6423 = vpack.c.b16 %v6367, %v6363
        %v6424 = vpack.c.b16 %v6368, %v6364
        %v6425 = vpack.c.b16 %v6369, %v6365
        %v6426 = vpack.c.b16 %v6370, %v6366
        %v6427 = vpack.c.b16 %v6375, %v6371
        %v6428 = vpack.c.b16 %v6376, %v6372
        %v6429 = vpack.c.b16 %v6377, %v6373
        %v6430 = vpack.c.b16 %v6378, %v6374
        %v6431 = vpack.c.b16 %v6383, %v6379
        %v6432 = vpack.c.b16 %v6384, %v6380
        %v6433 = vpack.c.b16 %v6385, %v6381
        %v6434 = vpack.c.b16 %v6386, %v6382
        %v6435 = vpack.c.b16 %v6391, %v6387
        %v6436 = vpack.c.b16 %v6392, %v6388
        %v6437 = vpack.c.b16 %v6393, %v6389
        %v6438 = vpack.c.b16 %v6394, %v6390
        %v6439 = vpack.c.b16 %v6399, %v6395
        %v6440 = vpack.c.b16 %v6400, %v6396
        %v6441 = vpack.c.b16 %v6401, %v6397
        %v6442 = vpack.c.b16 %v6402, %v6398
        %v6443 = vpack.c.b16 %v6407, %v6403
        %v6444 = vpack.c.b16 %v6408, %v6404
        %v6445 = vpack.c.b16 %v6409, %v6405
        %v6446 = vpack.c.b16 %v6410, %v6406
        %v6447 = vpack.c.b16 %v6415, %v6411
        %v6448 = vpack.c.b16 %v6416, %v6412
        %v6449 = vpack.c.b16 %v6417, %v6413
        %v6450 = vpack.c.b16 %v6418, %v6414
        %6483 = vmatprep.subr.bf16.mxu0 %v6420
        %6484 = vmatpush1.bf16.msra.mxu0 %v6419
        %6485 = vmatprep.subr.bf16.mxu0 %v6424
        %6486 = vmatpush1.bf16.msra.mxu0 %v6423
        %6487 = vmatprep.subr.bf16.mxu0 %v6428
        %6488 = vmatpush1.bf16.msra.mxu0 %v6427
        %6489 = vmatprep.subr.bf16.mxu0 %v6432
        %6490 = vmatpush1.bf16.msra.mxu0 %v6431
        %6491 = vmatprep.subr.bf16.mxu0 %v6436
        %6492 = vmatpush1.bf16.msra.mxu0 %v6435
        %6493 = vmatprep.subr.bf16.mxu0 %v6440
        %6494 = vmatpush1.bf16.msra.mxu0 %v6439
        %6495 = vmatprep.subr.bf16.mxu0 %v6444
        %6496 = vmatpush1.bf16.msra.mxu0 %v6443
        %6497 = vmatprep.subr.bf16.mxu0 %v6448
        %6498 = vmatpush1.bf16.msra.mxu0 %v6447
        %6499 = vmatprep.subr.bf16.mxu0 0
        %6500 = vmatpush1.bf16.msra.mxu0 0
        %6501 = vmatprep.subr.bf16.mxu0 0
        %6502 = vmatpush1.bf16.msra.mxu0 0
        %6503 = vmatprep.subr.bf16.mxu0 0
        %6504 = vmatpush1.bf16.msra.mxu0 0
        %6505 = vmatprep.subr.bf16.mxu0 0
        %6506 = vmatpush1.bf16.msra.mxu0 0
        %6507 = vmatprep.subr.bf16.mxu0 0
        %6508 = vmatpush1.bf16.msra.mxu0 0
        %6509 = vmatprep.subr.bf16.mxu0 0
        %6510 = vmatpush1.bf16.msra.mxu0 0
        %6511 = vmatprep.subr.bf16.mxu0 0
        %6512 = vmatpush1.bf16.msra.mxu0 0
        %6513 = vmatprep.subr.bf16.mxu0 0
        %6514 = vmatpush1.bf16.msra.mxu0 0
        %6515 = vmatprep.mubr.bf16.mxu0 0
        %6516 = vmatmul.mubr.bf16.gmra.mrb[0].mxu0 %v6290
        %v6517 = vpop.f32.mrb[0].mxu0
        %v6518 = vadd.f32 0.0, %v6517
        %v6519 = vpop.f32.mrb[0].mxu0
        %v6520 = vadd.f32 0.0, %v6519
        %v6521 = vpop.f32.mrb[0].mxu0
        %v6522 = vpop.f32.mrb[0].mxu0
        %6523 = vdwg.mxu0
        %6524 = vmatprep.subr.bf16.mxu0 %v6422
        %6525 = vmatpush1.bf16.msra.mxu0 %v6421
        %6526 = vmatprep.subr.bf16.mxu0 %v6426
        %6527 = vmatpush1.bf16.msra.mxu0 %v6425
        %6528 = vmatprep.subr.bf16.mxu0 %v6430
        %6529 = vmatpush1.bf16.msra.mxu0 %v6429
        %6530 = vmatprep.subr.bf16.mxu0 %v6434
        %6531 = vmatpush1.bf16.msra.mxu0 %v6433
        %6532 = vmatprep.subr.bf16.mxu0 %v6438
        %6533 = vmatpush1.bf16.msra.mxu0 %v6437
        %6534 = vmatprep.subr.bf16.mxu0 %v6442
        %6535 = vmatpush1.bf16.msra.mxu0 %v6441
        %6536 = vmatprep.subr.bf16.mxu0 %v6446
        %6537 = vmatpush1.bf16.msra.mxu0 %v6445
        %6538 = vmatprep.subr.bf16.mxu0 %v6450
        %6539 = vmatpush1.bf16.msra.mxu0 %v6449
        %6540 = vmatprep.subr.bf16.mxu0 0
        %6541 = vmatpush1.bf16.msra.mxu0 0
        %6542 = vmatprep.subr.bf16.mxu0 0
        %6543 = vmatpush1.bf16.msra.mxu0 0
        %6544 = vmatprep.subr.bf16.mxu0 0
        %6545 = vmatpush1.bf16.msra.mxu0 0
        %6546 = vmatprep.subr.bf16.mxu0 0
        %6547 = vmatpush1.bf16.msra.mxu0 0
        %6548 = vmatprep.subr.bf16.mxu0 0
        %6549 = vmatpush1.bf16.msra.mxu0 0
        %6550 = vmatprep.subr.bf16.mxu0 0
        %6551 = vmatpush1.bf16.msra.mxu0 0
        %6552 = vmatprep.subr.bf16.mxu0 0
        %6553 = vmatpush1.bf16.msra.mxu0 0
        %6554 = vmatprep.subr.bf16.mxu0 0
        %6555 = vmatpush1.bf16.msra.mxu0 0
        %6556 = vmatprep.mubr.bf16.mxu0 0
        %6557 = vmatmul.mubr.bf16.gmra.mrb[0].mxu0 %v6290
        %v6558 = vpop.f32.mrb[0].mxu0
        %v6559 = vadd.f32 0.0, %v6558
        %v6560 = vpop.f32.mrb[0].mxu0
        %v6561 = vadd.f32 0.0, %v6560
        %v6562 = vpop.f32.mrb[0].mxu0
        %v6563 = vpop.f32.mrb[0].mxu0
        %6564 = vdwg.mxu0
        %v6565 = vadd.f32 %v6286, %v6518
        %v6566 = vadd.f32 %v6287, %v6520
        %v6567 = vadd.f32 %v6288, %v6559
        %v6568 = vadd.f32 %v6289, %v6561
        %v6569 = vmul.f32 %v6565, 0.5
        %v6570 = vmul.f32 %v6566, 0.5
        %v6571 = vmul.f32 %v6567, 0.5
        %v6572 = vtanh.pop %v6569
        %v6573 = vtanh.pop %v6570
        %v6574 = vtanh.pop %v6571
        %v6575 = vmul.f32 %v6572, 0.5
        %v6576 = vmul.f32 %v6573, 0.5
        %v6577 = vmul.f32 %v6574, 0.5
        %v6578 = vadd.f32 %v6575, 0.5
        %v6579 = vadd.f32 %v6576, 0.5
        %v6580 = vadd.f32 %v6577, 0.5
        %v6581 = vtanh.pop %v6568
        %v6582 = vmul.f32 %v6579, %v6281
        %v6583 = vmul.f32 %v6578, %v6581
        %v6584 = vadd.f32 %v6582, %v6583
        %v6585 = vtanh.pop %v6584
        %v6586 = vmul.f32 %v6580, %v6585
        %s6587 = scalar_lea.vmem %s315, 64 [#allocation10]
        %6588 = vst [vmem:[%s6587] sm:$0xff] %v6586
        %s6589 = sand.u32 %s183, 1
        %s6590 = scalar_lea.sflag [#allocation6], %s6589
        %s6591 = sand.u32 %s183, 1
        %s6592 = smul.addr %s6591, 72
        %s6593 = scalar_lea.vmem [#allocation10], %s6592
        // Predicated region
        $region61: #{tpu_custom_call.1} parent=47 // pred_check
          %p6594 = pneg %p193
        $region62: #{tpu_custom_call.1} parent=47 // pred_check_branch
          %6596 = sbr.rel (%p6594) target = $region64
        $region63: #{tpu_custom_call.1} parent=47 // pred_region
          %s6598 = ssub.s32 1152, 1152
          %6599 = vsyncadd %s6590, %s6598
          %s6600 = smul.addr %s23, 9
          %s6601 = smul.addr %s6600, 128
          %s6602 = scalar_lea.hbm %s7, %s6601
          %s6603 = sshll.u32 %s6593, 4
          %s6604 = int_to_ptr.vmem [resolvable:$true] %s6603
          %6609 = dma.vmem_to_hbm [thread:$0]  %s6604, 1152, %s6602, %s6590, 128, 128, 8
        $region64: #{tpu_custom_call.1} parent=47 // pred_fallthru
          _
      $region48: #{tpu_custom_call.1} parent=5 // pred_fallthru
        _
      %p6610 = scmp.le.s32.totalorder 2, %s18
      // Predicated region
      $region65: #{tpu_custom_call.1} parent=5 // pred_check
        %p6611 = pneg %p6610
      $region66: #{tpu_custom_call.1} parent=5 // pred_check_branch
        %6613 = sbr.rel (%p6611) target = $region68
      $region67: #{tpu_custom_call.1} parent=5 // pred_region
        %s6614 = ssub.s32 %s18, 2
        // Predicated region
        $region69: #{tpu_custom_call.1} parent=67 // pred_check
          %p6615 = pneg %p199
        $region70: #{tpu_custom_call.1} parent=67 // pred_check_branch
          %6617 = sbr.rel (%p6615) target = $region72
        $region71: #{tpu_custom_call.1} parent=67 // pred_region
          %s6618 = sand.u32 %s184, 1
          %s6619 = scalar_lea.sflag [#allocation6], %s6618
          %s6620 = sand.u32 %s184, 1
          %s6621 = smul.addr %s6620, 72
          %s6622 = scalar_lea.vmem [#allocation10], %s6621
          %6623 = dma.done %s6619, 1152
        $region72: #{tpu_custom_call.1} parent=67 // pred_fallthru
          _
      $region68: #{tpu_custom_call.1} parent=5 // pred_fallthru
        _
    $region6: #{tpu_custom_call.1} parent=1 // loop_footer
      %s22 = sadd.s32 1, %s18
    $region7: #{tpu_custom_call.1} parent=1 // loop_footer_branch
      %17 = sbr.rel target = $region3
    $region8: #{tpu_custom_call.1} parent=1 // loop_exit
      _
    %6624 = vsyncpa [#allocation5], 1
    %s6625 = scalar_lea.sflag [#allocation5], 1
    %6626 = vsyncpa %s6625, 1
    %6627 = vsyncpa [#allocation8], 1
    %6628 = vsyncpa [#allocation6], 1
    %s6629 = scalar_lea.sflag [#allocation6], 1
    %6630 = vsyncpa %s6629, 1

</llo_original>
